<compile_context>
chip_gen: v5e
topology: v5e:2x2
jax: 0.10.0
libtpu: 0.0.40
codegen_flags: <defaults>
</compile_context>

<pallas_src>
import functools

import jax
import jax.numpy as jnp
from jax import lax
from jax.experimental import pallas as pl
from jax.experimental.pallas import tpu as pltpu


# ---------------------------------------------------------------------------
# TODO(synk): phi_s* and MM() are referenced via eval() in the original repo but their
# definitions are not in the provided source; standard half-quadratic choices are used
# (pseudo-Huber derivative for the convex penalty, Cauchy derivative for the non-convex
# one, batch-averaged majorant A = HtH + lamda * L^T diag(omega(Lx)) L for MM()).
# ---------------------------------------------------------------------------


def _fused_kernel(num_layers, ns_iters, delta_cvx, delta_ncvx, lamda_cvx, lamda_ncvx,
                  x_ref, hty_ref, v1t_ref, v2t_ref, l_ref, v3t_ref, hth_ref, out_ref):
    """All layers of myModel.forward (mode == 'MM') in one kernel invocation.

    Shapes (Npad = feature dim padded to a multiple of 128 lanes):
      x_ref, hty_ref : (B, Npad)
      v1t_ref        : (Npad, Npad)   = pad(V1^T)
      v2t_ref        : (Npad, Npad)   = pad(L^T)       (V2 == L)
      l_ref          : (Npad, Npad)   = pad(L)
      v3t_ref        : (3*Npad, Npad) = [pad(V3[:, :N]^T); pad(V3[:, N:2N]^T); pad(V3[:, 2N:]^T)]
      hth_ref        : (Npad, Npad)   = pad(Ht H)
      out_ref        : (B, Npad)
    """
    d2_cvx = delta_cvx * delta_cvx
    d2_ncvx = delta_ncvx * delta_ncvx
    inv_b = 1.0 / x_ref.shape[0]          # batch size for the MM batch average

    def layer_body(_, x):
        # ---- V2(x) and the penalty derivatives phi_s(u, delta) -------------------
        u = jnp.dot(x, v2t_ref[...], preferred_element_type=jnp.float32)
        r_cvx = lax.rsqrt(u * u + d2_cvx)                       # EUP rsqrt
        r_ncvx = pl.reciprocal(u * u + d2_ncvx, approx=True)    # EUP reciprocal
        sb_cvx = u * r_cvx        # pseudo-Huber derivative (convex penalty)
        sb_ncvx = u * r_ncvx      # Cauchy derivative (non-convex penalty)

        # ---- first_branch = V1(x) - Ht*y ------------------------------------------
        fb = jnp.dot(x, v1t_ref[...], preferred_element_type=jnp.float32) - hty_ref[...]

        # ---- glob = V3([fb | sb_cvx | sb_ncvx]) : one lane-dense MXU matmul --------
        concat = jnp.concatenate([fb, sb_cvx, sb_ncvx], axis=-1)       # (B, 3*Npad)
        glob = jnp.dot(concat, v3t_ref[...], preferred_element_type=jnp.float32)

        # ---- MM majorant  A = HtH + L^T diag(lam_cvx*w_cvx + lam_ncvx*w_ncvx) L ----
        # (omega(u) = phi'(u)/u, batch-averaged; stand-in for the repo's MM()).
        wmix = (lamda_cvx * jnp.sum(r_cvx, axis=0, keepdims=True)
                + lamda_ncvx * jnp.sum(r_ncvx, axis=0, keepdims=True)) * inv_b
        A = hth_ref[...] + jnp.dot(v2t_ref[...] * wmix, l_ref[...],
                                   preferred_element_type=jnp.float32)

        # ---- inv_A via Newton-Schulz: X_{k+1} = 2 X_k - X_k A X_k  (pure MXU) ------
        # Init X0 = A / (||A||_1 * ||A||_inf) guarantees convergence; since the
        # padded rows/cols of A are exactly zero, the iteration converges to the
        # pseudo-inverse and the padded lanes stay exactly zero.
        n1 = jnp.max(jnp.sum(jnp.abs(A), axis=0, keepdims=True))
        ninf = jnp.max(jnp.sum(jnp.abs(A), axis=1, keepdims=True))
        x0_ns = A * (1.0 / (n1 * ninf))                  # A is symmetric: A^T == A

        def ns_body(_, xk):
            ax = jnp.dot(A, xk, preferred_element_type=jnp.float32)
            return 2.0 * xk - jnp.dot(xk, ax, preferred_element_type=jnp.float32)

        inv_a = lax.fori_loop(0, ns_iters, ns_body, x0_ns, unroll=True)

        # ---- 'mat' layer (inv_A symmetric => equals glob @ inv_A^T) + residual -----
        glob = jnp.dot(glob, inv_a, preferred_element_type=jnp.float32)
        return x - glob

    out_ref[...] = lax.fori_loop(0, num_layers, layer_body, x_ref[...], unroll=True)


def _pad_to(a, rows, cols):
    out = jnp.zeros((rows, cols), a.dtype)
    return out.at[: a.shape[0], : a.shape[1]].set(a)


def my_model_forward(x, xdeg, xtrue, Ht_x_degraded, *,
                     number_layers, V1, V2, V3, HtH,
                     delta_s_cvx, delta_s_ncvx, lamda_cvx, lamda_ncvx,
                     ns_iters=16):
    """myModel.forward, mode == 'MM', as a single fused Pallas call."""
    del xdeg, xtrue  # not used by the 'MM' branch of Iter.forward
    B, N = x.shape
    npad = ((N + 127) // 128) * 128      # lane-dense feature dimension

    # Layer-invariant weight prep, hoisted out of the (now in-kernel) layer loop.
    v1t = _pad_to(V1.T, npad, npad)
    v2t = _pad_to(V2.T, npad, npad)          # L^T
    l_p = _pad_to(V2, npad, npad)            # L
    hth = _pad_to(HtH, npad, npad)
    v3t = jnp.concatenate(
        [_pad_to(V3[:, :N].T, npad, npad),         # block acting on first_branch
         _pad_to(V3[:, N:2 * N].T, npad, npad),    # block acting on phi_cvx(V2 x)
         _pad_to(V3[:, 2 * N:].T, npad, npad)],    # block acting on phi_ncvx(V2 x)
        axis=0)                                    # (3*npad, npad)
    x_p = _pad_to(x, B, npad)
    hty_p = _pad_to(Ht_x_degraded, B, npad)

    kernel = functools.partial(
        _fused_kernel, int(number_layers), int(ns_iters),
        float(delta_s_cvx), float(delta_s_ncvx), float(lamda_cvx), float(lamda_ncvx))

    vmem = lambda: pl.BlockSpec(memory_space=pltpu.MemorySpace.VMEM)
    # TODO(synk): for realistic (large-N) operators replace the whole-array VMEM specs
    # with a K-tiled grid + f32 VMEM accumulator so the kernel fits v7x's 64 MiB VMEM.
    out_p = pl.pallas_call(
        kernel,
        out_shape=jax.ShapeDtypeStruct((B, npad), jnp.float32),
        in_specs=[vmem() for _ in range(7)],
        out_specs=vmem(),
    )(x_p, hty_p, v1t, v2t, l_p, v3t, hth)
    return out_p[:, :N]


# ---------------------------------------------------------------------------
# Pure-JAX reference of the same math (exact inverse) for a sanity check.
# ---------------------------------------------------------------------------
def _reference_forward(x, hty, V1, V2, V3, HtH, num_layers,
                       d_cvx, d_ncvx, lam_cvx, lam_ncvx):
    L = V2
    for _ in range(num_layers):
        u = x @ V2.T
        w_cvx = jnp.mean(1.0 / jnp.sqrt(u * u + d_cvx ** 2), axis=0)
        w_ncvx = jnp.mean(1.0 / (u * u + d_ncvx ** 2), axis=0)
        A = (HtH
             + lam_cvx * (L.T * w_cvx[None, :]) @ L
             + lam_ncvx * (L.T * w_ncvx[None, :]) @ L)
        inv_A = jnp.linalg.inv(A)
        fb = x @ V1.T - hty
        sb_cvx = u / jnp.sqrt(u * u + d_cvx ** 2)
        sb_ncvx = u / (u * u + d_ncvx ** 2)
        glob = jnp.concatenate([fb, sb_cvx, sb_ncvx], axis=1) @ V3.T
        glob = glob @ inv_A.T
        x = x - glob
    return x


if __name__ == "__main__":
    key = jax.random.PRNGKey(0)
    B, N = 8, 32            # batch, n_in == n_out
    number_layers = 3
    lamda_cvx, lamda_ncvx = 0.1, 0.05
    delta_s_cvx, delta_s_ncvx = 1.0, 2.0

    k1, k2, k3 = jax.random.split(key, 3)

    # Deterministic operator H (well-conditioned), Ht, and V1 = Ht*H
    H = jnp.eye(N, dtype=jnp.float32) + 0.1 * jax.random.normal(k1, (N, N), jnp.float32)
    HtH = H.T @ H
    V1 = HtH                                        # (n_out, n_in)

    # V2 = L : circular first-difference operator
    L = jnp.eye(N, dtype=jnp.float32) - jnp.roll(jnp.eye(N, dtype=jnp.float32), 1, axis=1)
    V2 = L                                          # (n_out, n_in)

    # V3 corresponds to [Id | lamda_cvx*L^T | lamda_ncvx*L^T]   -> (n_out, 3*n_in)
    V3 = jnp.concatenate([jnp.eye(N, dtype=jnp.float32),
                          lamda_cvx * L.T,
                          lamda_ncvx * L.T], axis=1)

    # Signals
    xtrue = jax.random.normal(k2, (B, N), jnp.float32)
    noise = 0.01 * jax.random.normal(k3, (B, N), jnp.float32)
    xdeg = xtrue @ H.T + noise                      # y = H x + n
    Ht_x_degraded = xdeg @ H                        # Ht * y  (per row)
    x0 = Ht_x_degraded                              # first iterate

    out = my_model_forward(
        x0, xdeg, xtrue, Ht_x_degraded,
        number_layers=number_layers, V1=V1, V2=V2, V3=V3, HtH=HtH,
        delta_s_cvx=delta_s_cvx, delta_s_ncvx=delta_s_ncvx,
        lamda_cvx=lamda_cvx, lamda_ncvx=lamda_ncvx)
    out = jax.block_until_ready(out)

    with jax.default_matmul_precision("highest"):
        ref = _reference_forward(x0, Ht_x_degraded, V1, V2, V3, HtH, number_layers,
                                 delta_s_cvx, delta_s_ncvx, lamda_cvx, lamda_ncvx)

    assert out.shape == (B, N) and out.dtype == jnp.float32
    assert bool(jnp.all(jnp.isfinite(out)))
    assert bool(jnp.allclose(out, ref, rtol=5e-2, atol=5e-2)), \
        f"max abs diff vs reference: {float(jnp.max(jnp.abs(out - ref)))}"
    print("KERNEL_OK")
</pallas_src>

<mosaic_0001>
module attributes {stable_mosaic.version = 11 : i64} {
  func.func @_fused_kernel(%arg0: memref<8x128xf32, #tpu.memory_space<vmem>>, %arg1: memref<8x128xf32, #tpu.memory_space<vmem>>, %arg2: memref<128x128xf32, #tpu.memory_space<vmem>>, %arg3: memref<128x128xf32, #tpu.memory_space<vmem>>, %arg4: memref<128x128xf32, #tpu.memory_space<vmem>>, %arg5: memref<384x128xf32, #tpu.memory_space<vmem>>, %arg6: memref<128x128xf32, #tpu.memory_space<vmem>>, %arg7: memref<8x128xf32, #tpu.memory_space<vmem>>) attributes {dimension_semantics = [], scalar_prefetch = 0 : i64, scratch_operands = 0 : i64, tpu.core_type = #tpu.core_type<tc>} {
    %c0 = arith.constant 0 : index
    %c0_0 = arith.constant 0 : index
    %0 = vector.load %arg0[%c0, %c0_0] : memref<8x128xf32, #tpu.memory_space<vmem>>, vector<8x128xf32>
    %c0_i32 = arith.constant 0 : i32
    %c0_1 = arith.constant 0 : index
    %c0_2 = arith.constant 0 : index
    %1 = vector.load %arg3[%c0_1, %c0_2] : memref<128x128xf32, #tpu.memory_space<vmem>>, vector<128x128xf32>
    %cst = arith.constant dense<0.000000e+00> : vector<8x128xf32>
    %2 = tpu.matmul %0, %1, %cst {dimension_numbers = #tpu.dot_dimension_numbers<[1], [0], [0], [1], [0, 0, 1, 1], [], []>} : vector<8x128xf32>, vector<128x128xf32>, vector<8x128xf32> -> vector<8x128xf32>
    %3 = arith.mulf %2, %2 : vector<8x128xf32>
    %cst_3 = arith.constant 1.000000e+00 : f32
    %4 = vector.broadcast %cst_3 : f32 to vector<8x128xf32>
    %5 = arith.addf %3, %4 : vector<8x128xf32>
    %6 = math.rsqrt %5 : vector<8x128xf32>
    %7 = arith.mulf %2, %2 : vector<8x128xf32>
    %cst_4 = arith.constant 4.000000e+00 : f32
    %8 = vector.broadcast %cst_4 : f32 to vector<8x128xf32>
    %9 = arith.addf %7, %8 : vector<8x128xf32>
    %10 = tpu.reciprocal %9 {approx = true} : vector<8x128xf32> -> vector<8x128xf32>
    %11 = arith.mulf %2, %6 : vector<8x128xf32>
    %12 = arith.mulf %2, %10 : vector<8x128xf32>
    %c0_5 = arith.constant 0 : index
    %c0_6 = arith.constant 0 : index
    %13 = vector.load %arg2[%c0_5, %c0_6] : memref<128x128xf32, #tpu.memory_space<vmem>>, vector<128x128xf32>
    %cst_7 = arith.constant dense<0.000000e+00> : vector<8x128xf32>
    %14 = tpu.matmul %0, %13, %cst_7 {dimension_numbers = #tpu.dot_dimension_numbers<[1], [0], [0], [1], [0, 0, 1, 1], [], []>} : vector<8x128xf32>, vector<128x128xf32>, vector<8x128xf32> -> vector<8x128xf32>
    %c0_8 = arith.constant 0 : index
    %c0_9 = arith.constant 0 : index
    %15 = vector.load %arg1[%c0_8, %c0_9] : memref<8x128xf32, #tpu.memory_space<vmem>>, vector<8x128xf32>
    %16 = arith.subf %14, %15 : vector<8x128xf32>
    %17 = tpu.concatenate %16, %11, %12 in 1 : vector<8x128xf32>, vector<8x128xf32>, vector<8x128xf32> -> vector<8x384xf32>
    %c0_10 = arith.constant 0 : index
    %c0_11 = arith.constant 0 : index
    %18 = vector.load %arg5[%c0_10, %c0_11] : memref<384x128xf32, #tpu.memory_space<vmem>>, vector<384x128xf32>
    %cst_12 = arith.constant dense<0.000000e+00> : vector<8x128xf32>
    %19 = tpu.matmul %17, %18, %cst_12 {dimension_numbers = #tpu.dot_dimension_numbers<[1], [0], [0], [1], [0, 0, 1, 1], [], []>} : vector<8x384xf32>, vector<384x128xf32>, vector<8x128xf32> -> vector<8x128xf32>
    %cst_13 = arith.constant dense<0.000000e+00> : vector<128xf32>
    %20 = vector.multi_reduction <add>, %6, %cst_13 [0] : vector<8x128xf32> to vector<128xf32>
    %21 = vector.shape_cast %20 : vector<128xf32> to vector<1x128xf32>
    %cst_14 = arith.constant 1.000000e-01 : f32
    %22 = vector.broadcast %cst_14 : f32 to vector<1x128xf32>
    %23 = arith.mulf %22, %21 : vector<1x128xf32>
    %cst_15 = arith.constant dense<0.000000e+00> : vector<128xf32>
    %24 = vector.multi_reduction <add>, %10, %cst_15 [0] : vector<8x128xf32> to vector<128xf32>
    %25 = vector.shape_cast %24 : vector<128xf32> to vector<1x128xf32>
    %cst_16 = arith.constant 5.000000e-02 : f32
    %26 = vector.broadcast %cst_16 : f32 to vector<1x128xf32>
    %27 = arith.mulf %26, %25 : vector<1x128xf32>
    %28 = arith.addf %23, %27 : vector<1x128xf32>
    %cst_17 = arith.constant 1.250000e-01 : f32
    %29 = vector.broadcast %cst_17 : f32 to vector<1x128xf32>
    %30 = arith.mulf %28, %29 : vector<1x128xf32>
    %c0_18 = arith.constant 0 : index
    %c0_19 = arith.constant 0 : index
    %31 = vector.load %arg6[%c0_18, %c0_19] : memref<128x128xf32, #tpu.memory_space<vmem>>, vector<128x128xf32>
    %c0_20 = arith.constant 0 : index
    %c0_21 = arith.constant 0 : index
    %32 = vector.load %arg3[%c0_20, %c0_21] : memref<128x128xf32, #tpu.memory_space<vmem>>, vector<128x128xf32>
    %33 = vector.broadcast %30 : vector<1x128xf32> to vector<128x128xf32>
    %34 = arith.mulf %32, %33 : vector<128x128xf32>
    %c0_22 = arith.constant 0 : index
    %c0_23 = arith.constant 0 : index
    %35 = vector.load %arg4[%c0_22, %c0_23] : memref<128x128xf32, #tpu.memory_space<vmem>>, vector<128x128xf32>
    %cst_24 = arith.constant dense<0.000000e+00> : vector<128x128xf32>
    %36 = tpu.matmul %34, %35, %cst_24 {dimension_numbers = #tpu.dot_dimension_numbers<[1], [0], [0], [1], [0, 0, 1, 1], [], []>} : vector<128x128xf32>, vector<128x128xf32>, vector<128x128xf32> -> vector<128x128xf32>
    %37 = arith.addf %31, %36 : vector<128x128xf32>
    %38 = math.absf %37 : vector<128x128xf32>
    %cst_25 = arith.constant dense<0.000000e+00> : vector<128xf32>
    %39 = vector.multi_reduction <add>, %38, %cst_25 [0] : vector<128x128xf32> to vector<128xf32>
    %40 = vector.shape_cast %39 : vector<128xf32> to vector<1x128xf32>
    %41 = vector.shape_cast %40 : vector<1x128xf32> to vector<1x1x128xf32>
    %cst_26 = arith.constant dense<0xFF800000> : vector<1xf32>
    %42 = vector.multi_reduction <maximumf>, %41, %cst_26 [1, 2] : vector<1x1x128xf32> to vector<1xf32>
    %43 = vector.shape_cast %42 : vector<1xf32> to vector<1x1x1xf32>
    %44 = vector.extract %43[0, 0, 0] : f32 from vector<1x1x1xf32>
    %45 = math.absf %37 : vector<128x128xf32>
    %cst_27 = arith.constant dense<0.000000e+00> : vector<128xf32>
    %46 = vector.multi_reduction <add>, %45, %cst_27 [1] : vector<128x128xf32> to vector<128xf32>
    %47 = vector.shape_cast %46 : vector<128xf32> to vector<128x1xf32>
    %48 = vector.shape_cast %47 : vector<128x1xf32> to vector<1x128x1xf32>
    %cst_28 = arith.constant dense<0xFF800000> : vector<1xf32>
    %49 = vector.multi_reduction <maximumf>, %48, %cst_28 [1, 2] : vector<1x128x1xf32> to vector<1xf32>
    %50 = vector.shape_cast %49 : vector<1xf32> to vector<1x1x1xf32>
    %51 = vector.extract %50[0, 0, 0] : f32 from vector<1x1x1xf32>
    %52 = arith.mulf %44, %51 : f32
    %cst_29 = arith.constant 1.000000e+00 : f32
    %53 = arith.divf %cst_29, %52 : f32
    %54 = vector.broadcast %53 : f32 to vector<128x128xf32>
    %55 = arith.mulf %37, %54 : vector<128x128xf32>
    %c0_i32_30 = arith.constant 0 : i32
    %cst_31 = arith.constant dense<0.000000e+00> : vector<128x128xf32>
    %56 = tpu.matmul %37, %55, %cst_31 {dimension_numbers = #tpu.dot_dimension_numbers<[1], [0], [0], [1], [0, 0, 1, 1], [], []>} : vector<128x128xf32>, vector<128x128xf32>, vector<128x128xf32> -> vector<128x128xf32>
    %cst_32 = arith.constant 2.000000e+00 : f32
    %57 = vector.broadcast %cst_32 : f32 to vector<128x128xf32>
    %58 = arith.mulf %57, %55 : vector<128x128xf32>
    %cst_33 = arith.constant dense<0.000000e+00> : vector<128x128xf32>
    %59 = tpu.matmul %55, %56, %cst_33 {dimension_numbers = #tpu.dot_dimension_numbers<[1], [0], [0], [1], [0, 0, 1, 1], [], []>} : vector<128x128xf32>, vector<128x128xf32>, vector<128x128xf32> -> vector<128x128xf32>
    %60 = arith.subf %58, %59 : vector<128x128xf32>
    %c1_i32 = arith.constant 1 : i32
    %cst_34 = arith.constant dense<0.000000e+00> : vector<128x128xf32>
    %61 = tpu.matmul %37, %60, %cst_34 {dimension_numbers = #tpu.dot_dimension_numbers<[1], [0], [0], [1], [0, 0, 1, 1], [], []>} : vector<128x128xf32>, vector<128x128xf32>, vector<128x128xf32> -> vector<128x128xf32>
    %cst_35 = arith.constant 2.000000e+00 : f32
    %62 = vector.broadcast %cst_35 : f32 to vector<128x128xf32>
    %63 = arith.mulf %62, %60 : vector<128x128xf32>
    %cst_36 = arith.constant dense<0.000000e+00> : vector<128x128xf32>
    %64 = tpu.matmul %60, %61, %cst_36 {dimension_numbers = #tpu.dot_dimension_numbers<[1], [0], [0], [1], [0, 0, 1, 1], [], []>} : vector<128x128xf32>, vector<128x128xf32>, vector<128x128xf32> -> vector<128x128xf32>
    %65 = arith.subf %63, %64 : vector<128x128xf32>
    %c2_i32 = arith.constant 2 : i32
    %cst_37 = arith.constant dense<0.000000e+00> : vector<128x128xf32>
    %66 = tpu.matmul %37, %65, %cst_37 {dimension_numbers = #tpu.dot_dimension_numbers<[1], [0], [0], [1], [0, 0, 1, 1], [], []>} : vector<128x128xf32>, vector<128x128xf32>, vector<128x128xf32> -> vector<128x128xf32>
    %cst_38 = arith.constant 2.000000e+00 : f32
    %67 = vector.broadcast %cst_38 : f32 to vector<128x128xf32>
    %68 = arith.mulf %67, %65 : vector<128x128xf32>
    %cst_39 = arith.constant dense<0.000000e+00> : vector<128x128xf32>
    %69 = tpu.matmul %65, %66, %cst_39 {dimension_numbers = #tpu.dot_dimension_numbers<[1], [0], [0], [1], [0, 0, 1, 1], [], []>} : vector<128x128xf32>, vector<128x128xf32>, vector<128x128xf32> -> vector<128x128xf32>
    %70 = arith.subf %68, %69 : vector<128x128xf32>
    %c3_i32 = arith.constant 3 : i32
    %cst_40 = arith.constant dense<0.000000e+00> : vector<128x128xf32>
    %71 = tpu.matmul %37, %70, %cst_40 {dimension_numbers = #tpu.dot_dimension_numbers<[1], [0], [0], [1], [0, 0, 1, 1], [], []>} : vector<128x128xf32>, vector<128x128xf32>, vector<128x128xf32> -> vector<128x128xf32>
    %cst_41 = arith.constant 2.000000e+00 : f32
    %72 = vector.broadcast %cst_41 : f32 to vector<128x128xf32>
    %73 = arith.mulf %72, %70 : vector<128x128xf32>
    %cst_42 = arith.constant dense<0.000000e+00> : vector<128x128xf32>
    %74 = tpu.matmul %70, %71, %cst_42 {dimension_numbers = #tpu.dot_dimension_numbers<[1], [0], [0], [1], [0, 0, 1, 1], [], []>} : vector<128x128xf32>, vector<128x128xf32>, vector<128x128xf32> -> vector<128x128xf32>
    %75 = arith.subf %73, %74 : vector<128x128xf32>
    %c4_i32 = arith.constant 4 : i32
    %cst_43 = arith.constant dense<0.000000e+00> : vector<128x128xf32>
    %76 = tpu.matmul %37, %75, %cst_43 {dimension_numbers = #tpu.dot_dimension_numbers<[1], [0], [0], [1], [0, 0, 1, 1], [], []>} : vector<128x128xf32>, vector<128x128xf32>, vector<128x128xf32> -> vector<128x128xf32>
    %cst_44 = arith.constant 2.000000e+00 : f32
    %77 = vector.broadcast %cst_44 : f32 to vector<128x128xf32>
    %78 = arith.mulf %77, %75 : vector<128x128xf32>
    %cst_45 = arith.constant dense<0.000000e+00> : vector<128x128xf32>
    %79 = tpu.matmul %75, %76, %cst_45 {dimension_numbers = #tpu.dot_dimension_numbers<[1], [0], [0], [1], [0, 0, 1, 1], [], []>} : vector<128x128xf32>, vector<128x128xf32>, vector<128x128xf32> -> vector<128x128xf32>
    %80 = arith.subf %78, %79 : vector<128x128xf32>
    %c5_i32 = arith.constant 5 : i32
    %cst_46 = arith.constant dense<0.000000e+00> : vector<128x128xf32>
    %81 = tpu.matmul %37, %80, %cst_46 {dimension_numbers = #tpu.dot_dimension_numbers<[1], [0], [0], [1], [0, 0, 1, 1], [], []>} : vector<128x128xf32>, vector<128x128xf32>, vector<128x128xf32> -> vector<128x128xf32>
    %cst_47 = arith.constant 2.000000e+00 : f32
    %82 = vector.broadcast %cst_47 : f32 to vector<128x128xf32>
    %83 = arith.mulf %82, %80 : vector<128x128xf32>
    %cst_48 = arith.constant dense<0.000000e+00> : vector<128x128xf32>
    %84 = tpu.matmul %80, %81, %cst_48 {dimension_numbers = #tpu.dot_dimension_numbers<[1], [0], [0], [1], [0, 0, 1, 1], [], []>} : vector<128x128xf32>, vector<128x128xf32>, vector<128x128xf32> -> vector<128x128xf32>
    %85 = arith.subf %83, %84 : vector<128x128xf32>
    %c6_i32 = arith.constant 6 : i32
    %cst_49 = arith.constant dense<0.000000e+00> : vector<128x128xf32>
    %86 = tpu.matmul %37, %85, %cst_49 {dimension_numbers = #tpu.dot_dimension_numbers<[1], [0], [0], [1], [0, 0, 1, 1], [], []>} : vector<128x128xf32>, vector<128x128xf32>, vector<128x128xf32> -> vector<128x128xf32>
    %cst_50 = arith.constant 2.000000e+00 : f32
    %87 = vector.broadcast %cst_50 : f32 to vector<128x128xf32>
    %88 = arith.mulf %87, %85 : vector<128x128xf32>
    %cst_51 = arith.constant dense<0.000000e+00> : vector<128x128xf32>
    %89 = tpu.matmul %85, %86, %cst_51 {dimension_numbers = #tpu.dot_dimension_numbers<[1], [0], [0], [1], [0, 0, 1, 1], [], []>} : vector<128x128xf32>, vector<128x128xf32>, vector<128x128xf32> -> vector<128x128xf32>
    %90 = arith.subf %88, %89 : vector<128x128xf32>
    %c7_i32 = arith.constant 7 : i32
    %cst_52 = arith.constant dense<0.000000e+00> : vector<128x128xf32>
    %91 = tpu.matmul %37, %90, %cst_52 {dimension_numbers = #tpu.dot_dimension_numbers<[1], [0], [0], [1], [0, 0, 1, 1], [], []>} : vector<128x128xf32>, vector<128x128xf32>, vector<128x128xf32> -> vector<128x128xf32>
    %cst_53 = arith.constant 2.000000e+00 : f32
    %92 = vector.broadcast %cst_53 : f32 to vector<128x128xf32>
    %93 = arith.mulf %92, %90 : vector<128x128xf32>
    %cst_54 = arith.constant dense<0.000000e+00> : vector<128x128xf32>
    %94 = tpu.matmul %90, %91, %cst_54 {dimension_numbers = #tpu.dot_dimension_numbers<[1], [0], [0], [1], [0, 0, 1, 1], [], []>} : vector<128x128xf32>, vector<128x128xf32>, vector<128x128xf32> -> vector<128x128xf32>
    %95 = arith.subf %93, %94 : vector<128x128xf32>
    %c8_i32 = arith.constant 8 : i32
    %cst_55 = arith.constant dense<0.000000e+00> : vector<128x128xf32>
    %96 = tpu.matmul %37, %95, %cst_55 {dimension_numbers = #tpu.dot_dimension_numbers<[1], [0], [0], [1], [0, 0, 1, 1], [], []>} : vector<128x128xf32>, vector<128x128xf32>, vector<128x128xf32> -> vector<128x128xf32>
    %cst_56 = arith.constant 2.000000e+00 : f32
    %97 = vector.broadcast %cst_56 : f32 to vector<128x128xf32>
    %98 = arith.mulf %97, %95 : vector<128x128xf32>
    %cst_57 = arith.constant dense<0.000000e+00> : vector<128x128xf32>
    %99 = tpu.matmul %95, %96, %cst_57 {dimension_numbers = #tpu.dot_dimension_numbers<[1], [0], [0], [1], [0, 0, 1, 1], [], []>} : vector<128x128xf32>, vector<128x128xf32>, vector<128x128xf32> -> vector<128x128xf32>
    %100 = arith.subf %98, %99 : vector<128x128xf32>
    %c9_i32 = arith.constant 9 : i32
    %cst_58 = arith.constant dense<0.000000e+00> : vector<128x128xf32>
    %101 = tpu.matmul %37, %100, %cst_58 {dimension_numbers = #tpu.dot_dimension_numbers<[1], [0], [0], [1], [0, 0, 1, 1], [], []>} : vector<128x128xf32>, vector<128x128xf32>, vector<128x128xf32> -> vector<128x128xf32>
    %cst_59 = arith.constant 2.000000e+00 : f32
    %102 = vector.broadcast %cst_59 : f32 to vector<128x128xf32>
    %103 = arith.mulf %102, %100 : vector<128x128xf32>
    %cst_60 = arith.constant dense<0.000000e+00> : vector<128x128xf32>
    %104 = tpu.matmul %100, %101, %cst_60 {dimension_numbers = #tpu.dot_dimension_numbers<[1], [0], [0], [1], [0, 0, 1, 1], [], []>} : vector<128x128xf32>, vector<128x128xf32>, vector<128x128xf32> -> vector<128x128xf32>
    %105 = arith.subf %103, %104 : vector<128x128xf32>
    %c10_i32 = arith.constant 10 : i32
    %cst_61 = arith.constant dense<0.000000e+00> : vector<128x128xf32>
    %106 = tpu.matmul %37, %105, %cst_61 {dimension_numbers = #tpu.dot_dimension_numbers<[1], [0], [0], [1], [0, 0, 1, 1], [], []>} : vector<128x128xf32>, vector<128x128xf32>, vector<128x128xf32> -> vector<128x128xf32>
    %cst_62 = arith.constant 2.000000e+00 : f32
    %107 = vector.broadcast %cst_62 : f32 to vector<128x128xf32>
    %108 = arith.mulf %107, %105 : vector<128x128xf32>
    %cst_63 = arith.constant dense<0.000000e+00> : vector<128x128xf32>
    %109 = tpu.matmul %105, %106, %cst_63 {dimension_numbers = #tpu.dot_dimension_numbers<[1], [0], [0], [1], [0, 0, 1, 1], [], []>} : vector<128x128xf32>, vector<128x128xf32>, vector<128x128xf32> -> vector<128x128xf32>
    %110 = arith.subf %108, %109 : vector<128x128xf32>
    %c11_i32 = arith.constant 11 : i32
    %cst_64 = arith.constant dense<0.000000e+00> : vector<128x128xf32>
    %111 = tpu.matmul %37, %110, %cst_64 {dimension_numbers = #tpu.dot_dimension_numbers<[1], [0], [0], [1], [0, 0, 1, 1], [], []>} : vector<128x128xf32>, vector<128x128xf32>, vector<128x128xf32> -> vector<128x128xf32>
    %cst_65 = arith.constant 2.000000e+00 : f32
    %112 = vector.broadcast %cst_65 : f32 to vector<128x128xf32>
    %113 = arith.mulf %112, %110 : vector<128x128xf32>
    %cst_66 = arith.constant dense<0.000000e+00> : vector<128x128xf32>
    %114 = tpu.matmul %110, %111, %cst_66 {dimension_numbers = #tpu.dot_dimension_numbers<[1], [0], [0], [1], [0, 0, 1, 1], [], []>} : vector<128x128xf32>, vector<128x128xf32>, vector<128x128xf32> -> vector<128x128xf32>
    %115 = arith.subf %113, %114 : vector<128x128xf32>
    %c12_i32 = arith.constant 12 : i32
    %cst_67 = arith.constant dense<0.000000e+00> : vector<128x128xf32>
    %116 = tpu.matmul %37, %115, %cst_67 {dimension_numbers = #tpu.dot_dimension_numbers<[1], [0], [0], [1], [0, 0, 1, 1], [], []>} : vector<128x128xf32>, vector<128x128xf32>, vector<128x128xf32> -> vector<128x128xf32>
    %cst_68 = arith.constant 2.000000e+00 : f32
    %117 = vector.broadcast %cst_68 : f32 to vector<128x128xf32>
    %118 = arith.mulf %117, %115 : vector<128x128xf32>
    %cst_69 = arith.constant dense<0.000000e+00> : vector<128x128xf32>
    %119 = tpu.matmul %115, %116, %cst_69 {dimension_numbers = #tpu.dot_dimension_numbers<[1], [0], [0], [1], [0, 0, 1, 1], [], []>} : vector<128x128xf32>, vector<128x128xf32>, vector<128x128xf32> -> vector<128x128xf32>
    %120 = arith.subf %118, %119 : vector<128x128xf32>
    %c13_i32 = arith.constant 13 : i32
    %cst_70 = arith.constant dense<0.000000e+00> : vector<128x128xf32>
    %121 = tpu.matmul %37, %120, %cst_70 {dimension_numbers = #tpu.dot_dimension_numbers<[1], [0], [0], [1], [0, 0, 1, 1], [], []>} : vector<128x128xf32>, vector<128x128xf32>, vector<128x128xf32> -> vector<128x128xf32>
    %cst_71 = arith.constant 2.000000e+00 : f32
    %122 = vector.broadcast %cst_71 : f32 to vector<128x128xf32>
    %123 = arith.mulf %122, %120 : vector<128x128xf32>
    %cst_72 = arith.constant dense<0.000000e+00> : vector<128x128xf32>
    %124 = tpu.matmul %120, %121, %cst_72 {dimension_numbers = #tpu.dot_dimension_numbers<[1], [0], [0], [1], [0, 0, 1, 1], [], []>} : vector<128x128xf32>, vector<128x128xf32>, vector<128x128xf32> -> vector<128x128xf32>
    %125 = arith.subf %123, %124 : vector<128x128xf32>
    %c14_i32 = arith.constant 14 : i32
    %cst_73 = arith.constant dense<0.000000e+00> : vector<128x128xf32>
    %126 = tpu.matmul %37, %125, %cst_73 {dimension_numbers = #tpu.dot_dimension_numbers<[1], [0], [0], [1], [0, 0, 1, 1], [], []>} : vector<128x128xf32>, vector<128x128xf32>, vector<128x128xf32> -> vector<128x128xf32>
    %cst_74 = arith.constant 2.000000e+00 : f32
    %127 = vector.broadcast %cst_74 : f32 to vector<128x128xf32>
    %128 = arith.mulf %127, %125 : vector<128x128xf32>
    %cst_75 = arith.constant dense<0.000000e+00> : vector<128x128xf32>
    %129 = tpu.matmul %125, %126, %cst_75 {dimension_numbers = #tpu.dot_dimension_numbers<[1], [0], [0], [1], [0, 0, 1, 1], [], []>} : vector<128x128xf32>, vector<128x128xf32>, vector<128x128xf32> -> vector<128x128xf32>
    %130 = arith.subf %128, %129 : vector<128x128xf32>
    %c15_i32 = arith.constant 15 : i32
    %cst_76 = arith.constant dense<0.000000e+00> : vector<128x128xf32>
    %131 = tpu.matmul %37, %130, %cst_76 {dimension_numbers = #tpu.dot_dimension_numbers<[1], [0], [0], [1], [0, 0, 1, 1], [], []>} : vector<128x128xf32>, vector<128x128xf32>, vector<128x128xf32> -> vector<128x128xf32>
    %cst_77 = arith.constant 2.000000e+00 : f32
    %132 = vector.broadcast %cst_77 : f32 to vector<128x128xf32>
    %133 = arith.mulf %132, %130 : vector<128x128xf32>
    %cst_78 = arith.constant dense<0.000000e+00> : vector<128x128xf32>
    %134 = tpu.matmul %130, %131, %cst_78 {dimension_numbers = #tpu.dot_dimension_numbers<[1], [0], [0], [1], [0, 0, 1, 1], [], []>} : vector<128x128xf32>, vector<128x128xf32>, vector<128x128xf32> -> vector<128x128xf32>
    %135 = arith.subf %133, %134 : vector<128x128xf32>
    %cst_79 = arith.constant dense<0.000000e+00> : vector<8x128xf32>
    %136 = tpu.matmul %19, %135, %cst_79 {dimension_numbers = #tpu.dot_dimension_numbers<[1], [0], [0], [1], [0, 0, 1, 1], [], []>} : vector<8x128xf32>, vector<128x128xf32>, vector<8x128xf32> -> vector<8x128xf32>
    %137 = arith.subf %0, %136 : vector<8x128xf32>
    %c1_i32_80 = arith.constant 1 : i32
    %c0_81 = arith.constant 0 : index
    %c0_82 = arith.constant 0 : index
    %138 = vector.load %arg3[%c0_81, %c0_82] : memref<128x128xf32, #tpu.memory_space<vmem>>, vector<128x128xf32>
    %cst_83 = arith.constant dense<0.000000e+00> : vector<8x128xf32>
    %139 = tpu.matmul %137, %138, %cst_83 {dimension_numbers = #tpu.dot_dimension_numbers<[1], [0], [0], [1], [0, 0, 1, 1], [], []>} : vector<8x128xf32>, vector<128x128xf32>, vector<8x128xf32> -> vector<8x128xf32>
    %140 = arith.mulf %139, %139 : vector<8x128xf32>
    %cst_84 = arith.constant 1.000000e+00 : f32
    %141 = vector.broadcast %cst_84 : f32 to vector<8x128xf32>
    %142 = arith.addf %140, %141 : vector<8x128xf32>
    %143 = math.rsqrt %142 : vector<8x128xf32>
    %144 = arith.mulf %139, %139 : vector<8x128xf32>
    %cst_85 = arith.constant 4.000000e+00 : f32
    %145 = vector.broadcast %cst_85 : f32 to vector<8x128xf32>
    %146 = arith.addf %144, %145 : vector<8x128xf32>
    %147 = tpu.reciprocal %146 {approx = true} : vector<8x128xf32> -> vector<8x128xf32>
    %148 = arith.mulf %139, %143 : vector<8x128xf32>
    %149 = arith.mulf %139, %147 : vector<8x128xf32>
    %c0_86 = arith.constant 0 : index
    %c0_87 = arith.constant 0 : index
    %150 = vector.load %arg2[%c0_86, %c0_87] : memref<128x128xf32, #tpu.memory_space<vmem>>, vector<128x128xf32>
    %cst_88 = arith.constant dense<0.000000e+00> : vector<8x128xf32>
    %151 = tpu.matmul %137, %150, %cst_88 {dimension_numbers = #tpu.dot_dimension_numbers<[1], [0], [0], [1], [0, 0, 1, 1], [], []>} : vector<8x128xf32>, vector<128x128xf32>, vector<8x128xf32> -> vector<8x128xf32>
    %c0_89 = arith.constant 0 : index
    %c0_90 = arith.constant 0 : index
    %152 = vector.load %arg1[%c0_89, %c0_90] : memref<8x128xf32, #tpu.memory_space<vmem>>, vector<8x128xf32>
    %153 = arith.subf %151, %152 : vector<8x128xf32>
    %154 = tpu.concatenate %153, %148, %149 in 1 : vector<8x128xf32>, vector<8x128xf32>, vector<8x128xf32> -> vector<8x384xf32>
    %c0_91 = arith.constant 0 : index
    %c0_92 = arith.constant 0 : index
    %155 = vector.load %arg5[%c0_91, %c0_92] : memref<384x128xf32, #tpu.memory_space<vmem>>, vector<384x128xf32>
    %cst_93 = arith.constant dense<0.000000e+00> : vector<8x128xf32>
    %156 = tpu.matmul %154, %155, %cst_93 {dimension_numbers = #tpu.dot_dimension_numbers<[1], [0], [0], [1], [0, 0, 1, 1], [], []>} : vector<8x384xf32>, vector<384x128xf32>, vector<8x128xf32> -> vector<8x128xf32>
    %cst_94 = arith.constant dense<0.000000e+00> : vector<128xf32>
    %157 = vector.multi_reduction <add>, %143, %cst_94 [0] : vector<8x128xf32> to vector<128xf32>
    %158 = vector.shape_cast %157 : vector<128xf32> to vector<1x128xf32>
    %cst_95 = arith.constant 1.000000e-01 : f32
    %159 = vector.broadcast %cst_95 : f32 to vector<1x128xf32>
    %160 = arith.mulf %159, %158 : vector<1x128xf32>
    %cst_96 = arith.constant dense<0.000000e+00> : vector<128xf32>
    %161 = vector.multi_reduction <add>, %147, %cst_96 [0] : vector<8x128xf32> to vector<128xf32>
    %162 = vector.shape_cast %161 : vector<128xf32> to vector<1x128xf32>
    %cst_97 = arith.constant 5.000000e-02 : f32
    %163 = vector.broadcast %cst_97 : f32 to vector<1x128xf32>
    %164 = arith.mulf %163, %162 : vector<1x128xf32>
    %165 = arith.addf %160, %164 : vector<1x128xf32>
    %cst_98 = arith.constant 1.250000e-01 : f32
    %166 = vector.broadcast %cst_98 : f32 to vector<1x128xf32>
    %167 = arith.mulf %165, %166 : vector<1x128xf32>
    %c0_99 = arith.constant 0 : index
    %c0_100 = arith.constant 0 : index
    %168 = vector.load %arg6[%c0_99, %c0_100] : memref<128x128xf32, #tpu.memory_space<vmem>>, vector<128x128xf32>
    %c0_101 = arith.constant 0 : index
    %c0_102 = arith.constant 0 : index
    %169 = vector.load %arg3[%c0_101, %c0_102] : memref<128x128xf32, #tpu.memory_space<vmem>>, vector<128x128xf32>
    %170 = vector.broadcast %167 : vector<1x128xf32> to vector<128x128xf32>
    %171 = arith.mulf %169, %170 : vector<128x128xf32>
    %c0_103 = arith.constant 0 : index
    %c0_104 = arith.constant 0 : index
    %172 = vector.load %arg4[%c0_103, %c0_104] : memref<128x128xf32, #tpu.memory_space<vmem>>, vector<128x128xf32>
    %cst_105 = arith.constant dense<0.000000e+00> : vector<128x128xf32>
    %173 = tpu.matmul %171, %172, %cst_105 {dimension_numbers = #tpu.dot_dimension_numbers<[1], [0], [0], [1], [0, 0, 1, 1], [], []>} : vector<128x128xf32>, vector<128x128xf32>, vector<128x128xf32> -> vector<128x128xf32>
    %174 = arith.addf %168, %173 : vector<128x128xf32>
    %175 = math.absf %174 : vector<128x128xf32>
    %cst_106 = arith.constant dense<0.000000e+00> : vector<128xf32>
    %176 = vector.multi_reduction <add>, %175, %cst_106 [0] : vector<128x128xf32> to vector<128xf32>
    %177 = vector.shape_cast %176 : vector<128xf32> to vector<1x128xf32>
    %178 = vector.shape_cast %177 : vector<1x128xf32> to vector<1x1x128xf32>
    %cst_107 = arith.constant dense<0xFF800000> : vector<1xf32>
    %179 = vector.multi_reduction <maximumf>, %178, %cst_107 [1, 2] : vector<1x1x128xf32> to vector<1xf32>
    %180 = vector.shape_cast %179 : vector<1xf32> to vector<1x1x1xf32>
    %181 = vector.extract %180[0, 0, 0] : f32 from vector<1x1x1xf32>
    %182 = math.absf %174 : vector<128x128xf32>
    %cst_108 = arith.constant dense<0.000000e+00> : vector<128xf32>
    %183 = vector.multi_reduction <add>, %182, %cst_108 [1] : vector<128x128xf32> to vector<128xf32>
    %184 = vector.shape_cast %183 : vector<128xf32> to vector<128x1xf32>
    %185 = vector.shape_cast %184 : vector<128x1xf32> to vector<1x128x1xf32>
    %cst_109 = arith.constant dense<0xFF800000> : vector<1xf32>
    %186 = vector.multi_reduction <maximumf>, %185, %cst_109 [1, 2] : vector<1x128x1xf32> to vector<1xf32>
    %187 = vector.shape_cast %186 : vector<1xf32> to vector<1x1x1xf32>
    %188 = vector.extract %187[0, 0, 0] : f32 from vector<1x1x1xf32>
    %189 = arith.mulf %181, %188 : f32
    %cst_110 = arith.constant 1.000000e+00 : f32
    %190 = arith.divf %cst_110, %189 : f32
    %191 = vector.broadcast %190 : f32 to vector<128x128xf32>
    %192 = arith.mulf %174, %191 : vector<128x128xf32>
    %c0_i32_111 = arith.constant 0 : i32
    %cst_112 = arith.constant dense<0.000000e+00> : vector<128x128xf32>
    %193 = tpu.matmul %174, %192, %cst_112 {dimension_numbers = #tpu.dot_dimension_numbers<[1], [0], [0], [1], [0, 0, 1, 1], [], []>} : vector<128x128xf32>, vector<128x128xf32>, vector<128x128xf32> -> vector<128x128xf32>
    %cst_113 = arith.constant 2.000000e+00 : f32
    %194 = vector.broadcast %cst_113 : f32 to vector<128x128xf32>
    %195 = arith.mulf %194, %192 : vector<128x128xf32>
    %cst_114 = arith.constant dense<0.000000e+00> : vector<128x128xf32>
    %196 = tpu.matmul %192, %193, %cst_114 {dimension_numbers = #tpu.dot_dimension_numbers<[1], [0], [0], [1], [0, 0, 1, 1], [], []>} : vector<128x128xf32>, vector<128x128xf32>, vector<128x128xf32> -> vector<128x128xf32>
    %197 = arith.subf %195, %196 : vector<128x128xf32>
    %c1_i32_115 = arith.constant 1 : i32
    %cst_116 = arith.constant dense<0.000000e+00> : vector<128x128xf32>
    %198 = tpu.matmul %174, %197, %cst_116 {dimension_numbers = #tpu.dot_dimension_numbers<[1], [0], [0], [1], [0, 0, 1, 1], [], []>} : vector<128x128xf32>, vector<128x128xf32>, vector<128x128xf32> -> vector<128x128xf32>
    %cst_117 = arith.constant 2.000000e+00 : f32
    %199 = vector.broadcast %cst_117 : f32 to vector<128x128xf32>
    %200 = arith.mulf %199, %197 : vector<128x128xf32>
    %cst_118 = arith.constant dense<0.000000e+00> : vector<128x128xf32>
    %201 = tpu.matmul %197, %198, %cst_118 {dimension_numbers = #tpu.dot_dimension_numbers<[1], [0], [0], [1], [0, 0, 1, 1], [], []>} : vector<128x128xf32>, vector<128x128xf32>, vector<128x128xf32> -> vector<128x128xf32>
    %202 = arith.subf %200, %201 : vector<128x128xf32>
    %c2_i32_119 = arith.constant 2 : i32
    %cst_120 = arith.constant dense<0.000000e+00> : vector<128x128xf32>
    %203 = tpu.matmul %174, %202, %cst_120 {dimension_numbers = #tpu.dot_dimension_numbers<[1], [0], [0], [1], [0, 0, 1, 1], [], []>} : vector<128x128xf32>, vector<128x128xf32>, vector<128x128xf32> -> vector<128x128xf32>
    %cst_121 = arith.constant 2.000000e+00 : f32
    %204 = vector.broadcast %cst_121 : f32 to vector<128x128xf32>
    %205 = arith.mulf %204, %202 : vector<128x128xf32>
    %cst_122 = arith.constant dense<0.000000e+00> : vector<128x128xf32>
    %206 = tpu.matmul %202, %203, %cst_122 {dimension_numbers = #tpu.dot_dimension_numbers<[1], [0], [0], [1], [0, 0, 1, 1], [], []>} : vector<128x128xf32>, vector<128x128xf32>, vector<128x128xf32> -> vector<128x128xf32>
    %207 = arith.subf %205, %206 : vector<128x128xf32>
    %c3_i32_123 = arith.constant 3 : i32
    %cst_124 = arith.constant dense<0.000000e+00> : vector<128x128xf32>
    %208 = tpu.matmul %174, %207, %cst_124 {dimension_numbers = #tpu.dot_dimension_numbers<[1], [0], [0], [1], [0, 0, 1, 1], [], []>} : vector<128x128xf32>, vector<128x128xf32>, vector<128x128xf32> -> vector<128x128xf32>
    %cst_125 = arith.constant 2.000000e+00 : f32
    %209 = vector.broadcast %cst_125 : f32 to vector<128x128xf32>
    %210 = arith.mulf %209, %207 : vector<128x128xf32>
    %cst_126 = arith.constant dense<0.000000e+00> : vector<128x128xf32>
    %211 = tpu.matmul %207, %208, %cst_126 {dimension_numbers = #tpu.dot_dimension_numbers<[1], [0], [0], [1], [0, 0, 1, 1], [], []>} : vector<128x128xf32>, vector<128x128xf32>, vector<128x128xf32> -> vector<128x128xf32>
    %212 = arith.subf %210, %211 : vector<128x128xf32>
    %c4_i32_127 = arith.constant 4 : i32
    %cst_128 = arith.constant dense<0.000000e+00> : vector<128x128xf32>
    %213 = tpu.matmul %174, %212, %cst_128 {dimension_numbers = #tpu.dot_dimension_numbers<[1], [0], [0], [1], [0, 0, 1, 1], [], []>} : vector<128x128xf32>, vector<128x128xf32>, vector<128x128xf32> -> vector<128x128xf32>
    %cst_129 = arith.constant 2.000000e+00 : f32
    %214 = vector.broadcast %cst_129 : f32 to vector<128x128xf32>
    %215 = arith.mulf %214, %212 : vector<128x128xf32>
    %cst_130 = arith.constant dense<0.000000e+00> : vector<128x128xf32>
    %216 = tpu.matmul %212, %213, %cst_130 {dimension_numbers = #tpu.dot_dimension_numbers<[1], [0], [0], [1], [0, 0, 1, 1], [], []>} : vector<128x128xf32>, vector<128x128xf32>, vector<128x128xf32> -> vector<128x128xf32>
    %217 = arith.subf %215, %216 : vector<128x128xf32>
    %c5_i32_131 = arith.constant 5 : i32
    %cst_132 = arith.constant dense<0.000000e+00> : vector<128x128xf32>
    %218 = tpu.matmul %174, %217, %cst_132 {dimension_numbers = #tpu.dot_dimension_numbers<[1], [0], [0], [1], [0, 0, 1, 1], [], []>} : vector<128x128xf32>, vector<128x128xf32>, vector<128x128xf32> -> vector<128x128xf32>
    %cst_133 = arith.constant 2.000000e+00 : f32
    %219 = vector.broadcast %cst_133 : f32 to vector<128x128xf32>
    %220 = arith.mulf %219, %217 : vector<128x128xf32>
    %cst_134 = arith.constant dense<0.000000e+00> : vector<128x128xf32>
    %221 = tpu.matmul %217, %218, %cst_134 {dimension_numbers = #tpu.dot_dimension_numbers<[1], [0], [0], [1], [0, 0, 1, 1], [], []>} : vector<128x128xf32>, vector<128x128xf32>, vector<128x128xf32> -> vector<128x128xf32>
    %222 = arith.subf %220, %221 : vector<128x128xf32>
    %c6_i32_135 = arith.constant 6 : i32
    %cst_136 = arith.constant dense<0.000000e+00> : vector<128x128xf32>
    %223 = tpu.matmul %174, %222, %cst_136 {dimension_numbers = #tpu.dot_dimension_numbers<[1], [0], [0], [1], [0, 0, 1, 1], [], []>} : vector<128x128xf32>, vector<128x128xf32>, vector<128x128xf32> -> vector<128x128xf32>
    %cst_137 = arith.constant 2.000000e+00 : f32
    %224 = vector.broadcast %cst_137 : f32 to vector<128x128xf32>
    %225 = arith.mulf %224, %222 : vector<128x128xf32>
    %cst_138 = arith.constant dense<0.000000e+00> : vector<128x128xf32>
    %226 = tpu.matmul %222, %223, %cst_138 {dimension_numbers = #tpu.dot_dimension_numbers<[1], [0], [0], [1], [0, 0, 1, 1], [], []>} : vector<128x128xf32>, vector<128x128xf32>, vector<128x128xf32> -> vector<128x128xf32>
    %227 = arith.subf %225, %226 : vector<128x128xf32>
    %c7_i32_139 = arith.constant 7 : i32
    %cst_140 = arith.constant dense<0.000000e+00> : vector<128x128xf32>
    %228 = tpu.matmul %174, %227, %cst_140 {dimension_numbers = #tpu.dot_dimension_numbers<[1], [0], [0], [1], [0, 0, 1, 1], [], []>} : vector<128x128xf32>, vector<128x128xf32>, vector<128x128xf32> -> vector<128x128xf32>
    %cst_141 = arith.constant 2.000000e+00 : f32
    %229 = vector.broadcast %cst_141 : f32 to vector<128x128xf32>
    %230 = arith.mulf %229, %227 : vector<128x128xf32>
    %cst_142 = arith.constant dense<0.000000e+00> : vector<128x128xf32>
    %231 = tpu.matmul %227, %228, %cst_142 {dimension_numbers = #tpu.dot_dimension_numbers<[1], [0], [0], [1], [0, 0, 1, 1], [], []>} : vector<128x128xf32>, vector<128x128xf32>, vector<128x128xf32> -> vector<128x128xf32>
    %232 = arith.subf %230, %231 : vector<128x128xf32>
    %c8_i32_143 = arith.constant 8 : i32
    %cst_144 = arith.constant dense<0.000000e+00> : vector<128x128xf32>
    %233 = tpu.matmul %174, %232, %cst_144 {dimension_numbers = #tpu.dot_dimension_numbers<[1], [0], [0], [1], [0, 0, 1, 1], [], []>} : vector<128x128xf32>, vector<128x128xf32>, vector<128x128xf32> -> vector<128x128xf32>
    %cst_145 = arith.constant 2.000000e+00 : f32
    %234 = vector.broadcast %cst_145 : f32 to vector<128x128xf32>
    %235 = arith.mulf %234, %232 : vector<128x128xf32>
    %cst_146 = arith.constant dense<0.000000e+00> : vector<128x128xf32>
    %236 = tpu.matmul %232, %233, %cst_146 {dimension_numbers = #tpu.dot_dimension_numbers<[1], [0], [0], [1], [0, 0, 1, 1], [], []>} : vector<128x128xf32>, vector<128x128xf32>, vector<128x128xf32> -> vector<128x128xf32>
    %237 = arith.subf %235, %236 : vector<128x128xf32>
    %c9_i32_147 = arith.constant 9 : i32
    %cst_148 = arith.constant dense<0.000000e+00> : vector<128x128xf32>
    %238 = tpu.matmul %174, %237, %cst_148 {dimension_numbers = #tpu.dot_dimension_numbers<[1], [0], [0], [1], [0, 0, 1, 1], [], []>} : vector<128x128xf32>, vector<128x128xf32>, vector<128x128xf32> -> vector<128x128xf32>
    %cst_149 = arith.constant 2.000000e+00 : f32
    %239 = vector.broadcast %cst_149 : f32 to vector<128x128xf32>
    %240 = arith.mulf %239, %237 : vector<128x128xf32>
    %cst_150 = arith.constant dense<0.000000e+00> : vector<128x128xf32>
    %241 = tpu.matmul %237, %238, %cst_150 {dimension_numbers = #tpu.dot_dimension_numbers<[1], [0], [0], [1], [0, 0, 1, 1], [], []>} : vector<128x128xf32>, vector<128x128xf32>, vector<128x128xf32> -> vector<128x128xf32>
    %242 = arith.subf %240, %241 : vector<128x128xf32>
    %c10_i32_151 = arith.constant 10 : i32
    %cst_152 = arith.constant dense<0.000000e+00> : vector<128x128xf32>
    %243 = tpu.matmul %174, %242, %cst_152 {dimension_numbers = #tpu.dot_dimension_numbers<[1], [0], [0], [1], [0, 0, 1, 1], [], []>} : vector<128x128xf32>, vector<128x128xf32>, vector<128x128xf32> -> vector<128x128xf32>
    %cst_153 = arith.constant 2.000000e+00 : f32
    %244 = vector.broadcast %cst_153 : f32 to vector<128x128xf32>
    %245 = arith.mulf %244, %242 : vector<128x128xf32>
    %cst_154 = arith.constant dense<0.000000e+00> : vector<128x128xf32>
    %246 = tpu.matmul %242, %243, %cst_154 {dimension_numbers = #tpu.dot_dimension_numbers<[1], [0], [0], [1], [0, 0, 1, 1], [], []>} : vector<128x128xf32>, vector<128x128xf32>, vector<128x128xf32> -> vector<128x128xf32>
    %247 = arith.subf %245, %246 : vector<128x128xf32>
    %c11_i32_155 = arith.constant 11 : i32
    %cst_156 = arith.constant dense<0.000000e+00> : vector<128x128xf32>
    %248 = tpu.matmul %174, %247, %cst_156 {dimension_numbers = #tpu.dot_dimension_numbers<[1], [0], [0], [1], [0, 0, 1, 1], [], []>} : vector<128x128xf32>, vector<128x128xf32>, vector<128x128xf32> -> vector<128x128xf32>
    %cst_157 = arith.constant 2.000000e+00 : f32
    %249 = vector.broadcast %cst_157 : f32 to vector<128x128xf32>
    %250 = arith.mulf %249, %247 : vector<128x128xf32>
    %cst_158 = arith.constant dense<0.000000e+00> : vector<128x128xf32>
    %251 = tpu.matmul %247, %248, %cst_158 {dimension_numbers = #tpu.dot_dimension_numbers<[1], [0], [0], [1], [0, 0, 1, 1], [], []>} : vector<128x128xf32>, vector<128x128xf32>, vector<128x128xf32> -> vector<128x128xf32>
    %252 = arith.subf %250, %251 : vector<128x128xf32>
    %c12_i32_159 = arith.constant 12 : i32
    %cst_160 = arith.constant dense<0.000000e+00> : vector<128x128xf32>
    %253 = tpu.matmul %174, %252, %cst_160 {dimension_numbers = #tpu.dot_dimension_numbers<[1], [0], [0], [1], [0, 0, 1, 1], [], []>} : vector<128x128xf32>, vector<128x128xf32>, vector<128x128xf32> -> vector<128x128xf32>
    %cst_161 = arith.constant 2.000000e+00 : f32
    %254 = vector.broadcast %cst_161 : f32 to vector<128x128xf32>
    %255 = arith.mulf %254, %252 : vector<128x128xf32>
    %cst_162 = arith.constant dense<0.000000e+00> : vector<128x128xf32>
    %256 = tpu.matmul %252, %253, %cst_162 {dimension_numbers = #tpu.dot_dimension_numbers<[1], [0], [0], [1], [0, 0, 1, 1], [], []>} : vector<128x128xf32>, vector<128x128xf32>, vector<128x128xf32> -> vector<128x128xf32>
    %257 = arith.subf %255, %256 : vector<128x128xf32>
    %c13_i32_163 = arith.constant 13 : i32
    %cst_164 = arith.constant dense<0.000000e+00> : vector<128x128xf32>
    %258 = tpu.matmul %174, %257, %cst_164 {dimension_numbers = #tpu.dot_dimension_numbers<[1], [0], [0], [1], [0, 0, 1, 1], [], []>} : vector<128x128xf32>, vector<128x128xf32>, vector<128x128xf32> -> vector<128x128xf32>
    %cst_165 = arith.constant 2.000000e+00 : f32
    %259 = vector.broadcast %cst_165 : f32 to vector<128x128xf32>
    %260 = arith.mulf %259, %257 : vector<128x128xf32>
    %cst_166 = arith.constant dense<0.000000e+00> : vector<128x128xf32>
    %261 = tpu.matmul %257, %258, %cst_166 {dimension_numbers = #tpu.dot_dimension_numbers<[1], [0], [0], [1], [0, 0, 1, 1], [], []>} : vector<128x128xf32>, vector<128x128xf32>, vector<128x128xf32> -> vector<128x128xf32>
    %262 = arith.subf %260, %261 : vector<128x128xf32>
    %c14_i32_167 = arith.constant 14 : i32
    %cst_168 = arith.constant dense<0.000000e+00> : vector<128x128xf32>
    %263 = tpu.matmul %174, %262, %cst_168 {dimension_numbers = #tpu.dot_dimension_numbers<[1], [0], [0], [1], [0, 0, 1, 1], [], []>} : vector<128x128xf32>, vector<128x128xf32>, vector<128x128xf32> -> vector<128x128xf32>
    %cst_169 = arith.constant 2.000000e+00 : f32
    %264 = vector.broadcast %cst_169 : f32 to vector<128x128xf32>
    %265 = arith.mulf %264, %262 : vector<128x128xf32>
    %cst_170 = arith.constant dense<0.000000e+00> : vector<128x128xf32>
    %266 = tpu.matmul %262, %263, %cst_170 {dimension_numbers = #tpu.dot_dimension_numbers<[1], [0], [0], [1], [0, 0, 1, 1], [], []>} : vector<128x128xf32>, vector<128x128xf32>, vector<128x128xf32> -> vector<128x128xf32>
    %267 = arith.subf %265, %266 : vector<128x128xf32>
    %c15_i32_171 = arith.constant 15 : i32
    %cst_172 = arith.constant dense<0.000000e+00> : vector<128x128xf32>
    %268 = tpu.matmul %174, %267, %cst_172 {dimension_numbers = #tpu.dot_dimension_numbers<[1], [0], [0], [1], [0, 0, 1, 1], [], []>} : vector<128x128xf32>, vector<128x128xf32>, vector<128x128xf32> -> vector<128x128xf32>
    %cst_173 = arith.constant 2.000000e+00 : f32
    %269 = vector.broadcast %cst_173 : f32 to vector<128x128xf32>
    %270 = arith.mulf %269, %267 : vector<128x128xf32>
    %cst_174 = arith.constant dense<0.000000e+00> : vector<128x128xf32>
    %271 = tpu.matmul %267, %268, %cst_174 {dimension_numbers = #tpu.dot_dimension_numbers<[1], [0], [0], [1], [0, 0, 1, 1], [], []>} : vector<128x128xf32>, vector<128x128xf32>, vector<128x128xf32> -> vector<128x128xf32>
    %272 = arith.subf %270, %271 : vector<128x128xf32>
    %cst_175 = arith.constant dense<0.000000e+00> : vector<8x128xf32>
    %273 = tpu.matmul %156, %272, %cst_175 {dimension_numbers = #tpu.dot_dimension_numbers<[1], [0], [0], [1], [0, 0, 1, 1], [], []>} : vector<8x128xf32>, vector<128x128xf32>, vector<8x128xf32> -> vector<8x128xf32>
    %274 = arith.subf %137, %273 : vector<8x128xf32>
    %c2_i32_176 = arith.constant 2 : i32
    %c0_177 = arith.constant 0 : index
    %c0_178 = arith.constant 0 : index
    %275 = vector.load %arg3[%c0_177, %c0_178] : memref<128x128xf32, #tpu.memory_space<vmem>>, vector<128x128xf32>
    %cst_179 = arith.constant dense<0.000000e+00> : vector<8x128xf32>
    %276 = tpu.matmul %274, %275, %cst_179 {dimension_numbers = #tpu.dot_dimension_numbers<[1], [0], [0], [1], [0, 0, 1, 1], [], []>} : vector<8x128xf32>, vector<128x128xf32>, vector<8x128xf32> -> vector<8x128xf32>
    %277 = arith.mulf %276, %276 : vector<8x128xf32>
    %cst_180 = arith.constant 1.000000e+00 : f32
    %278 = vector.broadcast %cst_180 : f32 to vector<8x128xf32>
    %279 = arith.addf %277, %278 : vector<8x128xf32>
    %280 = math.rsqrt %279 : vector<8x128xf32>
    %281 = arith.mulf %276, %276 : vector<8x128xf32>
    %cst_181 = arith.constant 4.000000e+00 : f32
    %282 = vector.broadcast %cst_181 : f32 to vector<8x128xf32>
    %283 = arith.addf %281, %282 : vector<8x128xf32>
    %284 = tpu.reciprocal %283 {approx = true} : vector<8x128xf32> -> vector<8x128xf32>
    %285 = arith.mulf %276, %280 : vector<8x128xf32>
    %286 = arith.mulf %276, %284 : vector<8x128xf32>
    %c0_182 = arith.constant 0 : index
    %c0_183 = arith.constant 0 : index
    %287 = vector.load %arg2[%c0_182, %c0_183] : memref<128x128xf32, #tpu.memory_space<vmem>>, vector<128x128xf32>
    %cst_184 = arith.constant dense<0.000000e+00> : vector<8x128xf32>
    %288 = tpu.matmul %274, %287, %cst_184 {dimension_numbers = #tpu.dot_dimension_numbers<[1], [0], [0], [1], [0, 0, 1, 1], [], []>} : vector<8x128xf32>, vector<128x128xf32>, vector<8x128xf32> -> vector<8x128xf32>
    %c0_185 = arith.constant 0 : index
    %c0_186 = arith.constant 0 : index
    %289 = vector.load %arg1[%c0_185, %c0_186] : memref<8x128xf32, #tpu.memory_space<vmem>>, vector<8x128xf32>
    %290 = arith.subf %288, %289 : vector<8x128xf32>
    %291 = tpu.concatenate %290, %285, %286 in 1 : vector<8x128xf32>, vector<8x128xf32>, vector<8x128xf32> -> vector<8x384xf32>
    %c0_187 = arith.constant 0 : index
    %c0_188 = arith.constant 0 : index
    %292 = vector.load %arg5[%c0_187, %c0_188] : memref<384x128xf32, #tpu.memory_space<vmem>>, vector<384x128xf32>
    %cst_189 = arith.constant dense<0.000000e+00> : vector<8x128xf32>
    %293 = tpu.matmul %291, %292, %cst_189 {dimension_numbers = #tpu.dot_dimension_numbers<[1], [0], [0], [1], [0, 0, 1, 1], [], []>} : vector<8x384xf32>, vector<384x128xf32>, vector<8x128xf32> -> vector<8x128xf32>
    %cst_190 = arith.constant dense<0.000000e+00> : vector<128xf32>
    %294 = vector.multi_reduction <add>, %280, %cst_190 [0] : vector<8x128xf32> to vector<128xf32>
    %295 = vector.shape_cast %294 : vector<128xf32> to vector<1x128xf32>
    %cst_191 = arith.constant 1.000000e-01 : f32
    %296 = vector.broadcast %cst_191 : f32 to vector<1x128xf32>
    %297 = arith.mulf %296, %295 : vector<1x128xf32>
    %cst_192 = arith.constant dense<0.000000e+00> : vector<128xf32>
    %298 = vector.multi_reduction <add>, %284, %cst_192 [0] : vector<8x128xf32> to vector<128xf32>
    %299 = vector.shape_cast %298 : vector<128xf32> to vector<1x128xf32>
    %cst_193 = arith.constant 5.000000e-02 : f32
    %300 = vector.broadcast %cst_193 : f32 to vector<1x128xf32>
    %301 = arith.mulf %300, %299 : vector<1x128xf32>
    %302 = arith.addf %297, %301 : vector<1x128xf32>
    %cst_194 = arith.constant 1.250000e-01 : f32
    %303 = vector.broadcast %cst_194 : f32 to vector<1x128xf32>
    %304 = arith.mulf %302, %303 : vector<1x128xf32>
    %c0_195 = arith.constant 0 : index
    %c0_196 = arith.constant 0 : index
    %305 = vector.load %arg6[%c0_195, %c0_196] : memref<128x128xf32, #tpu.memory_space<vmem>>, vector<128x128xf32>
    %c0_197 = arith.constant 0 : index
    %c0_198 = arith.constant 0 : index
    %306 = vector.load %arg3[%c0_197, %c0_198] : memref<128x128xf32, #tpu.memory_space<vmem>>, vector<128x128xf32>
    %307 = vector.broadcast %304 : vector<1x128xf32> to vector<128x128xf32>
    %308 = arith.mulf %306, %307 : vector<128x128xf32>
    %c0_199 = arith.constant 0 : index
    %c0_200 = arith.constant 0 : index
    %309 = vector.load %arg4[%c0_199, %c0_200] : memref<128x128xf32, #tpu.memory_space<vmem>>, vector<128x128xf32>
    %cst_201 = arith.constant dense<0.000000e+00> : vector<128x128xf32>
    %310 = tpu.matmul %308, %309, %cst_201 {dimension_numbers = #tpu.dot_dimension_numbers<[1], [0], [0], [1], [0, 0, 1, 1], [], []>} : vector<128x128xf32>, vector<128x128xf32>, vector<128x128xf32> -> vector<128x128xf32>
    %311 = arith.addf %305, %310 : vector<128x128xf32>
    %312 = math.absf %311 : vector<128x128xf32>
    %cst_202 = arith.constant dense<0.000000e+00> : vector<128xf32>
    %313 = vector.multi_reduction <add>, %312, %cst_202 [0] : vector<128x128xf32> to vector<128xf32>
    %314 = vector.shape_cast %313 : vector<128xf32> to vector<1x128xf32>
    %315 = vector.shape_cast %314 : vector<1x128xf32> to vector<1x1x128xf32>
    %cst_203 = arith.constant dense<0xFF800000> : vector<1xf32>
    %316 = vector.multi_reduction <maximumf>, %315, %cst_203 [1, 2] : vector<1x1x128xf32> to vector<1xf32>
    %317 = vector.shape_cast %316 : vector<1xf32> to vector<1x1x1xf32>
    %318 = vector.extract %317[0, 0, 0] : f32 from vector<1x1x1xf32>
    %319 = math.absf %311 : vector<128x128xf32>
    %cst_204 = arith.constant dense<0.000000e+00> : vector<128xf32>
    %320 = vector.multi_reduction <add>, %319, %cst_204 [1] : vector<128x128xf32> to vector<128xf32>
    %321 = vector.shape_cast %320 : vector<128xf32> to vector<128x1xf32>
    %322 = vector.shape_cast %321 : vector<128x1xf32> to vector<1x128x1xf32>
    %cst_205 = arith.constant dense<0xFF800000> : vector<1xf32>
    %323 = vector.multi_reduction <maximumf>, %322, %cst_205 [1, 2] : vector<1x128x1xf32> to vector<1xf32>
    %324 = vector.shape_cast %323 : vector<1xf32> to vector<1x1x1xf32>
    %325 = vector.extract %324[0, 0, 0] : f32 from vector<1x1x1xf32>
    %326 = arith.mulf %318, %325 : f32
    %cst_206 = arith.constant 1.000000e+00 : f32
    %327 = arith.divf %cst_206, %326 : f32
    %328 = vector.broadcast %327 : f32 to vector<128x128xf32>
    %329 = arith.mulf %311, %328 : vector<128x128xf32>
    %c0_i32_207 = arith.constant 0 : i32
    %cst_208 = arith.constant dense<0.000000e+00> : vector<128x128xf32>
    %330 = tpu.matmul %311, %329, %cst_208 {dimension_numbers = #tpu.dot_dimension_numbers<[1], [0], [0], [1], [0, 0, 1, 1], [], []>} : vector<128x128xf32>, vector<128x128xf32>, vector<128x128xf32> -> vector<128x128xf32>
    %cst_209 = arith.constant 2.000000e+00 : f32
    %331 = vector.broadcast %cst_209 : f32 to vector<128x128xf32>
    %332 = arith.mulf %331, %329 : vector<128x128xf32>
    %cst_210 = arith.constant dense<0.000000e+00> : vector<128x128xf32>
    %333 = tpu.matmul %329, %330, %cst_210 {dimension_numbers = #tpu.dot_dimension_numbers<[1], [0], [0], [1], [0, 0, 1, 1], [], []>} : vector<128x128xf32>, vector<128x128xf32>, vector<128x128xf32> -> vector<128x128xf32>
    %334 = arith.subf %332, %333 : vector<128x128xf32>
    %c1_i32_211 = arith.constant 1 : i32
    %cst_212 = arith.constant dense<0.000000e+00> : vector<128x128xf32>
    %335 = tpu.matmul %311, %334, %cst_212 {dimension_numbers = #tpu.dot_dimension_numbers<[1], [0], [0], [1], [0, 0, 1, 1], [], []>} : vector<128x128xf32>, vector<128x128xf32>, vector<128x128xf32> -> vector<128x128xf32>
    %cst_213 = arith.constant 2.000000e+00 : f32
    %336 = vector.broadcast %cst_213 : f32 to vector<128x128xf32>
    %337 = arith.mulf %336, %334 : vector<128x128xf32>
    %cst_214 = arith.constant dense<0.000000e+00> : vector<128x128xf32>
    %338 = tpu.matmul %334, %335, %cst_214 {dimension_numbers = #tpu.dot_dimension_numbers<[1], [0], [0], [1], [0, 0, 1, 1], [], []>} : vector<128x128xf32>, vector<128x128xf32>, vector<128x128xf32> -> vector<128x128xf32>
    %339 = arith.subf %337, %338 : vector<128x128xf32>
    %c2_i32_215 = arith.constant 2 : i32
    %cst_216 = arith.constant dense<0.000000e+00> : vector<128x128xf32>
    %340 = tpu.matmul %311, %339, %cst_216 {dimension_numbers = #tpu.dot_dimension_numbers<[1], [0], [0], [1], [0, 0, 1, 1], [], []>} : vector<128x128xf32>, vector<128x128xf32>, vector<128x128xf32> -> vector<128x128xf32>
    %cst_217 = arith.constant 2.000000e+00 : f32
    %341 = vector.broadcast %cst_217 : f32 to vector<128x128xf32>
    %342 = arith.mulf %341, %339 : vector<128x128xf32>
    %cst_218 = arith.constant dense<0.000000e+00> : vector<128x128xf32>
    %343 = tpu.matmul %339, %340, %cst_218 {dimension_numbers = #tpu.dot_dimension_numbers<[1], [0], [0], [1], [0, 0, 1, 1], [], []>} : vector<128x128xf32>, vector<128x128xf32>, vector<128x128xf32> -> vector<128x128xf32>
    %344 = arith.subf %342, %343 : vector<128x128xf32>
    %c3_i32_219 = arith.constant 3 : i32
    %cst_220 = arith.constant dense<0.000000e+00> : vector<128x128xf32>
    %345 = tpu.matmul %311, %344, %cst_220 {dimension_numbers = #tpu.dot_dimension_numbers<[1], [0], [0], [1], [0, 0, 1, 1], [], []>} : vector<128x128xf32>, vector<128x128xf32>, vector<128x128xf32> -> vector<128x128xf32>
    %cst_221 = arith.constant 2.000000e+00 : f32
    %346 = vector.broadcast %cst_221 : f32 to vector<128x128xf32>
    %347 = arith.mulf %346, %344 : vector<128x128xf32>
    %cst_222 = arith.constant dense<0.000000e+00> : vector<128x128xf32>
    %348 = tpu.matmul %344, %345, %cst_222 {dimension_numbers = #tpu.dot_dimension_numbers<[1], [0], [0], [1], [0, 0, 1, 1], [], []>} : vector<128x128xf32>, vector<128x128xf32>, vector<128x128xf32> -> vector<128x128xf32>
    %349 = arith.subf %347, %348 : vector<128x128xf32>
    %c4_i32_223 = arith.constant 4 : i32
    %cst_224 = arith.constant dense<0.000000e+00> : vector<128x128xf32>
    %350 = tpu.matmul %311, %349, %cst_224 {dimension_numbers = #tpu.dot_dimension_numbers<[1], [0], [0], [1], [0, 0, 1, 1], [], []>} : vector<128x128xf32>, vector<128x128xf32>, vector<128x128xf32> -> vector<128x128xf32>
    %cst_225 = arith.constant 2.000000e+00 : f32
    %351 = vector.broadcast %cst_225 : f32 to vector<128x128xf32>
    %352 = arith.mulf %351, %349 : vector<128x128xf32>
    %cst_226 = arith.constant dense<0.000000e+00> : vector<128x128xf32>
    %353 = tpu.matmul %349, %350, %cst_226 {dimension_numbers = #tpu.dot_dimension_numbers<[1], [0], [0], [1], [0, 0, 1, 1], [], []>} : vector<128x128xf32>, vector<128x128xf32>, vector<128x128xf32> -> vector<128x128xf32>
    %354 = arith.subf %352, %353 : vector<128x128xf32>
    %c5_i32_227 = arith.constant 5 : i32
    %cst_228 = arith.constant dense<0.000000e+00> : vector<128x128xf32>
    %355 = tpu.matmul %311, %354, %cst_228 {dimension_numbers = #tpu.dot_dimension_numbers<[1], [0], [0], [1], [0, 0, 1, 1], [], []>} : vector<128x128xf32>, vector<128x128xf32>, vector<128x128xf32> -> vector<128x128xf32>
    %cst_229 = arith.constant 2.000000e+00 : f32
    %356 = vector.broadcast %cst_229 : f32 to vector<128x128xf32>
    %357 = arith.mulf %356, %354 : vector<128x128xf32>
    %cst_230 = arith.constant dense<0.000000e+00> : vector<128x128xf32>
    %358 = tpu.matmul %354, %355, %cst_230 {dimension_numbers = #tpu.dot_dimension_numbers<[1], [0], [0], [1], [0, 0, 1, 1], [], []>} : vector<128x128xf32>, vector<128x128xf32>, vector<128x128xf32> -> vector<128x128xf32>
    %359 = arith.subf %357, %358 : vector<128x128xf32>
    %c6_i32_231 = arith.constant 6 : i32
    %cst_232 = arith.constant dense<0.000000e+00> : vector<128x128xf32>
    %360 = tpu.matmul %311, %359, %cst_232 {dimension_numbers = #tpu.dot_dimension_numbers<[1], [0], [0], [1], [0, 0, 1, 1], [], []>} : vector<128x128xf32>, vector<128x128xf32>, vector<128x128xf32> -> vector<128x128xf32>
    %cst_233 = arith.constant 2.000000e+00 : f32
    %361 = vector.broadcast %cst_233 : f32 to vector<128x128xf32>
    %362 = arith.mulf %361, %359 : vector<128x128xf32>
    %cst_234 = arith.constant dense<0.000000e+00> : vector<128x128xf32>
    %363 = tpu.matmul %359, %360, %cst_234 {dimension_numbers = #tpu.dot_dimension_numbers<[1], [0], [0], [1], [0, 0, 1, 1], [], []>} : vector<128x128xf32>, vector<128x128xf32>, vector<128x128xf32> -> vector<128x128xf32>
    %364 = arith.subf %362, %363 : vector<128x128xf32>
    %c7_i32_235 = arith.constant 7 : i32
    %cst_236 = arith.constant dense<0.000000e+00> : vector<128x128xf32>
    %365 = tpu.matmul %311, %364, %cst_236 {dimension_numbers = #tpu.dot_dimension_numbers<[1], [0], [0], [1], [0, 0, 1, 1], [], []>} : vector<128x128xf32>, vector<128x128xf32>, vector<128x128xf32> -> vector<128x128xf32>
    %cst_237 = arith.constant 2.000000e+00 : f32
    %366 = vector.broadcast %cst_237 : f32 to vector<128x128xf32>
    %367 = arith.mulf %366, %364 : vector<128x128xf32>
    %cst_238 = arith.constant dense<0.000000e+00> : vector<128x128xf32>
    %368 = tpu.matmul %364, %365, %cst_238 {dimension_numbers = #tpu.dot_dimension_numbers<[1], [0], [0], [1], [0, 0, 1, 1], [], []>} : vector<128x128xf32>, vector<128x128xf32>, vector<128x128xf32> -> vector<128x128xf32>
    %369 = arith.subf %367, %368 : vector<128x128xf32>
    %c8_i32_239 = arith.constant 8 : i32
    %cst_240 = arith.constant dense<0.000000e+00> : vector<128x128xf32>
    %370 = tpu.matmul %311, %369, %cst_240 {dimension_numbers = #tpu.dot_dimension_numbers<[1], [0], [0], [1], [0, 0, 1, 1], [], []>} : vector<128x128xf32>, vector<128x128xf32>, vector<128x128xf32> -> vector<128x128xf32>
    %cst_241 = arith.constant 2.000000e+00 : f32
    %371 = vector.broadcast %cst_241 : f32 to vector<128x128xf32>
    %372 = arith.mulf %371, %369 : vector<128x128xf32>
    %cst_242 = arith.constant dense<0.000000e+00> : vector<128x128xf32>
    %373 = tpu.matmul %369, %370, %cst_242 {dimension_numbers = #tpu.dot_dimension_numbers<[1], [0], [0], [1], [0, 0, 1, 1], [], []>} : vector<128x128xf32>, vector<128x128xf32>, vector<128x128xf32> -> vector<128x128xf32>
    %374 = arith.subf %372, %373 : vector<128x128xf32>
    %c9_i32_243 = arith.constant 9 : i32
    %cst_244 = arith.constant dense<0.000000e+00> : vector<128x128xf32>
    %375 = tpu.matmul %311, %374, %cst_244 {dimension_numbers = #tpu.dot_dimension_numbers<[1], [0], [0], [1], [0, 0, 1, 1], [], []>} : vector<128x128xf32>, vector<128x128xf32>, vector<128x128xf32> -> vector<128x128xf32>
    %cst_245 = arith.constant 2.000000e+00 : f32
    %376 = vector.broadcast %cst_245 : f32 to vector<128x128xf32>
    %377 = arith.mulf %376, %374 : vector<128x128xf32>
    %cst_246 = arith.constant dense<0.000000e+00> : vector<128x128xf32>
    %378 = tpu.matmul %374, %375, %cst_246 {dimension_numbers = #tpu.dot_dimension_numbers<[1], [0], [0], [1], [0, 0, 1, 1], [], []>} : vector<128x128xf32>, vector<128x128xf32>, vector<128x128xf32> -> vector<128x128xf32>
    %379 = arith.subf %377, %378 : vector<128x128xf32>
    %c10_i32_247 = arith.constant 10 : i32
    %cst_248 = arith.constant dense<0.000000e+00> : vector<128x128xf32>
    %380 = tpu.matmul %311, %379, %cst_248 {dimension_numbers = #tpu.dot_dimension_numbers<[1], [0], [0], [1], [0, 0, 1, 1], [], []>} : vector<128x128xf32>, vector<128x128xf32>, vector<128x128xf32> -> vector<128x128xf32>
    %cst_249 = arith.constant 2.000000e+00 : f32
    %381 = vector.broadcast %cst_249 : f32 to vector<128x128xf32>
    %382 = arith.mulf %381, %379 : vector<128x128xf32>
    %cst_250 = arith.constant dense<0.000000e+00> : vector<128x128xf32>
    %383 = tpu.matmul %379, %380, %cst_250 {dimension_numbers = #tpu.dot_dimension_numbers<[1], [0], [0], [1], [0, 0, 1, 1], [], []>} : vector<128x128xf32>, vector<128x128xf32>, vector<128x128xf32> -> vector<128x128xf32>
    %384 = arith.subf %382, %383 : vector<128x128xf32>
    %c11_i32_251 = arith.constant 11 : i32
    %cst_252 = arith.constant dense<0.000000e+00> : vector<128x128xf32>
    %385 = tpu.matmul %311, %384, %cst_252 {dimension_numbers = #tpu.dot_dimension_numbers<[1], [0], [0], [1], [0, 0, 1, 1], [], []>} : vector<128x128xf32>, vector<128x128xf32>, vector<128x128xf32> -> vector<128x128xf32>
    %cst_253 = arith.constant 2.000000e+00 : f32
    %386 = vector.broadcast %cst_253 : f32 to vector<128x128xf32>
    %387 = arith.mulf %386, %384 : vector<128x128xf32>
    %cst_254 = arith.constant dense<0.000000e+00> : vector<128x128xf32>
    %388 = tpu.matmul %384, %385, %cst_254 {dimension_numbers = #tpu.dot_dimension_numbers<[1], [0], [0], [1], [0, 0, 1, 1], [], []>} : vector<128x128xf32>, vector<128x128xf32>, vector<128x128xf32> -> vector<128x128xf32>
    %389 = arith.subf %387, %388 : vector<128x128xf32>
    %c12_i32_255 = arith.constant 12 : i32
    %cst_256 = arith.constant dense<0.000000e+00> : vector<128x128xf32>
    %390 = tpu.matmul %311, %389, %cst_256 {dimension_numbers = #tpu.dot_dimension_numbers<[1], [0], [0], [1], [0, 0, 1, 1], [], []>} : vector<128x128xf32>, vector<128x128xf32>, vector<128x128xf32> -> vector<128x128xf32>
    %cst_257 = arith.constant 2.000000e+00 : f32
    %391 = vector.broadcast %cst_257 : f32 to vector<128x128xf32>
    %392 = arith.mulf %391, %389 : vector<128x128xf32>
    %cst_258 = arith.constant dense<0.000000e+00> : vector<128x128xf32>
    %393 = tpu.matmul %389, %390, %cst_258 {dimension_numbers = #tpu.dot_dimension_numbers<[1], [0], [0], [1], [0, 0, 1, 1], [], []>} : vector<128x128xf32>, vector<128x128xf32>, vector<128x128xf32> -> vector<128x128xf32>
    %394 = arith.subf %392, %393 : vector<128x128xf32>
    %c13_i32_259 = arith.constant 13 : i32
    %cst_260 = arith.constant dense<0.000000e+00> : vector<128x128xf32>
    %395 = tpu.matmul %311, %394, %cst_260 {dimension_numbers = #tpu.dot_dimension_numbers<[1], [0], [0], [1], [0, 0, 1, 1], [], []>} : vector<128x128xf32>, vector<128x128xf32>, vector<128x128xf32> -> vector<128x128xf32>
    %cst_261 = arith.constant 2.000000e+00 : f32
    %396 = vector.broadcast %cst_261 : f32 to vector<128x128xf32>
    %397 = arith.mulf %396, %394 : vector<128x128xf32>
    %cst_262 = arith.constant dense<0.000000e+00> : vector<128x128xf32>
    %398 = tpu.matmul %394, %395, %cst_262 {dimension_numbers = #tpu.dot_dimension_numbers<[1], [0], [0], [1], [0, 0, 1, 1], [], []>} : vector<128x128xf32>, vector<128x128xf32>, vector<128x128xf32> -> vector<128x128xf32>
    %399 = arith.subf %397, %398 : vector<128x128xf32>
    %c14_i32_263 = arith.constant 14 : i32
    %cst_264 = arith.constant dense<0.000000e+00> : vector<128x128xf32>
    %400 = tpu.matmul %311, %399, %cst_264 {dimension_numbers = #tpu.dot_dimension_numbers<[1], [0], [0], [1], [0, 0, 1, 1], [], []>} : vector<128x128xf32>, vector<128x128xf32>, vector<128x128xf32> -> vector<128x128xf32>
    %cst_265 = arith.constant 2.000000e+00 : f32
    %401 = vector.broadcast %cst_265 : f32 to vector<128x128xf32>
    %402 = arith.mulf %401, %399 : vector<128x128xf32>
    %cst_266 = arith.constant dense<0.000000e+00> : vector<128x128xf32>
    %403 = tpu.matmul %399, %400, %cst_266 {dimension_numbers = #tpu.dot_dimension_numbers<[1], [0], [0], [1], [0, 0, 1, 1], [], []>} : vector<128x128xf32>, vector<128x128xf32>, vector<128x128xf32> -> vector<128x128xf32>
    %404 = arith.subf %402, %403 : vector<128x128xf32>
    %c15_i32_267 = arith.constant 15 : i32
    %cst_268 = arith.constant dense<0.000000e+00> : vector<128x128xf32>
    %405 = tpu.matmul %311, %404, %cst_268 {dimension_numbers = #tpu.dot_dimension_numbers<[1], [0], [0], [1], [0, 0, 1, 1], [], []>} : vector<128x128xf32>, vector<128x128xf32>, vector<128x128xf32> -> vector<128x128xf32>
    %cst_269 = arith.constant 2.000000e+00 : f32
    %406 = vector.broadcast %cst_269 : f32 to vector<128x128xf32>
    %407 = arith.mulf %406, %404 : vector<128x128xf32>
    %cst_270 = arith.constant dense<0.000000e+00> : vector<128x128xf32>
    %408 = tpu.matmul %404, %405, %cst_270 {dimension_numbers = #tpu.dot_dimension_numbers<[1], [0], [0], [1], [0, 0, 1, 1], [], []>} : vector<128x128xf32>, vector<128x128xf32>, vector<128x128xf32> -> vector<128x128xf32>
    %409 = arith.subf %407, %408 : vector<128x128xf32>
    %cst_271 = arith.constant dense<0.000000e+00> : vector<8x128xf32>
    %410 = tpu.matmul %293, %409, %cst_271 {dimension_numbers = #tpu.dot_dimension_numbers<[1], [0], [0], [1], [0, 0, 1, 1], [], []>} : vector<8x128xf32>, vector<128x128xf32>, vector<8x128xf32> -> vector<8x128xf32>
    %411 = arith.subf %274, %410 : vector<8x128xf32>
    %c0_272 = arith.constant 0 : index
    %c0_273 = arith.constant 0 : index
    %412 = vector.load %arg7[%c0_272, %c0_273] : memref<8x128xf32, #tpu.memory_space<vmem>>, vector<8x128xf32>
    tpu.vector_store %arg7[%c0_272, %c0_273], %411 {strides = array<i32>} : memref<8x128xf32, #tpu.memory_space<vmem>>, vector<8x128xf32>,
    return
  }
}

</mosaic_0001>

<llo_original>
// kernel: tpu_custom_call.1
$region0: #{tpu_custom_call.1}
  #allocation0 [shape = 'u32[]', space=smem, size = 0x4, offset = 0x4, fixed_abs, tag = 'smem constant byte address 0x4 - core index']
  #allocation1 [shape = 'u32[72,128]{1,0:T(1,128)}', space=vmem, size = 0x9000, scoped, tag = 'internal scratch']
  %s0 = inlined_call_operand.hbm [shape: f32[8,128], index: 0, kind: input, shape index: {}]
  %s1 = inlined_call_operand.hbm [shape: f32[8,128], index: 1, kind: input, shape index: {}]
  %s2 = inlined_call_operand.hbm [shape: f32[128,128], index: 2, kind: input, shape index: {}]
  %s3 = inlined_call_operand.hbm [shape: f32[128,128], index: 3, kind: input, shape index: {}]
  %s4 = inlined_call_operand.hbm [shape: f32[128,128], index: 4, kind: input, shape index: {}]
  %s5 = inlined_call_operand.hbm [shape: f32[384,128], index: 5, kind: input, shape index: {}]
  %s6 = inlined_call_operand.hbm [shape: f32[128,128], index: 6, kind: input, shape index: {}]
  %s7 = inlined_call_operand.hbm [shape: f32[8,128], index: 7, kind: output, shape index: {}]
  %s8 = sld [smem:[#allocation0]]
  $region66: #{tpu_custom_call.1} parent=0
    _
  %s10 = ssub.s32 1, %s8
  %s11 = scalar_select 0, %s10, %s8
  $region1: #{tpu_custom_call.1} parent=0
    #allocation2 [shape = 'u8[4096]{0}', space=vmem, size = 0x1000, scoped, tag = 'input window, operand 0, single buffered']
    #allocation3 [shape = 's32[1]{0}', space=sflag, size = 0x4, scoped, tag = 'scoped memory for tpu_custom_call.1']
    #allocation4 [shape = 's32[1]{0}', space=sflag, size = 0x4, scoped, tag = 'scoped memory for tpu_custom_call.1']
    #allocation5 [shape = 'u8[4096]{0}', space=vmem, size = 0x1000, scoped, tag = 'input window, operand 1, single buffered']
    #allocation6 [shape = 's32[1]{0}', space=sflag, size = 0x4, scoped, tag = 'scoped memory for tpu_custom_call.1']
    #allocation7 [shape = 'u8[65536]{0}', space=vmem, size = 0x10000, scoped, tag = 'input window, operand 2, single buffered']
    #allocation8 [shape = 'u8[65536]{0}', space=vmem, size = 0x10000, scoped, tag = 'input window, operand 3, single buffered']
    #allocation9 [shape = 's32[1]{0}', space=sflag, size = 0x4, scoped, tag = 'scoped memory for tpu_custom_call.1']
    #allocation10 [shape = 'u8[65536]{0}', space=vmem, size = 0x10000, scoped, tag = 'input window, operand 4, single buffered']
    #allocation11 [shape = 'u8[196608]{0}', space=vmem, size = 0x30000, scoped, tag = 'input window, operand 5, single buffered']
    #allocation12 [shape = 's32[1]{0}', space=sflag, size = 0x4, scoped, tag = 'scoped memory for tpu_custom_call.1']
    #allocation13 [shape = 'u8[65536]{0}', space=vmem, size = 0x10000, scoped, tag = 'input window, operand 6, single buffered']
    #allocation14 [shape = 'u8[4096]{0}', space=vmem, size = 0x1000, scoped, tag = 'output window, operand 0, single buffered']
    %12 = vsyncpa [#allocation3], 0
    %13 = vsyncpa [#allocation6], 0
    %14 = vsyncpa [#allocation9], 0
    %15 = vsyncpa [#allocation12], 0
    %16 = vsyncpa [#allocation4], 0
    // Predicated region
    $region2: #{tpu_custom_call.1} parent=1 // pred_check
      _
    $region3: #{tpu_custom_call.1} parent=1 // pred_check_branch
      %18 = sbr.rel (0) target = $region5
    $region4: #{tpu_custom_call.1} parent=1 // pred_region
      %20 = vsyncadd [#allocation3], 0
      %s22 = sshll.u32 %s0, 4
      %s23 = int_to_ptr.hbm [resolvable:$true] %s22
      %s24 = sshll.u32 [#allocation2], 4
      %s25 = int_to_ptr.vmem [resolvable:$true] %s24
      %27 = dma.hbm_to_vmem [thread:$0]  %s23, 128, %s25, [#allocation3]
    $region5: #{tpu_custom_call.1} parent=1 // pred_fallthru
      _
    // Predicated region
    $region6: #{tpu_custom_call.1} parent=1 // pred_check
      _
    $region7: #{tpu_custom_call.1} parent=1 // pred_check_branch
      %29 = sbr.rel (0) target = $region9
    $region8: #{tpu_custom_call.1} parent=1 // pred_region
      %31 = vsyncadd [#allocation6], 0
      %s33 = sshll.u32 %s1, 4
      %s34 = int_to_ptr.hbm [resolvable:$true] %s33
      %s35 = sshll.u32 [#allocation5], 4
      %s36 = int_to_ptr.vmem [resolvable:$true] %s35
      %38 = dma.hbm_to_vmem [thread:$0]  %s34, 128, %s36, [#allocation6]
    $region9: #{tpu_custom_call.1} parent=1 // pred_fallthru
      _
    // Predicated region
    $region10: #{tpu_custom_call.1} parent=1 // pred_check
      _
    $region11: #{tpu_custom_call.1} parent=1 // pred_check_branch
      %40 = sbr.rel (0) target = $region13
    $region12: #{tpu_custom_call.1} parent=1 // pred_region
      %42 = vsyncadd [#allocation6], 0
      %s43 = sshll.u32 %s2, 4
      %s44 = int_to_ptr.hbm [resolvable:$true] %s43
      %s45 = sshll.u32 [#allocation7], 4
      %s46 = int_to_ptr.vmem [resolvable:$true] %s45
      %51 = dma.hbm_to_vmem [thread:$0]  %s44, 2048, %s46, [#allocation6], 128, 128, 8
    $region13: #{tpu_custom_call.1} parent=1 // pred_fallthru
      _
    // Predicated region
    $region14: #{tpu_custom_call.1} parent=1 // pred_check
      _
    $region15: #{tpu_custom_call.1} parent=1 // pred_check_branch
      %53 = sbr.rel (0) target = $region17
    $region16: #{tpu_custom_call.1} parent=1 // pred_region
      %55 = vsyncadd [#allocation9], 0
      %s56 = sshll.u32 %s3, 4
      %s57 = int_to_ptr.hbm [resolvable:$true] %s56
      %s58 = sshll.u32 [#allocation8], 4
      %s59 = int_to_ptr.vmem [resolvable:$true] %s58
      %64 = dma.hbm_to_vmem [thread:$0]  %s57, 2048, %s59, [#allocation9], 128, 128, 8
    $region17: #{tpu_custom_call.1} parent=1 // pred_fallthru
      _
    // Predicated region
    $region18: #{tpu_custom_call.1} parent=1 // pred_check
      _
    $region19: #{tpu_custom_call.1} parent=1 // pred_check_branch
      %66 = sbr.rel (0) target = $region21
    $region20: #{tpu_custom_call.1} parent=1 // pred_region
      %68 = vsyncadd [#allocation9], 0
      %s69 = sshll.u32 %s4, 4
      %s70 = int_to_ptr.hbm [resolvable:$true] %s69
      %s71 = sshll.u32 [#allocation10], 4
      %s72 = int_to_ptr.vmem [resolvable:$true] %s71
      %77 = dma.hbm_to_vmem [thread:$0]  %s70, 2048, %s72, [#allocation9], 128, 128, 8
    $region21: #{tpu_custom_call.1} parent=1 // pred_fallthru
      _
    // Predicated region
    $region22: #{tpu_custom_call.1} parent=1 // pred_check
      _
    $region23: #{tpu_custom_call.1} parent=1 // pred_check_branch
      %79 = sbr.rel (0) target = $region25
    $region24: #{tpu_custom_call.1} parent=1 // pred_region
      %81 = vsyncadd [#allocation12], 0
      %s82 = sshll.u32 %s5, 4
      %s83 = int_to_ptr.hbm [resolvable:$true] %s82
      %s84 = sshll.u32 [#allocation11], 4
      %s85 = int_to_ptr.vmem [resolvable:$true] %s84
      %90 = dma.hbm_to_vmem [thread:$0]  %s83, 6144, %s85, [#allocation12], 128, 128, 8
    $region25: #{tpu_custom_call.1} parent=1 // pred_fallthru
      _
    // Predicated region
    $region26: #{tpu_custom_call.1} parent=1 // pred_check
      _
    $region27: #{tpu_custom_call.1} parent=1 // pred_check_branch
      %92 = sbr.rel (0) target = $region29
    $region28: #{tpu_custom_call.1} parent=1 // pred_region
      %94 = vsyncadd [#allocation12], 0
      %s95 = sshll.u32 %s6, 4
      %s96 = int_to_ptr.hbm [resolvable:$true] %s95
      %s97 = sshll.u32 [#allocation13], 4
      %s98 = int_to_ptr.vmem [resolvable:$true] %s97
      %103 = dma.hbm_to_vmem [thread:$0]  %s96, 2048, %s98, [#allocation12], 128, 128, 8
    $region29: #{tpu_custom_call.1} parent=1 // pred_fallthru
      _
    // Predicated region
    $region30: #{tpu_custom_call.1} parent=1 // pred_check
      _
    $region31: #{tpu_custom_call.1} parent=1 // pred_check_branch
      %105 = sbr.rel (0) target = $region33
    $region32: #{tpu_custom_call.1} parent=1 // pred_region
      %107 = dma.done [#allocation3], 128
    $region33: #{tpu_custom_call.1} parent=1 // pred_fallthru
      _
    // Predicated region
    $region34: #{tpu_custom_call.1} parent=1 // pred_check
      _
    $region35: #{tpu_custom_call.1} parent=1 // pred_check_branch
      %109 = sbr.rel (0) target = $region37
    $region36: #{tpu_custom_call.1} parent=1 // pred_region
      %111 = dma.done [#allocation6], 128
    $region37: #{tpu_custom_call.1} parent=1 // pred_fallthru
      _
    // Predicated region
    $region38: #{tpu_custom_call.1} parent=1 // pred_check
      _
    $region39: #{tpu_custom_call.1} parent=1 // pred_check_branch
      %113 = sbr.rel (0) target = $region41
    $region40: #{tpu_custom_call.1} parent=1 // pred_region
      %115 = dma.done [#allocation6], 2048
    $region41: #{tpu_custom_call.1} parent=1 // pred_fallthru
      _
    // Predicated region
    $region42: #{tpu_custom_call.1} parent=1 // pred_check
      _
    $region43: #{tpu_custom_call.1} parent=1 // pred_check_branch
      %117 = sbr.rel (0) target = $region45
    $region44: #{tpu_custom_call.1} parent=1 // pred_region
      %119 = dma.done [#allocation9], 2048
    $region45: #{tpu_custom_call.1} parent=1 // pred_fallthru
      _
    // Predicated region
    $region46: #{tpu_custom_call.1} parent=1 // pred_check
      _
    $region47: #{tpu_custom_call.1} parent=1 // pred_check_branch
      %121 = sbr.rel (0) target = $region49
    $region48: #{tpu_custom_call.1} parent=1 // pred_region
      %123 = dma.done [#allocation9], 2048
    $region49: #{tpu_custom_call.1} parent=1 // pred_fallthru
      _
    // Predicated region
    $region50: #{tpu_custom_call.1} parent=1 // pred_check
      _
    $region51: #{tpu_custom_call.1} parent=1 // pred_check_branch
      %125 = sbr.rel (0) target = $region53
    $region52: #{tpu_custom_call.1} parent=1 // pred_region
      %127 = dma.done [#allocation12], 6144
    $region53: #{tpu_custom_call.1} parent=1 // pred_fallthru
      _
    // Predicated region
    $region54: #{tpu_custom_call.1} parent=1 // pred_check
      _
    $region55: #{tpu_custom_call.1} parent=1 // pred_check_branch
      %129 = sbr.rel (0) target = $region57
    $region56: #{tpu_custom_call.1} parent=1 // pred_region
      %131 = dma.done [#allocation12], 2048
    $region57: #{tpu_custom_call.1} parent=1 // pred_fallthru
      _
    %v132 = vld [vmem:[#allocation2] sm:$0xff]
    %v133 = vld [vmem:[#allocation8] sm:$0xff]
    %v134 = vld [vmem:[#allocation8 + $0x8] sm:$0xff]
    %v135 = vld [vmem:[#allocation8 + $0x10] sm:$0xff]
    %v136 = vld [vmem:[#allocation8 + $0x18] sm:$0xff]
    %v137 = vld [vmem:[#allocation8 + $0x20] sm:$0xff]
    %v138 = vld [vmem:[#allocation8 + $0x28] sm:$0xff]
    %v139 = vld [vmem:[#allocation8 + $0x30] sm:$0xff]
    %v140 = vld [vmem:[#allocation8 + $0x38] sm:$0xff]
    %v141 = vld [vmem:[#allocation8 + $0x40] sm:$0xff]
    %v142 = vld [vmem:[#allocation8 + $0x48] sm:$0xff]
    %v143 = vld [vmem:[#allocation8 + $0x50] sm:$0xff]
    %v144 = vld [vmem:[#allocation8 + $0x58] sm:$0xff]
    %v145 = vld [vmem:[#allocation8 + $0x60] sm:$0xff]
    %v146 = vld [vmem:[#allocation8 + $0x68] sm:$0xff]
    %v147 = vld [vmem:[#allocation8 + $0x70] sm:$0xff]
    %v148 = vld [vmem:[#allocation8 + $0x78] sm:$0xff]
    %149 = vmatpush.msra.mxu0 %v148
    %150 = vmatpush.msra.mxu0 %v147
    %151 = vmatpush.msra.mxu0 %v146
    %152 = vmatpush.msra.mxu0 %v145
    %153 = vmatpush.msra.mxu0 %v144
    %154 = vmatpush.msra.mxu0 %v143
    %155 = vmatpush.msra.mxu0 %v142
    %156 = vmatpush.msra.mxu0 %v141
    %157 = vmatpush.msra.mxu0 %v140
    %158 = vmatpush.msra.mxu0 %v139
    %159 = vmatpush.msra.mxu0 %v138
    %160 = vmatpush.msra.mxu0 %v137
    %161 = vmatpush.msra.mxu0 %v136
    %162 = vmatpush.msra.mxu0 %v135
    %163 = vmatpush.msra.mxu0 %v134
    %164 = vmatpush.msra.mxu0 %v133
    %165 = vmatmul.f32.gmra.mxu0 %v132
    %v166 = vpop.f32.mrf.mxu0
    %v167 = vadd.f32 0.0, %v166
    %168 = vdwg.mxu0
    %v169 = vmul.f32 %v167, %v167
    %v170 = vadd.f32 %v169, 1.0
    %v171 = vrsqrt.pop %v170
    %v172 = vmul.f32 %v171, %v170
    %v173 = vmul.f32 %v172, %v171
    %v174 = vmul.f32 0.5, %v173
    %v175 = vsub.f32 1.5, %v174
    %v176 = vmul.f32 %v171, %v175
    %vm177 = vweird.f32 %v170
    %vm178 = vweird.f32 %v171
    %vm179 = vmor %vm177, %vm178
    %v180 = vsel %vm179, %v171, %v176
    %v181 = vadd.f32 %v169, 4.0
    %v182 = vrcp.pop %v181
    %v183 = vmul.f32 %v167, %v180
    %v184 = vmul.f32 %v167, %v182
    %v185 = vld [vmem:[#allocation7] sm:$0xff]
    %v186 = vld [vmem:[#allocation7 + $0x8] sm:$0xff]
    %v187 = vld [vmem:[#allocation7 + $0x10] sm:$0xff]
    %v188 = vld [vmem:[#allocation7 + $0x18] sm:$0xff]
    %v189 = vld [vmem:[#allocation7 + $0x20] sm:$0xff]
    %v190 = vld [vmem:[#allocation7 + $0x28] sm:$0xff]
    %v191 = vld [vmem:[#allocation7 + $0x30] sm:$0xff]
    %v192 = vld [vmem:[#allocation7 + $0x38] sm:$0xff]
    %v193 = vld [vmem:[#allocation7 + $0x40] sm:$0xff]
    %v194 = vld [vmem:[#allocation7 + $0x48] sm:$0xff]
    %v195 = vld [vmem:[#allocation7 + $0x50] sm:$0xff]
    %v196 = vld [vmem:[#allocation7 + $0x58] sm:$0xff]
    %v197 = vld [vmem:[#allocation7 + $0x60] sm:$0xff]
    %v198 = vld [vmem:[#allocation7 + $0x68] sm:$0xff]
    %v199 = vld [vmem:[#allocation7 + $0x70] sm:$0xff]
    %v200 = vld [vmem:[#allocation7 + $0x78] sm:$0xff]
    %201 = vmatpush.msra.mxu0 %v200
    %202 = vmatpush.msra.mxu0 %v199
    %203 = vmatpush.msra.mxu0 %v198
    %204 = vmatpush.msra.mxu0 %v197
    %205 = vmatpush.msra.mxu0 %v196
    %206 = vmatpush.msra.mxu0 %v195
    %207 = vmatpush.msra.mxu0 %v194
    %208 = vmatpush.msra.mxu0 %v193
    %209 = vmatpush.msra.mxu0 %v192
    %210 = vmatpush.msra.mxu0 %v191
    %211 = vmatpush.msra.mxu0 %v190
    %212 = vmatpush.msra.mxu0 %v189
    %213 = vmatpush.msra.mxu0 %v188
    %214 = vmatpush.msra.mxu0 %v187
    %215 = vmatpush.msra.mxu0 %v186
    %216 = vmatpush.msra.mxu0 %v185
    %217 = vmatmul.f32.gmra.mxu0 %v132
    %v218 = vpop.f32.mrf.mxu0
    %v219 = vadd.f32 0.0, %v218
    %220 = vdwg.mxu0
    %v221 = vld [vmem:[#allocation5] sm:$0xff]
    %v222 = vsub.f32 %v219, %v221
    %v223 = vld [vmem:[#allocation11] sm:$0xff]
    %v224 = vld [vmem:[#allocation11 + $0x8] sm:$0xff]
    %v225 = vld [vmem:[#allocation11 + $0x10] sm:$0xff]
    %v226 = vld [vmem:[#allocation11 + $0x18] sm:$0xff]
    %v227 = vld [vmem:[#allocation11 + $0x20] sm:$0xff]
    %v228 = vld [vmem:[#allocation11 + $0x28] sm:$0xff]
    %v229 = vld [vmem:[#allocation11 + $0x30] sm:$0xff]
    %v230 = vld [vmem:[#allocation11 + $0x38] sm:$0xff]
    %v231 = vld [vmem:[#allocation11 + $0x40] sm:$0xff]
    %v232 = vld [vmem:[#allocation11 + $0x48] sm:$0xff]
    %v233 = vld [vmem:[#allocation11 + $0x50] sm:$0xff]
    %v234 = vld [vmem:[#allocation11 + $0x58] sm:$0xff]
    %v235 = vld [vmem:[#allocation11 + $0x60] sm:$0xff]
    %v236 = vld [vmem:[#allocation11 + $0x68] sm:$0xff]
    %v237 = vld [vmem:[#allocation11 + $0x70] sm:$0xff]
    %v238 = vld [vmem:[#allocation11 + $0x78] sm:$0xff]
    %v239 = vld [vmem:[#allocation11 + $0x80] sm:$0xff]
    %v240 = vld [vmem:[#allocation11 + $0x88] sm:$0xff]
    %v241 = vld [vmem:[#allocation11 + $0x90] sm:$0xff]
    %v242 = vld [vmem:[#allocation11 + $0x98] sm:$0xff]
    %v243 = vld [vmem:[#allocation11 + $0xa0] sm:$0xff]
    %v244 = vld [vmem:[#allocation11 + $0xa8] sm:$0xff]
    %v245 = vld [vmem:[#allocation11 + $0xb0] sm:$0xff]
    %v246 = vld [vmem:[#allocation11 + $0xb8] sm:$0xff]
    %v247 = vld [vmem:[#allocation11 + $0xc0] sm:$0xff]
    %v248 = vld [vmem:[#allocation11 + $0xc8] sm:$0xff]
    %v249 = vld [vmem:[#allocation11 + $0xd0] sm:$0xff]
    %v250 = vld [vmem:[#allocation11 + $0xd8] sm:$0xff]
    %v251 = vld [vmem:[#allocation11 + $0xe0] sm:$0xff]
    %v252 = vld [vmem:[#allocation11 + $0xe8] sm:$0xff]
    %v253 = vld [vmem:[#allocation11 + $0xf0] sm:$0xff]
    %v254 = vld [vmem:[#allocation11 + $0xf8] sm:$0xff]
    %v255 = vld [vmem:[#allocation11 + $0x100] sm:$0xff]
    %v256 = vld [vmem:[#allocation11 + $0x108] sm:$0xff]
    %v257 = vld [vmem:[#allocation11 + $0x110] sm:$0xff]
    %v258 = vld [vmem:[#allocation11 + $0x118] sm:$0xff]
    %v259 = vld [vmem:[#allocation11 + $0x120] sm:$0xff]
    %v260 = vld [vmem:[#allocation11 + $0x128] sm:$0xff]
    %v261 = vld [vmem:[#allocation11 + $0x130] sm:$0xff]
    %v262 = vld [vmem:[#allocation11 + $0x138] sm:$0xff]
    %v263 = vld [vmem:[#allocation11 + $0x140] sm:$0xff]
    %v264 = vld [vmem:[#allocation11 + $0x148] sm:$0xff]
    %v265 = vld [vmem:[#allocation11 + $0x150] sm:$0xff]
    %v266 = vld [vmem:[#allocation11 + $0x158] sm:$0xff]
    %v267 = vld [vmem:[#allocation11 + $0x160] sm:$0xff]
    %v268 = vld [vmem:[#allocation11 + $0x168] sm:$0xff]
    %v269 = vld [vmem:[#allocation11 + $0x170] sm:$0xff]
    %v270 = vld [vmem:[#allocation11 + $0x178] sm:$0xff]
    %271 = vmatpush.msra.mxu0 %v238
    %272 = vmatpush.msra.mxu0 %v237
    %273 = vmatpush.msra.mxu0 %v236
    %274 = vmatpush.msra.mxu0 %v235
    %275 = vmatpush.msra.mxu0 %v234
    %276 = vmatpush.msra.mxu0 %v233
    %277 = vmatpush.msra.mxu0 %v232
    %278 = vmatpush.msra.mxu0 %v231
    %279 = vmatpush.msra.mxu0 %v230
    %280 = vmatpush.msra.mxu0 %v229
    %281 = vmatpush.msra.mxu0 %v228
    %282 = vmatpush.msra.mxu0 %v227
    %283 = vmatpush.msra.mxu0 %v226
    %284 = vmatpush.msra.mxu0 %v225
    %285 = vmatpush.msra.mxu0 %v224
    %286 = vmatpush.msra.mxu0 %v223
    %287 = vmatmul.f32.gmra.mxu0 %v222
    %v288 = vpop.f32.mrf.mxu0
    %v289 = vadd.f32 0.0, %v288
    %290 = vdwg.mxu0
    %291 = vmatpush.msra.mxu0 %v254
    %292 = vmatpush.msra.mxu0 %v253
    %293 = vmatpush.msra.mxu0 %v252
    %294 = vmatpush.msra.mxu0 %v251
    %295 = vmatpush.msra.mxu0 %v250
    %296 = vmatpush.msra.mxu0 %v249
    %297 = vmatpush.msra.mxu0 %v248
    %298 = vmatpush.msra.mxu0 %v247
    %299 = vmatpush.msra.mxu0 %v246
    %300 = vmatpush.msra.mxu0 %v245
    %301 = vmatpush.msra.mxu0 %v244
    %302 = vmatpush.msra.mxu0 %v243
    %303 = vmatpush.msra.mxu0 %v242
    %304 = vmatpush.msra.mxu0 %v241
    %305 = vmatpush.msra.mxu0 %v240
    %306 = vmatpush.msra.mxu0 %v239
    %307 = vmatmul.f32.gmra.mxu0 %v183
    %v308 = vpop.f32.mrf.mxu0
    %v309 = vadd.f32 %v289, %v308
    %310 = vdwg.mxu0
    %311 = vmatpush.msra.mxu0 %v270
    %312 = vmatpush.msra.mxu0 %v269
    %313 = vmatpush.msra.mxu0 %v268
    %314 = vmatpush.msra.mxu0 %v267
    %315 = vmatpush.msra.mxu0 %v266
    %316 = vmatpush.msra.mxu0 %v265
    %317 = vmatpush.msra.mxu0 %v264
    %318 = vmatpush.msra.mxu0 %v263
    %319 = vmatpush.msra.mxu0 %v262
    %320 = vmatpush.msra.mxu0 %v261
    %321 = vmatpush.msra.mxu0 %v260
    %322 = vmatpush.msra.mxu0 %v259
    %323 = vmatpush.msra.mxu0 %v258
    %324 = vmatpush.msra.mxu0 %v257
    %325 = vmatpush.msra.mxu0 %v256
    %326 = vmatpush.msra.mxu0 %v255
    %327 = vmatmul.f32.gmra.mxu0 %v184
    %v328 = vpop.f32.mrf.mxu0
    %v329 = vadd.f32 %v309, %v328
    %330 = vdwg.mxu0
    %v331 = vrot.slane %v180, 4
    %v332 = vadd.f32 %v180, %v331
    %v333 = vrot.slane %v332, 2
    %v334 = vadd.f32 %v332, %v333
    %v335 = vrot.slane %v334, 1
    %v336 = vadd.f32 %v334, %v335
    %v337 = vmul.f32 %v336, 0.1
    %v338 = vrot.slane %v182, 4
    %v339 = vadd.f32 %v182, %v338
    %v340 = vrot.slane %v339, 2
    %v341 = vadd.f32 %v339, %v340
    %v342 = vrot.slane %v341, 1
    %v343 = vadd.f32 %v341, %v342
    %v344 = vmul.f32 %v343, 0.05
    %v345 = vadd.f32 %v337, %v344
    %v346 = vmul.f32 %v345, 0.125
    %v347 = vld [vmem:[#allocation13] sm:$0xff]
    %v348 = vld [vmem:[#allocation13 + $0x8] sm:$0xff]
    %v349 = vld [vmem:[#allocation13 + $0x10] sm:$0xff]
    %v350 = vld [vmem:[#allocation13 + $0x18] sm:$0xff]
    %v351 = vld [vmem:[#allocation13 + $0x20] sm:$0xff]
    %v352 = vld [vmem:[#allocation13 + $0x28] sm:$0xff]
    %v353 = vld [vmem:[#allocation13 + $0x30] sm:$0xff]
    %v354 = vld [vmem:[#allocation13 + $0x38] sm:$0xff]
    %v355 = vld [vmem:[#allocation13 + $0x40] sm:$0xff]
    %v356 = vld [vmem:[#allocation13 + $0x48] sm:$0xff]
    %v357 = vld [vmem:[#allocation13 + $0x50] sm:$0xff]
    %v358 = vld [vmem:[#allocation13 + $0x58] sm:$0xff]
    %v359 = vld [vmem:[#allocation13 + $0x60] sm:$0xff]
    %v360 = vld [vmem:[#allocation13 + $0x68] sm:$0xff]
    %v361 = vld [vmem:[#allocation13 + $0x70] sm:$0xff]
    %v362 = vld [vmem:[#allocation13 + $0x78] sm:$0xff]
    %v363 = vmul.f32 %v133, %v346
    %v364 = vmul.f32 %v134, %v346
    %v365 = vmul.f32 %v135, %v346
    %v366 = vmul.f32 %v136, %v346
    %v367 = vmul.f32 %v137, %v346
    %v368 = vmul.f32 %v138, %v346
    %v369 = vmul.f32 %v139, %v346
    %v370 = vmul.f32 %v140, %v346
    %v371 = vmul.f32 %v141, %v346
    %v372 = vmul.f32 %v142, %v346
    %v373 = vmul.f32 %v143, %v346
    %v374 = vmul.f32 %v144, %v346
    %v375 = vmul.f32 %v145, %v346
    %v376 = vmul.f32 %v146, %v346
    %v377 = vmul.f32 %v147, %v346
    %v378 = vmul.f32 %v148, %v346
    %v379 = vld [vmem:[#allocation10] sm:$0xff]
    %v380 = vld [vmem:[#allocation10 + $0x8] sm:$0xff]
    %v381 = vld [vmem:[#allocation10 + $0x10] sm:$0xff]
    %v382 = vld [vmem:[#allocation10 + $0x18] sm:$0xff]
    %v383 = vld [vmem:[#allocation10 + $0x20] sm:$0xff]
    %v384 = vld [vmem:[#allocation10 + $0x28] sm:$0xff]
    %v385 = vld [vmem:[#allocation10 + $0x30] sm:$0xff]
    %v386 = vld [vmem:[#allocation10 + $0x38] sm:$0xff]
    %v387 = vld [vmem:[#allocation10 + $0x40] sm:$0xff]
    %v388 = vld [vmem:[#allocation10 + $0x48] sm:$0xff]
    %v389 = vld [vmem:[#allocation10 + $0x50] sm:$0xff]
    %v390 = vld [vmem:[#allocation10 + $0x58] sm:$0xff]
    %v391 = vld [vmem:[#allocation10 + $0x60] sm:$0xff]
    %v392 = vld [vmem:[#allocation10 + $0x68] sm:$0xff]
    %v393 = vld [vmem:[#allocation10 + $0x70] sm:$0xff]
    %v394 = vld [vmem:[#allocation10 + $0x78] sm:$0xff]
    %395 = vmatpush.msra.mxu0 %v394
    %396 = vmatpush.msra.mxu0 %v393
    %397 = vmatpush.msra.mxu0 %v392
    %398 = vmatpush.msra.mxu0 %v391
    %399 = vmatpush.msra.mxu0 %v390
    %400 = vmatpush.msra.mxu0 %v389
    %401 = vmatpush.msra.mxu0 %v388
    %402 = vmatpush.msra.mxu0 %v387
    %403 = vmatpush.msra.mxu0 %v386
    %404 = vmatpush.msra.mxu0 %v385
    %405 = vmatpush.msra.mxu0 %v384
    %406 = vmatpush.msra.mxu0 %v383
    %407 = vmatpush.msra.mxu0 %v382
    %408 = vmatpush.msra.mxu0 %v381
    %409 = vmatpush.msra.mxu0 %v380
    %410 = vmatpush.msra.mxu0 %v379
    %411 = vmatmul.f32.gmra.mxu0 %v363
    %v412 = vpop.f32.mrf.mxu0
    %v413 = vadd.f32 0.0, %v412
    %414 = vmatmul.f32.gmra.mxu0 %v364
    %v415 = vpop.f32.mrf.mxu0
    %v416 = vadd.f32 0.0, %v415
    %417 = vmatmul.f32.gmra.mxu0 %v365
    %v418 = vpop.f32.mrf.mxu0
    %v419 = vadd.f32 0.0, %v418
    %420 = vmatmul.f32.gmra.mxu0 %v366
    %v421 = vpop.f32.mrf.mxu0
    %v422 = vadd.f32 0.0, %v421
    %423 = vmatmul.f32.gmra.mxu0 %v367
    %v424 = vpop.f32.mrf.mxu0
    %v425 = vadd.f32 0.0, %v424
    %426 = vmatmul.f32.gmra.mxu0 %v368
    %v427 = vpop.f32.mrf.mxu0
    %v428 = vadd.f32 0.0, %v427
    %429 = vmatmul.f32.gmra.mxu0 %v369
    %v430 = vpop.f32.mrf.mxu0
    %v431 = vadd.f32 0.0, %v430
    %432 = vmatmul.f32.gmra.mxu0 %v370
    %v433 = vpop.f32.mrf.mxu0
    %v434 = vadd.f32 0.0, %v433
    %435 = vmatmul.f32.gmra.mxu0 %v371
    %v436 = vpop.f32.mrf.mxu0
    %v437 = vadd.f32 0.0, %v436
    %438 = vmatmul.f32.gmra.mxu0 %v372
    %v439 = vpop.f32.mrf.mxu0
    %v440 = vadd.f32 0.0, %v439
    %441 = vmatmul.f32.gmra.mxu0 %v373
    %v442 = vpop.f32.mrf.mxu0
    %v443 = vadd.f32 0.0, %v442
    %444 = vmatmul.f32.gmra.mxu0 %v374
    %v445 = vpop.f32.mrf.mxu0
    %v446 = vadd.f32 0.0, %v445
    %447 = vmatmul.f32.gmra.mxu0 %v375
    %v448 = vpop.f32.mrf.mxu0
    %v449 = vadd.f32 0.0, %v448
    %450 = vmatmul.f32.gmra.mxu0 %v376
    %v451 = vpop.f32.mrf.mxu0
    %v452 = vadd.f32 0.0, %v451
    %453 = vmatmul.f32.gmra.mxu0 %v377
    %v454 = vpop.f32.mrf.mxu0
    %v455 = vadd.f32 0.0, %v454
    %456 = vmatmul.f32.gmra.mxu0 %v378
    %v457 = vpop.f32.mrf.mxu0
    %v458 = vadd.f32 0.0, %v457
    %459 = vdwg.mxu0
    %v460 = vadd.f32 %v347, %v413
    %v461 = vadd.f32 %v348, %v416
    %v462 = vadd.f32 %v349, %v419
    %v463 = vadd.f32 %v350, %v422
    %v464 = vadd.f32 %v351, %v425
    %v465 = vadd.f32 %v352, %v428
    %v466 = vadd.f32 %v353, %v431
    %v467 = vadd.f32 %v354, %v434
    %v468 = vadd.f32 %v355, %v437
    %v469 = vadd.f32 %v356, %v440
    %v470 = vadd.f32 %v357, %v443
    %v471 = vadd.f32 %v358, %v446
    %v472 = vadd.f32 %v359, %v449
    %v473 = vadd.f32 %v360, %v452
    %v474 = vadd.f32 %v361, %v455
    %v475 = vadd.f32 %v362, %v458
    %v476 = vand.u32 2147483647, %v460
    %v477 = vand.u32 2147483647, %v461
    %v478 = vand.u32 2147483647, %v462
    %v479 = vand.u32 2147483647, %v463
    %v480 = vand.u32 2147483647, %v464
    %v481 = vand.u32 2147483647, %v465
    %v482 = vand.u32 2147483647, %v466
    %v483 = vand.u32 2147483647, %v467
    %v484 = vand.u32 2147483647, %v468
    %v485 = vand.u32 2147483647, %v469
    %v486 = vand.u32 2147483647, %v470
    %v487 = vand.u32 2147483647, %v471
    %v488 = vand.u32 2147483647, %v472
    %v489 = vand.u32 2147483647, %v473
    %v490 = vand.u32 2147483647, %v474
    %v491 = vand.u32 2147483647, %v475
    %v492 = vadd.f32 %v476, %v477
    %v493 = vadd.f32 %v492, %v478
    %v494 = vadd.f32 %v493, %v479
    %v495 = vadd.f32 %v494, %v480
    %v496 = vadd.f32 %v495, %v481
    %v497 = vadd.f32 %v496, %v482
    %v498 = vadd.f32 %v497, %v483
    %v499 = vadd.f32 %v498, %v484
    %v500 = vadd.f32 %v499, %v485
    %v501 = vadd.f32 %v500, %v486
    %v502 = vadd.f32 %v501, %v487
    %v503 = vadd.f32 %v502, %v488
    %v504 = vadd.f32 %v503, %v489
    %v505 = vadd.f32 %v504, %v490
    %v506 = vadd.f32 %v505, %v491
    %v507 = vrot.slane %v506, 4
    %v508 = vadd.f32 %v506, %v507
    %v509 = vrot.slane %v508, 2
    %v510 = vadd.f32 %v508, %v509
    %v511 = vrot.slane %v510, 1
    %v512 = vadd.f32 %v510, %v511
    %513 = vmax.xlane.f32.xlu0 %v512
    %v514 = vpop.xlane.xlu0 %513
    %s515 = vtos %v514
    %516 = vadd.xlane.f32.xlu0 %v476
    %v517 = vpop.xlane.xlu0 %516
    %518 = vadd.xlane.f32.xlu0 %v477
    %v519 = vpop.xlane.xlu0 %518
    %520 = vadd.xlane.f32.xlu0 %v478
    %v521 = vpop.xlane.xlu0 %520
    %522 = vadd.xlane.f32.xlu0 %v479
    %v523 = vpop.xlane.xlu0 %522
    %524 = vadd.xlane.f32.xlu0 %v480
    %v525 = vpop.xlane.xlu0 %524
    %526 = vadd.xlane.f32.xlu0 %v481
    %v527 = vpop.xlane.xlu0 %526
    %528 = vadd.xlane.f32.xlu0 %v482
    %v529 = vpop.xlane.xlu0 %528
    %530 = vadd.xlane.f32.xlu0 %v483
    %v531 = vpop.xlane.xlu0 %530
    %532 = vadd.xlane.f32.xlu0 %v484
    %v533 = vpop.xlane.xlu0 %532
    %534 = vadd.xlane.f32.xlu0 %v485
    %v535 = vpop.xlane.xlu0 %534
    %536 = vadd.xlane.f32.xlu0 %v486
    %v537 = vpop.xlane.xlu0 %536
    %538 = vadd.xlane.f32.xlu0 %v487
    %v539 = vpop.xlane.xlu0 %538
    %540 = vadd.xlane.f32.xlu0 %v488
    %v541 = vpop.xlane.xlu0 %540
    %542 = vadd.xlane.f32.xlu0 %v489
    %v543 = vpop.xlane.xlu0 %542
    %544 = vadd.xlane.f32.xlu0 %v490
    %v545 = vpop.xlane.xlu0 %544
    %546 = vadd.xlane.f32.xlu0 %v491
    %v547 = vpop.xlane.xlu0 %546
    %v548 = vmax.f32 %v517, %v525
    %v549 = vmax.f32 %v519, %v527
    %v550 = vmax.f32 %v521, %v529
    %v551 = vmax.f32 %v523, %v531
    %v552 = vmax.f32 %v548, %v533
    %v553 = vmax.f32 %v549, %v535
    %v554 = vmax.f32 %v550, %v537
    %v555 = vmax.f32 %v551, %v539
    %v556 = vmax.f32 %v552, %v541
    %v557 = vmax.f32 %v553, %v543
    %v558 = vmax.f32 %v554, %v545
    %v559 = vmax.f32 %v555, %v547
    %v560 = vmax.f32 %v556, %v557
    %v561 = vmax.f32 %v558, %v559
    %v562 = vmax.f32 %v560, %v561
    %v563 = vrot.slane %v562, 4
    %v564 = vmax.f32 %v562, %v563
    %v565 = vrot.slane %v564, 2
    %v566 = vmax.f32 %v564, %v565
    %v567 = vrot.slane %v566, 1
    %v568 = vmax.f32 %v566, %v567
    %s569 = vtos %v568
    %s570 = smul.f32 %s515, %s569
    %v571 = vstv %s570
    %v572 = vrcp.pop %v571
    %v573 = vmul.f32 %v571, %v572
    %v574 = vsub.f32 1.0, %v573
    %v575 = vmul.f32 %v572, %v574
    %v576 = vadd.f32 %v572, %v575
    %vm577 = vweird.f32 %v571
    %vm578 = vweird.f32 %v572
    %vm579 = vmor %vm577, %vm578
    %v580 = vsel %vm579, %v572, %v576
    %v581 = vand.u32 2147483647, %v571
    %vm582 = vcmp.eq.f32.partialorder %v581, 8.507059e+37
    %v583 = vand.u32 %v571, 2147483648
    %v584 = vor.u32 1.1754944e-38, %v583
    %v585 = vsel %vm582, %v584, %v580
    %s586 = vtos %v585
    %v587 = vstv %s586
    %v588 = vmul.f32 %v460, %v587
    %v589 = vmul.f32 %v461, %v587
    %v590 = vmul.f32 %v462, %v587
    %v591 = vmul.f32 %v463, %v587
    %v592 = vmul.f32 %v464, %v587
    %v593 = vmul.f32 %v465, %v587
    %v594 = vmul.f32 %v466, %v587
    %v595 = vmul.f32 %v467, %v587
    %v596 = vmul.f32 %v468, %v587
    %v597 = vmul.f32 %v469, %v587
    %v598 = vmul.f32 %v470, %v587
    %v599 = vmul.f32 %v471, %v587
    %v600 = vmul.f32 %v472, %v587
    %v601 = vmul.f32 %v473, %v587
    %v602 = vmul.f32 %v474, %v587
    %v603 = vmul.f32 %v475, %v587
    %604 = vmatpush.msra.mxu0 %v603
    %605 = vmatpush.msra.mxu0 %v602
    %606 = vmatpush.msra.mxu0 %v601
    %607 = vmatpush.msra.mxu0 %v600
    %608 = vmatpush.msra.mxu0 %v599
    %609 = vmatpush.msra.mxu0 %v598
    %610 = vmatpush.msra.mxu0 %v597
    %611 = vmatpush.msra.mxu0 %v596
    %612 = vmatpush.msra.mxu0 %v595
    %613 = vmatpush.msra.mxu0 %v594
    %614 = vmatpush.msra.mxu0 %v593
    %615 = vmatpush.msra.mxu0 %v592
    %616 = vmatpush.msra.mxu0 %v591
    %617 = vmatpush.msra.mxu0 %v590
    %618 = vmatpush.msra.mxu0 %v589
    %619 = vmatpush.msra.mxu0 %v588
    %620 = vmatmul.f32.gmra.mxu0 %v460
    %v621 = vpop.f32.mrf.mxu0
    %v622 = vadd.f32 0.0, %v621
    %623 = vmatmul.f32.gmra.mxu0 %v461
    %v624 = vpop.f32.mrf.mxu0
    %v625 = vadd.f32 0.0, %v624
    %626 = vmatmul.f32.gmra.mxu0 %v462
    %v627 = vpop.f32.mrf.mxu0
    %v628 = vadd.f32 0.0, %v627
    %629 = vmatmul.f32.gmra.mxu0 %v463
    %v630 = vpop.f32.mrf.mxu0
    %v631 = vadd.f32 0.0, %v630
    %632 = vmatmul.f32.gmra.mxu0 %v464
    %v633 = vpop.f32.mrf.mxu0
    %v634 = vadd.f32 0.0, %v633
    %635 = vmatmul.f32.gmra.mxu0 %v465
    %v636 = vpop.f32.mrf.mxu0
    %v637 = vadd.f32 0.0, %v636
    %638 = vmatmul.f32.gmra.mxu0 %v466
    %v639 = vpop.f32.mrf.mxu0
    %v640 = vadd.f32 0.0, %v639
    %641 = vmatmul.f32.gmra.mxu0 %v467
    %v642 = vpop.f32.mrf.mxu0
    %v643 = vadd.f32 0.0, %v642
    %644 = vmatmul.f32.gmra.mxu0 %v468
    %v645 = vpop.f32.mrf.mxu0
    %v646 = vadd.f32 0.0, %v645
    %647 = vmatmul.f32.gmra.mxu0 %v469
    %v648 = vpop.f32.mrf.mxu0
    %v649 = vadd.f32 0.0, %v648
    %650 = vmatmul.f32.gmra.mxu0 %v470
    %v651 = vpop.f32.mrf.mxu0
    %v652 = vadd.f32 0.0, %v651
    %653 = vmatmul.f32.gmra.mxu0 %v471
    %v654 = vpop.f32.mrf.mxu0
    %v655 = vadd.f32 0.0, %v654
    %656 = vmatmul.f32.gmra.mxu0 %v472
    %v657 = vpop.f32.mrf.mxu0
    %v658 = vadd.f32 0.0, %v657
    %659 = vmatmul.f32.gmra.mxu0 %v473
    %v660 = vpop.f32.mrf.mxu0
    %v661 = vadd.f32 0.0, %v660
    %662 = vmatmul.f32.gmra.mxu0 %v474
    %v663 = vpop.f32.mrf.mxu0
    %v664 = vadd.f32 0.0, %v663
    %665 = vmatmul.f32.gmra.mxu0 %v475
    %v666 = vpop.f32.mrf.mxu0
    %v667 = vadd.f32 0.0, %v666
    %668 = vdwg.mxu0
    %v669 = vmul.f32 %v588, 2.0
    %v670 = vmul.f32 %v589, 2.0
    %v671 = vmul.f32 %v590, 2.0
    %v672 = vmul.f32 %v591, 2.0
    %v673 = vmul.f32 %v592, 2.0
    %v674 = vmul.f32 %v593, 2.0
    %v675 = vmul.f32 %v594, 2.0
    %v676 = vmul.f32 %v595, 2.0
    %v677 = vmul.f32 %v596, 2.0
    %v678 = vmul.f32 %v597, 2.0
    %v679 = vmul.f32 %v598, 2.0
    %v680 = vmul.f32 %v599, 2.0
    %v681 = vmul.f32 %v600, 2.0
    %v682 = vmul.f32 %v601, 2.0
    %v683 = vmul.f32 %v602, 2.0
    %v684 = vmul.f32 %v603, 2.0
    %685 = vmatpush.msra.mxu0 %v667
    %686 = vmatpush.msra.mxu0 %v664
    %687 = vmatpush.msra.mxu0 %v661
    %688 = vmatpush.msra.mxu0 %v658
    %689 = vmatpush.msra.mxu0 %v655
    %690 = vmatpush.msra.mxu0 %v652
    %691 = vmatpush.msra.mxu0 %v649
    %692 = vmatpush.msra.mxu0 %v646
    %693 = vmatpush.msra.mxu0 %v643
    %694 = vmatpush.msra.mxu0 %v640
    %695 = vmatpush.msra.mxu0 %v637
    %696 = vmatpush.msra.mxu0 %v634
    %697 = vmatpush.msra.mxu0 %v631
    %698 = vmatpush.msra.mxu0 %v628
    %699 = vmatpush.msra.mxu0 %v625
    %700 = vmatpush.msra.mxu0 %v622
    %701 = vmatmul.f32.gmra.mxu0 %v588
    %v702 = vpop.f32.mrf.mxu0
    %v703 = vadd.f32 0.0, %v702
    %704 = vmatmul.f32.gmra.mxu0 %v589
    %v705 = vpop.f32.mrf.mxu0
    %v706 = vadd.f32 0.0, %v705
    %707 = vmatmul.f32.gmra.mxu0 %v590
    %v708 = vpop.f32.mrf.mxu0
    %v709 = vadd.f32 0.0, %v708
    %710 = vmatmul.f32.gmra.mxu0 %v591
    %v711 = vpop.f32.mrf.mxu0
    %v712 = vadd.f32 0.0, %v711
    %713 = vmatmul.f32.gmra.mxu0 %v592
    %v714 = vpop.f32.mrf.mxu0
    %v715 = vadd.f32 0.0, %v714
    %716 = vmatmul.f32.gmra.mxu0 %v593
    %v717 = vpop.f32.mrf.mxu0
    %v718 = vadd.f32 0.0, %v717
    %719 = vmatmul.f32.gmra.mxu0 %v594
    %v720 = vpop.f32.mrf.mxu0
    %v721 = vadd.f32 0.0, %v720
    %722 = vmatmul.f32.gmra.mxu0 %v595
    %v723 = vpop.f32.mrf.mxu0
    %v724 = vadd.f32 0.0, %v723
    %725 = vmatmul.f32.gmra.mxu0 %v596
    %v726 = vpop.f32.mrf.mxu0
    %v727 = vadd.f32 0.0, %v726
    %728 = vmatmul.f32.gmra.mxu0 %v597
    %v729 = vpop.f32.mrf.mxu0
    %v730 = vadd.f32 0.0, %v729
    %731 = vmatmul.f32.gmra.mxu0 %v598
    %v732 = vpop.f32.mrf.mxu0
    %v733 = vadd.f32 0.0, %v732
    %734 = vmatmul.f32.gmra.mxu0 %v599
    %v735 = vpop.f32.mrf.mxu0
    %v736 = vadd.f32 0.0, %v735
    %737 = vmatmul.f32.gmra.mxu0 %v600
    %v738 = vpop.f32.mrf.mxu0
    %v739 = vadd.f32 0.0, %v738
    %740 = vmatmul.f32.gmra.mxu0 %v601
    %v741 = vpop.f32.mrf.mxu0
    %v742 = vadd.f32 0.0, %v741
    %743 = vmatmul.f32.gmra.mxu0 %v602
    %v744 = vpop.f32.mrf.mxu0
    %v745 = vadd.f32 0.0, %v744
    %746 = vmatmul.f32.gmra.mxu0 %v603
    %v747 = vpop.f32.mrf.mxu0
    %v748 = vadd.f32 0.0, %v747
    %749 = vdwg.mxu0
    %v750 = vsub.f32 %v669, %v703
    %v751 = vsub.f32 %v670, %v706
    %v752 = vsub.f32 %v671, %v709
    %v753 = vsub.f32 %v672, %v712
    %v754 = vsub.f32 %v673, %v715
    %v755 = vsub.f32 %v674, %v718
    %v756 = vsub.f32 %v675, %v721
    %v757 = vsub.f32 %v676, %v724
    %v758 = vsub.f32 %v677, %v727
    %v759 = vsub.f32 %v678, %v730
    %v760 = vsub.f32 %v679, %v733
    %v761 = vsub.f32 %v680, %v736
    %v762 = vsub.f32 %v681, %v739
    %v763 = vsub.f32 %v682, %v742
    %v764 = vsub.f32 %v683, %v745
    %v765 = vsub.f32 %v684, %v748
    %766 = vmatpush.msra.mxu0 %v765
    %767 = vmatpush.msra.mxu0 %v764
    %768 = vmatpush.msra.mxu0 %v763
    %769 = vmatpush.msra.mxu0 %v762
    %770 = vmatpush.msra.mxu0 %v761
    %771 = vmatpush.msra.mxu0 %v760
    %772 = vmatpush.msra.mxu0 %v759
    %773 = vmatpush.msra.mxu0 %v758
    %774 = vmatpush.msra.mxu0 %v757
    %775 = vmatpush.msra.mxu0 %v756
    %776 = vmatpush.msra.mxu0 %v755
    %777 = vmatpush.msra.mxu0 %v754
    %778 = vmatpush.msra.mxu0 %v753
    %779 = vmatpush.msra.mxu0 %v752
    %780 = vmatpush.msra.mxu0 %v751
    %781 = vmatpush.msra.mxu0 %v750
    %782 = vmatmul.f32.gmra.mxu0 %v460
    %v783 = vpop.f32.mrf.mxu0
    %v784 = vadd.f32 0.0, %v783
    %785 = vmatmul.f32.gmra.mxu0 %v461
    %v786 = vpop.f32.mrf.mxu0
    %v787 = vadd.f32 0.0, %v786
    %788 = vmatmul.f32.gmra.mxu0 %v462
    %v789 = vpop.f32.mrf.mxu0
    %v790 = vadd.f32 0.0, %v789
    %791 = vmatmul.f32.gmra.mxu0 %v463
    %v792 = vpop.f32.mrf.mxu0
    %v793 = vadd.f32 0.0, %v792
    %794 = vmatmul.f32.gmra.mxu0 %v464
    %v795 = vpop.f32.mrf.mxu0
    %v796 = vadd.f32 0.0, %v795
    %797 = vmatmul.f32.gmra.mxu0 %v465
    %v798 = vpop.f32.mrf.mxu0
    %v799 = vadd.f32 0.0, %v798
    %800 = vmatmul.f32.gmra.mxu0 %v466
    %v801 = vpop.f32.mrf.mxu0
    %v802 = vadd.f32 0.0, %v801
    %803 = vmatmul.f32.gmra.mxu0 %v467
    %v804 = vpop.f32.mrf.mxu0
    %v805 = vadd.f32 0.0, %v804
    %806 = vmatmul.f32.gmra.mxu0 %v468
    %v807 = vpop.f32.mrf.mxu0
    %v808 = vadd.f32 0.0, %v807
    %809 = vmatmul.f32.gmra.mxu0 %v469
    %v810 = vpop.f32.mrf.mxu0
    %v811 = vadd.f32 0.0, %v810
    %812 = vmatmul.f32.gmra.mxu0 %v470
    %v813 = vpop.f32.mrf.mxu0
    %v814 = vadd.f32 0.0, %v813
    %815 = vmatmul.f32.gmra.mxu0 %v471
    %v816 = vpop.f32.mrf.mxu0
    %v817 = vadd.f32 0.0, %v816
    %818 = vmatmul.f32.gmra.mxu0 %v472
    %v819 = vpop.f32.mrf.mxu0
    %v820 = vadd.f32 0.0, %v819
    %821 = vmatmul.f32.gmra.mxu0 %v473
    %v822 = vpop.f32.mrf.mxu0
    %v823 = vadd.f32 0.0, %v822
    %824 = vmatmul.f32.gmra.mxu0 %v474
    %v825 = vpop.f32.mrf.mxu0
    %v826 = vadd.f32 0.0, %v825
    %827 = vmatmul.f32.gmra.mxu0 %v475
    %v828 = vpop.f32.mrf.mxu0
    %v829 = vadd.f32 0.0, %v828
    %830 = vdwg.mxu0
    %v831 = vmul.f32 %v750, 2.0
    %v832 = vmul.f32 %v751, 2.0
    %v833 = vmul.f32 %v752, 2.0
    %v834 = vmul.f32 %v753, 2.0
    %v835 = vmul.f32 %v754, 2.0
    %v836 = vmul.f32 %v755, 2.0
    %v837 = vmul.f32 %v756, 2.0
    %v838 = vmul.f32 %v757, 2.0
    %v839 = vmul.f32 %v758, 2.0
    %v840 = vmul.f32 %v759, 2.0
    %v841 = vmul.f32 %v760, 2.0
    %v842 = vmul.f32 %v761, 2.0
    %v843 = vmul.f32 %v762, 2.0
    %v844 = vmul.f32 %v763, 2.0
    %v845 = vmul.f32 %v764, 2.0
    %v846 = vmul.f32 %v765, 2.0
    %847 = vmatpush.msra.mxu0 %v829
    %848 = vmatpush.msra.mxu0 %v826
    %849 = vmatpush.msra.mxu0 %v823
    %850 = vmatpush.msra.mxu0 %v820
    %851 = vmatpush.msra.mxu0 %v817
    %852 = vmatpush.msra.mxu0 %v814
    %853 = vmatpush.msra.mxu0 %v811
    %854 = vmatpush.msra.mxu0 %v808
    %855 = vmatpush.msra.mxu0 %v805
    %856 = vmatpush.msra.mxu0 %v802
    %857 = vmatpush.msra.mxu0 %v799
    %858 = vmatpush.msra.mxu0 %v796
    %859 = vmatpush.msra.mxu0 %v793
    %860 = vmatpush.msra.mxu0 %v790
    %861 = vmatpush.msra.mxu0 %v787
    %862 = vmatpush.msra.mxu0 %v784
    %863 = vmatmul.f32.gmra.mxu0 %v750
    %v864 = vpop.f32.mrf.mxu0
    %v865 = vadd.f32 0.0, %v864
    %866 = vmatmul.f32.gmra.mxu0 %v751
    %v867 = vpop.f32.mrf.mxu0
    %v868 = vadd.f32 0.0, %v867
    %869 = vmatmul.f32.gmra.mxu0 %v752
    %v870 = vpop.f32.mrf.mxu0
    %v871 = vadd.f32 0.0, %v870
    %872 = vmatmul.f32.gmra.mxu0 %v753
    %v873 = vpop.f32.mrf.mxu0
    %v874 = vadd.f32 0.0, %v873
    %875 = vmatmul.f32.gmra.mxu0 %v754
    %v876 = vpop.f32.mrf.mxu0
    %v877 = vadd.f32 0.0, %v876
    %878 = vmatmul.f32.gmra.mxu0 %v755
    %v879 = vpop.f32.mrf.mxu0
    %v880 = vadd.f32 0.0, %v879
    %881 = vmatmul.f32.gmra.mxu0 %v756
    %v882 = vpop.f32.mrf.mxu0
    %v883 = vadd.f32 0.0, %v882
    %884 = vmatmul.f32.gmra.mxu0 %v757
    %v885 = vpop.f32.mrf.mxu0
    %v886 = vadd.f32 0.0, %v885
    %887 = vmatmul.f32.gmra.mxu0 %v758
    %v888 = vpop.f32.mrf.mxu0
    %v889 = vadd.f32 0.0, %v888
    %890 = vmatmul.f32.gmra.mxu0 %v759
    %v891 = vpop.f32.mrf.mxu0
    %v892 = vadd.f32 0.0, %v891
    %893 = vmatmul.f32.gmra.mxu0 %v760
    %v894 = vpop.f32.mrf.mxu0
    %v895 = vadd.f32 0.0, %v894
    %896 = vmatmul.f32.gmra.mxu0 %v761
    %v897 = vpop.f32.mrf.mxu0
    %v898 = vadd.f32 0.0, %v897
    %899 = vmatmul.f32.gmra.mxu0 %v762
    %v900 = vpop.f32.mrf.mxu0
    %v901 = vadd.f32 0.0, %v900
    %902 = vmatmul.f32.gmra.mxu0 %v763
    %v903 = vpop.f32.mrf.mxu0
    %v904 = vadd.f32 0.0, %v903
    %905 = vmatmul.f32.gmra.mxu0 %v764
    %v906 = vpop.f32.mrf.mxu0
    %v907 = vadd.f32 0.0, %v906
    %908 = vmatmul.f32.gmra.mxu0 %v765
    %v909 = vpop.f32.mrf.mxu0
    %v910 = vadd.f32 0.0, %v909
    %911 = vdwg.mxu0
    %v912 = vsub.f32 %v831, %v865
    %v913 = vsub.f32 %v832, %v868
    %v914 = vsub.f32 %v833, %v871
    %v915 = vsub.f32 %v834, %v874
    %v916 = vsub.f32 %v835, %v877
    %v917 = vsub.f32 %v836, %v880
    %v918 = vsub.f32 %v837, %v883
    %v919 = vsub.f32 %v838, %v886
    %v920 = vsub.f32 %v839, %v889
    %v921 = vsub.f32 %v840, %v892
    %v922 = vsub.f32 %v841, %v895
    %v923 = vsub.f32 %v842, %v898
    %v924 = vsub.f32 %v843, %v901
    %v925 = vsub.f32 %v844, %v904
    %v926 = vsub.f32 %v845, %v907
    %v927 = vsub.f32 %v846, %v910
    %928 = vmatpush.msra.mxu0 %v927
    %929 = vmatpush.msra.mxu0 %v926
    %930 = vmatpush.msra.mxu0 %v925
    %931 = vmatpush.msra.mxu0 %v924
    %932 = vmatpush.msra.mxu0 %v923
    %933 = vmatpush.msra.mxu0 %v922
    %934 = vmatpush.msra.mxu0 %v921
    %935 = vmatpush.msra.mxu0 %v920
    %936 = vmatpush.msra.mxu0 %v919
    %937 = vmatpush.msra.mxu0 %v918
    %938 = vmatpush.msra.mxu0 %v917
    %939 = vmatpush.msra.mxu0 %v916
    %940 = vmatpush.msra.mxu0 %v915
    %941 = vmatpush.msra.mxu0 %v914
    %942 = vmatpush.msra.mxu0 %v913
    %943 = vmatpush.msra.mxu0 %v912
    %944 = vmatmul.f32.gmra.mxu0 %v460
    %v945 = vpop.f32.mrf.mxu0
    %v946 = vadd.f32 0.0, %v945
    %947 = vmatmul.f32.gmra.mxu0 %v461
    %v948 = vpop.f32.mrf.mxu0
    %v949 = vadd.f32 0.0, %v948
    %950 = vmatmul.f32.gmra.mxu0 %v462
    %v951 = vpop.f32.mrf.mxu0
    %v952 = vadd.f32 0.0, %v951
    %953 = vmatmul.f32.gmra.mxu0 %v463
    %v954 = vpop.f32.mrf.mxu0
    %v955 = vadd.f32 0.0, %v954
    %956 = vmatmul.f32.gmra.mxu0 %v464
    %v957 = vpop.f32.mrf.mxu0
    %v958 = vadd.f32 0.0, %v957
    %959 = vmatmul.f32.gmra.mxu0 %v465
    %v960 = vpop.f32.mrf.mxu0
    %v961 = vadd.f32 0.0, %v960
    %962 = vmatmul.f32.gmra.mxu0 %v466
    %v963 = vpop.f32.mrf.mxu0
    %v964 = vadd.f32 0.0, %v963
    %965 = vmatmul.f32.gmra.mxu0 %v467
    %v966 = vpop.f32.mrf.mxu0
    %v967 = vadd.f32 0.0, %v966
    %968 = vmatmul.f32.gmra.mxu0 %v468
    %v969 = vpop.f32.mrf.mxu0
    %v970 = vadd.f32 0.0, %v969
    %971 = vmatmul.f32.gmra.mxu0 %v469
    %v972 = vpop.f32.mrf.mxu0
    %v973 = vadd.f32 0.0, %v972
    %974 = vmatmul.f32.gmra.mxu0 %v470
    %v975 = vpop.f32.mrf.mxu0
    %v976 = vadd.f32 0.0, %v975
    %977 = vmatmul.f32.gmra.mxu0 %v471
    %v978 = vpop.f32.mrf.mxu0
    %v979 = vadd.f32 0.0, %v978
    %980 = vmatmul.f32.gmra.mxu0 %v472
    %v981 = vpop.f32.mrf.mxu0
    %v982 = vadd.f32 0.0, %v981
    %983 = vmatmul.f32.gmra.mxu0 %v473
    %v984 = vpop.f32.mrf.mxu0
    %v985 = vadd.f32 0.0, %v984
    %986 = vmatmul.f32.gmra.mxu0 %v474
    %v987 = vpop.f32.mrf.mxu0
    %v988 = vadd.f32 0.0, %v987
    %989 = vmatmul.f32.gmra.mxu0 %v475
    %v990 = vpop.f32.mrf.mxu0
    %v991 = vadd.f32 0.0, %v990
    %992 = vdwg.mxu0
    %v993 = vmul.f32 %v912, 2.0
    %v994 = vmul.f32 %v913, 2.0
    %v995 = vmul.f32 %v914, 2.0
    %v996 = vmul.f32 %v915, 2.0
    %v997 = vmul.f32 %v916, 2.0
    %v998 = vmul.f32 %v917, 2.0
    %v999 = vmul.f32 %v918, 2.0
    %v1000 = vmul.f32 %v919, 2.0
    %v1001 = vmul.f32 %v920, 2.0
    %v1002 = vmul.f32 %v921, 2.0
    %v1003 = vmul.f32 %v922, 2.0
    %v1004 = vmul.f32 %v923, 2.0
    %v1005 = vmul.f32 %v924, 2.0
    %v1006 = vmul.f32 %v925, 2.0
    %v1007 = vmul.f32 %v926, 2.0
    %v1008 = vmul.f32 %v927, 2.0
    %1009 = vmatpush.msra.mxu0 %v991
    %1010 = vmatpush.msra.mxu0 %v988
    %1011 = vmatpush.msra.mxu0 %v985
    %1012 = vmatpush.msra.mxu0 %v982
    %1013 = vmatpush.msra.mxu0 %v979
    %1014 = vmatpush.msra.mxu0 %v976
    %1015 = vmatpush.msra.mxu0 %v973
    %1016 = vmatpush.msra.mxu0 %v970
    %1017 = vmatpush.msra.mxu0 %v967
    %1018 = vmatpush.msra.mxu0 %v964
    %1019 = vmatpush.msra.mxu0 %v961
    %1020 = vmatpush.msra.mxu0 %v958
    %1021 = vmatpush.msra.mxu0 %v955
    %1022 = vmatpush.msra.mxu0 %v952
    %1023 = vmatpush.msra.mxu0 %v949
    %1024 = vmatpush.msra.mxu0 %v946
    %1025 = vmatmul.f32.gmra.mxu0 %v912
    %v1026 = vpop.f32.mrf.mxu0
    %v1027 = vadd.f32 0.0, %v1026
    %1028 = vmatmul.f32.gmra.mxu0 %v913
    %v1029 = vpop.f32.mrf.mxu0
    %v1030 = vadd.f32 0.0, %v1029
    %1031 = vmatmul.f32.gmra.mxu0 %v914
    %v1032 = vpop.f32.mrf.mxu0
    %v1033 = vadd.f32 0.0, %v1032
    %1034 = vmatmul.f32.gmra.mxu0 %v915
    %v1035 = vpop.f32.mrf.mxu0
    %v1036 = vadd.f32 0.0, %v1035
    %1037 = vmatmul.f32.gmra.mxu0 %v916
    %v1038 = vpop.f32.mrf.mxu0
    %v1039 = vadd.f32 0.0, %v1038
    %1040 = vmatmul.f32.gmra.mxu0 %v917
    %v1041 = vpop.f32.mrf.mxu0
    %v1042 = vadd.f32 0.0, %v1041
    %1043 = vmatmul.f32.gmra.mxu0 %v918
    %v1044 = vpop.f32.mrf.mxu0
    %v1045 = vadd.f32 0.0, %v1044
    %1046 = vmatmul.f32.gmra.mxu0 %v919
    %v1047 = vpop.f32.mrf.mxu0
    %v1048 = vadd.f32 0.0, %v1047
    %1049 = vmatmul.f32.gmra.mxu0 %v920
    %v1050 = vpop.f32.mrf.mxu0
    %v1051 = vadd.f32 0.0, %v1050
    %1052 = vmatmul.f32.gmra.mxu0 %v921
    %v1053 = vpop.f32.mrf.mxu0
    %v1054 = vadd.f32 0.0, %v1053
    %1055 = vmatmul.f32.gmra.mxu0 %v922
    %v1056 = vpop.f32.mrf.mxu0
    %v1057 = vadd.f32 0.0, %v1056
    %1058 = vmatmul.f32.gmra.mxu0 %v923
    %v1059 = vpop.f32.mrf.mxu0
    %v1060 = vadd.f32 0.0, %v1059
    %1061 = vmatmul.f32.gmra.mxu0 %v924
    %v1062 = vpop.f32.mrf.mxu0
    %v1063 = vadd.f32 0.0, %v1062
    %1064 = vmatmul.f32.gmra.mxu0 %v925
    %v1065 = vpop.f32.mrf.mxu0
    %v1066 = vadd.f32 0.0, %v1065
    %1067 = vmatmul.f32.gmra.mxu0 %v926
    %v1068 = vpop.f32.mrf.mxu0
    %v1069 = vadd.f32 0.0, %v1068
    %1070 = vmatmul.f32.gmra.mxu0 %v927
    %v1071 = vpop.f32.mrf.mxu0
    %v1072 = vadd.f32 0.0, %v1071
    %1073 = vdwg.mxu0
    %v1074 = vsub.f32 %v993, %v1027
    %v1075 = vsub.f32 %v994, %v1030
    %v1076 = vsub.f32 %v995, %v1033
    %v1077 = vsub.f32 %v996, %v1036
    %v1078 = vsub.f32 %v997, %v1039
    %v1079 = vsub.f32 %v998, %v1042
    %v1080 = vsub.f32 %v999, %v1045
    %v1081 = vsub.f32 %v1000, %v1048
    %v1082 = vsub.f32 %v1001, %v1051
    %v1083 = vsub.f32 %v1002, %v1054
    %v1084 = vsub.f32 %v1003, %v1057
    %v1085 = vsub.f32 %v1004, %v1060
    %v1086 = vsub.f32 %v1005, %v1063
    %v1087 = vsub.f32 %v1006, %v1066
    %v1088 = vsub.f32 %v1007, %v1069
    %v1089 = vsub.f32 %v1008, %v1072
    %1090 = vmatpush.msra.mxu0 %v1089
    %1091 = vmatpush.msra.mxu0 %v1088
    %1092 = vmatpush.msra.mxu0 %v1087
    %1093 = vmatpush.msra.mxu0 %v1086
    %1094 = vmatpush.msra.mxu0 %v1085
    %1095 = vmatpush.msra.mxu0 %v1084
    %1096 = vmatpush.msra.mxu0 %v1083
    %1097 = vmatpush.msra.mxu0 %v1082
    %1098 = vmatpush.msra.mxu0 %v1081
    %1099 = vmatpush.msra.mxu0 %v1080
    %1100 = vmatpush.msra.mxu0 %v1079
    %1101 = vmatpush.msra.mxu0 %v1078
    %1102 = vmatpush.msra.mxu0 %v1077
    %1103 = vmatpush.msra.mxu0 %v1076
    %1104 = vmatpush.msra.mxu0 %v1075
    %1105 = vmatpush.msra.mxu0 %v1074
    %1106 = vmatmul.f32.gmra.mxu0 %v460
    %v1107 = vpop.f32.mrf.mxu0
    %v1108 = vadd.f32 0.0, %v1107
    %1109 = vmatmul.f32.gmra.mxu0 %v461
    %v1110 = vpop.f32.mrf.mxu0
    %v1111 = vadd.f32 0.0, %v1110
    %1112 = vmatmul.f32.gmra.mxu0 %v462
    %v1113 = vpop.f32.mrf.mxu0
    %v1114 = vadd.f32 0.0, %v1113
    %1115 = vmatmul.f32.gmra.mxu0 %v463
    %v1116 = vpop.f32.mrf.mxu0
    %v1117 = vadd.f32 0.0, %v1116
    %1118 = vmatmul.f32.gmra.mxu0 %v464
    %v1119 = vpop.f32.mrf.mxu0
    %v1120 = vadd.f32 0.0, %v1119
    %1121 = vmatmul.f32.gmra.mxu0 %v465
    %v1122 = vpop.f32.mrf.mxu0
    %v1123 = vadd.f32 0.0, %v1122
    %1124 = vmatmul.f32.gmra.mxu0 %v466
    %v1125 = vpop.f32.mrf.mxu0
    %v1126 = vadd.f32 0.0, %v1125
    %1127 = vmatmul.f32.gmra.mxu0 %v467
    %v1128 = vpop.f32.mrf.mxu0
    %v1129 = vadd.f32 0.0, %v1128
    %1130 = vmatmul.f32.gmra.mxu0 %v468
    %v1131 = vpop.f32.mrf.mxu0
    %v1132 = vadd.f32 0.0, %v1131
    %1133 = vmatmul.f32.gmra.mxu0 %v469
    %v1134 = vpop.f32.mrf.mxu0
    %v1135 = vadd.f32 0.0, %v1134
    %1136 = vmatmul.f32.gmra.mxu0 %v470
    %v1137 = vpop.f32.mrf.mxu0
    %v1138 = vadd.f32 0.0, %v1137
    %1139 = vmatmul.f32.gmra.mxu0 %v471
    %v1140 = vpop.f32.mrf.mxu0
    %v1141 = vadd.f32 0.0, %v1140
    %1142 = vmatmul.f32.gmra.mxu0 %v472
    %v1143 = vpop.f32.mrf.mxu0
    %v1144 = vadd.f32 0.0, %v1143
    %1145 = vmatmul.f32.gmra.mxu0 %v473
    %v1146 = vpop.f32.mrf.mxu0
    %v1147 = vadd.f32 0.0, %v1146
    %1148 = vmatmul.f32.gmra.mxu0 %v474
    %v1149 = vpop.f32.mrf.mxu0
    %v1150 = vadd.f32 0.0, %v1149
    %1151 = vmatmul.f32.gmra.mxu0 %v475
    %v1152 = vpop.f32.mrf.mxu0
    %v1153 = vadd.f32 0.0, %v1152
    %1154 = vdwg.mxu0
    %v1155 = vmul.f32 %v1074, 2.0
    %v1156 = vmul.f32 %v1075, 2.0
    %v1157 = vmul.f32 %v1076, 2.0
    %v1158 = vmul.f32 %v1077, 2.0
    %v1159 = vmul.f32 %v1078, 2.0
    %v1160 = vmul.f32 %v1079, 2.0
    %v1161 = vmul.f32 %v1080, 2.0
    %v1162 = vmul.f32 %v1081, 2.0
    %v1163 = vmul.f32 %v1082, 2.0
    %v1164 = vmul.f32 %v1083, 2.0
    %v1165 = vmul.f32 %v1084, 2.0
    %v1166 = vmul.f32 %v1085, 2.0
    %v1167 = vmul.f32 %v1086, 2.0
    %v1168 = vmul.f32 %v1087, 2.0
    %v1169 = vmul.f32 %v1088, 2.0
    %v1170 = vmul.f32 %v1089, 2.0
    %1171 = vmatpush.msra.mxu0 %v1153
    %1172 = vmatpush.msra.mxu0 %v1150
    %1173 = vmatpush.msra.mxu0 %v1147
    %1174 = vmatpush.msra.mxu0 %v1144
    %1175 = vmatpush.msra.mxu0 %v1141
    %1176 = vmatpush.msra.mxu0 %v1138
    %1177 = vmatpush.msra.mxu0 %v1135
    %1178 = vmatpush.msra.mxu0 %v1132
    %1179 = vmatpush.msra.mxu0 %v1129
    %1180 = vmatpush.msra.mxu0 %v1126
    %1181 = vmatpush.msra.mxu0 %v1123
    %1182 = vmatpush.msra.mxu0 %v1120
    %1183 = vmatpush.msra.mxu0 %v1117
    %1184 = vmatpush.msra.mxu0 %v1114
    %1185 = vmatpush.msra.mxu0 %v1111
    %1186 = vmatpush.msra.mxu0 %v1108
    %1187 = vmatmul.f32.gmra.mxu0 %v1074
    %v1188 = vpop.f32.mrf.mxu0
    %v1189 = vadd.f32 0.0, %v1188
    %1190 = vmatmul.f32.gmra.mxu0 %v1075
    %v1191 = vpop.f32.mrf.mxu0
    %v1192 = vadd.f32 0.0, %v1191
    %1193 = vmatmul.f32.gmra.mxu0 %v1076
    %v1194 = vpop.f32.mrf.mxu0
    %v1195 = vadd.f32 0.0, %v1194
    %1196 = vmatmul.f32.gmra.mxu0 %v1077
    %v1197 = vpop.f32.mrf.mxu0
    %v1198 = vadd.f32 0.0, %v1197
    %1199 = vmatmul.f32.gmra.mxu0 %v1078
    %v1200 = vpop.f32.mrf.mxu0
    %v1201 = vadd.f32 0.0, %v1200
    %1202 = vmatmul.f32.gmra.mxu0 %v1079
    %v1203 = vpop.f32.mrf.mxu0
    %v1204 = vadd.f32 0.0, %v1203
    %1205 = vmatmul.f32.gmra.mxu0 %v1080
    %v1206 = vpop.f32.mrf.mxu0
    %v1207 = vadd.f32 0.0, %v1206
    %1208 = vmatmul.f32.gmra.mxu0 %v1081
    %v1209 = vpop.f32.mrf.mxu0
    %v1210 = vadd.f32 0.0, %v1209
    %1211 = vmatmul.f32.gmra.mxu0 %v1082
    %v1212 = vpop.f32.mrf.mxu0
    %v1213 = vadd.f32 0.0, %v1212
    %1214 = vmatmul.f32.gmra.mxu0 %v1083
    %v1215 = vpop.f32.mrf.mxu0
    %v1216 = vadd.f32 0.0, %v1215
    %1217 = vmatmul.f32.gmra.mxu0 %v1084
    %v1218 = vpop.f32.mrf.mxu0
    %v1219 = vadd.f32 0.0, %v1218
    %1220 = vmatmul.f32.gmra.mxu0 %v1085
    %v1221 = vpop.f32.mrf.mxu0
    %v1222 = vadd.f32 0.0, %v1221
    %1223 = vmatmul.f32.gmra.mxu0 %v1086
    %v1224 = vpop.f32.mrf.mxu0
    %v1225 = vadd.f32 0.0, %v1224
    %1226 = vmatmul.f32.gmra.mxu0 %v1087
    %v1227 = vpop.f32.mrf.mxu0
    %v1228 = vadd.f32 0.0, %v1227
    %1229 = vmatmul.f32.gmra.mxu0 %v1088
    %v1230 = vpop.f32.mrf.mxu0
    %v1231 = vadd.f32 0.0, %v1230
    %1232 = vmatmul.f32.gmra.mxu0 %v1089
    %v1233 = vpop.f32.mrf.mxu0
    %v1234 = vadd.f32 0.0, %v1233
    %1235 = vdwg.mxu0
    %v1236 = vsub.f32 %v1155, %v1189
    %v1237 = vsub.f32 %v1156, %v1192
    %v1238 = vsub.f32 %v1157, %v1195
    %v1239 = vsub.f32 %v1158, %v1198
    %v1240 = vsub.f32 %v1159, %v1201
    %v1241 = vsub.f32 %v1160, %v1204
    %v1242 = vsub.f32 %v1161, %v1207
    %v1243 = vsub.f32 %v1162, %v1210
    %v1244 = vsub.f32 %v1163, %v1213
    %v1245 = vsub.f32 %v1164, %v1216
    %v1246 = vsub.f32 %v1165, %v1219
    %v1247 = vsub.f32 %v1166, %v1222
    %v1248 = vsub.f32 %v1167, %v1225
    %v1249 = vsub.f32 %v1168, %v1228
    %v1250 = vsub.f32 %v1169, %v1231
    %v1251 = vsub.f32 %v1170, %v1234
    %1252 = vmatpush.msra.mxu0 %v1251
    %1253 = vmatpush.msra.mxu0 %v1250
    %1254 = vmatpush.msra.mxu0 %v1249
    %1255 = vmatpush.msra.mxu0 %v1248
    %1256 = vmatpush.msra.mxu0 %v1247
    %1257 = vmatpush.msra.mxu0 %v1246
    %1258 = vmatpush.msra.mxu0 %v1245
    %1259 = vmatpush.msra.mxu0 %v1244
    %1260 = vmatpush.msra.mxu0 %v1243
    %1261 = vmatpush.msra.mxu0 %v1242
    %1262 = vmatpush.msra.mxu0 %v1241
    %1263 = vmatpush.msra.mxu0 %v1240
    %1264 = vmatpush.msra.mxu0 %v1239
    %1265 = vmatpush.msra.mxu0 %v1238
    %1266 = vmatpush.msra.mxu0 %v1237
    %1267 = vmatpush.msra.mxu0 %v1236
    %1268 = vmatmul.f32.gmra.mxu0 %v460
    %v1269 = vpop.f32.mrf.mxu0
    %v1270 = vadd.f32 0.0, %v1269
    %1271 = vmatmul.f32.gmra.mxu0 %v461
    %v1272 = vpop.f32.mrf.mxu0
    %v1273 = vadd.f32 0.0, %v1272
    %1274 = vmatmul.f32.gmra.mxu0 %v462
    %v1275 = vpop.f32.mrf.mxu0
    %v1276 = vadd.f32 0.0, %v1275
    %1277 = vmatmul.f32.gmra.mxu0 %v463
    %v1278 = vpop.f32.mrf.mxu0
    %v1279 = vadd.f32 0.0, %v1278
    %1280 = vmatmul.f32.gmra.mxu0 %v464
    %v1281 = vpop.f32.mrf.mxu0
    %v1282 = vadd.f32 0.0, %v1281
    %1283 = vmatmul.f32.gmra.mxu0 %v465
    %v1284 = vpop.f32.mrf.mxu0
    %v1285 = vadd.f32 0.0, %v1284
    %1286 = vmatmul.f32.gmra.mxu0 %v466
    %v1287 = vpop.f32.mrf.mxu0
    %v1288 = vadd.f32 0.0, %v1287
    %1289 = vmatmul.f32.gmra.mxu0 %v467
    %v1290 = vpop.f32.mrf.mxu0
    %v1291 = vadd.f32 0.0, %v1290
    %1292 = vmatmul.f32.gmra.mxu0 %v468
    %v1293 = vpop.f32.mrf.mxu0
    %v1294 = vadd.f32 0.0, %v1293
    %1295 = vmatmul.f32.gmra.mxu0 %v469
    %v1296 = vpop.f32.mrf.mxu0
    %v1297 = vadd.f32 0.0, %v1296
    %1298 = vmatmul.f32.gmra.mxu0 %v470
    %v1299 = vpop.f32.mrf.mxu0
    %v1300 = vadd.f32 0.0, %v1299
    %1301 = vmatmul.f32.gmra.mxu0 %v471
    %v1302 = vpop.f32.mrf.mxu0
    %v1303 = vadd.f32 0.0, %v1302
    %1304 = vmatmul.f32.gmra.mxu0 %v472
    %v1305 = vpop.f32.mrf.mxu0
    %v1306 = vadd.f32 0.0, %v1305
    %1307 = vmatmul.f32.gmra.mxu0 %v473
    %v1308 = vpop.f32.mrf.mxu0
    %v1309 = vadd.f32 0.0, %v1308
    %1310 = vmatmul.f32.gmra.mxu0 %v474
    %v1311 = vpop.f32.mrf.mxu0
    %v1312 = vadd.f32 0.0, %v1311
    %1313 = vmatmul.f32.gmra.mxu0 %v475
    %v1314 = vpop.f32.mrf.mxu0
    %v1315 = vadd.f32 0.0, %v1314
    %1316 = vdwg.mxu0
    %v1317 = vmul.f32 %v1236, 2.0
    %v1318 = vmul.f32 %v1237, 2.0
    %v1319 = vmul.f32 %v1238, 2.0
    %v1320 = vmul.f32 %v1239, 2.0
    %v1321 = vmul.f32 %v1240, 2.0
    %v1322 = vmul.f32 %v1241, 2.0
    %v1323 = vmul.f32 %v1242, 2.0
    %v1324 = vmul.f32 %v1243, 2.0
    %v1325 = vmul.f32 %v1244, 2.0
    %v1326 = vmul.f32 %v1245, 2.0
    %v1327 = vmul.f32 %v1246, 2.0
    %v1328 = vmul.f32 %v1247, 2.0
    %v1329 = vmul.f32 %v1248, 2.0
    %v1330 = vmul.f32 %v1249, 2.0
    %v1331 = vmul.f32 %v1250, 2.0
    %v1332 = vmul.f32 %v1251, 2.0
    %1333 = vmatpush.msra.mxu0 %v1315
    %1334 = vmatpush.msra.mxu0 %v1312
    %1335 = vmatpush.msra.mxu0 %v1309
    %1336 = vmatpush.msra.mxu0 %v1306
    %1337 = vmatpush.msra.mxu0 %v1303
    %1338 = vmatpush.msra.mxu0 %v1300
    %1339 = vmatpush.msra.mxu0 %v1297
    %1340 = vmatpush.msra.mxu0 %v1294
    %1341 = vmatpush.msra.mxu0 %v1291
    %1342 = vmatpush.msra.mxu0 %v1288
    %1343 = vmatpush.msra.mxu0 %v1285
    %1344 = vmatpush.msra.mxu0 %v1282
    %1345 = vmatpush.msra.mxu0 %v1279
    %1346 = vmatpush.msra.mxu0 %v1276
    %1347 = vmatpush.msra.mxu0 %v1273
    %1348 = vmatpush.msra.mxu0 %v1270
    %1349 = vmatmul.f32.gmra.mxu0 %v1236
    %v1350 = vpop.f32.mrf.mxu0
    %v1351 = vadd.f32 0.0, %v1350
    %1352 = vmatmul.f32.gmra.mxu0 %v1237
    %v1353 = vpop.f32.mrf.mxu0
    %v1354 = vadd.f32 0.0, %v1353
    %1355 = vmatmul.f32.gmra.mxu0 %v1238
    %v1356 = vpop.f32.mrf.mxu0
    %v1357 = vadd.f32 0.0, %v1356
    %1358 = vmatmul.f32.gmra.mxu0 %v1239
    %v1359 = vpop.f32.mrf.mxu0
    %v1360 = vadd.f32 0.0, %v1359
    %1361 = vmatmul.f32.gmra.mxu0 %v1240
    %v1362 = vpop.f32.mrf.mxu0
    %v1363 = vadd.f32 0.0, %v1362
    %1364 = vmatmul.f32.gmra.mxu0 %v1241
    %v1365 = vpop.f32.mrf.mxu0
    %v1366 = vadd.f32 0.0, %v1365
    %1367 = vmatmul.f32.gmra.mxu0 %v1242
    %v1368 = vpop.f32.mrf.mxu0
    %v1369 = vadd.f32 0.0, %v1368
    %1370 = vmatmul.f32.gmra.mxu0 %v1243
    %v1371 = vpop.f32.mrf.mxu0
    %v1372 = vadd.f32 0.0, %v1371
    %1373 = vmatmul.f32.gmra.mxu0 %v1244
    %v1374 = vpop.f32.mrf.mxu0
    %v1375 = vadd.f32 0.0, %v1374
    %1376 = vmatmul.f32.gmra.mxu0 %v1245
    %v1377 = vpop.f32.mrf.mxu0
    %v1378 = vadd.f32 0.0, %v1377
    %1379 = vmatmul.f32.gmra.mxu0 %v1246
    %v1380 = vpop.f32.mrf.mxu0
    %v1381 = vadd.f32 0.0, %v1380
    %1382 = vmatmul.f32.gmra.mxu0 %v1247
    %v1383 = vpop.f32.mrf.mxu0
    %v1384 = vadd.f32 0.0, %v1383
    %1385 = vmatmul.f32.gmra.mxu0 %v1248
    %v1386 = vpop.f32.mrf.mxu0
    %v1387 = vadd.f32 0.0, %v1386
    %1388 = vmatmul.f32.gmra.mxu0 %v1249
    %v1389 = vpop.f32.mrf.mxu0
    %v1390 = vadd.f32 0.0, %v1389
    %1391 = vmatmul.f32.gmra.mxu0 %v1250
    %v1392 = vpop.f32.mrf.mxu0
    %v1393 = vadd.f32 0.0, %v1392
    %1394 = vmatmul.f32.gmra.mxu0 %v1251
    %v1395 = vpop.f32.mrf.mxu0
    %v1396 = vadd.f32 0.0, %v1395
    %1397 = vdwg.mxu0
    %v1398 = vsub.f32 %v1317, %v1351
    %v1399 = vsub.f32 %v1318, %v1354
    %v1400 = vsub.f32 %v1319, %v1357
    %v1401 = vsub.f32 %v1320, %v1360
    %v1402 = vsub.f32 %v1321, %v1363
    %v1403 = vsub.f32 %v1322, %v1366
    %v1404 = vsub.f32 %v1323, %v1369
    %v1405 = vsub.f32 %v1324, %v1372
    %v1406 = vsub.f32 %v1325, %v1375
    %v1407 = vsub.f32 %v1326, %v1378
    %v1408 = vsub.f32 %v1327, %v1381
    %v1409 = vsub.f32 %v1328, %v1384
    %v1410 = vsub.f32 %v1329, %v1387
    %v1411 = vsub.f32 %v1330, %v1390
    %v1412 = vsub.f32 %v1331, %v1393
    %v1413 = vsub.f32 %v1332, %v1396
    %1414 = vmatpush.msra.mxu0 %v1413
    %1415 = vmatpush.msra.mxu0 %v1412
    %1416 = vmatpush.msra.mxu0 %v1411
    %1417 = vmatpush.msra.mxu0 %v1410
    %1418 = vmatpush.msra.mxu0 %v1409
    %1419 = vmatpush.msra.mxu0 %v1408
    %1420 = vmatpush.msra.mxu0 %v1407
    %1421 = vmatpush.msra.mxu0 %v1406
    %1422 = vmatpush.msra.mxu0 %v1405
    %1423 = vmatpush.msra.mxu0 %v1404
    %1424 = vmatpush.msra.mxu0 %v1403
    %1425 = vmatpush.msra.mxu0 %v1402
    %1426 = vmatpush.msra.mxu0 %v1401
    %1427 = vmatpush.msra.mxu0 %v1400
    %1428 = vmatpush.msra.mxu0 %v1399
    %1429 = vmatpush.msra.mxu0 %v1398
    %1430 = vmatmul.f32.gmra.mxu0 %v460
    %v1431 = vpop.f32.mrf.mxu0
    %v1432 = vadd.f32 0.0, %v1431
    %1433 = vmatmul.f32.gmra.mxu0 %v461
    %v1434 = vpop.f32.mrf.mxu0
    %v1435 = vadd.f32 0.0, %v1434
    %1436 = vmatmul.f32.gmra.mxu0 %v462
    %v1437 = vpop.f32.mrf.mxu0
    %v1438 = vadd.f32 0.0, %v1437
    %1439 = vmatmul.f32.gmra.mxu0 %v463
    %v1440 = vpop.f32.mrf.mxu0
    %v1441 = vadd.f32 0.0, %v1440
    %1442 = vmatmul.f32.gmra.mxu0 %v464
    %v1443 = vpop.f32.mrf.mxu0
    %v1444 = vadd.f32 0.0, %v1443
    %1445 = vmatmul.f32.gmra.mxu0 %v465
    %v1446 = vpop.f32.mrf.mxu0
    %v1447 = vadd.f32 0.0, %v1446
    %1448 = vmatmul.f32.gmra.mxu0 %v466
    %v1449 = vpop.f32.mrf.mxu0
    %v1450 = vadd.f32 0.0, %v1449
    %1451 = vmatmul.f32.gmra.mxu0 %v467
    %v1452 = vpop.f32.mrf.mxu0
    %v1453 = vadd.f32 0.0, %v1452
    %1454 = vmatmul.f32.gmra.mxu0 %v468
    %v1455 = vpop.f32.mrf.mxu0
    %v1456 = vadd.f32 0.0, %v1455
    %1457 = vmatmul.f32.gmra.mxu0 %v469
    %v1458 = vpop.f32.mrf.mxu0
    %v1459 = vadd.f32 0.0, %v1458
    %1460 = vmatmul.f32.gmra.mxu0 %v470
    %v1461 = vpop.f32.mrf.mxu0
    %v1462 = vadd.f32 0.0, %v1461
    %1463 = vmatmul.f32.gmra.mxu0 %v471
    %v1464 = vpop.f32.mrf.mxu0
    %v1465 = vadd.f32 0.0, %v1464
    %1466 = vmatmul.f32.gmra.mxu0 %v472
    %v1467 = vpop.f32.mrf.mxu0
    %v1468 = vadd.f32 0.0, %v1467
    %1469 = vmatmul.f32.gmra.mxu0 %v473
    %v1470 = vpop.f32.mrf.mxu0
    %v1471 = vadd.f32 0.0, %v1470
    %1472 = vmatmul.f32.gmra.mxu0 %v474
    %v1473 = vpop.f32.mrf.mxu0
    %v1474 = vadd.f32 0.0, %v1473
    %1475 = vmatmul.f32.gmra.mxu0 %v475
    %v1476 = vpop.f32.mrf.mxu0
    %v1477 = vadd.f32 0.0, %v1476
    %1478 = vdwg.mxu0
    %v1479 = vmul.f32 %v1398, 2.0
    %v1480 = vmul.f32 %v1399, 2.0
    %v1481 = vmul.f32 %v1400, 2.0
    %v1482 = vmul.f32 %v1401, 2.0
    %v1483 = vmul.f32 %v1402, 2.0
    %v1484 = vmul.f32 %v1403, 2.0
    %v1485 = vmul.f32 %v1404, 2.0
    %v1486 = vmul.f32 %v1405, 2.0
    %v1487 = vmul.f32 %v1406, 2.0
    %v1488 = vmul.f32 %v1407, 2.0
    %v1489 = vmul.f32 %v1408, 2.0
    %v1490 = vmul.f32 %v1409, 2.0
    %v1491 = vmul.f32 %v1410, 2.0
    %v1492 = vmul.f32 %v1411, 2.0
    %v1493 = vmul.f32 %v1412, 2.0
    %v1494 = vmul.f32 %v1413, 2.0
    %1495 = vmatpush.msra.mxu0 %v1477
    %1496 = vmatpush.msra.mxu0 %v1474
    %1497 = vmatpush.msra.mxu0 %v1471
    %1498 = vmatpush.msra.mxu0 %v1468
    %1499 = vmatpush.msra.mxu0 %v1465
    %1500 = vmatpush.msra.mxu0 %v1462
    %1501 = vmatpush.msra.mxu0 %v1459
    %1502 = vmatpush.msra.mxu0 %v1456
    %1503 = vmatpush.msra.mxu0 %v1453
    %1504 = vmatpush.msra.mxu0 %v1450
    %1505 = vmatpush.msra.mxu0 %v1447
    %1506 = vmatpush.msra.mxu0 %v1444
    %1507 = vmatpush.msra.mxu0 %v1441
    %1508 = vmatpush.msra.mxu0 %v1438
    %1509 = vmatpush.msra.mxu0 %v1435
    %1510 = vmatpush.msra.mxu0 %v1432
    %1511 = vmatmul.f32.gmra.mxu0 %v1398
    %v1512 = vpop.f32.mrf.mxu0
    %v1513 = vadd.f32 0.0, %v1512
    %1514 = vmatmul.f32.gmra.mxu0 %v1399
    %v1515 = vpop.f32.mrf.mxu0
    %v1516 = vadd.f32 0.0, %v1515
    %1517 = vmatmul.f32.gmra.mxu0 %v1400
    %v1518 = vpop.f32.mrf.mxu0
    %v1519 = vadd.f32 0.0, %v1518
    %1520 = vmatmul.f32.gmra.mxu0 %v1401
    %v1521 = vpop.f32.mrf.mxu0
    %v1522 = vadd.f32 0.0, %v1521
    %1523 = vmatmul.f32.gmra.mxu0 %v1402
    %v1524 = vpop.f32.mrf.mxu0
    %v1525 = vadd.f32 0.0, %v1524
    %1526 = vmatmul.f32.gmra.mxu0 %v1403
    %v1527 = vpop.f32.mrf.mxu0
    %v1528 = vadd.f32 0.0, %v1527
    %1529 = vmatmul.f32.gmra.mxu0 %v1404
    %v1530 = vpop.f32.mrf.mxu0
    %v1531 = vadd.f32 0.0, %v1530
    %1532 = vmatmul.f32.gmra.mxu0 %v1405
    %v1533 = vpop.f32.mrf.mxu0
    %v1534 = vadd.f32 0.0, %v1533
    %1535 = vmatmul.f32.gmra.mxu0 %v1406
    %v1536 = vpop.f32.mrf.mxu0
    %v1537 = vadd.f32 0.0, %v1536
    %1538 = vmatmul.f32.gmra.mxu0 %v1407
    %v1539 = vpop.f32.mrf.mxu0
    %v1540 = vadd.f32 0.0, %v1539
    %1541 = vmatmul.f32.gmra.mxu0 %v1408
    %v1542 = vpop.f32.mrf.mxu0
    %v1543 = vadd.f32 0.0, %v1542
    %1544 = vmatmul.f32.gmra.mxu0 %v1409
    %v1545 = vpop.f32.mrf.mxu0
    %v1546 = vadd.f32 0.0, %v1545
    %1547 = vmatmul.f32.gmra.mxu0 %v1410
    %v1548 = vpop.f32.mrf.mxu0
    %v1549 = vadd.f32 0.0, %v1548
    %1550 = vmatmul.f32.gmra.mxu0 %v1411
    %v1551 = vpop.f32.mrf.mxu0
    %v1552 = vadd.f32 0.0, %v1551
    %1553 = vmatmul.f32.gmra.mxu0 %v1412
    %v1554 = vpop.f32.mrf.mxu0
    %v1555 = vadd.f32 0.0, %v1554
    %1556 = vmatmul.f32.gmra.mxu0 %v1413
    %v1557 = vpop.f32.mrf.mxu0
    %v1558 = vadd.f32 0.0, %v1557
    %1559 = vdwg.mxu0
    %v1560 = vsub.f32 %v1479, %v1513
    %v1561 = vsub.f32 %v1480, %v1516
    %v1562 = vsub.f32 %v1481, %v1519
    %v1563 = vsub.f32 %v1482, %v1522
    %v1564 = vsub.f32 %v1483, %v1525
    %v1565 = vsub.f32 %v1484, %v1528
    %v1566 = vsub.f32 %v1485, %v1531
    %v1567 = vsub.f32 %v1486, %v1534
    %v1568 = vsub.f32 %v1487, %v1537
    %v1569 = vsub.f32 %v1488, %v1540
    %v1570 = vsub.f32 %v1489, %v1543
    %v1571 = vsub.f32 %v1490, %v1546
    %v1572 = vsub.f32 %v1491, %v1549
    %v1573 = vsub.f32 %v1492, %v1552
    %v1574 = vsub.f32 %v1493, %v1555
    %v1575 = vsub.f32 %v1494, %v1558
    %1576 = vmatpush.msra.mxu0 %v1575
    %1577 = vmatpush.msra.mxu0 %v1574
    %1578 = vmatpush.msra.mxu0 %v1573
    %1579 = vmatpush.msra.mxu0 %v1572
    %1580 = vmatpush.msra.mxu0 %v1571
    %1581 = vmatpush.msra.mxu0 %v1570
    %1582 = vmatpush.msra.mxu0 %v1569
    %1583 = vmatpush.msra.mxu0 %v1568
    %1584 = vmatpush.msra.mxu0 %v1567
    %1585 = vmatpush.msra.mxu0 %v1566
    %1586 = vmatpush.msra.mxu0 %v1565
    %1587 = vmatpush.msra.mxu0 %v1564
    %1588 = vmatpush.msra.mxu0 %v1563
    %1589 = vmatpush.msra.mxu0 %v1562
    %1590 = vmatpush.msra.mxu0 %v1561
    %1591 = vmatpush.msra.mxu0 %v1560
    %1592 = vmatmul.f32.gmra.mxu0 %v460
    %v1593 = vpop.f32.mrf.mxu0
    %v1594 = vadd.f32 0.0, %v1593
    %1595 = vmatmul.f32.gmra.mxu0 %v461
    %v1596 = vpop.f32.mrf.mxu0
    %v1597 = vadd.f32 0.0, %v1596
    %1598 = vmatmul.f32.gmra.mxu0 %v462
    %v1599 = vpop.f32.mrf.mxu0
    %v1600 = vadd.f32 0.0, %v1599
    %1601 = vmatmul.f32.gmra.mxu0 %v463
    %v1602 = vpop.f32.mrf.mxu0
    %v1603 = vadd.f32 0.0, %v1602
    %1604 = vmatmul.f32.gmra.mxu0 %v464
    %v1605 = vpop.f32.mrf.mxu0
    %v1606 = vadd.f32 0.0, %v1605
    %1607 = vmatmul.f32.gmra.mxu0 %v465
    %v1608 = vpop.f32.mrf.mxu0
    %v1609 = vadd.f32 0.0, %v1608
    %1610 = vmatmul.f32.gmra.mxu0 %v466
    %v1611 = vpop.f32.mrf.mxu0
    %v1612 = vadd.f32 0.0, %v1611
    %1613 = vmatmul.f32.gmra.mxu0 %v467
    %v1614 = vpop.f32.mrf.mxu0
    %v1615 = vadd.f32 0.0, %v1614
    %1616 = vmatmul.f32.gmra.mxu0 %v468
    %v1617 = vpop.f32.mrf.mxu0
    %v1618 = vadd.f32 0.0, %v1617
    %1619 = vmatmul.f32.gmra.mxu0 %v469
    %v1620 = vpop.f32.mrf.mxu0
    %v1621 = vadd.f32 0.0, %v1620
    %1622 = vmatmul.f32.gmra.mxu0 %v470
    %v1623 = vpop.f32.mrf.mxu0
    %v1624 = vadd.f32 0.0, %v1623
    %1625 = vmatmul.f32.gmra.mxu0 %v471
    %v1626 = vpop.f32.mrf.mxu0
    %v1627 = vadd.f32 0.0, %v1626
    %1628 = vmatmul.f32.gmra.mxu0 %v472
    %v1629 = vpop.f32.mrf.mxu0
    %v1630 = vadd.f32 0.0, %v1629
    %1631 = vmatmul.f32.gmra.mxu0 %v473
    %v1632 = vpop.f32.mrf.mxu0
    %v1633 = vadd.f32 0.0, %v1632
    %1634 = vmatmul.f32.gmra.mxu0 %v474
    %v1635 = vpop.f32.mrf.mxu0
    %v1636 = vadd.f32 0.0, %v1635
    %1637 = vmatmul.f32.gmra.mxu0 %v475
    %v1638 = vpop.f32.mrf.mxu0
    %v1639 = vadd.f32 0.0, %v1638
    %1640 = vdwg.mxu0
    %v1641 = vmul.f32 %v1560, 2.0
    %v1642 = vmul.f32 %v1561, 2.0
    %v1643 = vmul.f32 %v1562, 2.0
    %v1644 = vmul.f32 %v1563, 2.0
    %v1645 = vmul.f32 %v1564, 2.0
    %v1646 = vmul.f32 %v1565, 2.0
    %v1647 = vmul.f32 %v1566, 2.0
    %v1648 = vmul.f32 %v1567, 2.0
    %v1649 = vmul.f32 %v1568, 2.0
    %v1650 = vmul.f32 %v1569, 2.0
    %v1651 = vmul.f32 %v1570, 2.0
    %v1652 = vmul.f32 %v1571, 2.0
    %v1653 = vmul.f32 %v1572, 2.0
    %v1654 = vmul.f32 %v1573, 2.0
    %v1655 = vmul.f32 %v1574, 2.0
    %v1656 = vmul.f32 %v1575, 2.0
    %1657 = vmatpush.msra.mxu0 %v1639
    %1658 = vmatpush.msra.mxu0 %v1636
    %1659 = vmatpush.msra.mxu0 %v1633
    %1660 = vmatpush.msra.mxu0 %v1630
    %1661 = vmatpush.msra.mxu0 %v1627
    %1662 = vmatpush.msra.mxu0 %v1624
    %1663 = vmatpush.msra.mxu0 %v1621
    %1664 = vmatpush.msra.mxu0 %v1618
    %1665 = vmatpush.msra.mxu0 %v1615
    %1666 = vmatpush.msra.mxu0 %v1612
    %1667 = vmatpush.msra.mxu0 %v1609
    %1668 = vmatpush.msra.mxu0 %v1606
    %1669 = vmatpush.msra.mxu0 %v1603
    %1670 = vmatpush.msra.mxu0 %v1600
    %1671 = vmatpush.msra.mxu0 %v1597
    %1672 = vmatpush.msra.mxu0 %v1594
    %1673 = vmatmul.f32.gmra.mxu0 %v1560
    %v1674 = vpop.f32.mrf.mxu0
    %v1675 = vadd.f32 0.0, %v1674
    %1676 = vmatmul.f32.gmra.mxu0 %v1561
    %v1677 = vpop.f32.mrf.mxu0
    %v1678 = vadd.f32 0.0, %v1677
    %1679 = vmatmul.f32.gmra.mxu0 %v1562
    %v1680 = vpop.f32.mrf.mxu0
    %v1681 = vadd.f32 0.0, %v1680
    %1682 = vmatmul.f32.gmra.mxu0 %v1563
    %v1683 = vpop.f32.mrf.mxu0
    %v1684 = vadd.f32 0.0, %v1683
    %1685 = vmatmul.f32.gmra.mxu0 %v1564
    %v1686 = vpop.f32.mrf.mxu0
    %v1687 = vadd.f32 0.0, %v1686
    %1688 = vmatmul.f32.gmra.mxu0 %v1565
    %v1689 = vpop.f32.mrf.mxu0
    %v1690 = vadd.f32 0.0, %v1689
    %1691 = vmatmul.f32.gmra.mxu0 %v1566
    %v1692 = vpop.f32.mrf.mxu0
    %v1693 = vadd.f32 0.0, %v1692
    %1694 = vmatmul.f32.gmra.mxu0 %v1567
    %v1695 = vpop.f32.mrf.mxu0
    %v1696 = vadd.f32 0.0, %v1695
    %1697 = vmatmul.f32.gmra.mxu0 %v1568
    %v1698 = vpop.f32.mrf.mxu0
    %v1699 = vadd.f32 0.0, %v1698
    %1700 = vmatmul.f32.gmra.mxu0 %v1569
    %v1701 = vpop.f32.mrf.mxu0
    %v1702 = vadd.f32 0.0, %v1701
    %1703 = vmatmul.f32.gmra.mxu0 %v1570
    %v1704 = vpop.f32.mrf.mxu0
    %v1705 = vadd.f32 0.0, %v1704
    %1706 = vmatmul.f32.gmra.mxu0 %v1571
    %v1707 = vpop.f32.mrf.mxu0
    %v1708 = vadd.f32 0.0, %v1707
    %1709 = vmatmul.f32.gmra.mxu0 %v1572
    %v1710 = vpop.f32.mrf.mxu0
    %v1711 = vadd.f32 0.0, %v1710
    %1712 = vmatmul.f32.gmra.mxu0 %v1573
    %v1713 = vpop.f32.mrf.mxu0
    %v1714 = vadd.f32 0.0, %v1713
    %1715 = vmatmul.f32.gmra.mxu0 %v1574
    %v1716 = vpop.f32.mrf.mxu0
    %v1717 = vadd.f32 0.0, %v1716
    %1718 = vmatmul.f32.gmra.mxu0 %v1575
    %v1719 = vpop.f32.mrf.mxu0
    %v1720 = vadd.f32 0.0, %v1719
    %1721 = vdwg.mxu0
    %v1722 = vsub.f32 %v1641, %v1675
    %v1723 = vsub.f32 %v1642, %v1678
    %v1724 = vsub.f32 %v1643, %v1681
    %v1725 = vsub.f32 %v1644, %v1684
    %v1726 = vsub.f32 %v1645, %v1687
    %v1727 = vsub.f32 %v1646, %v1690
    %v1728 = vsub.f32 %v1647, %v1693
    %v1729 = vsub.f32 %v1648, %v1696
    %v1730 = vsub.f32 %v1649, %v1699
    %v1731 = vsub.f32 %v1650, %v1702
    %v1732 = vsub.f32 %v1651, %v1705
    %v1733 = vsub.f32 %v1652, %v1708
    %v1734 = vsub.f32 %v1653, %v1711
    %v1735 = vsub.f32 %v1654, %v1714
    %v1736 = vsub.f32 %v1655, %v1717
    %v1737 = vsub.f32 %v1656, %v1720
    %1738 = vmatpush.msra.mxu0 %v1737
    %1739 = vmatpush.msra.mxu0 %v1736
    %1740 = vmatpush.msra.mxu0 %v1735
    %1741 = vmatpush.msra.mxu0 %v1734
    %1742 = vmatpush.msra.mxu0 %v1733
    %1743 = vmatpush.msra.mxu0 %v1732
    %1744 = vmatpush.msra.mxu0 %v1731
    %1745 = vmatpush.msra.mxu0 %v1730
    %1746 = vmatpush.msra.mxu0 %v1729
    %1747 = vmatpush.msra.mxu0 %v1728
    %1748 = vmatpush.msra.mxu0 %v1727
    %1749 = vmatpush.msra.mxu0 %v1726
    %1750 = vmatpush.msra.mxu0 %v1725
    %1751 = vmatpush.msra.mxu0 %v1724
    %1752 = vmatpush.msra.mxu0 %v1723
    %1753 = vmatpush.msra.mxu0 %v1722
    %1754 = vmatmul.f32.gmra.mxu0 %v460
    %v1755 = vpop.f32.mrf.mxu0
    %v1756 = vadd.f32 0.0, %v1755
    %1757 = vmatmul.f32.gmra.mxu0 %v461
    %v1758 = vpop.f32.mrf.mxu0
    %v1759 = vadd.f32 0.0, %v1758
    %1760 = vmatmul.f32.gmra.mxu0 %v462
    %v1761 = vpop.f32.mrf.mxu0
    %v1762 = vadd.f32 0.0, %v1761
    %1763 = vmatmul.f32.gmra.mxu0 %v463
    %v1764 = vpop.f32.mrf.mxu0
    %v1765 = vadd.f32 0.0, %v1764
    %1766 = vmatmul.f32.gmra.mxu0 %v464
    %v1767 = vpop.f32.mrf.mxu0
    %v1768 = vadd.f32 0.0, %v1767
    %1769 = vmatmul.f32.gmra.mxu0 %v465
    %v1770 = vpop.f32.mrf.mxu0
    %v1771 = vadd.f32 0.0, %v1770
    %1772 = vmatmul.f32.gmra.mxu0 %v466
    %v1773 = vpop.f32.mrf.mxu0
    %v1774 = vadd.f32 0.0, %v1773
    %1775 = vmatmul.f32.gmra.mxu0 %v467
    %v1776 = vpop.f32.mrf.mxu0
    %v1777 = vadd.f32 0.0, %v1776
    %1778 = vmatmul.f32.gmra.mxu0 %v468
    %v1779 = vpop.f32.mrf.mxu0
    %v1780 = vadd.f32 0.0, %v1779
    %1781 = vmatmul.f32.gmra.mxu0 %v469
    %v1782 = vpop.f32.mrf.mxu0
    %v1783 = vadd.f32 0.0, %v1782
    %1784 = vmatmul.f32.gmra.mxu0 %v470
    %v1785 = vpop.f32.mrf.mxu0
    %v1786 = vadd.f32 0.0, %v1785
    %1787 = vmatmul.f32.gmra.mxu0 %v471
    %v1788 = vpop.f32.mrf.mxu0
    %v1789 = vadd.f32 0.0, %v1788
    %1790 = vmatmul.f32.gmra.mxu0 %v472
    %v1791 = vpop.f32.mrf.mxu0
    %v1792 = vadd.f32 0.0, %v1791
    %1793 = vmatmul.f32.gmra.mxu0 %v473
    %v1794 = vpop.f32.mrf.mxu0
    %v1795 = vadd.f32 0.0, %v1794
    %1796 = vmatmul.f32.gmra.mxu0 %v474
    %v1797 = vpop.f32.mrf.mxu0
    %v1798 = vadd.f32 0.0, %v1797
    %1799 = vmatmul.f32.gmra.mxu0 %v475
    %v1800 = vpop.f32.mrf.mxu0
    %v1801 = vadd.f32 0.0, %v1800
    %1802 = vdwg.mxu0
    %v1803 = vmul.f32 %v1722, 2.0
    %v1804 = vmul.f32 %v1723, 2.0
    %v1805 = vmul.f32 %v1724, 2.0
    %v1806 = vmul.f32 %v1725, 2.0
    %v1807 = vmul.f32 %v1726, 2.0
    %v1808 = vmul.f32 %v1727, 2.0
    %v1809 = vmul.f32 %v1728, 2.0
    %v1810 = vmul.f32 %v1729, 2.0
    %v1811 = vmul.f32 %v1730, 2.0
    %v1812 = vmul.f32 %v1731, 2.0
    %v1813 = vmul.f32 %v1732, 2.0
    %v1814 = vmul.f32 %v1733, 2.0
    %v1815 = vmul.f32 %v1734, 2.0
    %v1816 = vmul.f32 %v1735, 2.0
    %v1817 = vmul.f32 %v1736, 2.0
    %v1818 = vmul.f32 %v1737, 2.0
    %1819 = vmatpush.msra.mxu0 %v1801
    %1820 = vmatpush.msra.mxu0 %v1798
    %1821 = vmatpush.msra.mxu0 %v1795
    %1822 = vmatpush.msra.mxu0 %v1792
    %1823 = vmatpush.msra.mxu0 %v1789
    %1824 = vmatpush.msra.mxu0 %v1786
    %1825 = vmatpush.msra.mxu0 %v1783
    %1826 = vmatpush.msra.mxu0 %v1780
    %1827 = vmatpush.msra.mxu0 %v1777
    %1828 = vmatpush.msra.mxu0 %v1774
    %1829 = vmatpush.msra.mxu0 %v1771
    %1830 = vmatpush.msra.mxu0 %v1768
    %1831 = vmatpush.msra.mxu0 %v1765
    %1832 = vmatpush.msra.mxu0 %v1762
    %1833 = vmatpush.msra.mxu0 %v1759
    %1834 = vmatpush.msra.mxu0 %v1756
    %1835 = vmatmul.f32.gmra.mxu0 %v1722
    %v1836 = vpop.f32.mrf.mxu0
    %v1837 = vadd.f32 0.0, %v1836
    %1838 = vmatmul.f32.gmra.mxu0 %v1723
    %v1839 = vpop.f32.mrf.mxu0
    %v1840 = vadd.f32 0.0, %v1839
    %1841 = vmatmul.f32.gmra.mxu0 %v1724
    %v1842 = vpop.f32.mrf.mxu0
    %v1843 = vadd.f32 0.0, %v1842
    %1844 = vmatmul.f32.gmra.mxu0 %v1725
    %v1845 = vpop.f32.mrf.mxu0
    %v1846 = vadd.f32 0.0, %v1845
    %1847 = vmatmul.f32.gmra.mxu0 %v1726
    %v1848 = vpop.f32.mrf.mxu0
    %v1849 = vadd.f32 0.0, %v1848
    %1850 = vmatmul.f32.gmra.mxu0 %v1727
    %v1851 = vpop.f32.mrf.mxu0
    %v1852 = vadd.f32 0.0, %v1851
    %1853 = vmatmul.f32.gmra.mxu0 %v1728
    %v1854 = vpop.f32.mrf.mxu0
    %v1855 = vadd.f32 0.0, %v1854
    %1856 = vmatmul.f32.gmra.mxu0 %v1729
    %v1857 = vpop.f32.mrf.mxu0
    %v1858 = vadd.f32 0.0, %v1857
    %1859 = vmatmul.f32.gmra.mxu0 %v1730
    %v1860 = vpop.f32.mrf.mxu0
    %v1861 = vadd.f32 0.0, %v1860
    %1862 = vmatmul.f32.gmra.mxu0 %v1731
    %v1863 = vpop.f32.mrf.mxu0
    %v1864 = vadd.f32 0.0, %v1863
    %1865 = vmatmul.f32.gmra.mxu0 %v1732
    %v1866 = vpop.f32.mrf.mxu0
    %v1867 = vadd.f32 0.0, %v1866
    %1868 = vmatmul.f32.gmra.mxu0 %v1733
    %v1869 = vpop.f32.mrf.mxu0
    %v1870 = vadd.f32 0.0, %v1869
    %1871 = vmatmul.f32.gmra.mxu0 %v1734
    %v1872 = vpop.f32.mrf.mxu0
    %v1873 = vadd.f32 0.0, %v1872
    %1874 = vmatmul.f32.gmra.mxu0 %v1735
    %v1875 = vpop.f32.mrf.mxu0
    %v1876 = vadd.f32 0.0, %v1875
    %1877 = vmatmul.f32.gmra.mxu0 %v1736
    %v1878 = vpop.f32.mrf.mxu0
    %v1879 = vadd.f32 0.0, %v1878
    %1880 = vmatmul.f32.gmra.mxu0 %v1737
    %v1881 = vpop.f32.mrf.mxu0
    %v1882 = vadd.f32 0.0, %v1881
    %1883 = vdwg.mxu0
    %v1884 = vsub.f32 %v1803, %v1837
    %v1885 = vsub.f32 %v1804, %v1840
    %v1886 = vsub.f32 %v1805, %v1843
    %v1887 = vsub.f32 %v1806, %v1846
    %v1888 = vsub.f32 %v1807, %v1849
    %v1889 = vsub.f32 %v1808, %v1852
    %v1890 = vsub.f32 %v1809, %v1855
    %v1891 = vsub.f32 %v1810, %v1858
    %v1892 = vsub.f32 %v1811, %v1861
    %v1893 = vsub.f32 %v1812, %v1864
    %v1894 = vsub.f32 %v1813, %v1867
    %v1895 = vsub.f32 %v1814, %v1870
    %v1896 = vsub.f32 %v1815, %v1873
    %v1897 = vsub.f32 %v1816, %v1876
    %v1898 = vsub.f32 %v1817, %v1879
    %v1899 = vsub.f32 %v1818, %v1882
    %1900 = vmatpush.msra.mxu0 %v1899
    %1901 = vmatpush.msra.mxu0 %v1898
    %1902 = vmatpush.msra.mxu0 %v1897
    %1903 = vmatpush.msra.mxu0 %v1896
    %1904 = vmatpush.msra.mxu0 %v1895
    %1905 = vmatpush.msra.mxu0 %v1894
    %1906 = vmatpush.msra.mxu0 %v1893
    %1907 = vmatpush.msra.mxu0 %v1892
    %1908 = vmatpush.msra.mxu0 %v1891
    %1909 = vmatpush.msra.mxu0 %v1890
    %1910 = vmatpush.msra.mxu0 %v1889
    %1911 = vmatpush.msra.mxu0 %v1888
    %1912 = vmatpush.msra.mxu0 %v1887
    %1913 = vmatpush.msra.mxu0 %v1886
    %1914 = vmatpush.msra.mxu0 %v1885
    %1915 = vmatpush.msra.mxu0 %v1884
    %1916 = vmatmul.f32.gmra.mxu0 %v460
    %v1917 = vpop.f32.mrf.mxu0
    %v1918 = vadd.f32 0.0, %v1917
    %1919 = vmatmul.f32.gmra.mxu0 %v461
    %v1920 = vpop.f32.mrf.mxu0
    %v1921 = vadd.f32 0.0, %v1920
    %1922 = vmatmul.f32.gmra.mxu0 %v462
    %v1923 = vpop.f32.mrf.mxu0
    %v1924 = vadd.f32 0.0, %v1923
    %1925 = vmatmul.f32.gmra.mxu0 %v463
    %v1926 = vpop.f32.mrf.mxu0
    %v1927 = vadd.f32 0.0, %v1926
    %1928 = vmatmul.f32.gmra.mxu0 %v464
    %v1929 = vpop.f32.mrf.mxu0
    %v1930 = vadd.f32 0.0, %v1929
    %1931 = vmatmul.f32.gmra.mxu0 %v465
    %v1932 = vpop.f32.mrf.mxu0
    %v1933 = vadd.f32 0.0, %v1932
    %1934 = vmatmul.f32.gmra.mxu0 %v466
    %v1935 = vpop.f32.mrf.mxu0
    %v1936 = vadd.f32 0.0, %v1935
    %1937 = vmatmul.f32.gmra.mxu0 %v467
    %v1938 = vpop.f32.mrf.mxu0
    %v1939 = vadd.f32 0.0, %v1938
    %1940 = vmatmul.f32.gmra.mxu0 %v468
    %v1941 = vpop.f32.mrf.mxu0
    %v1942 = vadd.f32 0.0, %v1941
    %1943 = vmatmul.f32.gmra.mxu0 %v469
    %v1944 = vpop.f32.mrf.mxu0
    %v1945 = vadd.f32 0.0, %v1944
    %1946 = vmatmul.f32.gmra.mxu0 %v470
    %v1947 = vpop.f32.mrf.mxu0
    %v1948 = vadd.f32 0.0, %v1947
    %1949 = vmatmul.f32.gmra.mxu0 %v471
    %v1950 = vpop.f32.mrf.mxu0
    %v1951 = vadd.f32 0.0, %v1950
    %1952 = vmatmul.f32.gmra.mxu0 %v472
    %v1953 = vpop.f32.mrf.mxu0
    %v1954 = vadd.f32 0.0, %v1953
    %1955 = vmatmul.f32.gmra.mxu0 %v473
    %v1956 = vpop.f32.mrf.mxu0
    %v1957 = vadd.f32 0.0, %v1956
    %1958 = vmatmul.f32.gmra.mxu0 %v474
    %v1959 = vpop.f32.mrf.mxu0
    %v1960 = vadd.f32 0.0, %v1959
    %1961 = vmatmul.f32.gmra.mxu0 %v475
    %v1962 = vpop.f32.mrf.mxu0
    %v1963 = vadd.f32 0.0, %v1962
    %1964 = vdwg.mxu0
    %v1965 = vmul.f32 %v1884, 2.0
    %v1966 = vmul.f32 %v1885, 2.0
    %v1967 = vmul.f32 %v1886, 2.0
    %v1968 = vmul.f32 %v1887, 2.0
    %v1969 = vmul.f32 %v1888, 2.0
    %v1970 = vmul.f32 %v1889, 2.0
    %v1971 = vmul.f32 %v1890, 2.0
    %v1972 = vmul.f32 %v1891, 2.0
    %v1973 = vmul.f32 %v1892, 2.0
    %v1974 = vmul.f32 %v1893, 2.0
    %v1975 = vmul.f32 %v1894, 2.0
    %v1976 = vmul.f32 %v1895, 2.0
    %v1977 = vmul.f32 %v1896, 2.0
    %v1978 = vmul.f32 %v1897, 2.0
    %v1979 = vmul.f32 %v1898, 2.0
    %v1980 = vmul.f32 %v1899, 2.0
    %1981 = vmatpush.msra.mxu0 %v1963
    %1982 = vmatpush.msra.mxu0 %v1960
    %1983 = vmatpush.msra.mxu0 %v1957
    %1984 = vmatpush.msra.mxu0 %v1954
    %1985 = vmatpush.msra.mxu0 %v1951
    %1986 = vmatpush.msra.mxu0 %v1948
    %1987 = vmatpush.msra.mxu0 %v1945
    %1988 = vmatpush.msra.mxu0 %v1942
    %1989 = vmatpush.msra.mxu0 %v1939
    %1990 = vmatpush.msra.mxu0 %v1936
    %1991 = vmatpush.msra.mxu0 %v1933
    %1992 = vmatpush.msra.mxu0 %v1930
    %1993 = vmatpush.msra.mxu0 %v1927
    %1994 = vmatpush.msra.mxu0 %v1924
    %1995 = vmatpush.msra.mxu0 %v1921
    %1996 = vmatpush.msra.mxu0 %v1918
    %1997 = vmatmul.f32.gmra.mxu0 %v1884
    %v1998 = vpop.f32.mrf.mxu0
    %v1999 = vadd.f32 0.0, %v1998
    %2000 = vmatmul.f32.gmra.mxu0 %v1885
    %v2001 = vpop.f32.mrf.mxu0
    %v2002 = vadd.f32 0.0, %v2001
    %2003 = vmatmul.f32.gmra.mxu0 %v1886
    %v2004 = vpop.f32.mrf.mxu0
    %v2005 = vadd.f32 0.0, %v2004
    %2006 = vmatmul.f32.gmra.mxu0 %v1887
    %v2007 = vpop.f32.mrf.mxu0
    %v2008 = vadd.f32 0.0, %v2007
    %2009 = vmatmul.f32.gmra.mxu0 %v1888
    %v2010 = vpop.f32.mrf.mxu0
    %v2011 = vadd.f32 0.0, %v2010
    %2012 = vmatmul.f32.gmra.mxu0 %v1889
    %v2013 = vpop.f32.mrf.mxu0
    %v2014 = vadd.f32 0.0, %v2013
    %2015 = vmatmul.f32.gmra.mxu0 %v1890
    %v2016 = vpop.f32.mrf.mxu0
    %v2017 = vadd.f32 0.0, %v2016
    %2018 = vmatmul.f32.gmra.mxu0 %v1891
    %v2019 = vpop.f32.mrf.mxu0
    %v2020 = vadd.f32 0.0, %v2019
    %2021 = vmatmul.f32.gmra.mxu0 %v1892
    %v2022 = vpop.f32.mrf.mxu0
    %v2023 = vadd.f32 0.0, %v2022
    %2024 = vmatmul.f32.gmra.mxu0 %v1893
    %v2025 = vpop.f32.mrf.mxu0
    %v2026 = vadd.f32 0.0, %v2025
    %2027 = vmatmul.f32.gmra.mxu0 %v1894
    %v2028 = vpop.f32.mrf.mxu0
    %v2029 = vadd.f32 0.0, %v2028
    %2030 = vmatmul.f32.gmra.mxu0 %v1895
    %v2031 = vpop.f32.mrf.mxu0
    %v2032 = vadd.f32 0.0, %v2031
    %2033 = vmatmul.f32.gmra.mxu0 %v1896
    %v2034 = vpop.f32.mrf.mxu0
    %v2035 = vadd.f32 0.0, %v2034
    %2036 = vmatmul.f32.gmra.mxu0 %v1897
    %v2037 = vpop.f32.mrf.mxu0
    %v2038 = vadd.f32 0.0, %v2037
    %2039 = vmatmul.f32.gmra.mxu0 %v1898
    %v2040 = vpop.f32.mrf.mxu0
    %v2041 = vadd.f32 0.0, %v2040
    %2042 = vmatmul.f32.gmra.mxu0 %v1899
    %v2043 = vpop.f32.mrf.mxu0
    %v2044 = vadd.f32 0.0, %v2043
    %2045 = vdwg.mxu0
    %v2046 = vsub.f32 %v1965, %v1999
    %v2047 = vsub.f32 %v1966, %v2002
    %v2048 = vsub.f32 %v1967, %v2005
    %v2049 = vsub.f32 %v1968, %v2008
    %v2050 = vsub.f32 %v1969, %v2011
    %v2051 = vsub.f32 %v1970, %v2014
    %v2052 = vsub.f32 %v1971, %v2017
    %v2053 = vsub.f32 %v1972, %v2020
    %v2054 = vsub.f32 %v1973, %v2023
    %v2055 = vsub.f32 %v1974, %v2026
    %v2056 = vsub.f32 %v1975, %v2029
    %v2057 = vsub.f32 %v1976, %v2032
    %v2058 = vsub.f32 %v1977, %v2035
    %v2059 = vsub.f32 %v1978, %v2038
    %v2060 = vsub.f32 %v1979, %v2041
    %v2061 = vsub.f32 %v1980, %v2044
    %2062 = vmatpush.msra.mxu0 %v2061
    %2063 = vmatpush.msra.mxu0 %v2060
    %2064 = vmatpush.msra.mxu0 %v2059
    %2065 = vmatpush.msra.mxu0 %v2058
    %2066 = vmatpush.msra.mxu0 %v2057
    %2067 = vmatpush.msra.mxu0 %v2056
    %2068 = vmatpush.msra.mxu0 %v2055
    %2069 = vmatpush.msra.mxu0 %v2054
    %2070 = vmatpush.msra.mxu0 %v2053
    %2071 = vmatpush.msra.mxu0 %v2052
    %2072 = vmatpush.msra.mxu0 %v2051
    %2073 = vmatpush.msra.mxu0 %v2050
    %2074 = vmatpush.msra.mxu0 %v2049
    %2075 = vmatpush.msra.mxu0 %v2048
    %2076 = vmatpush.msra.mxu0 %v2047
    %2077 = vmatpush.msra.mxu0 %v2046
    %2078 = vmatmul.f32.gmra.mxu0 %v460
    %v2079 = vpop.f32.mrf.mxu0
    %v2080 = vadd.f32 0.0, %v2079
    %2081 = vmatmul.f32.gmra.mxu0 %v461
    %v2082 = vpop.f32.mrf.mxu0
    %v2083 = vadd.f32 0.0, %v2082
    %2084 = vmatmul.f32.gmra.mxu0 %v462
    %v2085 = vpop.f32.mrf.mxu0
    %v2086 = vadd.f32 0.0, %v2085
    %2087 = vmatmul.f32.gmra.mxu0 %v463
    %v2088 = vpop.f32.mrf.mxu0
    %v2089 = vadd.f32 0.0, %v2088
    %2090 = vmatmul.f32.gmra.mxu0 %v464
    %v2091 = vpop.f32.mrf.mxu0
    %v2092 = vadd.f32 0.0, %v2091
    %2093 = vmatmul.f32.gmra.mxu0 %v465
    %v2094 = vpop.f32.mrf.mxu0
    %v2095 = vadd.f32 0.0, %v2094
    %2096 = vmatmul.f32.gmra.mxu0 %v466
    %v2097 = vpop.f32.mrf.mxu0
    %v2098 = vadd.f32 0.0, %v2097
    %2099 = vmatmul.f32.gmra.mxu0 %v467
    %v2100 = vpop.f32.mrf.mxu0
    %v2101 = vadd.f32 0.0, %v2100
    %2102 = vmatmul.f32.gmra.mxu0 %v468
    %v2103 = vpop.f32.mrf.mxu0
    %v2104 = vadd.f32 0.0, %v2103
    %2105 = vmatmul.f32.gmra.mxu0 %v469
    %v2106 = vpop.f32.mrf.mxu0
    %v2107 = vadd.f32 0.0, %v2106
    %2108 = vmatmul.f32.gmra.mxu0 %v470
    %v2109 = vpop.f32.mrf.mxu0
    %v2110 = vadd.f32 0.0, %v2109
    %2111 = vmatmul.f32.gmra.mxu0 %v471
    %v2112 = vpop.f32.mrf.mxu0
    %v2113 = vadd.f32 0.0, %v2112
    %2114 = vmatmul.f32.gmra.mxu0 %v472
    %v2115 = vpop.f32.mrf.mxu0
    %v2116 = vadd.f32 0.0, %v2115
    %2117 = vmatmul.f32.gmra.mxu0 %v473
    %v2118 = vpop.f32.mrf.mxu0
    %v2119 = vadd.f32 0.0, %v2118
    %2120 = vmatmul.f32.gmra.mxu0 %v474
    %v2121 = vpop.f32.mrf.mxu0
    %v2122 = vadd.f32 0.0, %v2121
    %2123 = vmatmul.f32.gmra.mxu0 %v475
    %v2124 = vpop.f32.mrf.mxu0
    %v2125 = vadd.f32 0.0, %v2124
    %2126 = vdwg.mxu0
    %v2127 = vmul.f32 %v2046, 2.0
    %v2128 = vmul.f32 %v2047, 2.0
    %v2129 = vmul.f32 %v2048, 2.0
    %v2130 = vmul.f32 %v2049, 2.0
    %v2131 = vmul.f32 %v2050, 2.0
    %v2132 = vmul.f32 %v2051, 2.0
    %v2133 = vmul.f32 %v2052, 2.0
    %v2134 = vmul.f32 %v2053, 2.0
    %v2135 = vmul.f32 %v2054, 2.0
    %v2136 = vmul.f32 %v2055, 2.0
    %v2137 = vmul.f32 %v2056, 2.0
    %v2138 = vmul.f32 %v2057, 2.0
    %v2139 = vmul.f32 %v2058, 2.0
    %v2140 = vmul.f32 %v2059, 2.0
    %v2141 = vmul.f32 %v2060, 2.0
    %v2142 = vmul.f32 %v2061, 2.0
    %2143 = vmatpush.msra.mxu0 %v2125
    %2144 = vmatpush.msra.mxu0 %v2122
    %2145 = vmatpush.msra.mxu0 %v2119
    %2146 = vmatpush.msra.mxu0 %v2116
    %2147 = vmatpush.msra.mxu0 %v2113
    %2148 = vmatpush.msra.mxu0 %v2110
    %2149 = vmatpush.msra.mxu0 %v2107
    %2150 = vmatpush.msra.mxu0 %v2104
    %2151 = vmatpush.msra.mxu0 %v2101
    %2152 = vmatpush.msra.mxu0 %v2098
    %2153 = vmatpush.msra.mxu0 %v2095
    %2154 = vmatpush.msra.mxu0 %v2092
    %2155 = vmatpush.msra.mxu0 %v2089
    %2156 = vmatpush.msra.mxu0 %v2086
    %2157 = vmatpush.msra.mxu0 %v2083
    %2158 = vmatpush.msra.mxu0 %v2080
    %2159 = vmatmul.f32.gmra.mxu0 %v2046
    %v2160 = vpop.f32.mrf.mxu0
    %v2161 = vadd.f32 0.0, %v2160
    %2162 = vmatmul.f32.gmra.mxu0 %v2047
    %v2163 = vpop.f32.mrf.mxu0
    %v2164 = vadd.f32 0.0, %v2163
    %2165 = vmatmul.f32.gmra.mxu0 %v2048
    %v2166 = vpop.f32.mrf.mxu0
    %v2167 = vadd.f32 0.0, %v2166
    %2168 = vmatmul.f32.gmra.mxu0 %v2049
    %v2169 = vpop.f32.mrf.mxu0
    %v2170 = vadd.f32 0.0, %v2169
    %2171 = vmatmul.f32.gmra.mxu0 %v2050
    %v2172 = vpop.f32.mrf.mxu0
    %v2173 = vadd.f32 0.0, %v2172
    %2174 = vmatmul.f32.gmra.mxu0 %v2051
    %v2175 = vpop.f32.mrf.mxu0
    %v2176 = vadd.f32 0.0, %v2175
    %2177 = vmatmul.f32.gmra.mxu0 %v2052
    %v2178 = vpop.f32.mrf.mxu0
    %v2179 = vadd.f32 0.0, %v2178
    %2180 = vmatmul.f32.gmra.mxu0 %v2053
    %v2181 = vpop.f32.mrf.mxu0
    %v2182 = vadd.f32 0.0, %v2181
    %2183 = vmatmul.f32.gmra.mxu0 %v2054
    %v2184 = vpop.f32.mrf.mxu0
    %v2185 = vadd.f32 0.0, %v2184
    %2186 = vmatmul.f32.gmra.mxu0 %v2055
    %v2187 = vpop.f32.mrf.mxu0
    %v2188 = vadd.f32 0.0, %v2187
    %2189 = vmatmul.f32.gmra.mxu0 %v2056
    %v2190 = vpop.f32.mrf.mxu0
    %v2191 = vadd.f32 0.0, %v2190
    %2192 = vmatmul.f32.gmra.mxu0 %v2057
    %v2193 = vpop.f32.mrf.mxu0
    %v2194 = vadd.f32 0.0, %v2193
    %2195 = vmatmul.f32.gmra.mxu0 %v2058
    %v2196 = vpop.f32.mrf.mxu0
    %v2197 = vadd.f32 0.0, %v2196
    %2198 = vmatmul.f32.gmra.mxu0 %v2059
    %v2199 = vpop.f32.mrf.mxu0
    %v2200 = vadd.f32 0.0, %v2199
    %2201 = vmatmul.f32.gmra.mxu0 %v2060
    %v2202 = vpop.f32.mrf.mxu0
    %v2203 = vadd.f32 0.0, %v2202
    %2204 = vmatmul.f32.gmra.mxu0 %v2061
    %v2205 = vpop.f32.mrf.mxu0
    %v2206 = vadd.f32 0.0, %v2205
    %2207 = vdwg.mxu0
    %v2208 = vsub.f32 %v2127, %v2161
    %v2209 = vsub.f32 %v2128, %v2164
    %v2210 = vsub.f32 %v2129, %v2167
    %v2211 = vsub.f32 %v2130, %v2170
    %v2212 = vsub.f32 %v2131, %v2173
    %v2213 = vsub.f32 %v2132, %v2176
    %v2214 = vsub.f32 %v2133, %v2179
    %v2215 = vsub.f32 %v2134, %v2182
    %v2216 = vsub.f32 %v2135, %v2185
    %v2217 = vsub.f32 %v2136, %v2188
    %v2218 = vsub.f32 %v2137, %v2191
    %v2219 = vsub.f32 %v2138, %v2194
    %v2220 = vsub.f32 %v2139, %v2197
    %v2221 = vsub.f32 %v2140, %v2200
    %v2222 = vsub.f32 %v2141, %v2203
    %v2223 = vsub.f32 %v2142, %v2206
    %2224 = vmatpush.msra.mxu0 %v2223
    %2225 = vmatpush.msra.mxu0 %v2222
    %2226 = vmatpush.msra.mxu0 %v2221
    %2227 = vmatpush.msra.mxu0 %v2220
    %2228 = vmatpush.msra.mxu0 %v2219
    %2229 = vmatpush.msra.mxu0 %v2218
    %2230 = vmatpush.msra.mxu0 %v2217
    %2231 = vmatpush.msra.mxu0 %v2216
    %2232 = vmatpush.msra.mxu0 %v2215
    %2233 = vmatpush.msra.mxu0 %v2214
    %2234 = vmatpush.msra.mxu0 %v2213
    %2235 = vmatpush.msra.mxu0 %v2212
    %2236 = vmatpush.msra.mxu0 %v2211
    %2237 = vmatpush.msra.mxu0 %v2210
    %2238 = vmatpush.msra.mxu0 %v2209
    %2239 = vmatpush.msra.mxu0 %v2208
    %2240 = vmatmul.f32.gmra.mxu0 %v460
    %v2241 = vpop.f32.mrf.mxu0
    %v2242 = vadd.f32 0.0, %v2241
    %2243 = vmatmul.f32.gmra.mxu0 %v461
    %v2244 = vpop.f32.mrf.mxu0
    %v2245 = vadd.f32 0.0, %v2244
    %2246 = vmatmul.f32.gmra.mxu0 %v462
    %v2247 = vpop.f32.mrf.mxu0
    %v2248 = vadd.f32 0.0, %v2247
    %2249 = vmatmul.f32.gmra.mxu0 %v463
    %v2250 = vpop.f32.mrf.mxu0
    %v2251 = vadd.f32 0.0, %v2250
    %2252 = vmatmul.f32.gmra.mxu0 %v464
    %v2253 = vpop.f32.mrf.mxu0
    %v2254 = vadd.f32 0.0, %v2253
    %2255 = vmatmul.f32.gmra.mxu0 %v465
    %v2256 = vpop.f32.mrf.mxu0
    %v2257 = vadd.f32 0.0, %v2256
    %2258 = vmatmul.f32.gmra.mxu0 %v466
    %v2259 = vpop.f32.mrf.mxu0
    %v2260 = vadd.f32 0.0, %v2259
    %2261 = vmatmul.f32.gmra.mxu0 %v467
    %v2262 = vpop.f32.mrf.mxu0
    %v2263 = vadd.f32 0.0, %v2262
    %2264 = vmatmul.f32.gmra.mxu0 %v468
    %v2265 = vpop.f32.mrf.mxu0
    %v2266 = vadd.f32 0.0, %v2265
    %2267 = vmatmul.f32.gmra.mxu0 %v469
    %v2268 = vpop.f32.mrf.mxu0
    %v2269 = vadd.f32 0.0, %v2268
    %2270 = vmatmul.f32.gmra.mxu0 %v470
    %v2271 = vpop.f32.mrf.mxu0
    %v2272 = vadd.f32 0.0, %v2271
    %2273 = vmatmul.f32.gmra.mxu0 %v471
    %v2274 = vpop.f32.mrf.mxu0
    %v2275 = vadd.f32 0.0, %v2274
    %2276 = vmatmul.f32.gmra.mxu0 %v472
    %v2277 = vpop.f32.mrf.mxu0
    %v2278 = vadd.f32 0.0, %v2277
    %2279 = vmatmul.f32.gmra.mxu0 %v473
    %v2280 = vpop.f32.mrf.mxu0
    %v2281 = vadd.f32 0.0, %v2280
    %2282 = vmatmul.f32.gmra.mxu0 %v474
    %v2283 = vpop.f32.mrf.mxu0
    %v2284 = vadd.f32 0.0, %v2283
    %2285 = vmatmul.f32.gmra.mxu0 %v475
    %v2286 = vpop.f32.mrf.mxu0
    %v2287 = vadd.f32 0.0, %v2286
    %2288 = vdwg.mxu0
    %v2289 = vmul.f32 %v2208, 2.0
    %v2290 = vmul.f32 %v2209, 2.0
    %v2291 = vmul.f32 %v2210, 2.0
    %v2292 = vmul.f32 %v2211, 2.0
    %v2293 = vmul.f32 %v2212, 2.0
    %v2294 = vmul.f32 %v2213, 2.0
    %v2295 = vmul.f32 %v2214, 2.0
    %v2296 = vmul.f32 %v2215, 2.0
    %v2297 = vmul.f32 %v2216, 2.0
    %v2298 = vmul.f32 %v2217, 2.0
    %v2299 = vmul.f32 %v2218, 2.0
    %v2300 = vmul.f32 %v2219, 2.0
    %v2301 = vmul.f32 %v2220, 2.0
    %v2302 = vmul.f32 %v2221, 2.0
    %v2303 = vmul.f32 %v2222, 2.0
    %v2304 = vmul.f32 %v2223, 2.0
    %2305 = vmatpush.msra.mxu0 %v2287
    %2306 = vmatpush.msra.mxu0 %v2284
    %2307 = vmatpush.msra.mxu0 %v2281
    %2308 = vmatpush.msra.mxu0 %v2278
    %2309 = vmatpush.msra.mxu0 %v2275
    %2310 = vmatpush.msra.mxu0 %v2272
    %2311 = vmatpush.msra.mxu0 %v2269
    %2312 = vmatpush.msra.mxu0 %v2266
    %2313 = vmatpush.msra.mxu0 %v2263
    %2314 = vmatpush.msra.mxu0 %v2260
    %2315 = vmatpush.msra.mxu0 %v2257
    %2316 = vmatpush.msra.mxu0 %v2254
    %2317 = vmatpush.msra.mxu0 %v2251
    %2318 = vmatpush.msra.mxu0 %v2248
    %2319 = vmatpush.msra.mxu0 %v2245
    %2320 = vmatpush.msra.mxu0 %v2242
    %2321 = vmatmul.f32.gmra.mxu0 %v2208
    %v2322 = vpop.f32.mrf.mxu0
    %v2323 = vadd.f32 0.0, %v2322
    %2324 = vmatmul.f32.gmra.mxu0 %v2209
    %v2325 = vpop.f32.mrf.mxu0
    %v2326 = vadd.f32 0.0, %v2325
    %2327 = vmatmul.f32.gmra.mxu0 %v2210
    %v2328 = vpop.f32.mrf.mxu0
    %v2329 = vadd.f32 0.0, %v2328
    %2330 = vmatmul.f32.gmra.mxu0 %v2211
    %v2331 = vpop.f32.mrf.mxu0
    %v2332 = vadd.f32 0.0, %v2331
    %2333 = vmatmul.f32.gmra.mxu0 %v2212
    %v2334 = vpop.f32.mrf.mxu0
    %v2335 = vadd.f32 0.0, %v2334
    %2336 = vmatmul.f32.gmra.mxu0 %v2213
    %v2337 = vpop.f32.mrf.mxu0
    %v2338 = vadd.f32 0.0, %v2337
    %2339 = vmatmul.f32.gmra.mxu0 %v2214
    %v2340 = vpop.f32.mrf.mxu0
    %v2341 = vadd.f32 0.0, %v2340
    %2342 = vmatmul.f32.gmra.mxu0 %v2215
    %v2343 = vpop.f32.mrf.mxu0
    %v2344 = vadd.f32 0.0, %v2343
    %2345 = vmatmul.f32.gmra.mxu0 %v2216
    %v2346 = vpop.f32.mrf.mxu0
    %v2347 = vadd.f32 0.0, %v2346
    %2348 = vmatmul.f32.gmra.mxu0 %v2217
    %v2349 = vpop.f32.mrf.mxu0
    %v2350 = vadd.f32 0.0, %v2349
    %2351 = vmatmul.f32.gmra.mxu0 %v2218
    %v2352 = vpop.f32.mrf.mxu0
    %v2353 = vadd.f32 0.0, %v2352
    %2354 = vmatmul.f32.gmra.mxu0 %v2219
    %v2355 = vpop.f32.mrf.mxu0
    %v2356 = vadd.f32 0.0, %v2355
    %2357 = vmatmul.f32.gmra.mxu0 %v2220
    %v2358 = vpop.f32.mrf.mxu0
    %v2359 = vadd.f32 0.0, %v2358
    %2360 = vmatmul.f32.gmra.mxu0 %v2221
    %v2361 = vpop.f32.mrf.mxu0
    %v2362 = vadd.f32 0.0, %v2361
    %2363 = vmatmul.f32.gmra.mxu0 %v2222
    %v2364 = vpop.f32.mrf.mxu0
    %v2365 = vadd.f32 0.0, %v2364
    %2366 = vmatmul.f32.gmra.mxu0 %v2223
    %v2367 = vpop.f32.mrf.mxu0
    %v2368 = vadd.f32 0.0, %v2367
    %2369 = vdwg.mxu0
    %v2370 = vsub.f32 %v2289, %v2323
    %v2371 = vsub.f32 %v2290, %v2326
    %v2372 = vsub.f32 %v2291, %v2329
    %v2373 = vsub.f32 %v2292, %v2332
    %v2374 = vsub.f32 %v2293, %v2335
    %v2375 = vsub.f32 %v2294, %v2338
    %v2376 = vsub.f32 %v2295, %v2341
    %v2377 = vsub.f32 %v2296, %v2344
    %v2378 = vsub.f32 %v2297, %v2347
    %v2379 = vsub.f32 %v2298, %v2350
    %v2380 = vsub.f32 %v2299, %v2353
    %v2381 = vsub.f32 %v2300, %v2356
    %v2382 = vsub.f32 %v2301, %v2359
    %v2383 = vsub.f32 %v2302, %v2362
    %v2384 = vsub.f32 %v2303, %v2365
    %v2385 = vsub.f32 %v2304, %v2368
    %2386 = vmatpush.msra.mxu0 %v2385
    %2387 = vmatpush.msra.mxu0 %v2384
    %2388 = vmatpush.msra.mxu0 %v2383
    %2389 = vmatpush.msra.mxu0 %v2382
    %2390 = vmatpush.msra.mxu0 %v2381
    %2391 = vmatpush.msra.mxu0 %v2380
    %2392 = vmatpush.msra.mxu0 %v2379
    %2393 = vmatpush.msra.mxu0 %v2378
    %2394 = vmatpush.msra.mxu0 %v2377
    %2395 = vmatpush.msra.mxu0 %v2376
    %2396 = vmatpush.msra.mxu0 %v2375
    %2397 = vmatpush.msra.mxu0 %v2374
    %2398 = vmatpush.msra.mxu0 %v2373
    %2399 = vmatpush.msra.mxu0 %v2372
    %2400 = vmatpush.msra.mxu0 %v2371
    %2401 = vmatpush.msra.mxu0 %v2370
    %2402 = vmatmul.f32.gmra.mxu0 %v460
    %v2403 = vpop.f32.mrf.mxu0
    %v2404 = vadd.f32 0.0, %v2403
    %2405 = vmatmul.f32.gmra.mxu0 %v461
    %v2406 = vpop.f32.mrf.mxu0
    %v2407 = vadd.f32 0.0, %v2406
    %2408 = vmatmul.f32.gmra.mxu0 %v462
    %v2409 = vpop.f32.mrf.mxu0
    %v2410 = vadd.f32 0.0, %v2409
    %2411 = vmatmul.f32.gmra.mxu0 %v463
    %v2412 = vpop.f32.mrf.mxu0
    %v2413 = vadd.f32 0.0, %v2412
    %2414 = vmatmul.f32.gmra.mxu0 %v464
    %v2415 = vpop.f32.mrf.mxu0
    %v2416 = vadd.f32 0.0, %v2415
    %2417 = vmatmul.f32.gmra.mxu0 %v465
    %v2418 = vpop.f32.mrf.mxu0
    %v2419 = vadd.f32 0.0, %v2418
    %2420 = vmatmul.f32.gmra.mxu0 %v466
    %v2421 = vpop.f32.mrf.mxu0
    %v2422 = vadd.f32 0.0, %v2421
    %2423 = vmatmul.f32.gmra.mxu0 %v467
    %v2424 = vpop.f32.mrf.mxu0
    %v2425 = vadd.f32 0.0, %v2424
    %2426 = vmatmul.f32.gmra.mxu0 %v468
    %v2427 = vpop.f32.mrf.mxu0
    %v2428 = vadd.f32 0.0, %v2427
    %2429 = vmatmul.f32.gmra.mxu0 %v469
    %v2430 = vpop.f32.mrf.mxu0
    %v2431 = vadd.f32 0.0, %v2430
    %2432 = vmatmul.f32.gmra.mxu0 %v470
    %v2433 = vpop.f32.mrf.mxu0
    %v2434 = vadd.f32 0.0, %v2433
    %2435 = vmatmul.f32.gmra.mxu0 %v471
    %v2436 = vpop.f32.mrf.mxu0
    %v2437 = vadd.f32 0.0, %v2436
    %2438 = vmatmul.f32.gmra.mxu0 %v472
    %v2439 = vpop.f32.mrf.mxu0
    %v2440 = vadd.f32 0.0, %v2439
    %2441 = vmatmul.f32.gmra.mxu0 %v473
    %v2442 = vpop.f32.mrf.mxu0
    %v2443 = vadd.f32 0.0, %v2442
    %2444 = vmatmul.f32.gmra.mxu0 %v474
    %v2445 = vpop.f32.mrf.mxu0
    %v2446 = vadd.f32 0.0, %v2445
    %2447 = vmatmul.f32.gmra.mxu0 %v475
    %v2448 = vpop.f32.mrf.mxu0
    %v2449 = vadd.f32 0.0, %v2448
    %2450 = vdwg.mxu0
    %v2451 = vmul.f32 %v2370, 2.0
    %v2452 = vmul.f32 %v2371, 2.0
    %v2453 = vmul.f32 %v2372, 2.0
    %v2454 = vmul.f32 %v2373, 2.0
    %v2455 = vmul.f32 %v2374, 2.0
    %v2456 = vmul.f32 %v2375, 2.0
    %v2457 = vmul.f32 %v2376, 2.0
    %v2458 = vmul.f32 %v2377, 2.0
    %v2459 = vmul.f32 %v2378, 2.0
    %v2460 = vmul.f32 %v2379, 2.0
    %v2461 = vmul.f32 %v2380, 2.0
    %v2462 = vmul.f32 %v2381, 2.0
    %v2463 = vmul.f32 %v2382, 2.0
    %v2464 = vmul.f32 %v2383, 2.0
    %v2465 = vmul.f32 %v2384, 2.0
    %v2466 = vmul.f32 %v2385, 2.0
    %2467 = vmatpush.msra.mxu0 %v2449
    %2468 = vmatpush.msra.mxu0 %v2446
    %2469 = vmatpush.msra.mxu0 %v2443
    %2470 = vmatpush.msra.mxu0 %v2440
    %2471 = vmatpush.msra.mxu0 %v2437
    %2472 = vmatpush.msra.mxu0 %v2434
    %2473 = vmatpush.msra.mxu0 %v2431
    %2474 = vmatpush.msra.mxu0 %v2428
    %2475 = vmatpush.msra.mxu0 %v2425
    %2476 = vmatpush.msra.mxu0 %v2422
    %2477 = vmatpush.msra.mxu0 %v2419
    %2478 = vmatpush.msra.mxu0 %v2416
    %2479 = vmatpush.msra.mxu0 %v2413
    %2480 = vmatpush.msra.mxu0 %v2410
    %2481 = vmatpush.msra.mxu0 %v2407
    %2482 = vmatpush.msra.mxu0 %v2404
    %2483 = vmatmul.f32.gmra.mxu0 %v2370
    %v2484 = vpop.f32.mrf.mxu0
    %v2485 = vadd.f32 0.0, %v2484
    %2486 = vmatmul.f32.gmra.mxu0 %v2371
    %v2487 = vpop.f32.mrf.mxu0
    %v2488 = vadd.f32 0.0, %v2487
    %2489 = vmatmul.f32.gmra.mxu0 %v2372
    %v2490 = vpop.f32.mrf.mxu0
    %v2491 = vadd.f32 0.0, %v2490
    %2492 = vmatmul.f32.gmra.mxu0 %v2373
    %v2493 = vpop.f32.mrf.mxu0
    %v2494 = vadd.f32 0.0, %v2493
    %2495 = vmatmul.f32.gmra.mxu0 %v2374
    %v2496 = vpop.f32.mrf.mxu0
    %v2497 = vadd.f32 0.0, %v2496
    %2498 = vmatmul.f32.gmra.mxu0 %v2375
    %v2499 = vpop.f32.mrf.mxu0
    %v2500 = vadd.f32 0.0, %v2499
    %2501 = vmatmul.f32.gmra.mxu0 %v2376
    %v2502 = vpop.f32.mrf.mxu0
    %v2503 = vadd.f32 0.0, %v2502
    %2504 = vmatmul.f32.gmra.mxu0 %v2377
    %v2505 = vpop.f32.mrf.mxu0
    %v2506 = vadd.f32 0.0, %v2505
    %2507 = vmatmul.f32.gmra.mxu0 %v2378
    %v2508 = vpop.f32.mrf.mxu0
    %v2509 = vadd.f32 0.0, %v2508
    %2510 = vmatmul.f32.gmra.mxu0 %v2379
    %v2511 = vpop.f32.mrf.mxu0
    %v2512 = vadd.f32 0.0, %v2511
    %2513 = vmatmul.f32.gmra.mxu0 %v2380
    %v2514 = vpop.f32.mrf.mxu0
    %v2515 = vadd.f32 0.0, %v2514
    %2516 = vmatmul.f32.gmra.mxu0 %v2381
    %v2517 = vpop.f32.mrf.mxu0
    %v2518 = vadd.f32 0.0, %v2517
    %2519 = vmatmul.f32.gmra.mxu0 %v2382
    %v2520 = vpop.f32.mrf.mxu0
    %v2521 = vadd.f32 0.0, %v2520
    %2522 = vmatmul.f32.gmra.mxu0 %v2383
    %v2523 = vpop.f32.mrf.mxu0
    %v2524 = vadd.f32 0.0, %v2523
    %2525 = vmatmul.f32.gmra.mxu0 %v2384
    %v2526 = vpop.f32.mrf.mxu0
    %v2527 = vadd.f32 0.0, %v2526
    %2528 = vmatmul.f32.gmra.mxu0 %v2385
    %v2529 = vpop.f32.mrf.mxu0
    %v2530 = vadd.f32 0.0, %v2529
    %2531 = vdwg.mxu0
    %v2532 = vsub.f32 %v2451, %v2485
    %v2533 = vsub.f32 %v2452, %v2488
    %v2534 = vsub.f32 %v2453, %v2491
    %v2535 = vsub.f32 %v2454, %v2494
    %v2536 = vsub.f32 %v2455, %v2497
    %v2537 = vsub.f32 %v2456, %v2500
    %v2538 = vsub.f32 %v2457, %v2503
    %v2539 = vsub.f32 %v2458, %v2506
    %v2540 = vsub.f32 %v2459, %v2509
    %v2541 = vsub.f32 %v2460, %v2512
    %v2542 = vsub.f32 %v2461, %v2515
    %v2543 = vsub.f32 %v2462, %v2518
    %v2544 = vsub.f32 %v2463, %v2521
    %v2545 = vsub.f32 %v2464, %v2524
    %v2546 = vsub.f32 %v2465, %v2527
    %v2547 = vsub.f32 %v2466, %v2530
    %2548 = vmatpush.msra.mxu0 %v2547
    %2549 = vmatpush.msra.mxu0 %v2546
    %2550 = vmatpush.msra.mxu0 %v2545
    %2551 = vmatpush.msra.mxu0 %v2544
    %2552 = vmatpush.msra.mxu0 %v2543
    %2553 = vmatpush.msra.mxu0 %v2542
    %2554 = vmatpush.msra.mxu0 %v2541
    %2555 = vmatpush.msra.mxu0 %v2540
    %2556 = vmatpush.msra.mxu0 %v2539
    %2557 = vmatpush.msra.mxu0 %v2538
    %2558 = vmatpush.msra.mxu0 %v2537
    %2559 = vmatpush.msra.mxu0 %v2536
    %2560 = vmatpush.msra.mxu0 %v2535
    %2561 = vmatpush.msra.mxu0 %v2534
    %2562 = vmatpush.msra.mxu0 %v2533
    %2563 = vmatpush.msra.mxu0 %v2532
    %2564 = vmatmul.f32.gmra.mxu0 %v460
    %v2565 = vpop.f32.mrf.mxu0
    %v2566 = vadd.f32 0.0, %v2565
    %2567 = vmatmul.f32.gmra.mxu0 %v461
    %v2568 = vpop.f32.mrf.mxu0
    %v2569 = vadd.f32 0.0, %v2568
    %2570 = vmatmul.f32.gmra.mxu0 %v462
    %v2571 = vpop.f32.mrf.mxu0
    %v2572 = vadd.f32 0.0, %v2571
    %2573 = vmatmul.f32.gmra.mxu0 %v463
    %v2574 = vpop.f32.mrf.mxu0
    %v2575 = vadd.f32 0.0, %v2574
    %2576 = vmatmul.f32.gmra.mxu0 %v464
    %v2577 = vpop.f32.mrf.mxu0
    %v2578 = vadd.f32 0.0, %v2577
    %2579 = vmatmul.f32.gmra.mxu0 %v465
    %v2580 = vpop.f32.mrf.mxu0
    %v2581 = vadd.f32 0.0, %v2580
    %2582 = vmatmul.f32.gmra.mxu0 %v466
    %v2583 = vpop.f32.mrf.mxu0
    %v2584 = vadd.f32 0.0, %v2583
    %2585 = vmatmul.f32.gmra.mxu0 %v467
    %v2586 = vpop.f32.mrf.mxu0
    %v2587 = vadd.f32 0.0, %v2586
    %2588 = vmatmul.f32.gmra.mxu0 %v468
    %v2589 = vpop.f32.mrf.mxu0
    %v2590 = vadd.f32 0.0, %v2589
    %2591 = vmatmul.f32.gmra.mxu0 %v469
    %v2592 = vpop.f32.mrf.mxu0
    %v2593 = vadd.f32 0.0, %v2592
    %2594 = vmatmul.f32.gmra.mxu0 %v470
    %v2595 = vpop.f32.mrf.mxu0
    %v2596 = vadd.f32 0.0, %v2595
    %2597 = vmatmul.f32.gmra.mxu0 %v471
    %v2598 = vpop.f32.mrf.mxu0
    %v2599 = vadd.f32 0.0, %v2598
    %2600 = vmatmul.f32.gmra.mxu0 %v472
    %v2601 = vpop.f32.mrf.mxu0
    %v2602 = vadd.f32 0.0, %v2601
    %2603 = vmatmul.f32.gmra.mxu0 %v473
    %v2604 = vpop.f32.mrf.mxu0
    %v2605 = vadd.f32 0.0, %v2604
    %2606 = vmatmul.f32.gmra.mxu0 %v474
    %v2607 = vpop.f32.mrf.mxu0
    %v2608 = vadd.f32 0.0, %v2607
    %2609 = vmatmul.f32.gmra.mxu0 %v475
    %v2610 = vpop.f32.mrf.mxu0
    %v2611 = vadd.f32 0.0, %v2610
    %2612 = vdwg.mxu0
    %v2613 = vmul.f32 %v2532, 2.0
    %v2614 = vmul.f32 %v2533, 2.0
    %v2615 = vmul.f32 %v2534, 2.0
    %v2616 = vmul.f32 %v2535, 2.0
    %v2617 = vmul.f32 %v2536, 2.0
    %v2618 = vmul.f32 %v2537, 2.0
    %v2619 = vmul.f32 %v2538, 2.0
    %v2620 = vmul.f32 %v2539, 2.0
    %v2621 = vmul.f32 %v2540, 2.0
    %v2622 = vmul.f32 %v2541, 2.0
    %v2623 = vmul.f32 %v2542, 2.0
    %v2624 = vmul.f32 %v2543, 2.0
    %v2625 = vmul.f32 %v2544, 2.0
    %v2626 = vmul.f32 %v2545, 2.0
    %v2627 = vmul.f32 %v2546, 2.0
    %v2628 = vmul.f32 %v2547, 2.0
    %2629 = vmatpush.msra.mxu0 %v2611
    %2630 = vmatpush.msra.mxu0 %v2608
    %2631 = vmatpush.msra.mxu0 %v2605
    %2632 = vmatpush.msra.mxu0 %v2602
    %2633 = vmatpush.msra.mxu0 %v2599
    %2634 = vmatpush.msra.mxu0 %v2596
    %2635 = vmatpush.msra.mxu0 %v2593
    %2636 = vmatpush.msra.mxu0 %v2590
    %2637 = vmatpush.msra.mxu0 %v2587
    %2638 = vmatpush.msra.mxu0 %v2584
    %2639 = vmatpush.msra.mxu0 %v2581
    %2640 = vmatpush.msra.mxu0 %v2578
    %2641 = vmatpush.msra.mxu0 %v2575
    %2642 = vmatpush.msra.mxu0 %v2572
    %2643 = vmatpush.msra.mxu0 %v2569
    %2644 = vmatpush.msra.mxu0 %v2566
    %2645 = vmatmul.f32.gmra.mxu0 %v2532
    %v2646 = vpop.f32.mrf.mxu0
    %v2647 = vadd.f32 0.0, %v2646
    %2648 = vmatmul.f32.gmra.mxu0 %v2533
    %v2649 = vpop.f32.mrf.mxu0
    %v2650 = vadd.f32 0.0, %v2649
    %2651 = vmatmul.f32.gmra.mxu0 %v2534
    %v2652 = vpop.f32.mrf.mxu0
    %v2653 = vadd.f32 0.0, %v2652
    %2654 = vmatmul.f32.gmra.mxu0 %v2535
    %v2655 = vpop.f32.mrf.mxu0
    %v2656 = vadd.f32 0.0, %v2655
    %2657 = vmatmul.f32.gmra.mxu0 %v2536
    %v2658 = vpop.f32.mrf.mxu0
    %v2659 = vadd.f32 0.0, %v2658
    %2660 = vmatmul.f32.gmra.mxu0 %v2537
    %v2661 = vpop.f32.mrf.mxu0
    %v2662 = vadd.f32 0.0, %v2661
    %2663 = vmatmul.f32.gmra.mxu0 %v2538
    %v2664 = vpop.f32.mrf.mxu0
    %v2665 = vadd.f32 0.0, %v2664
    %2666 = vmatmul.f32.gmra.mxu0 %v2539
    %v2667 = vpop.f32.mrf.mxu0
    %v2668 = vadd.f32 0.0, %v2667
    %2669 = vmatmul.f32.gmra.mxu0 %v2540
    %v2670 = vpop.f32.mrf.mxu0
    %v2671 = vadd.f32 0.0, %v2670
    %2672 = vmatmul.f32.gmra.mxu0 %v2541
    %v2673 = vpop.f32.mrf.mxu0
    %v2674 = vadd.f32 0.0, %v2673
    %2675 = vmatmul.f32.gmra.mxu0 %v2542
    %v2676 = vpop.f32.mrf.mxu0
    %v2677 = vadd.f32 0.0, %v2676
    %2678 = vmatmul.f32.gmra.mxu0 %v2543
    %v2679 = vpop.f32.mrf.mxu0
    %v2680 = vadd.f32 0.0, %v2679
    %2681 = vmatmul.f32.gmra.mxu0 %v2544
    %v2682 = vpop.f32.mrf.mxu0
    %v2683 = vadd.f32 0.0, %v2682
    %2684 = vmatmul.f32.gmra.mxu0 %v2545
    %v2685 = vpop.f32.mrf.mxu0
    %v2686 = vadd.f32 0.0, %v2685
    %2687 = vmatmul.f32.gmra.mxu0 %v2546
    %v2688 = vpop.f32.mrf.mxu0
    %v2689 = vadd.f32 0.0, %v2688
    %2690 = vmatmul.f32.gmra.mxu0 %v2547
    %v2691 = vpop.f32.mrf.mxu0
    %v2692 = vadd.f32 0.0, %v2691
    %2693 = vdwg.mxu0
    %v2694 = vsub.f32 %v2613, %v2647
    %v2695 = vsub.f32 %v2614, %v2650
    %v2696 = vsub.f32 %v2615, %v2653
    %v2697 = vsub.f32 %v2616, %v2656
    %v2698 = vsub.f32 %v2617, %v2659
    %v2699 = vsub.f32 %v2618, %v2662
    %v2700 = vsub.f32 %v2619, %v2665
    %v2701 = vsub.f32 %v2620, %v2668
    %v2702 = vsub.f32 %v2621, %v2671
    %v2703 = vsub.f32 %v2622, %v2674
    %v2704 = vsub.f32 %v2623, %v2677
    %v2705 = vsub.f32 %v2624, %v2680
    %v2706 = vsub.f32 %v2625, %v2683
    %v2707 = vsub.f32 %v2626, %v2686
    %v2708 = vsub.f32 %v2627, %v2689
    %v2709 = vsub.f32 %v2628, %v2692
    %2710 = vmatpush.msra.mxu0 %v2709
    %2711 = vmatpush.msra.mxu0 %v2708
    %2712 = vmatpush.msra.mxu0 %v2707
    %2713 = vmatpush.msra.mxu0 %v2706
    %2714 = vmatpush.msra.mxu0 %v2705
    %2715 = vmatpush.msra.mxu0 %v2704
    %2716 = vmatpush.msra.mxu0 %v2703
    %2717 = vmatpush.msra.mxu0 %v2702
    %2718 = vmatpush.msra.mxu0 %v2701
    %2719 = vmatpush.msra.mxu0 %v2700
    %2720 = vmatpush.msra.mxu0 %v2699
    %2721 = vmatpush.msra.mxu0 %v2698
    %2722 = vmatpush.msra.mxu0 %v2697
    %2723 = vmatpush.msra.mxu0 %v2696
    %2724 = vmatpush.msra.mxu0 %v2695
    %2725 = vmatpush.msra.mxu0 %v2694
    %2726 = vmatmul.f32.gmra.mxu0 %v460
    %v2727 = vpop.f32.mrf.mxu0
    %v2728 = vadd.f32 0.0, %v2727
    %2729 = vmatmul.f32.gmra.mxu0 %v461
    %v2730 = vpop.f32.mrf.mxu0
    %v2731 = vadd.f32 0.0, %v2730
    %2732 = vmatmul.f32.gmra.mxu0 %v462
    %v2733 = vpop.f32.mrf.mxu0
    %v2734 = vadd.f32 0.0, %v2733
    %2735 = vmatmul.f32.gmra.mxu0 %v463
    %v2736 = vpop.f32.mrf.mxu0
    %v2737 = vadd.f32 0.0, %v2736
    %2738 = vmatmul.f32.gmra.mxu0 %v464
    %v2739 = vpop.f32.mrf.mxu0
    %v2740 = vadd.f32 0.0, %v2739
    %2741 = vmatmul.f32.gmra.mxu0 %v465
    %v2742 = vpop.f32.mrf.mxu0
    %v2743 = vadd.f32 0.0, %v2742
    %2744 = vmatmul.f32.gmra.mxu0 %v466
    %v2745 = vpop.f32.mrf.mxu0
    %v2746 = vadd.f32 0.0, %v2745
    %2747 = vmatmul.f32.gmra.mxu0 %v467
    %v2748 = vpop.f32.mrf.mxu0
    %v2749 = vadd.f32 0.0, %v2748
    %2750 = vmatmul.f32.gmra.mxu0 %v468
    %v2751 = vpop.f32.mrf.mxu0
    %v2752 = vadd.f32 0.0, %v2751
    %2753 = vmatmul.f32.gmra.mxu0 %v469
    %v2754 = vpop.f32.mrf.mxu0
    %v2755 = vadd.f32 0.0, %v2754
    %2756 = vmatmul.f32.gmra.mxu0 %v470
    %v2757 = vpop.f32.mrf.mxu0
    %v2758 = vadd.f32 0.0, %v2757
    %2759 = vmatmul.f32.gmra.mxu0 %v471
    %v2760 = vpop.f32.mrf.mxu0
    %v2761 = vadd.f32 0.0, %v2760
    %2762 = vmatmul.f32.gmra.mxu0 %v472
    %v2763 = vpop.f32.mrf.mxu0
    %v2764 = vadd.f32 0.0, %v2763
    %2765 = vmatmul.f32.gmra.mxu0 %v473
    %v2766 = vpop.f32.mrf.mxu0
    %v2767 = vadd.f32 0.0, %v2766
    %2768 = vmatmul.f32.gmra.mxu0 %v474
    %v2769 = vpop.f32.mrf.mxu0
    %v2770 = vadd.f32 0.0, %v2769
    %2771 = vmatmul.f32.gmra.mxu0 %v475
    %v2772 = vpop.f32.mrf.mxu0
    %v2773 = vadd.f32 0.0, %v2772
    %2774 = vdwg.mxu0
    %v2775 = vmul.f32 %v2694, 2.0
    %v2776 = vmul.f32 %v2695, 2.0
    %v2777 = vmul.f32 %v2696, 2.0
    %v2778 = vmul.f32 %v2697, 2.0
    %v2779 = vmul.f32 %v2698, 2.0
    %v2780 = vmul.f32 %v2699, 2.0
    %v2781 = vmul.f32 %v2700, 2.0
    %v2782 = vmul.f32 %v2701, 2.0
    %v2783 = vmul.f32 %v2702, 2.0
    %v2784 = vmul.f32 %v2703, 2.0
    %v2785 = vmul.f32 %v2704, 2.0
    %v2786 = vmul.f32 %v2705, 2.0
    %v2787 = vmul.f32 %v2706, 2.0
    %v2788 = vmul.f32 %v2707, 2.0
    %v2789 = vmul.f32 %v2708, 2.0
    %v2790 = vmul.f32 %v2709, 2.0
    %2791 = vmatpush.msra.mxu0 %v2773
    %2792 = vmatpush.msra.mxu0 %v2770
    %2793 = vmatpush.msra.mxu0 %v2767
    %2794 = vmatpush.msra.mxu0 %v2764
    %2795 = vmatpush.msra.mxu0 %v2761
    %2796 = vmatpush.msra.mxu0 %v2758
    %2797 = vmatpush.msra.mxu0 %v2755
    %2798 = vmatpush.msra.mxu0 %v2752
    %2799 = vmatpush.msra.mxu0 %v2749
    %2800 = vmatpush.msra.mxu0 %v2746
    %2801 = vmatpush.msra.mxu0 %v2743
    %2802 = vmatpush.msra.mxu0 %v2740
    %2803 = vmatpush.msra.mxu0 %v2737
    %2804 = vmatpush.msra.mxu0 %v2734
    %2805 = vmatpush.msra.mxu0 %v2731
    %2806 = vmatpush.msra.mxu0 %v2728
    %2807 = vmatmul.f32.gmra.mxu0 %v2694
    %v2808 = vpop.f32.mrf.mxu0
    %v2809 = vadd.f32 0.0, %v2808
    %2810 = vmatmul.f32.gmra.mxu0 %v2695
    %v2811 = vpop.f32.mrf.mxu0
    %v2812 = vadd.f32 0.0, %v2811
    %2813 = vmatmul.f32.gmra.mxu0 %v2696
    %v2814 = vpop.f32.mrf.mxu0
    %v2815 = vadd.f32 0.0, %v2814
    %2816 = vmatmul.f32.gmra.mxu0 %v2697
    %v2817 = vpop.f32.mrf.mxu0
    %v2818 = vadd.f32 0.0, %v2817
    %2819 = vmatmul.f32.gmra.mxu0 %v2698
    %v2820 = vpop.f32.mrf.mxu0
    %v2821 = vadd.f32 0.0, %v2820
    %2822 = vmatmul.f32.gmra.mxu0 %v2699
    %v2823 = vpop.f32.mrf.mxu0
    %v2824 = vadd.f32 0.0, %v2823
    %2825 = vmatmul.f32.gmra.mxu0 %v2700
    %v2826 = vpop.f32.mrf.mxu0
    %v2827 = vadd.f32 0.0, %v2826
    %2828 = vmatmul.f32.gmra.mxu0 %v2701
    %v2829 = vpop.f32.mrf.mxu0
    %v2830 = vadd.f32 0.0, %v2829
    %2831 = vmatmul.f32.gmra.mxu0 %v2702
    %v2832 = vpop.f32.mrf.mxu0
    %v2833 = vadd.f32 0.0, %v2832
    %2834 = vmatmul.f32.gmra.mxu0 %v2703
    %v2835 = vpop.f32.mrf.mxu0
    %v2836 = vadd.f32 0.0, %v2835
    %2837 = vmatmul.f32.gmra.mxu0 %v2704
    %v2838 = vpop.f32.mrf.mxu0
    %v2839 = vadd.f32 0.0, %v2838
    %2840 = vmatmul.f32.gmra.mxu0 %v2705
    %v2841 = vpop.f32.mrf.mxu0
    %v2842 = vadd.f32 0.0, %v2841
    %2843 = vmatmul.f32.gmra.mxu0 %v2706
    %v2844 = vpop.f32.mrf.mxu0
    %v2845 = vadd.f32 0.0, %v2844
    %2846 = vmatmul.f32.gmra.mxu0 %v2707
    %v2847 = vpop.f32.mrf.mxu0
    %v2848 = vadd.f32 0.0, %v2847
    %2849 = vmatmul.f32.gmra.mxu0 %v2708
    %v2850 = vpop.f32.mrf.mxu0
    %v2851 = vadd.f32 0.0, %v2850
    %2852 = vmatmul.f32.gmra.mxu0 %v2709
    %v2853 = vpop.f32.mrf.mxu0
    %v2854 = vadd.f32 0.0, %v2853
    %2855 = vdwg.mxu0
    %v2856 = vsub.f32 %v2775, %v2809
    %v2857 = vsub.f32 %v2776, %v2812
    %v2858 = vsub.f32 %v2777, %v2815
    %v2859 = vsub.f32 %v2778, %v2818
    %v2860 = vsub.f32 %v2779, %v2821
    %v2861 = vsub.f32 %v2780, %v2824
    %v2862 = vsub.f32 %v2781, %v2827
    %v2863 = vsub.f32 %v2782, %v2830
    %v2864 = vsub.f32 %v2783, %v2833
    %v2865 = vsub.f32 %v2784, %v2836
    %v2866 = vsub.f32 %v2785, %v2839
    %v2867 = vsub.f32 %v2786, %v2842
    %v2868 = vsub.f32 %v2787, %v2845
    %v2869 = vsub.f32 %v2788, %v2848
    %v2870 = vsub.f32 %v2789, %v2851
    %v2871 = vsub.f32 %v2790, %v2854
    %2872 = vmatpush.msra.mxu0 %v2871
    %2873 = vmatpush.msra.mxu0 %v2870
    %2874 = vmatpush.msra.mxu0 %v2869
    %2875 = vmatpush.msra.mxu0 %v2868
    %2876 = vmatpush.msra.mxu0 %v2867
    %2877 = vmatpush.msra.mxu0 %v2866
    %2878 = vmatpush.msra.mxu0 %v2865
    %2879 = vmatpush.msra.mxu0 %v2864
    %2880 = vmatpush.msra.mxu0 %v2863
    %2881 = vmatpush.msra.mxu0 %v2862
    %2882 = vmatpush.msra.mxu0 %v2861
    %2883 = vmatpush.msra.mxu0 %v2860
    %2884 = vmatpush.msra.mxu0 %v2859
    %2885 = vmatpush.msra.mxu0 %v2858
    %2886 = vmatpush.msra.mxu0 %v2857
    %2887 = vmatpush.msra.mxu0 %v2856
    %2888 = vmatmul.f32.gmra.mxu0 %v460
    %v2889 = vpop.f32.mrf.mxu0
    %v2890 = vadd.f32 0.0, %v2889
    %2891 = vmatmul.f32.gmra.mxu0 %v461
    %v2892 = vpop.f32.mrf.mxu0
    %v2893 = vadd.f32 0.0, %v2892
    %2894 = vmatmul.f32.gmra.mxu0 %v462
    %v2895 = vpop.f32.mrf.mxu0
    %v2896 = vadd.f32 0.0, %v2895
    %2897 = vmatmul.f32.gmra.mxu0 %v463
    %v2898 = vpop.f32.mrf.mxu0
    %v2899 = vadd.f32 0.0, %v2898
    %2900 = vmatmul.f32.gmra.mxu0 %v464
    %v2901 = vpop.f32.mrf.mxu0
    %v2902 = vadd.f32 0.0, %v2901
    %2903 = vmatmul.f32.gmra.mxu0 %v465
    %v2904 = vpop.f32.mrf.mxu0
    %v2905 = vadd.f32 0.0, %v2904
    %2906 = vmatmul.f32.gmra.mxu0 %v466
    %v2907 = vpop.f32.mrf.mxu0
    %v2908 = vadd.f32 0.0, %v2907
    %2909 = vmatmul.f32.gmra.mxu0 %v467
    %v2910 = vpop.f32.mrf.mxu0
    %v2911 = vadd.f32 0.0, %v2910
    %2912 = vmatmul.f32.gmra.mxu0 %v468
    %v2913 = vpop.f32.mrf.mxu0
    %v2914 = vadd.f32 0.0, %v2913
    %2915 = vmatmul.f32.gmra.mxu0 %v469
    %v2916 = vpop.f32.mrf.mxu0
    %v2917 = vadd.f32 0.0, %v2916
    %2918 = vmatmul.f32.gmra.mxu0 %v470
    %v2919 = vpop.f32.mrf.mxu0
    %v2920 = vadd.f32 0.0, %v2919
    %2921 = vmatmul.f32.gmra.mxu0 %v471
    %v2922 = vpop.f32.mrf.mxu0
    %v2923 = vadd.f32 0.0, %v2922
    %2924 = vmatmul.f32.gmra.mxu0 %v472
    %v2925 = vpop.f32.mrf.mxu0
    %v2926 = vadd.f32 0.0, %v2925
    %2927 = vmatmul.f32.gmra.mxu0 %v473
    %v2928 = vpop.f32.mrf.mxu0
    %v2929 = vadd.f32 0.0, %v2928
    %2930 = vmatmul.f32.gmra.mxu0 %v474
    %v2931 = vpop.f32.mrf.mxu0
    %v2932 = vadd.f32 0.0, %v2931
    %2933 = vmatmul.f32.gmra.mxu0 %v475
    %v2934 = vpop.f32.mrf.mxu0
    %v2935 = vadd.f32 0.0, %v2934
    %2936 = vdwg.mxu0
    %v2937 = vmul.f32 %v2856, 2.0
    %v2938 = vmul.f32 %v2857, 2.0
    %v2939 = vmul.f32 %v2858, 2.0
    %v2940 = vmul.f32 %v2859, 2.0
    %v2941 = vmul.f32 %v2860, 2.0
    %v2942 = vmul.f32 %v2861, 2.0
    %v2943 = vmul.f32 %v2862, 2.0
    %v2944 = vmul.f32 %v2863, 2.0
    %v2945 = vmul.f32 %v2864, 2.0
    %v2946 = vmul.f32 %v2865, 2.0
    %v2947 = vmul.f32 %v2866, 2.0
    %v2948 = vmul.f32 %v2867, 2.0
    %v2949 = vmul.f32 %v2868, 2.0
    %v2950 = vmul.f32 %v2869, 2.0
    %v2951 = vmul.f32 %v2870, 2.0
    %v2952 = vmul.f32 %v2871, 2.0
    %2953 = vmatpush.msra.mxu0 %v2935
    %2954 = vmatpush.msra.mxu0 %v2932
    %2955 = vmatpush.msra.mxu0 %v2929
    %2956 = vmatpush.msra.mxu0 %v2926
    %2957 = vmatpush.msra.mxu0 %v2923
    %2958 = vmatpush.msra.mxu0 %v2920
    %2959 = vmatpush.msra.mxu0 %v2917
    %2960 = vmatpush.msra.mxu0 %v2914
    %2961 = vmatpush.msra.mxu0 %v2911
    %2962 = vmatpush.msra.mxu0 %v2908
    %2963 = vmatpush.msra.mxu0 %v2905
    %2964 = vmatpush.msra.mxu0 %v2902
    %2965 = vmatpush.msra.mxu0 %v2899
    %2966 = vmatpush.msra.mxu0 %v2896
    %2967 = vmatpush.msra.mxu0 %v2893
    %2968 = vmatpush.msra.mxu0 %v2890
    %2969 = vmatmul.f32.gmra.mxu0 %v2856
    %v2970 = vpop.f32.mrf.mxu0
    %v2971 = vadd.f32 0.0, %v2970
    %2972 = vmatmul.f32.gmra.mxu0 %v2857
    %v2973 = vpop.f32.mrf.mxu0
    %v2974 = vadd.f32 0.0, %v2973
    %2975 = vmatmul.f32.gmra.mxu0 %v2858
    %v2976 = vpop.f32.mrf.mxu0
    %v2977 = vadd.f32 0.0, %v2976
    %2978 = vmatmul.f32.gmra.mxu0 %v2859
    %v2979 = vpop.f32.mrf.mxu0
    %v2980 = vadd.f32 0.0, %v2979
    %2981 = vmatmul.f32.gmra.mxu0 %v2860
    %v2982 = vpop.f32.mrf.mxu0
    %v2983 = vadd.f32 0.0, %v2982
    %2984 = vmatmul.f32.gmra.mxu0 %v2861
    %v2985 = vpop.f32.mrf.mxu0
    %v2986 = vadd.f32 0.0, %v2985
    %2987 = vmatmul.f32.gmra.mxu0 %v2862
    %v2988 = vpop.f32.mrf.mxu0
    %v2989 = vadd.f32 0.0, %v2988
    %2990 = vmatmul.f32.gmra.mxu0 %v2863
    %v2991 = vpop.f32.mrf.mxu0
    %v2992 = vadd.f32 0.0, %v2991
    %2993 = vmatmul.f32.gmra.mxu0 %v2864
    %v2994 = vpop.f32.mrf.mxu0
    %v2995 = vadd.f32 0.0, %v2994
    %2996 = vmatmul.f32.gmra.mxu0 %v2865
    %v2997 = vpop.f32.mrf.mxu0
    %v2998 = vadd.f32 0.0, %v2997
    %2999 = vmatmul.f32.gmra.mxu0 %v2866
    %v3000 = vpop.f32.mrf.mxu0
    %v3001 = vadd.f32 0.0, %v3000
    %3002 = vmatmul.f32.gmra.mxu0 %v2867
    %v3003 = vpop.f32.mrf.mxu0
    %v3004 = vadd.f32 0.0, %v3003
    %3005 = vmatmul.f32.gmra.mxu0 %v2868
    %v3006 = vpop.f32.mrf.mxu0
    %v3007 = vadd.f32 0.0, %v3006
    %3008 = vmatmul.f32.gmra.mxu0 %v2869
    %v3009 = vpop.f32.mrf.mxu0
    %v3010 = vadd.f32 0.0, %v3009
    %3011 = vmatmul.f32.gmra.mxu0 %v2870
    %v3012 = vpop.f32.mrf.mxu0
    %v3013 = vadd.f32 0.0, %v3012
    %3014 = vmatmul.f32.gmra.mxu0 %v2871
    %v3015 = vpop.f32.mrf.mxu0
    %v3016 = vadd.f32 0.0, %v3015
    %3017 = vdwg.mxu0
    %v3018 = vsub.f32 %v2937, %v2971
    %v3019 = vsub.f32 %v2938, %v2974
    %v3020 = vsub.f32 %v2939, %v2977
    %v3021 = vsub.f32 %v2940, %v2980
    %v3022 = vsub.f32 %v2941, %v2983
    %v3023 = vsub.f32 %v2942, %v2986
    %v3024 = vsub.f32 %v2943, %v2989
    %v3025 = vsub.f32 %v2944, %v2992
    %v3026 = vsub.f32 %v2945, %v2995
    %v3027 = vsub.f32 %v2946, %v2998
    %v3028 = vsub.f32 %v2947, %v3001
    %v3029 = vsub.f32 %v2948, %v3004
    %v3030 = vsub.f32 %v2949, %v3007
    %v3031 = vsub.f32 %v2950, %v3010
    %v3032 = vsub.f32 %v2951, %v3013
    %v3033 = vsub.f32 %v2952, %v3016
    %3034 = vmatpush.msra.mxu0 %v3033
    %3035 = vmatpush.msra.mxu0 %v3032
    %3036 = vmatpush.msra.mxu0 %v3031
    %3037 = vmatpush.msra.mxu0 %v3030
    %3038 = vmatpush.msra.mxu0 %v3029
    %3039 = vmatpush.msra.mxu0 %v3028
    %3040 = vmatpush.msra.mxu0 %v3027
    %3041 = vmatpush.msra.mxu0 %v3026
    %3042 = vmatpush.msra.mxu0 %v3025
    %3043 = vmatpush.msra.mxu0 %v3024
    %3044 = vmatpush.msra.mxu0 %v3023
    %3045 = vmatpush.msra.mxu0 %v3022
    %3046 = vmatpush.msra.mxu0 %v3021
    %3047 = vmatpush.msra.mxu0 %v3020
    %3048 = vmatpush.msra.mxu0 %v3019
    %3049 = vmatpush.msra.mxu0 %v3018
    %3050 = vmatmul.f32.gmra.mxu0 %v460
    %v3051 = vpop.f32.mrf.mxu0
    %v3052 = vadd.f32 0.0, %v3051
    %3053 = vmatmul.f32.gmra.mxu0 %v461
    %v3054 = vpop.f32.mrf.mxu0
    %v3055 = vadd.f32 0.0, %v3054
    %3056 = vmatmul.f32.gmra.mxu0 %v462
    %v3057 = vpop.f32.mrf.mxu0
    %v3058 = vadd.f32 0.0, %v3057
    %3059 = vmatmul.f32.gmra.mxu0 %v463
    %v3060 = vpop.f32.mrf.mxu0
    %v3061 = vadd.f32 0.0, %v3060
    %3062 = vmatmul.f32.gmra.mxu0 %v464
    %v3063 = vpop.f32.mrf.mxu0
    %v3064 = vadd.f32 0.0, %v3063
    %3065 = vmatmul.f32.gmra.mxu0 %v465
    %v3066 = vpop.f32.mrf.mxu0
    %v3067 = vadd.f32 0.0, %v3066
    %3068 = vmatmul.f32.gmra.mxu0 %v466
    %v3069 = vpop.f32.mrf.mxu0
    %v3070 = vadd.f32 0.0, %v3069
    %3071 = vmatmul.f32.gmra.mxu0 %v467
    %v3072 = vpop.f32.mrf.mxu0
    %v3073 = vadd.f32 0.0, %v3072
    %3074 = vmatmul.f32.gmra.mxu0 %v468
    %v3075 = vpop.f32.mrf.mxu0
    %v3076 = vadd.f32 0.0, %v3075
    %3077 = vmatmul.f32.gmra.mxu0 %v469
    %v3078 = vpop.f32.mrf.mxu0
    %v3079 = vadd.f32 0.0, %v3078
    %3080 = vmatmul.f32.gmra.mxu0 %v470
    %v3081 = vpop.f32.mrf.mxu0
    %v3082 = vadd.f32 0.0, %v3081
    %3083 = vmatmul.f32.gmra.mxu0 %v471
    %v3084 = vpop.f32.mrf.mxu0
    %v3085 = vadd.f32 0.0, %v3084
    %3086 = vmatmul.f32.gmra.mxu0 %v472
    %v3087 = vpop.f32.mrf.mxu0
    %v3088 = vadd.f32 0.0, %v3087
    %3089 = vmatmul.f32.gmra.mxu0 %v473
    %v3090 = vpop.f32.mrf.mxu0
    %v3091 = vadd.f32 0.0, %v3090
    %3092 = vmatmul.f32.gmra.mxu0 %v474
    %v3093 = vpop.f32.mrf.mxu0
    %v3094 = vadd.f32 0.0, %v3093
    %3095 = vmatmul.f32.gmra.mxu0 %v475
    %v3096 = vpop.f32.mrf.mxu0
    %v3097 = vadd.f32 0.0, %v3096
    %3098 = vdwg.mxu0
    %v3099 = vmul.f32 %v3018, 2.0
    %v3100 = vmul.f32 %v3019, 2.0
    %v3101 = vmul.f32 %v3020, 2.0
    %v3102 = vmul.f32 %v3021, 2.0
    %v3103 = vmul.f32 %v3022, 2.0
    %v3104 = vmul.f32 %v3023, 2.0
    %v3105 = vmul.f32 %v3024, 2.0
    %v3106 = vmul.f32 %v3025, 2.0
    %v3107 = vmul.f32 %v3026, 2.0
    %v3108 = vmul.f32 %v3027, 2.0
    %v3109 = vmul.f32 %v3028, 2.0
    %v3110 = vmul.f32 %v3029, 2.0
    %v3111 = vmul.f32 %v3030, 2.0
    %v3112 = vmul.f32 %v3031, 2.0
    %v3113 = vmul.f32 %v3032, 2.0
    %v3114 = vmul.f32 %v3033, 2.0
    %3115 = vmatpush.msra.mxu0 %v3097
    %3116 = vmatpush.msra.mxu0 %v3094
    %3117 = vmatpush.msra.mxu0 %v3091
    %3118 = vmatpush.msra.mxu0 %v3088
    %3119 = vmatpush.msra.mxu0 %v3085
    %3120 = vmatpush.msra.mxu0 %v3082
    %3121 = vmatpush.msra.mxu0 %v3079
    %3122 = vmatpush.msra.mxu0 %v3076
    %3123 = vmatpush.msra.mxu0 %v3073
    %3124 = vmatpush.msra.mxu0 %v3070
    %3125 = vmatpush.msra.mxu0 %v3067
    %3126 = vmatpush.msra.mxu0 %v3064
    %3127 = vmatpush.msra.mxu0 %v3061
    %3128 = vmatpush.msra.mxu0 %v3058
    %3129 = vmatpush.msra.mxu0 %v3055
    %3130 = vmatpush.msra.mxu0 %v3052
    %3131 = vmatmul.f32.gmra.mxu0 %v3018
    %v3132 = vpop.f32.mrf.mxu0
    %v3133 = vadd.f32 0.0, %v3132
    %3134 = vmatmul.f32.gmra.mxu0 %v3019
    %v3135 = vpop.f32.mrf.mxu0
    %v3136 = vadd.f32 0.0, %v3135
    %3137 = vmatmul.f32.gmra.mxu0 %v3020
    %v3138 = vpop.f32.mrf.mxu0
    %v3139 = vadd.f32 0.0, %v3138
    %3140 = vmatmul.f32.gmra.mxu0 %v3021
    %v3141 = vpop.f32.mrf.mxu0
    %v3142 = vadd.f32 0.0, %v3141
    %3143 = vmatmul.f32.gmra.mxu0 %v3022
    %v3144 = vpop.f32.mrf.mxu0
    %v3145 = vadd.f32 0.0, %v3144
    %3146 = vmatmul.f32.gmra.mxu0 %v3023
    %v3147 = vpop.f32.mrf.mxu0
    %v3148 = vadd.f32 0.0, %v3147
    %3149 = vmatmul.f32.gmra.mxu0 %v3024
    %v3150 = vpop.f32.mrf.mxu0
    %v3151 = vadd.f32 0.0, %v3150
    %3152 = vmatmul.f32.gmra.mxu0 %v3025
    %v3153 = vpop.f32.mrf.mxu0
    %v3154 = vadd.f32 0.0, %v3153
    %3155 = vmatmul.f32.gmra.mxu0 %v3026
    %v3156 = vpop.f32.mrf.mxu0
    %v3157 = vadd.f32 0.0, %v3156
    %3158 = vmatmul.f32.gmra.mxu0 %v3027
    %v3159 = vpop.f32.mrf.mxu0
    %v3160 = vadd.f32 0.0, %v3159
    %3161 = vmatmul.f32.gmra.mxu0 %v3028
    %v3162 = vpop.f32.mrf.mxu0
    %v3163 = vadd.f32 0.0, %v3162
    %3164 = vmatmul.f32.gmra.mxu0 %v3029
    %v3165 = vpop.f32.mrf.mxu0
    %v3166 = vadd.f32 0.0, %v3165
    %3167 = vmatmul.f32.gmra.mxu0 %v3030
    %v3168 = vpop.f32.mrf.mxu0
    %v3169 = vadd.f32 0.0, %v3168
    %3170 = vmatmul.f32.gmra.mxu0 %v3031
    %v3171 = vpop.f32.mrf.mxu0
    %v3172 = vadd.f32 0.0, %v3171
    %3173 = vmatmul.f32.gmra.mxu0 %v3032
    %v3174 = vpop.f32.mrf.mxu0
    %v3175 = vadd.f32 0.0, %v3174
    %3176 = vmatmul.f32.gmra.mxu0 %v3033
    %v3177 = vpop.f32.mrf.mxu0
    %v3178 = vadd.f32 0.0, %v3177
    %3179 = vdwg.mxu0
    %v3180 = vsub.f32 %v3099, %v3133
    %v3181 = vsub.f32 %v3100, %v3136
    %v3182 = vsub.f32 %v3101, %v3139
    %v3183 = vsub.f32 %v3102, %v3142
    %v3184 = vsub.f32 %v3103, %v3145
    %v3185 = vsub.f32 %v3104, %v3148
    %v3186 = vsub.f32 %v3105, %v3151
    %v3187 = vsub.f32 %v3106, %v3154
    %v3188 = vsub.f32 %v3107, %v3157
    %v3189 = vsub.f32 %v3108, %v3160
    %v3190 = vsub.f32 %v3109, %v3163
    %v3191 = vsub.f32 %v3110, %v3166
    %v3192 = vsub.f32 %v3111, %v3169
    %v3193 = vsub.f32 %v3112, %v3172
    %v3194 = vsub.f32 %v3113, %v3175
    %v3195 = vsub.f32 %v3114, %v3178
    %3196 = vmatpush.msra.mxu0 %v3195
    %3197 = vmatpush.msra.mxu0 %v3194
    %3198 = vmatpush.msra.mxu0 %v3193
    %3199 = vmatpush.msra.mxu0 %v3192
    %3200 = vmatpush.msra.mxu0 %v3191
    %3201 = vmatpush.msra.mxu0 %v3190
    %3202 = vmatpush.msra.mxu0 %v3189
    %3203 = vmatpush.msra.mxu0 %v3188
    %3204 = vmatpush.msra.mxu0 %v3187
    %3205 = vmatpush.msra.mxu0 %v3186
    %3206 = vmatpush.msra.mxu0 %v3185
    %3207 = vmatpush.msra.mxu0 %v3184
    %3208 = vmatpush.msra.mxu0 %v3183
    %3209 = vmatpush.msra.mxu0 %v3182
    %3210 = vmatpush.msra.mxu0 %v3181
    %3211 = vmatpush.msra.mxu0 %v3180
    %3212 = vmatmul.f32.gmra.mxu0 %v329
    %v3213 = vpop.f32.mrf.mxu0
    %v3214 = vadd.f32 0.0, %v3213
    %3215 = vdwg.mxu0
    %v3216 = vsub.f32 %v132, %v3214
    %3217 = vmatpush.msra.mxu0 %v148
    %3218 = vmatpush.msra.mxu0 %v147
    %3219 = vmatpush.msra.mxu0 %v146
    %3220 = vmatpush.msra.mxu0 %v145
    %3221 = vmatpush.msra.mxu0 %v144
    %3222 = vmatpush.msra.mxu0 %v143
    %3223 = vmatpush.msra.mxu0 %v142
    %3224 = vmatpush.msra.mxu0 %v141
    %3225 = vmatpush.msra.mxu0 %v140
    %3226 = vmatpush.msra.mxu0 %v139
    %3227 = vmatpush.msra.mxu0 %v138
    %3228 = vmatpush.msra.mxu0 %v137
    %3229 = vmatpush.msra.mxu0 %v136
    %3230 = vmatpush.msra.mxu0 %v135
    %3231 = vmatpush.msra.mxu0 %v134
    %3232 = vmatpush.msra.mxu0 %v133
    %3233 = vmatmul.f32.gmra.mxu0 %v3216
    %v3234 = vpop.f32.mrf.mxu0
    %v3235 = vadd.f32 0.0, %v3234
    %3236 = vdwg.mxu0
    %v3237 = vmul.f32 %v3235, %v3235
    %v3238 = vadd.f32 %v3237, 1.0
    %v3239 = vrsqrt.pop %v3238
    %v3240 = vmul.f32 %v3239, %v3238
    %v3241 = vmul.f32 %v3240, %v3239
    %v3242 = vmul.f32 0.5, %v3241
    %v3243 = vsub.f32 1.5, %v3242
    %v3244 = vmul.f32 %v3239, %v3243
    %vm3245 = vweird.f32 %v3238
    %vm3246 = vweird.f32 %v3239
    %vm3247 = vmor %vm3245, %vm3246
    %v3248 = vsel %vm3247, %v3239, %v3244
    %v3249 = vadd.f32 %v3237, 4.0
    %v3250 = vrcp.pop %v3249
    %v3251 = vmul.f32 %v3235, %v3248
    %v3252 = vmul.f32 %v3235, %v3250
    %3253 = vmatpush.msra.mxu0 %v200
    %3254 = vmatpush.msra.mxu0 %v199
    %3255 = vmatpush.msra.mxu0 %v198
    %3256 = vmatpush.msra.mxu0 %v197
    %3257 = vmatpush.msra.mxu0 %v196
    %3258 = vmatpush.msra.mxu0 %v195
    %3259 = vmatpush.msra.mxu0 %v194
    %3260 = vmatpush.msra.mxu0 %v193
    %3261 = vmatpush.msra.mxu0 %v192
    %3262 = vmatpush.msra.mxu0 %v191
    %3263 = vmatpush.msra.mxu0 %v190
    %3264 = vmatpush.msra.mxu0 %v189
    %3265 = vmatpush.msra.mxu0 %v188
    %3266 = vmatpush.msra.mxu0 %v187
    %3267 = vmatpush.msra.mxu0 %v186
    %3268 = vmatpush.msra.mxu0 %v185
    %3269 = vmatmul.f32.gmra.mxu0 %v3216
    %v3270 = vpop.f32.mrf.mxu0
    %v3271 = vadd.f32 0.0, %v3270
    %3272 = vdwg.mxu0
    %v3273 = vsub.f32 %v3271, %v221
    %3274 = vmatpush.msra.mxu0 %v238
    %3275 = vmatpush.msra.mxu0 %v237
    %3276 = vmatpush.msra.mxu0 %v236
    %3277 = vmatpush.msra.mxu0 %v235
    %3278 = vmatpush.msra.mxu0 %v234
    %3279 = vmatpush.msra.mxu0 %v233
    %3280 = vmatpush.msra.mxu0 %v232
    %3281 = vmatpush.msra.mxu0 %v231
    %3282 = vmatpush.msra.mxu0 %v230
    %3283 = vmatpush.msra.mxu0 %v229
    %3284 = vmatpush.msra.mxu0 %v228
    %3285 = vmatpush.msra.mxu0 %v227
    %3286 = vmatpush.msra.mxu0 %v226
    %3287 = vmatpush.msra.mxu0 %v225
    %3288 = vmatpush.msra.mxu0 %v224
    %3289 = vmatpush.msra.mxu0 %v223
    %3290 = vmatmul.f32.gmra.mxu0 %v3273
    %v3291 = vpop.f32.mrf.mxu0
    %v3292 = vadd.f32 0.0, %v3291
    %3293 = vdwg.mxu0
    %3294 = vmatpush.msra.mxu0 %v254
    %3295 = vmatpush.msra.mxu0 %v253
    %3296 = vmatpush.msra.mxu0 %v252
    %3297 = vmatpush.msra.mxu0 %v251
    %3298 = vmatpush.msra.mxu0 %v250
    %3299 = vmatpush.msra.mxu0 %v249
    %3300 = vmatpush.msra.mxu0 %v248
    %3301 = vmatpush.msra.mxu0 %v247
    %3302 = vmatpush.msra.mxu0 %v246
    %3303 = vmatpush.msra.mxu0 %v245
    %3304 = vmatpush.msra.mxu0 %v244
    %3305 = vmatpush.msra.mxu0 %v243
    %3306 = vmatpush.msra.mxu0 %v242
    %3307 = vmatpush.msra.mxu0 %v241
    %3308 = vmatpush.msra.mxu0 %v240
    %3309 = vmatpush.msra.mxu0 %v239
    %3310 = vmatmul.f32.gmra.mxu0 %v3251
    %v3311 = vpop.f32.mrf.mxu0
    %v3312 = vadd.f32 %v3292, %v3311
    %3313 = vdwg.mxu0
    %3314 = vmatpush.msra.mxu0 %v270
    %3315 = vmatpush.msra.mxu0 %v269
    %3316 = vmatpush.msra.mxu0 %v268
    %3317 = vmatpush.msra.mxu0 %v267
    %3318 = vmatpush.msra.mxu0 %v266
    %3319 = vmatpush.msra.mxu0 %v265
    %3320 = vmatpush.msra.mxu0 %v264
    %3321 = vmatpush.msra.mxu0 %v263
    %3322 = vmatpush.msra.mxu0 %v262
    %3323 = vmatpush.msra.mxu0 %v261
    %3324 = vmatpush.msra.mxu0 %v260
    %3325 = vmatpush.msra.mxu0 %v259
    %3326 = vmatpush.msra.mxu0 %v258
    %3327 = vmatpush.msra.mxu0 %v257
    %3328 = vmatpush.msra.mxu0 %v256
    %3329 = vmatpush.msra.mxu0 %v255
    %3330 = vmatmul.f32.gmra.mxu0 %v3252
    %v3331 = vpop.f32.mrf.mxu0
    %v3332 = vadd.f32 %v3312, %v3331
    %3333 = vdwg.mxu0
    %v3334 = vrot.slane %v3248, 4
    %v3335 = vadd.f32 %v3248, %v3334
    %v3336 = vrot.slane %v3335, 2
    %v3337 = vadd.f32 %v3335, %v3336
    %v3338 = vrot.slane %v3337, 1
    %v3339 = vadd.f32 %v3337, %v3338
    %v3340 = vmul.f32 %v3339, 0.1
    %v3341 = vrot.slane %v3250, 4
    %v3342 = vadd.f32 %v3250, %v3341
    %v3343 = vrot.slane %v3342, 2
    %v3344 = vadd.f32 %v3342, %v3343
    %v3345 = vrot.slane %v3344, 1
    %v3346 = vadd.f32 %v3344, %v3345
    %v3347 = vmul.f32 %v3346, 0.05
    %v3348 = vadd.f32 %v3340, %v3347
    %v3349 = vmul.f32 %v3348, 0.125
    %v3350 = vmul.f32 %v133, %v3349
    %v3351 = vmul.f32 %v134, %v3349
    %v3352 = vmul.f32 %v135, %v3349
    %v3353 = vmul.f32 %v136, %v3349
    %v3354 = vmul.f32 %v137, %v3349
    %v3355 = vmul.f32 %v138, %v3349
    %v3356 = vmul.f32 %v139, %v3349
    %v3357 = vmul.f32 %v140, %v3349
    %v3358 = vmul.f32 %v141, %v3349
    %v3359 = vmul.f32 %v142, %v3349
    %v3360 = vmul.f32 %v143, %v3349
    %v3361 = vmul.f32 %v144, %v3349
    %v3362 = vmul.f32 %v145, %v3349
    %v3363 = vmul.f32 %v146, %v3349
    %v3364 = vmul.f32 %v147, %v3349
    %v3365 = vmul.f32 %v148, %v3349
    %3366 = vmatpush.msra.mxu0 %v394
    %3367 = vmatpush.msra.mxu0 %v393
    %3368 = vmatpush.msra.mxu0 %v392
    %3369 = vmatpush.msra.mxu0 %v391
    %3370 = vmatpush.msra.mxu0 %v390
    %3371 = vmatpush.msra.mxu0 %v389
    %3372 = vmatpush.msra.mxu0 %v388
    %3373 = vmatpush.msra.mxu0 %v387
    %3374 = vmatpush.msra.mxu0 %v386
    %3375 = vmatpush.msra.mxu0 %v385
    %3376 = vmatpush.msra.mxu0 %v384
    %3377 = vmatpush.msra.mxu0 %v383
    %3378 = vmatpush.msra.mxu0 %v382
    %3379 = vmatpush.msra.mxu0 %v381
    %3380 = vmatpush.msra.mxu0 %v380
    %3381 = vmatpush.msra.mxu0 %v379
    %3382 = vmatmul.f32.gmra.mxu0 %v3350
    %v3383 = vpop.f32.mrf.mxu0
    %v3384 = vadd.f32 0.0, %v3383
    %3385 = vmatmul.f32.gmra.mxu0 %v3351
    %v3386 = vpop.f32.mrf.mxu0
    %v3387 = vadd.f32 0.0, %v3386
    %3388 = vmatmul.f32.gmra.mxu0 %v3352
    %v3389 = vpop.f32.mrf.mxu0
    %v3390 = vadd.f32 0.0, %v3389
    %3391 = vmatmul.f32.gmra.mxu0 %v3353
    %v3392 = vpop.f32.mrf.mxu0
    %v3393 = vadd.f32 0.0, %v3392
    %3394 = vmatmul.f32.gmra.mxu0 %v3354
    %v3395 = vpop.f32.mrf.mxu0
    %v3396 = vadd.f32 0.0, %v3395
    %3397 = vmatmul.f32.gmra.mxu0 %v3355
    %v3398 = vpop.f32.mrf.mxu0
    %v3399 = vadd.f32 0.0, %v3398
    %3400 = vmatmul.f32.gmra.mxu0 %v3356
    %v3401 = vpop.f32.mrf.mxu0
    %v3402 = vadd.f32 0.0, %v3401
    %3403 = vmatmul.f32.gmra.mxu0 %v3357
    %v3404 = vpop.f32.mrf.mxu0
    %v3405 = vadd.f32 0.0, %v3404
    %3406 = vmatmul.f32.gmra.mxu0 %v3358
    %v3407 = vpop.f32.mrf.mxu0
    %v3408 = vadd.f32 0.0, %v3407
    %3409 = vmatmul.f32.gmra.mxu0 %v3359
    %v3410 = vpop.f32.mrf.mxu0
    %v3411 = vadd.f32 0.0, %v3410
    %3412 = vmatmul.f32.gmra.mxu0 %v3360
    %v3413 = vpop.f32.mrf.mxu0
    %v3414 = vadd.f32 0.0, %v3413
    %3415 = vmatmul.f32.gmra.mxu0 %v3361
    %v3416 = vpop.f32.mrf.mxu0
    %v3417 = vadd.f32 0.0, %v3416
    %3418 = vmatmul.f32.gmra.mxu0 %v3362
    %v3419 = vpop.f32.mrf.mxu0
    %v3420 = vadd.f32 0.0, %v3419
    %3421 = vmatmul.f32.gmra.mxu0 %v3363
    %v3422 = vpop.f32.mrf.mxu0
    %v3423 = vadd.f32 0.0, %v3422
    %3424 = vmatmul.f32.gmra.mxu0 %v3364
    %v3425 = vpop.f32.mrf.mxu0
    %v3426 = vadd.f32 0.0, %v3425
    %3427 = vmatmul.f32.gmra.mxu0 %v3365
    %v3428 = vpop.f32.mrf.mxu0
    %v3429 = vadd.f32 0.0, %v3428
    %3430 = vdwg.mxu0
    %v3431 = vadd.f32 %v347, %v3384
    %v3432 = vadd.f32 %v348, %v3387
    %v3433 = vadd.f32 %v349, %v3390
    %v3434 = vadd.f32 %v350, %v3393
    %v3435 = vadd.f32 %v351, %v3396
    %v3436 = vadd.f32 %v352, %v3399
    %v3437 = vadd.f32 %v353, %v3402
    %v3438 = vadd.f32 %v354, %v3405
    %v3439 = vadd.f32 %v355, %v3408
    %v3440 = vadd.f32 %v356, %v3411
    %v3441 = vadd.f32 %v357, %v3414
    %v3442 = vadd.f32 %v358, %v3417
    %v3443 = vadd.f32 %v359, %v3420
    %v3444 = vadd.f32 %v360, %v3423
    %v3445 = vadd.f32 %v361, %v3426
    %v3446 = vadd.f32 %v362, %v3429
    %v3447 = vand.u32 2147483647, %v3431
    %v3448 = vand.u32 2147483647, %v3432
    %v3449 = vand.u32 2147483647, %v3433
    %v3450 = vand.u32 2147483647, %v3434
    %v3451 = vand.u32 2147483647, %v3435
    %v3452 = vand.u32 2147483647, %v3436
    %v3453 = vand.u32 2147483647, %v3437
    %v3454 = vand.u32 2147483647, %v3438
    %v3455 = vand.u32 2147483647, %v3439
    %v3456 = vand.u32 2147483647, %v3440
    %v3457 = vand.u32 2147483647, %v3441
    %v3458 = vand.u32 2147483647, %v3442
    %v3459 = vand.u32 2147483647, %v3443
    %v3460 = vand.u32 2147483647, %v3444
    %v3461 = vand.u32 2147483647, %v3445
    %v3462 = vand.u32 2147483647, %v3446
    %v3463 = vadd.f32 %v3447, %v3448
    %v3464 = vadd.f32 %v3463, %v3449
    %v3465 = vadd.f32 %v3464, %v3450
    %v3466 = vadd.f32 %v3465, %v3451
    %v3467 = vadd.f32 %v3466, %v3452
    %v3468 = vadd.f32 %v3467, %v3453
    %v3469 = vadd.f32 %v3468, %v3454
    %v3470 = vadd.f32 %v3469, %v3455
    %v3471 = vadd.f32 %v3470, %v3456
    %v3472 = vadd.f32 %v3471, %v3457
    %v3473 = vadd.f32 %v3472, %v3458
    %v3474 = vadd.f32 %v3473, %v3459
    %v3475 = vadd.f32 %v3474, %v3460
    %v3476 = vadd.f32 %v3475, %v3461
    %v3477 = vadd.f32 %v3476, %v3462
    %v3478 = vrot.slane %v3477, 4
    %v3479 = vadd.f32 %v3477, %v3478
    %v3480 = vrot.slane %v3479, 2
    %v3481 = vadd.f32 %v3479, %v3480
    %v3482 = vrot.slane %v3481, 1
    %v3483 = vadd.f32 %v3481, %v3482
    %3484 = vmax.xlane.f32.xlu0 %v3483
    %v3485 = vpop.xlane.xlu0 %3484
    %s3486 = vtos %v3485
    %3487 = vadd.xlane.f32.xlu0 %v3447
    %v3488 = vpop.xlane.xlu0 %3487
    %3489 = vadd.xlane.f32.xlu0 %v3448
    %v3490 = vpop.xlane.xlu0 %3489
    %3491 = vadd.xlane.f32.xlu0 %v3449
    %v3492 = vpop.xlane.xlu0 %3491
    %3493 = vadd.xlane.f32.xlu0 %v3450
    %v3494 = vpop.xlane.xlu0 %3493
    %3495 = vadd.xlane.f32.xlu0 %v3451
    %v3496 = vpop.xlane.xlu0 %3495
    %3497 = vadd.xlane.f32.xlu0 %v3452
    %v3498 = vpop.xlane.xlu0 %3497
    %3499 = vadd.xlane.f32.xlu0 %v3453
    %v3500 = vpop.xlane.xlu0 %3499
    %3501 = vadd.xlane.f32.xlu0 %v3454
    %v3502 = vpop.xlane.xlu0 %3501
    %3503 = vadd.xlane.f32.xlu0 %v3455
    %v3504 = vpop.xlane.xlu0 %3503
    %3505 = vadd.xlane.f32.xlu0 %v3456
    %v3506 = vpop.xlane.xlu0 %3505
    %3507 = vadd.xlane.f32.xlu0 %v3457
    %v3508 = vpop.xlane.xlu0 %3507
    %3509 = vadd.xlane.f32.xlu0 %v3458
    %v3510 = vpop.xlane.xlu0 %3509
    %3511 = vadd.xlane.f32.xlu0 %v3459
    %v3512 = vpop.xlane.xlu0 %3511
    %3513 = vadd.xlane.f32.xlu0 %v3460
    %v3514 = vpop.xlane.xlu0 %3513
    %3515 = vadd.xlane.f32.xlu0 %v3461
    %v3516 = vpop.xlane.xlu0 %3515
    %3517 = vadd.xlane.f32.xlu0 %v3462
    %v3518 = vpop.xlane.xlu0 %3517
    %v3519 = vmax.f32 %v3488, %v3496
    %v3520 = vmax.f32 %v3490, %v3498
    %v3521 = vmax.f32 %v3492, %v3500
    %v3522 = vmax.f32 %v3494, %v3502
    %v3523 = vmax.f32 %v3519, %v3504
    %v3524 = vmax.f32 %v3520, %v3506
    %v3525 = vmax.f32 %v3521, %v3508
    %v3526 = vmax.f32 %v3522, %v3510
    %v3527 = vmax.f32 %v3523, %v3512
    %v3528 = vmax.f32 %v3524, %v3514
    %v3529 = vmax.f32 %v3525, %v3516
    %v3530 = vmax.f32 %v3526, %v3518
    %v3531 = vmax.f32 %v3527, %v3528
    %v3532 = vmax.f32 %v3529, %v3530
    %v3533 = vmax.f32 %v3531, %v3532
    %v3534 = vrot.slane %v3533, 4
    %v3535 = vmax.f32 %v3533, %v3534
    %v3536 = vrot.slane %v3535, 2
    %v3537 = vmax.f32 %v3535, %v3536
    %v3538 = vrot.slane %v3537, 1
    %v3539 = vmax.f32 %v3537, %v3538
    %s3540 = vtos %v3539
    %s3541 = smul.f32 %s3486, %s3540
    %v3542 = vstv %s3541
    %v3543 = vrcp.pop %v3542
    %v3544 = vmul.f32 %v3542, %v3543
    %v3545 = vsub.f32 1.0, %v3544
    %v3546 = vmul.f32 %v3543, %v3545
    %v3547 = vadd.f32 %v3543, %v3546
    %vm3548 = vweird.f32 %v3542
    %vm3549 = vweird.f32 %v3543
    %vm3550 = vmor %vm3548, %vm3549
    %v3551 = vsel %vm3550, %v3543, %v3547
    %v3552 = vand.u32 2147483647, %v3542
    %vm3553 = vcmp.eq.f32.partialorder %v3552, 8.507059e+37
    %v3554 = vand.u32 %v3542, 2147483648
    %v3555 = vor.u32 1.1754944e-38, %v3554
    %v3556 = vsel %vm3553, %v3555, %v3551
    %s3557 = vtos %v3556
    %v3558 = vstv %s3557
    %v3559 = vmul.f32 %v3431, %v3558
    %v3560 = vmul.f32 %v3432, %v3558
    %v3561 = vmul.f32 %v3433, %v3558
    %v3562 = vmul.f32 %v3434, %v3558
    %v3563 = vmul.f32 %v3435, %v3558
    %v3564 = vmul.f32 %v3436, %v3558
    %v3565 = vmul.f32 %v3437, %v3558
    %v3566 = vmul.f32 %v3438, %v3558
    %v3567 = vmul.f32 %v3439, %v3558
    %v3568 = vmul.f32 %v3440, %v3558
    %v3569 = vmul.f32 %v3441, %v3558
    %v3570 = vmul.f32 %v3442, %v3558
    %v3571 = vmul.f32 %v3443, %v3558
    %v3572 = vmul.f32 %v3444, %v3558
    %v3573 = vmul.f32 %v3445, %v3558
    %v3574 = vmul.f32 %v3446, %v3558
    %3575 = vmatpush.msra.mxu0 %v3574
    %3576 = vmatpush.msra.mxu0 %v3573
    %3577 = vmatpush.msra.mxu0 %v3572
    %3578 = vmatpush.msra.mxu0 %v3571
    %3579 = vmatpush.msra.mxu0 %v3570
    %3580 = vmatpush.msra.mxu0 %v3569
    %3581 = vmatpush.msra.mxu0 %v3568
    %3582 = vmatpush.msra.mxu0 %v3567
    %3583 = vmatpush.msra.mxu0 %v3566
    %3584 = vmatpush.msra.mxu0 %v3565
    %3585 = vmatpush.msra.mxu0 %v3564
    %3586 = vmatpush.msra.mxu0 %v3563
    %3587 = vmatpush.msra.mxu0 %v3562
    %3588 = vmatpush.msra.mxu0 %v3561
    %3589 = vmatpush.msra.mxu0 %v3560
    %3590 = vmatpush.msra.mxu0 %v3559
    %3591 = vmatmul.f32.gmra.mxu0 %v3431
    %v3592 = vpop.f32.mrf.mxu0
    %v3593 = vadd.f32 0.0, %v3592
    %3594 = vmatmul.f32.gmra.mxu0 %v3432
    %v3595 = vpop.f32.mrf.mxu0
    %v3596 = vadd.f32 0.0, %v3595
    %3597 = vmatmul.f32.gmra.mxu0 %v3433
    %v3598 = vpop.f32.mrf.mxu0
    %v3599 = vadd.f32 0.0, %v3598
    %3600 = vmatmul.f32.gmra.mxu0 %v3434
    %v3601 = vpop.f32.mrf.mxu0
    %v3602 = vadd.f32 0.0, %v3601
    %3603 = vmatmul.f32.gmra.mxu0 %v3435
    %v3604 = vpop.f32.mrf.mxu0
    %v3605 = vadd.f32 0.0, %v3604
    %3606 = vmatmul.f32.gmra.mxu0 %v3436
    %v3607 = vpop.f32.mrf.mxu0
    %v3608 = vadd.f32 0.0, %v3607
    %3609 = vmatmul.f32.gmra.mxu0 %v3437
    %v3610 = vpop.f32.mrf.mxu0
    %v3611 = vadd.f32 0.0, %v3610
    %3612 = vmatmul.f32.gmra.mxu0 %v3438
    %v3613 = vpop.f32.mrf.mxu0
    %v3614 = vadd.f32 0.0, %v3613
    %3615 = vmatmul.f32.gmra.mxu0 %v3439
    %v3616 = vpop.f32.mrf.mxu0
    %v3617 = vadd.f32 0.0, %v3616
    %3618 = vmatmul.f32.gmra.mxu0 %v3440
    %v3619 = vpop.f32.mrf.mxu0
    %v3620 = vadd.f32 0.0, %v3619
    %3621 = vmatmul.f32.gmra.mxu0 %v3441
    %v3622 = vpop.f32.mrf.mxu0
    %v3623 = vadd.f32 0.0, %v3622
    %3624 = vmatmul.f32.gmra.mxu0 %v3442
    %v3625 = vpop.f32.mrf.mxu0
    %v3626 = vadd.f32 0.0, %v3625
    %3627 = vmatmul.f32.gmra.mxu0 %v3443
    %v3628 = vpop.f32.mrf.mxu0
    %v3629 = vadd.f32 0.0, %v3628
    %3630 = vmatmul.f32.gmra.mxu0 %v3444
    %v3631 = vpop.f32.mrf.mxu0
    %v3632 = vadd.f32 0.0, %v3631
    %3633 = vmatmul.f32.gmra.mxu0 %v3445
    %v3634 = vpop.f32.mrf.mxu0
    %v3635 = vadd.f32 0.0, %v3634
    %3636 = vmatmul.f32.gmra.mxu0 %v3446
    %v3637 = vpop.f32.mrf.mxu0
    %v3638 = vadd.f32 0.0, %v3637
    %3639 = vdwg.mxu0
    %v3640 = vmul.f32 %v3559, 2.0
    %v3641 = vmul.f32 %v3560, 2.0
    %v3642 = vmul.f32 %v3561, 2.0
    %v3643 = vmul.f32 %v3562, 2.0
    %v3644 = vmul.f32 %v3563, 2.0
    %v3645 = vmul.f32 %v3564, 2.0
    %v3646 = vmul.f32 %v3565, 2.0
    %v3647 = vmul.f32 %v3566, 2.0
    %v3648 = vmul.f32 %v3567, 2.0
    %v3649 = vmul.f32 %v3568, 2.0
    %v3650 = vmul.f32 %v3569, 2.0
    %v3651 = vmul.f32 %v3570, 2.0
    %v3652 = vmul.f32 %v3571, 2.0
    %v3653 = vmul.f32 %v3572, 2.0
    %v3654 = vmul.f32 %v3573, 2.0
    %v3655 = vmul.f32 %v3574, 2.0
    %3656 = vmatpush.msra.mxu0 %v3638
    %3657 = vmatpush.msra.mxu0 %v3635
    %3658 = vmatpush.msra.mxu0 %v3632
    %3659 = vmatpush.msra.mxu0 %v3629
    %3660 = vmatpush.msra.mxu0 %v3626
    %3661 = vmatpush.msra.mxu0 %v3623
    %3662 = vmatpush.msra.mxu0 %v3620
    %3663 = vmatpush.msra.mxu0 %v3617
    %3664 = vmatpush.msra.mxu0 %v3614
    %3665 = vmatpush.msra.mxu0 %v3611
    %3666 = vmatpush.msra.mxu0 %v3608
    %3667 = vmatpush.msra.mxu0 %v3605
    %3668 = vmatpush.msra.mxu0 %v3602
    %3669 = vmatpush.msra.mxu0 %v3599
    %3670 = vmatpush.msra.mxu0 %v3596
    %3671 = vmatpush.msra.mxu0 %v3593
    %3672 = vmatmul.f32.gmra.mxu0 %v3559
    %v3673 = vpop.f32.mrf.mxu0
    %v3674 = vadd.f32 0.0, %v3673
    %3675 = vmatmul.f32.gmra.mxu0 %v3560
    %v3676 = vpop.f32.mrf.mxu0
    %v3677 = vadd.f32 0.0, %v3676
    %3678 = vmatmul.f32.gmra.mxu0 %v3561
    %v3679 = vpop.f32.mrf.mxu0
    %v3680 = vadd.f32 0.0, %v3679
    %3681 = vmatmul.f32.gmra.mxu0 %v3562
    %v3682 = vpop.f32.mrf.mxu0
    %v3683 = vadd.f32 0.0, %v3682
    %3684 = vmatmul.f32.gmra.mxu0 %v3563
    %v3685 = vpop.f32.mrf.mxu0
    %v3686 = vadd.f32 0.0, %v3685
    %3687 = vmatmul.f32.gmra.mxu0 %v3564
    %v3688 = vpop.f32.mrf.mxu0
    %v3689 = vadd.f32 0.0, %v3688
    %3690 = vmatmul.f32.gmra.mxu0 %v3565
    %v3691 = vpop.f32.mrf.mxu0
    %v3692 = vadd.f32 0.0, %v3691
    %3693 = vmatmul.f32.gmra.mxu0 %v3566
    %v3694 = vpop.f32.mrf.mxu0
    %v3695 = vadd.f32 0.0, %v3694
    %3696 = vmatmul.f32.gmra.mxu0 %v3567
    %v3697 = vpop.f32.mrf.mxu0
    %v3698 = vadd.f32 0.0, %v3697
    %3699 = vmatmul.f32.gmra.mxu0 %v3568
    %v3700 = vpop.f32.mrf.mxu0
    %v3701 = vadd.f32 0.0, %v3700
    %3702 = vmatmul.f32.gmra.mxu0 %v3569
    %v3703 = vpop.f32.mrf.mxu0
    %v3704 = vadd.f32 0.0, %v3703
    %3705 = vmatmul.f32.gmra.mxu0 %v3570
    %v3706 = vpop.f32.mrf.mxu0
    %v3707 = vadd.f32 0.0, %v3706
    %3708 = vmatmul.f32.gmra.mxu0 %v3571
    %v3709 = vpop.f32.mrf.mxu0
    %v3710 = vadd.f32 0.0, %v3709
    %3711 = vmatmul.f32.gmra.mxu0 %v3572
    %v3712 = vpop.f32.mrf.mxu0
    %v3713 = vadd.f32 0.0, %v3712
    %3714 = vmatmul.f32.gmra.mxu0 %v3573
    %v3715 = vpop.f32.mrf.mxu0
    %v3716 = vadd.f32 0.0, %v3715
    %3717 = vmatmul.f32.gmra.mxu0 %v3574
    %v3718 = vpop.f32.mrf.mxu0
    %v3719 = vadd.f32 0.0, %v3718
    %3720 = vdwg.mxu0
    %v3721 = vsub.f32 %v3640, %v3674
    %v3722 = vsub.f32 %v3641, %v3677
    %v3723 = vsub.f32 %v3642, %v3680
    %v3724 = vsub.f32 %v3643, %v3683
    %v3725 = vsub.f32 %v3644, %v3686
    %v3726 = vsub.f32 %v3645, %v3689
    %v3727 = vsub.f32 %v3646, %v3692
    %v3728 = vsub.f32 %v3647, %v3695
    %v3729 = vsub.f32 %v3648, %v3698
    %v3730 = vsub.f32 %v3649, %v3701
    %v3731 = vsub.f32 %v3650, %v3704
    %v3732 = vsub.f32 %v3651, %v3707
    %v3733 = vsub.f32 %v3652, %v3710
    %v3734 = vsub.f32 %v3653, %v3713
    %v3735 = vsub.f32 %v3654, %v3716
    %v3736 = vsub.f32 %v3655, %v3719
    %3737 = vmatpush.msra.mxu0 %v3736
    %3738 = vmatpush.msra.mxu0 %v3735
    %3739 = vmatpush.msra.mxu0 %v3734
    %3740 = vmatpush.msra.mxu0 %v3733
    %3741 = vmatpush.msra.mxu0 %v3732
    %3742 = vmatpush.msra.mxu0 %v3731
    %3743 = vmatpush.msra.mxu0 %v3730
    %3744 = vmatpush.msra.mxu0 %v3729
    %3745 = vmatpush.msra.mxu0 %v3728
    %3746 = vmatpush.msra.mxu0 %v3727
    %3747 = vmatpush.msra.mxu0 %v3726
    %3748 = vmatpush.msra.mxu0 %v3725
    %3749 = vmatpush.msra.mxu0 %v3724
    %3750 = vmatpush.msra.mxu0 %v3723
    %3751 = vmatpush.msra.mxu0 %v3722
    %3752 = vmatpush.msra.mxu0 %v3721
    %3753 = vmatmul.f32.gmra.mxu0 %v3431
    %v3754 = vpop.f32.mrf.mxu0
    %v3755 = vadd.f32 0.0, %v3754
    %3756 = vmatmul.f32.gmra.mxu0 %v3432
    %v3757 = vpop.f32.mrf.mxu0
    %v3758 = vadd.f32 0.0, %v3757
    %3759 = vmatmul.f32.gmra.mxu0 %v3433
    %v3760 = vpop.f32.mrf.mxu0
    %v3761 = vadd.f32 0.0, %v3760
    %3762 = vmatmul.f32.gmra.mxu0 %v3434
    %v3763 = vpop.f32.mrf.mxu0
    %v3764 = vadd.f32 0.0, %v3763
    %3765 = vmatmul.f32.gmra.mxu0 %v3435
    %v3766 = vpop.f32.mrf.mxu0
    %v3767 = vadd.f32 0.0, %v3766
    %3768 = vmatmul.f32.gmra.mxu0 %v3436
    %v3769 = vpop.f32.mrf.mxu0
    %v3770 = vadd.f32 0.0, %v3769
    %3771 = vmatmul.f32.gmra.mxu0 %v3437
    %v3772 = vpop.f32.mrf.mxu0
    %v3773 = vadd.f32 0.0, %v3772
    %3774 = vmatmul.f32.gmra.mxu0 %v3438
    %v3775 = vpop.f32.mrf.mxu0
    %v3776 = vadd.f32 0.0, %v3775
    %3777 = vmatmul.f32.gmra.mxu0 %v3439
    %v3778 = vpop.f32.mrf.mxu0
    %v3779 = vadd.f32 0.0, %v3778
    %3780 = vmatmul.f32.gmra.mxu0 %v3440
    %v3781 = vpop.f32.mrf.mxu0
    %v3782 = vadd.f32 0.0, %v3781
    %3783 = vmatmul.f32.gmra.mxu0 %v3441
    %v3784 = vpop.f32.mrf.mxu0
    %v3785 = vadd.f32 0.0, %v3784
    %3786 = vmatmul.f32.gmra.mxu0 %v3442
    %v3787 = vpop.f32.mrf.mxu0
    %v3788 = vadd.f32 0.0, %v3787
    %3789 = vmatmul.f32.gmra.mxu0 %v3443
    %v3790 = vpop.f32.mrf.mxu0
    %v3791 = vadd.f32 0.0, %v3790
    %3792 = vmatmul.f32.gmra.mxu0 %v3444
    %v3793 = vpop.f32.mrf.mxu0
    %v3794 = vadd.f32 0.0, %v3793
    %3795 = vmatmul.f32.gmra.mxu0 %v3445
    %v3796 = vpop.f32.mrf.mxu0
    %v3797 = vadd.f32 0.0, %v3796
    %3798 = vmatmul.f32.gmra.mxu0 %v3446
    %v3799 = vpop.f32.mrf.mxu0
    %v3800 = vadd.f32 0.0, %v3799
    %3801 = vdwg.mxu0
    %v3802 = vmul.f32 %v3721, 2.0
    %v3803 = vmul.f32 %v3722, 2.0
    %v3804 = vmul.f32 %v3723, 2.0
    %v3805 = vmul.f32 %v3724, 2.0
    %v3806 = vmul.f32 %v3725, 2.0
    %v3807 = vmul.f32 %v3726, 2.0
    %v3808 = vmul.f32 %v3727, 2.0
    %v3809 = vmul.f32 %v3728, 2.0
    %v3810 = vmul.f32 %v3729, 2.0
    %v3811 = vmul.f32 %v3730, 2.0
    %v3812 = vmul.f32 %v3731, 2.0
    %v3813 = vmul.f32 %v3732, 2.0
    %v3814 = vmul.f32 %v3733, 2.0
    %v3815 = vmul.f32 %v3734, 2.0
    %v3816 = vmul.f32 %v3735, 2.0
    %v3817 = vmul.f32 %v3736, 2.0
    %3818 = vmatpush.msra.mxu0 %v3800
    %3819 = vmatpush.msra.mxu0 %v3797
    %3820 = vmatpush.msra.mxu0 %v3794
    %3821 = vmatpush.msra.mxu0 %v3791
    %3822 = vmatpush.msra.mxu0 %v3788
    %3823 = vmatpush.msra.mxu0 %v3785
    %3824 = vmatpush.msra.mxu0 %v3782
    %3825 = vmatpush.msra.mxu0 %v3779
    %3826 = vmatpush.msra.mxu0 %v3776
    %3827 = vmatpush.msra.mxu0 %v3773
    %3828 = vmatpush.msra.mxu0 %v3770
    %3829 = vmatpush.msra.mxu0 %v3767
    %3830 = vmatpush.msra.mxu0 %v3764
    %3831 = vmatpush.msra.mxu0 %v3761
    %3832 = vmatpush.msra.mxu0 %v3758
    %3833 = vmatpush.msra.mxu0 %v3755
    %3834 = vmatmul.f32.gmra.mxu0 %v3721
    %v3835 = vpop.f32.mrf.mxu0
    %v3836 = vadd.f32 0.0, %v3835
    %3837 = vmatmul.f32.gmra.mxu0 %v3722
    %v3838 = vpop.f32.mrf.mxu0
    %v3839 = vadd.f32 0.0, %v3838
    %3840 = vmatmul.f32.gmra.mxu0 %v3723
    %v3841 = vpop.f32.mrf.mxu0
    %v3842 = vadd.f32 0.0, %v3841
    %3843 = vmatmul.f32.gmra.mxu0 %v3724
    %v3844 = vpop.f32.mrf.mxu0
    %v3845 = vadd.f32 0.0, %v3844
    %3846 = vmatmul.f32.gmra.mxu0 %v3725
    %v3847 = vpop.f32.mrf.mxu0
    %v3848 = vadd.f32 0.0, %v3847
    %3849 = vmatmul.f32.gmra.mxu0 %v3726
    %v3850 = vpop.f32.mrf.mxu0
    %v3851 = vadd.f32 0.0, %v3850
    %3852 = vmatmul.f32.gmra.mxu0 %v3727
    %v3853 = vpop.f32.mrf.mxu0
    %v3854 = vadd.f32 0.0, %v3853
    %3855 = vmatmul.f32.gmra.mxu0 %v3728
    %v3856 = vpop.f32.mrf.mxu0
    %v3857 = vadd.f32 0.0, %v3856
    %3858 = vmatmul.f32.gmra.mxu0 %v3729
    %v3859 = vpop.f32.mrf.mxu0
    %v3860 = vadd.f32 0.0, %v3859
    %3861 = vmatmul.f32.gmra.mxu0 %v3730
    %v3862 = vpop.f32.mrf.mxu0
    %v3863 = vadd.f32 0.0, %v3862
    %3864 = vmatmul.f32.gmra.mxu0 %v3731
    %v3865 = vpop.f32.mrf.mxu0
    %v3866 = vadd.f32 0.0, %v3865
    %3867 = vmatmul.f32.gmra.mxu0 %v3732
    %v3868 = vpop.f32.mrf.mxu0
    %v3869 = vadd.f32 0.0, %v3868
    %3870 = vmatmul.f32.gmra.mxu0 %v3733
    %v3871 = vpop.f32.mrf.mxu0
    %v3872 = vadd.f32 0.0, %v3871
    %3873 = vmatmul.f32.gmra.mxu0 %v3734
    %v3874 = vpop.f32.mrf.mxu0
    %v3875 = vadd.f32 0.0, %v3874
    %3876 = vmatmul.f32.gmra.mxu0 %v3735
    %v3877 = vpop.f32.mrf.mxu0
    %v3878 = vadd.f32 0.0, %v3877
    %3879 = vmatmul.f32.gmra.mxu0 %v3736
    %v3880 = vpop.f32.mrf.mxu0
    %v3881 = vadd.f32 0.0, %v3880
    %3882 = vdwg.mxu0
    %v3883 = vsub.f32 %v3802, %v3836
    %v3884 = vsub.f32 %v3803, %v3839
    %v3885 = vsub.f32 %v3804, %v3842
    %v3886 = vsub.f32 %v3805, %v3845
    %v3887 = vsub.f32 %v3806, %v3848
    %v3888 = vsub.f32 %v3807, %v3851
    %v3889 = vsub.f32 %v3808, %v3854
    %v3890 = vsub.f32 %v3809, %v3857
    %v3891 = vsub.f32 %v3810, %v3860
    %v3892 = vsub.f32 %v3811, %v3863
    %v3893 = vsub.f32 %v3812, %v3866
    %v3894 = vsub.f32 %v3813, %v3869
    %v3895 = vsub.f32 %v3814, %v3872
    %v3896 = vsub.f32 %v3815, %v3875
    %v3897 = vsub.f32 %v3816, %v3878
    %v3898 = vsub.f32 %v3817, %v3881
    %3899 = vmatpush.msra.mxu0 %v3898
    %3900 = vmatpush.msra.mxu0 %v3897
    %3901 = vmatpush.msra.mxu0 %v3896
    %3902 = vmatpush.msra.mxu0 %v3895
    %3903 = vmatpush.msra.mxu0 %v3894
    %3904 = vmatpush.msra.mxu0 %v3893
    %3905 = vmatpush.msra.mxu0 %v3892
    %3906 = vmatpush.msra.mxu0 %v3891
    %3907 = vmatpush.msra.mxu0 %v3890
    %3908 = vmatpush.msra.mxu0 %v3889
    %3909 = vmatpush.msra.mxu0 %v3888
    %3910 = vmatpush.msra.mxu0 %v3887
    %3911 = vmatpush.msra.mxu0 %v3886
    %3912 = vmatpush.msra.mxu0 %v3885
    %3913 = vmatpush.msra.mxu0 %v3884
    %3914 = vmatpush.msra.mxu0 %v3883
    %3915 = vmatmul.f32.gmra.mxu0 %v3431
    %v3916 = vpop.f32.mrf.mxu0
    %v3917 = vadd.f32 0.0, %v3916
    %3918 = vmatmul.f32.gmra.mxu0 %v3432
    %v3919 = vpop.f32.mrf.mxu0
    %v3920 = vadd.f32 0.0, %v3919
    %3921 = vmatmul.f32.gmra.mxu0 %v3433
    %v3922 = vpop.f32.mrf.mxu0
    %v3923 = vadd.f32 0.0, %v3922
    %3924 = vmatmul.f32.gmra.mxu0 %v3434
    %v3925 = vpop.f32.mrf.mxu0
    %v3926 = vadd.f32 0.0, %v3925
    %3927 = vmatmul.f32.gmra.mxu0 %v3435
    %v3928 = vpop.f32.mrf.mxu0
    %v3929 = vadd.f32 0.0, %v3928
    %3930 = vmatmul.f32.gmra.mxu0 %v3436
    %v3931 = vpop.f32.mrf.mxu0
    %v3932 = vadd.f32 0.0, %v3931
    %3933 = vmatmul.f32.gmra.mxu0 %v3437
    %v3934 = vpop.f32.mrf.mxu0
    %v3935 = vadd.f32 0.0, %v3934
    %3936 = vmatmul.f32.gmra.mxu0 %v3438
    %v3937 = vpop.f32.mrf.mxu0
    %v3938 = vadd.f32 0.0, %v3937
    %3939 = vmatmul.f32.gmra.mxu0 %v3439
    %v3940 = vpop.f32.mrf.mxu0
    %v3941 = vadd.f32 0.0, %v3940
    %3942 = vmatmul.f32.gmra.mxu0 %v3440
    %v3943 = vpop.f32.mrf.mxu0
    %v3944 = vadd.f32 0.0, %v3943
    %3945 = vmatmul.f32.gmra.mxu0 %v3441
    %v3946 = vpop.f32.mrf.mxu0
    %v3947 = vadd.f32 0.0, %v3946
    %3948 = vmatmul.f32.gmra.mxu0 %v3442
    %v3949 = vpop.f32.mrf.mxu0
    %v3950 = vadd.f32 0.0, %v3949
    %3951 = vmatmul.f32.gmra.mxu0 %v3443
    %v3952 = vpop.f32.mrf.mxu0
    %v3953 = vadd.f32 0.0, %v3952
    %3954 = vmatmul.f32.gmra.mxu0 %v3444
    %v3955 = vpop.f32.mrf.mxu0
    %v3956 = vadd.f32 0.0, %v3955
    %3957 = vmatmul.f32.gmra.mxu0 %v3445
    %v3958 = vpop.f32.mrf.mxu0
    %v3959 = vadd.f32 0.0, %v3958
    %3960 = vmatmul.f32.gmra.mxu0 %v3446
    %v3961 = vpop.f32.mrf.mxu0
    %v3962 = vadd.f32 0.0, %v3961
    %3963 = vdwg.mxu0
    %v3964 = vmul.f32 %v3883, 2.0
    %v3965 = vmul.f32 %v3884, 2.0
    %v3966 = vmul.f32 %v3885, 2.0
    %v3967 = vmul.f32 %v3886, 2.0
    %v3968 = vmul.f32 %v3887, 2.0
    %v3969 = vmul.f32 %v3888, 2.0
    %v3970 = vmul.f32 %v3889, 2.0
    %v3971 = vmul.f32 %v3890, 2.0
    %v3972 = vmul.f32 %v3891, 2.0
    %v3973 = vmul.f32 %v3892, 2.0
    %v3974 = vmul.f32 %v3893, 2.0
    %v3975 = vmul.f32 %v3894, 2.0
    %v3976 = vmul.f32 %v3895, 2.0
    %v3977 = vmul.f32 %v3896, 2.0
    %v3978 = vmul.f32 %v3897, 2.0
    %v3979 = vmul.f32 %v3898, 2.0
    %3980 = vmatpush.msra.mxu0 %v3962
    %3981 = vmatpush.msra.mxu0 %v3959
    %3982 = vmatpush.msra.mxu0 %v3956
    %3983 = vmatpush.msra.mxu0 %v3953
    %3984 = vmatpush.msra.mxu0 %v3950
    %3985 = vmatpush.msra.mxu0 %v3947
    %3986 = vmatpush.msra.mxu0 %v3944
    %3987 = vmatpush.msra.mxu0 %v3941
    %3988 = vmatpush.msra.mxu0 %v3938
    %3989 = vmatpush.msra.mxu0 %v3935
    %3990 = vmatpush.msra.mxu0 %v3932
    %3991 = vmatpush.msra.mxu0 %v3929
    %3992 = vmatpush.msra.mxu0 %v3926
    %3993 = vmatpush.msra.mxu0 %v3923
    %3994 = vmatpush.msra.mxu0 %v3920
    %3995 = vmatpush.msra.mxu0 %v3917
    %3996 = vmatmul.f32.gmra.mxu0 %v3883
    %v3997 = vpop.f32.mrf.mxu0
    %v3998 = vadd.f32 0.0, %v3997
    %3999 = vmatmul.f32.gmra.mxu0 %v3884
    %v4000 = vpop.f32.mrf.mxu0
    %v4001 = vadd.f32 0.0, %v4000
    %4002 = vmatmul.f32.gmra.mxu0 %v3885
    %v4003 = vpop.f32.mrf.mxu0
    %v4004 = vadd.f32 0.0, %v4003
    %4005 = vmatmul.f32.gmra.mxu0 %v3886
    %v4006 = vpop.f32.mrf.mxu0
    %v4007 = vadd.f32 0.0, %v4006
    %4008 = vmatmul.f32.gmra.mxu0 %v3887
    %v4009 = vpop.f32.mrf.mxu0
    %v4010 = vadd.f32 0.0, %v4009
    %4011 = vmatmul.f32.gmra.mxu0 %v3888
    %v4012 = vpop.f32.mrf.mxu0
    %v4013 = vadd.f32 0.0, %v4012
    %4014 = vmatmul.f32.gmra.mxu0 %v3889
    %v4015 = vpop.f32.mrf.mxu0
    %v4016 = vadd.f32 0.0, %v4015
    %4017 = vmatmul.f32.gmra.mxu0 %v3890
    %v4018 = vpop.f32.mrf.mxu0
    %v4019 = vadd.f32 0.0, %v4018
    %4020 = vmatmul.f32.gmra.mxu0 %v3891
    %v4021 = vpop.f32.mrf.mxu0
    %v4022 = vadd.f32 0.0, %v4021
    %4023 = vmatmul.f32.gmra.mxu0 %v3892
    %v4024 = vpop.f32.mrf.mxu0
    %v4025 = vadd.f32 0.0, %v4024
    %4026 = vmatmul.f32.gmra.mxu0 %v3893
    %v4027 = vpop.f32.mrf.mxu0
    %v4028 = vadd.f32 0.0, %v4027
    %4029 = vmatmul.f32.gmra.mxu0 %v3894
    %v4030 = vpop.f32.mrf.mxu0
    %v4031 = vadd.f32 0.0, %v4030
    %4032 = vmatmul.f32.gmra.mxu0 %v3895
    %v4033 = vpop.f32.mrf.mxu0
    %v4034 = vadd.f32 0.0, %v4033
    %4035 = vmatmul.f32.gmra.mxu0 %v3896
    %v4036 = vpop.f32.mrf.mxu0
    %v4037 = vadd.f32 0.0, %v4036
    %4038 = vmatmul.f32.gmra.mxu0 %v3897
    %v4039 = vpop.f32.mrf.mxu0
    %v4040 = vadd.f32 0.0, %v4039
    %4041 = vmatmul.f32.gmra.mxu0 %v3898
    %v4042 = vpop.f32.mrf.mxu0
    %v4043 = vadd.f32 0.0, %v4042
    %4044 = vdwg.mxu0
    %v4045 = vsub.f32 %v3964, %v3998
    %v4046 = vsub.f32 %v3965, %v4001
    %v4047 = vsub.f32 %v3966, %v4004
    %v4048 = vsub.f32 %v3967, %v4007
    %v4049 = vsub.f32 %v3968, %v4010
    %v4050 = vsub.f32 %v3969, %v4013
    %v4051 = vsub.f32 %v3970, %v4016
    %v4052 = vsub.f32 %v3971, %v4019
    %v4053 = vsub.f32 %v3972, %v4022
    %v4054 = vsub.f32 %v3973, %v4025
    %v4055 = vsub.f32 %v3974, %v4028
    %v4056 = vsub.f32 %v3975, %v4031
    %v4057 = vsub.f32 %v3976, %v4034
    %v4058 = vsub.f32 %v3977, %v4037
    %v4059 = vsub.f32 %v3978, %v4040
    %v4060 = vsub.f32 %v3979, %v4043
    %4061 = vmatpush.msra.mxu0 %v4060
    %4062 = vmatpush.msra.mxu0 %v4059
    %4063 = vmatpush.msra.mxu0 %v4058
    %4064 = vmatpush.msra.mxu0 %v4057
    %4065 = vmatpush.msra.mxu0 %v4056
    %4066 = vmatpush.msra.mxu0 %v4055
    %4067 = vmatpush.msra.mxu0 %v4054
    %4068 = vmatpush.msra.mxu0 %v4053
    %4069 = vmatpush.msra.mxu0 %v4052
    %4070 = vmatpush.msra.mxu0 %v4051
    %4071 = vmatpush.msra.mxu0 %v4050
    %4072 = vmatpush.msra.mxu0 %v4049
    %4073 = vmatpush.msra.mxu0 %v4048
    %4074 = vmatpush.msra.mxu0 %v4047
    %4075 = vmatpush.msra.mxu0 %v4046
    %4076 = vmatpush.msra.mxu0 %v4045
    %4077 = vmatmul.f32.gmra.mxu0 %v3431
    %v4078 = vpop.f32.mrf.mxu0
    %v4079 = vadd.f32 0.0, %v4078
    %4080 = vmatmul.f32.gmra.mxu0 %v3432
    %v4081 = vpop.f32.mrf.mxu0
    %v4082 = vadd.f32 0.0, %v4081
    %4083 = vmatmul.f32.gmra.mxu0 %v3433
    %v4084 = vpop.f32.mrf.mxu0
    %v4085 = vadd.f32 0.0, %v4084
    %4086 = vmatmul.f32.gmra.mxu0 %v3434
    %v4087 = vpop.f32.mrf.mxu0
    %v4088 = vadd.f32 0.0, %v4087
    %4089 = vmatmul.f32.gmra.mxu0 %v3435
    %v4090 = vpop.f32.mrf.mxu0
    %v4091 = vadd.f32 0.0, %v4090
    %4092 = vmatmul.f32.gmra.mxu0 %v3436
    %v4093 = vpop.f32.mrf.mxu0
    %v4094 = vadd.f32 0.0, %v4093
    %4095 = vmatmul.f32.gmra.mxu0 %v3437
    %v4096 = vpop.f32.mrf.mxu0
    %v4097 = vadd.f32 0.0, %v4096
    %4098 = vmatmul.f32.gmra.mxu0 %v3438
    %v4099 = vpop.f32.mrf.mxu0
    %v4100 = vadd.f32 0.0, %v4099
    %4101 = vmatmul.f32.gmra.mxu0 %v3439
    %v4102 = vpop.f32.mrf.mxu0
    %v4103 = vadd.f32 0.0, %v4102
    %4104 = vmatmul.f32.gmra.mxu0 %v3440
    %v4105 = vpop.f32.mrf.mxu0
    %v4106 = vadd.f32 0.0, %v4105
    %4107 = vmatmul.f32.gmra.mxu0 %v3441
    %v4108 = vpop.f32.mrf.mxu0
    %v4109 = vadd.f32 0.0, %v4108
    %4110 = vmatmul.f32.gmra.mxu0 %v3442
    %v4111 = vpop.f32.mrf.mxu0
    %v4112 = vadd.f32 0.0, %v4111
    %4113 = vmatmul.f32.gmra.mxu0 %v3443
    %v4114 = vpop.f32.mrf.mxu0
    %v4115 = vadd.f32 0.0, %v4114
    %4116 = vmatmul.f32.gmra.mxu0 %v3444
    %v4117 = vpop.f32.mrf.mxu0
    %v4118 = vadd.f32 0.0, %v4117
    %4119 = vmatmul.f32.gmra.mxu0 %v3445
    %v4120 = vpop.f32.mrf.mxu0
    %v4121 = vadd.f32 0.0, %v4120
    %4122 = vmatmul.f32.gmra.mxu0 %v3446
    %v4123 = vpop.f32.mrf.mxu0
    %v4124 = vadd.f32 0.0, %v4123
    %4125 = vdwg.mxu0
    %v4126 = vmul.f32 %v4045, 2.0
    %v4127 = vmul.f32 %v4046, 2.0
    %v4128 = vmul.f32 %v4047, 2.0
    %v4129 = vmul.f32 %v4048, 2.0
    %v4130 = vmul.f32 %v4049, 2.0
    %v4131 = vmul.f32 %v4050, 2.0
    %v4132 = vmul.f32 %v4051, 2.0
    %v4133 = vmul.f32 %v4052, 2.0
    %v4134 = vmul.f32 %v4053, 2.0
    %v4135 = vmul.f32 %v4054, 2.0
    %v4136 = vmul.f32 %v4055, 2.0
    %v4137 = vmul.f32 %v4056, 2.0
    %v4138 = vmul.f32 %v4057, 2.0
    %v4139 = vmul.f32 %v4058, 2.0
    %v4140 = vmul.f32 %v4059, 2.0
    %v4141 = vmul.f32 %v4060, 2.0
    %4142 = vmatpush.msra.mxu0 %v4124
    %4143 = vmatpush.msra.mxu0 %v4121
    %4144 = vmatpush.msra.mxu0 %v4118
    %4145 = vmatpush.msra.mxu0 %v4115
    %4146 = vmatpush.msra.mxu0 %v4112
    %4147 = vmatpush.msra.mxu0 %v4109
    %4148 = vmatpush.msra.mxu0 %v4106
    %4149 = vmatpush.msra.mxu0 %v4103
    %4150 = vmatpush.msra.mxu0 %v4100
    %4151 = vmatpush.msra.mxu0 %v4097
    %4152 = vmatpush.msra.mxu0 %v4094
    %4153 = vmatpush.msra.mxu0 %v4091
    %4154 = vmatpush.msra.mxu0 %v4088
    %4155 = vmatpush.msra.mxu0 %v4085
    %4156 = vmatpush.msra.mxu0 %v4082
    %4157 = vmatpush.msra.mxu0 %v4079
    %4158 = vmatmul.f32.gmra.mxu0 %v4045
    %v4159 = vpop.f32.mrf.mxu0
    %v4160 = vadd.f32 0.0, %v4159
    %4161 = vmatmul.f32.gmra.mxu0 %v4046
    %v4162 = vpop.f32.mrf.mxu0
    %v4163 = vadd.f32 0.0, %v4162
    %4164 = vmatmul.f32.gmra.mxu0 %v4047
    %v4165 = vpop.f32.mrf.mxu0
    %v4166 = vadd.f32 0.0, %v4165
    %4167 = vmatmul.f32.gmra.mxu0 %v4048
    %v4168 = vpop.f32.mrf.mxu0
    %v4169 = vadd.f32 0.0, %v4168
    %4170 = vmatmul.f32.gmra.mxu0 %v4049
    %v4171 = vpop.f32.mrf.mxu0
    %v4172 = vadd.f32 0.0, %v4171
    %4173 = vmatmul.f32.gmra.mxu0 %v4050
    %v4174 = vpop.f32.mrf.mxu0
    %v4175 = vadd.f32 0.0, %v4174
    %4176 = vmatmul.f32.gmra.mxu0 %v4051
    %v4177 = vpop.f32.mrf.mxu0
    %v4178 = vadd.f32 0.0, %v4177
    %4179 = vmatmul.f32.gmra.mxu0 %v4052
    %v4180 = vpop.f32.mrf.mxu0
    %v4181 = vadd.f32 0.0, %v4180
    %4182 = vmatmul.f32.gmra.mxu0 %v4053
    %v4183 = vpop.f32.mrf.mxu0
    %v4184 = vadd.f32 0.0, %v4183
    %4185 = vmatmul.f32.gmra.mxu0 %v4054
    %v4186 = vpop.f32.mrf.mxu0
    %v4187 = vadd.f32 0.0, %v4186
    %4188 = vmatmul.f32.gmra.mxu0 %v4055
    %v4189 = vpop.f32.mrf.mxu0
    %v4190 = vadd.f32 0.0, %v4189
    %4191 = vmatmul.f32.gmra.mxu0 %v4056
    %v4192 = vpop.f32.mrf.mxu0
    %v4193 = vadd.f32 0.0, %v4192
    %4194 = vmatmul.f32.gmra.mxu0 %v4057
    %v4195 = vpop.f32.mrf.mxu0
    %v4196 = vadd.f32 0.0, %v4195
    %4197 = vmatmul.f32.gmra.mxu0 %v4058
    %v4198 = vpop.f32.mrf.mxu0
    %v4199 = vadd.f32 0.0, %v4198
    %4200 = vmatmul.f32.gmra.mxu0 %v4059
    %v4201 = vpop.f32.mrf.mxu0
    %v4202 = vadd.f32 0.0, %v4201
    %4203 = vmatmul.f32.gmra.mxu0 %v4060
    %v4204 = vpop.f32.mrf.mxu0
    %v4205 = vadd.f32 0.0, %v4204
    %4206 = vdwg.mxu0
    %v4207 = vsub.f32 %v4126, %v4160
    %v4208 = vsub.f32 %v4127, %v4163
    %v4209 = vsub.f32 %v4128, %v4166
    %v4210 = vsub.f32 %v4129, %v4169
    %v4211 = vsub.f32 %v4130, %v4172
    %v4212 = vsub.f32 %v4131, %v4175
    %v4213 = vsub.f32 %v4132, %v4178
    %v4214 = vsub.f32 %v4133, %v4181
    %v4215 = vsub.f32 %v4134, %v4184
    %v4216 = vsub.f32 %v4135, %v4187
    %v4217 = vsub.f32 %v4136, %v4190
    %v4218 = vsub.f32 %v4137, %v4193
    %v4219 = vsub.f32 %v4138, %v4196
    %v4220 = vsub.f32 %v4139, %v4199
    %v4221 = vsub.f32 %v4140, %v4202
    %v4222 = vsub.f32 %v4141, %v4205
    %4223 = vmatpush.msra.mxu0 %v4222
    %4224 = vmatpush.msra.mxu0 %v4221
    %4225 = vmatpush.msra.mxu0 %v4220
    %4226 = vmatpush.msra.mxu0 %v4219
    %4227 = vmatpush.msra.mxu0 %v4218
    %4228 = vmatpush.msra.mxu0 %v4217
    %4229 = vmatpush.msra.mxu0 %v4216
    %4230 = vmatpush.msra.mxu0 %v4215
    %4231 = vmatpush.msra.mxu0 %v4214
    %4232 = vmatpush.msra.mxu0 %v4213
    %4233 = vmatpush.msra.mxu0 %v4212
    %4234 = vmatpush.msra.mxu0 %v4211
    %4235 = vmatpush.msra.mxu0 %v4210
    %4236 = vmatpush.msra.mxu0 %v4209
    %4237 = vmatpush.msra.mxu0 %v4208
    %4238 = vmatpush.msra.mxu0 %v4207
    %4239 = vmatmul.f32.gmra.mxu0 %v3431
    %v4240 = vpop.f32.mrf.mxu0
    %v4241 = vadd.f32 0.0, %v4240
    %4242 = vmatmul.f32.gmra.mxu0 %v3432
    %v4243 = vpop.f32.mrf.mxu0
    %v4244 = vadd.f32 0.0, %v4243
    %4245 = vmatmul.f32.gmra.mxu0 %v3433
    %v4246 = vpop.f32.mrf.mxu0
    %v4247 = vadd.f32 0.0, %v4246
    %4248 = vmatmul.f32.gmra.mxu0 %v3434
    %v4249 = vpop.f32.mrf.mxu0
    %v4250 = vadd.f32 0.0, %v4249
    %4251 = vmatmul.f32.gmra.mxu0 %v3435
    %v4252 = vpop.f32.mrf.mxu0
    %v4253 = vadd.f32 0.0, %v4252
    %4254 = vmatmul.f32.gmra.mxu0 %v3436
    %v4255 = vpop.f32.mrf.mxu0
    %v4256 = vadd.f32 0.0, %v4255
    %4257 = vmatmul.f32.gmra.mxu0 %v3437
    %v4258 = vpop.f32.mrf.mxu0
    %v4259 = vadd.f32 0.0, %v4258
    %4260 = vmatmul.f32.gmra.mxu0 %v3438
    %v4261 = vpop.f32.mrf.mxu0
    %v4262 = vadd.f32 0.0, %v4261
    %4263 = vmatmul.f32.gmra.mxu0 %v3439
    %v4264 = vpop.f32.mrf.mxu0
    %v4265 = vadd.f32 0.0, %v4264
    %4266 = vmatmul.f32.gmra.mxu0 %v3440
    %v4267 = vpop.f32.mrf.mxu0
    %v4268 = vadd.f32 0.0, %v4267
    %4269 = vmatmul.f32.gmra.mxu0 %v3441
    %v4270 = vpop.f32.mrf.mxu0
    %v4271 = vadd.f32 0.0, %v4270
    %4272 = vmatmul.f32.gmra.mxu0 %v3442
    %v4273 = vpop.f32.mrf.mxu0
    %v4274 = vadd.f32 0.0, %v4273
    %4275 = vmatmul.f32.gmra.mxu0 %v3443
    %v4276 = vpop.f32.mrf.mxu0
    %v4277 = vadd.f32 0.0, %v4276
    %4278 = vmatmul.f32.gmra.mxu0 %v3444
    %v4279 = vpop.f32.mrf.mxu0
    %v4280 = vadd.f32 0.0, %v4279
    %4281 = vmatmul.f32.gmra.mxu0 %v3445
    %v4282 = vpop.f32.mrf.mxu0
    %v4283 = vadd.f32 0.0, %v4282
    %4284 = vmatmul.f32.gmra.mxu0 %v3446
    %v4285 = vpop.f32.mrf.mxu0
    %v4286 = vadd.f32 0.0, %v4285
    %4287 = vdwg.mxu0
    %v4288 = vmul.f32 %v4207, 2.0
    %v4289 = vmul.f32 %v4208, 2.0
    %v4290 = vmul.f32 %v4209, 2.0
    %v4291 = vmul.f32 %v4210, 2.0
    %v4292 = vmul.f32 %v4211, 2.0
    %v4293 = vmul.f32 %v4212, 2.0
    %v4294 = vmul.f32 %v4213, 2.0
    %v4295 = vmul.f32 %v4214, 2.0
    %v4296 = vmul.f32 %v4215, 2.0
    %v4297 = vmul.f32 %v4216, 2.0
    %v4298 = vmul.f32 %v4217, 2.0
    %v4299 = vmul.f32 %v4218, 2.0
    %v4300 = vmul.f32 %v4219, 2.0
    %v4301 = vmul.f32 %v4220, 2.0
    %v4302 = vmul.f32 %v4221, 2.0
    %v4303 = vmul.f32 %v4222, 2.0
    %4304 = vmatpush.msra.mxu0 %v4286
    %4305 = vmatpush.msra.mxu0 %v4283
    %4306 = vmatpush.msra.mxu0 %v4280
    %4307 = vmatpush.msra.mxu0 %v4277
    %4308 = vmatpush.msra.mxu0 %v4274
    %4309 = vmatpush.msra.mxu0 %v4271
    %4310 = vmatpush.msra.mxu0 %v4268
    %4311 = vmatpush.msra.mxu0 %v4265
    %4312 = vmatpush.msra.mxu0 %v4262
    %4313 = vmatpush.msra.mxu0 %v4259
    %4314 = vmatpush.msra.mxu0 %v4256
    %4315 = vmatpush.msra.mxu0 %v4253
    %4316 = vmatpush.msra.mxu0 %v4250
    %4317 = vmatpush.msra.mxu0 %v4247
    %4318 = vmatpush.msra.mxu0 %v4244
    %4319 = vmatpush.msra.mxu0 %v4241
    %4320 = vmatmul.f32.gmra.mxu0 %v4207
    %v4321 = vpop.f32.mrf.mxu0
    %v4322 = vadd.f32 0.0, %v4321
    %4323 = vmatmul.f32.gmra.mxu0 %v4208
    %v4324 = vpop.f32.mrf.mxu0
    %v4325 = vadd.f32 0.0, %v4324
    %4326 = vmatmul.f32.gmra.mxu0 %v4209
    %v4327 = vpop.f32.mrf.mxu0
    %v4328 = vadd.f32 0.0, %v4327
    %4329 = vmatmul.f32.gmra.mxu0 %v4210
    %v4330 = vpop.f32.mrf.mxu0
    %v4331 = vadd.f32 0.0, %v4330
    %4332 = vmatmul.f32.gmra.mxu0 %v4211
    %v4333 = vpop.f32.mrf.mxu0
    %v4334 = vadd.f32 0.0, %v4333
    %4335 = vmatmul.f32.gmra.mxu0 %v4212
    %v4336 = vpop.f32.mrf.mxu0
    %v4337 = vadd.f32 0.0, %v4336
    %4338 = vmatmul.f32.gmra.mxu0 %v4213
    %v4339 = vpop.f32.mrf.mxu0
    %v4340 = vadd.f32 0.0, %v4339
    %4341 = vmatmul.f32.gmra.mxu0 %v4214
    %v4342 = vpop.f32.mrf.mxu0
    %v4343 = vadd.f32 0.0, %v4342
    %4344 = vmatmul.f32.gmra.mxu0 %v4215
    %v4345 = vpop.f32.mrf.mxu0
    %v4346 = vadd.f32 0.0, %v4345
    %4347 = vmatmul.f32.gmra.mxu0 %v4216
    %v4348 = vpop.f32.mrf.mxu0
    %v4349 = vadd.f32 0.0, %v4348
    %4350 = vmatmul.f32.gmra.mxu0 %v4217
    %v4351 = vpop.f32.mrf.mxu0
    %v4352 = vadd.f32 0.0, %v4351
    %4353 = vmatmul.f32.gmra.mxu0 %v4218
    %v4354 = vpop.f32.mrf.mxu0
    %v4355 = vadd.f32 0.0, %v4354
    %4356 = vmatmul.f32.gmra.mxu0 %v4219
    %v4357 = vpop.f32.mrf.mxu0
    %v4358 = vadd.f32 0.0, %v4357
    %4359 = vmatmul.f32.gmra.mxu0 %v4220
    %v4360 = vpop.f32.mrf.mxu0
    %v4361 = vadd.f32 0.0, %v4360
    %4362 = vmatmul.f32.gmra.mxu0 %v4221
    %v4363 = vpop.f32.mrf.mxu0
    %v4364 = vadd.f32 0.0, %v4363
    %4365 = vmatmul.f32.gmra.mxu0 %v4222
    %v4366 = vpop.f32.mrf.mxu0
    %v4367 = vadd.f32 0.0, %v4366
    %4368 = vdwg.mxu0
    %v4369 = vsub.f32 %v4288, %v4322
    %v4370 = vsub.f32 %v4289, %v4325
    %v4371 = vsub.f32 %v4290, %v4328
    %v4372 = vsub.f32 %v4291, %v4331
    %v4373 = vsub.f32 %v4292, %v4334
    %v4374 = vsub.f32 %v4293, %v4337
    %v4375 = vsub.f32 %v4294, %v4340
    %v4376 = vsub.f32 %v4295, %v4343
    %v4377 = vsub.f32 %v4296, %v4346
    %v4378 = vsub.f32 %v4297, %v4349
    %v4379 = vsub.f32 %v4298, %v4352
    %v4380 = vsub.f32 %v4299, %v4355
    %v4381 = vsub.f32 %v4300, %v4358
    %v4382 = vsub.f32 %v4301, %v4361
    %v4383 = vsub.f32 %v4302, %v4364
    %v4384 = vsub.f32 %v4303, %v4367
    %4385 = vmatpush.msra.mxu0 %v4384
    %4386 = vmatpush.msra.mxu0 %v4383
    %4387 = vmatpush.msra.mxu0 %v4382
    %4388 = vmatpush.msra.mxu0 %v4381
    %4389 = vmatpush.msra.mxu0 %v4380
    %4390 = vmatpush.msra.mxu0 %v4379
    %4391 = vmatpush.msra.mxu0 %v4378
    %4392 = vmatpush.msra.mxu0 %v4377
    %4393 = vmatpush.msra.mxu0 %v4376
    %4394 = vmatpush.msra.mxu0 %v4375
    %4395 = vmatpush.msra.mxu0 %v4374
    %4396 = vmatpush.msra.mxu0 %v4373
    %4397 = vmatpush.msra.mxu0 %v4372
    %4398 = vmatpush.msra.mxu0 %v4371
    %4399 = vmatpush.msra.mxu0 %v4370
    %4400 = vmatpush.msra.mxu0 %v4369
    %4401 = vmatmul.f32.gmra.mxu0 %v3431
    %v4402 = vpop.f32.mrf.mxu0
    %v4403 = vadd.f32 0.0, %v4402
    %4404 = vmatmul.f32.gmra.mxu0 %v3432
    %v4405 = vpop.f32.mrf.mxu0
    %v4406 = vadd.f32 0.0, %v4405
    %4407 = vmatmul.f32.gmra.mxu0 %v3433
    %v4408 = vpop.f32.mrf.mxu0
    %v4409 = vadd.f32 0.0, %v4408
    %4410 = vmatmul.f32.gmra.mxu0 %v3434
    %v4411 = vpop.f32.mrf.mxu0
    %v4412 = vadd.f32 0.0, %v4411
    %4413 = vmatmul.f32.gmra.mxu0 %v3435
    %v4414 = vpop.f32.mrf.mxu0
    %v4415 = vadd.f32 0.0, %v4414
    %4416 = vmatmul.f32.gmra.mxu0 %v3436
    %v4417 = vpop.f32.mrf.mxu0
    %v4418 = vadd.f32 0.0, %v4417
    %4419 = vmatmul.f32.gmra.mxu0 %v3437
    %v4420 = vpop.f32.mrf.mxu0
    %v4421 = vadd.f32 0.0, %v4420
    %4422 = vmatmul.f32.gmra.mxu0 %v3438
    %v4423 = vpop.f32.mrf.mxu0
    %v4424 = vadd.f32 0.0, %v4423
    %4425 = vmatmul.f32.gmra.mxu0 %v3439
    %v4426 = vpop.f32.mrf.mxu0
    %v4427 = vadd.f32 0.0, %v4426
    %4428 = vmatmul.f32.gmra.mxu0 %v3440
    %v4429 = vpop.f32.mrf.mxu0
    %v4430 = vadd.f32 0.0, %v4429
    %4431 = vmatmul.f32.gmra.mxu0 %v3441
    %v4432 = vpop.f32.mrf.mxu0
    %v4433 = vadd.f32 0.0, %v4432
    %4434 = vmatmul.f32.gmra.mxu0 %v3442
    %v4435 = vpop.f32.mrf.mxu0
    %v4436 = vadd.f32 0.0, %v4435
    %4437 = vmatmul.f32.gmra.mxu0 %v3443
    %v4438 = vpop.f32.mrf.mxu0
    %v4439 = vadd.f32 0.0, %v4438
    %4440 = vmatmul.f32.gmra.mxu0 %v3444
    %v4441 = vpop.f32.mrf.mxu0
    %v4442 = vadd.f32 0.0, %v4441
    %4443 = vmatmul.f32.gmra.mxu0 %v3445
    %v4444 = vpop.f32.mrf.mxu0
    %v4445 = vadd.f32 0.0, %v4444
    %4446 = vmatmul.f32.gmra.mxu0 %v3446
    %v4447 = vpop.f32.mrf.mxu0
    %v4448 = vadd.f32 0.0, %v4447
    %4449 = vdwg.mxu0
    %v4450 = vmul.f32 %v4369, 2.0
    %v4451 = vmul.f32 %v4370, 2.0
    %v4452 = vmul.f32 %v4371, 2.0
    %v4453 = vmul.f32 %v4372, 2.0
    %v4454 = vmul.f32 %v4373, 2.0
    %v4455 = vmul.f32 %v4374, 2.0
    %v4456 = vmul.f32 %v4375, 2.0
    %v4457 = vmul.f32 %v4376, 2.0
    %v4458 = vmul.f32 %v4377, 2.0
    %v4459 = vmul.f32 %v4378, 2.0
    %v4460 = vmul.f32 %v4379, 2.0
    %v4461 = vmul.f32 %v4380, 2.0
    %v4462 = vmul.f32 %v4381, 2.0
    %v4463 = vmul.f32 %v4382, 2.0
    %v4464 = vmul.f32 %v4383, 2.0
    %v4465 = vmul.f32 %v4384, 2.0
    %4466 = vmatpush.msra.mxu0 %v4448
    %4467 = vmatpush.msra.mxu0 %v4445
    %4468 = vmatpush.msra.mxu0 %v4442
    %4469 = vmatpush.msra.mxu0 %v4439
    %4470 = vmatpush.msra.mxu0 %v4436
    %4471 = vmatpush.msra.mxu0 %v4433
    %4472 = vmatpush.msra.mxu0 %v4430
    %4473 = vmatpush.msra.mxu0 %v4427
    %4474 = vmatpush.msra.mxu0 %v4424
    %4475 = vmatpush.msra.mxu0 %v4421
    %4476 = vmatpush.msra.mxu0 %v4418
    %4477 = vmatpush.msra.mxu0 %v4415
    %4478 = vmatpush.msra.mxu0 %v4412
    %4479 = vmatpush.msra.mxu0 %v4409
    %4480 = vmatpush.msra.mxu0 %v4406
    %4481 = vmatpush.msra.mxu0 %v4403
    %4482 = vmatmul.f32.gmra.mxu0 %v4369
    %v4483 = vpop.f32.mrf.mxu0
    %v4484 = vadd.f32 0.0, %v4483
    %4485 = vmatmul.f32.gmra.mxu0 %v4370
    %v4486 = vpop.f32.mrf.mxu0
    %v4487 = vadd.f32 0.0, %v4486
    %4488 = vmatmul.f32.gmra.mxu0 %v4371
    %v4489 = vpop.f32.mrf.mxu0
    %v4490 = vadd.f32 0.0, %v4489
    %4491 = vmatmul.f32.gmra.mxu0 %v4372
    %v4492 = vpop.f32.mrf.mxu0
    %v4493 = vadd.f32 0.0, %v4492
    %4494 = vmatmul.f32.gmra.mxu0 %v4373
    %v4495 = vpop.f32.mrf.mxu0
    %v4496 = vadd.f32 0.0, %v4495
    %4497 = vmatmul.f32.gmra.mxu0 %v4374
    %v4498 = vpop.f32.mrf.mxu0
    %v4499 = vadd.f32 0.0, %v4498
    %4500 = vmatmul.f32.gmra.mxu0 %v4375
    %v4501 = vpop.f32.mrf.mxu0
    %v4502 = vadd.f32 0.0, %v4501
    %4503 = vmatmul.f32.gmra.mxu0 %v4376
    %v4504 = vpop.f32.mrf.mxu0
    %v4505 = vadd.f32 0.0, %v4504
    %4506 = vmatmul.f32.gmra.mxu0 %v4377
    %v4507 = vpop.f32.mrf.mxu0
    %v4508 = vadd.f32 0.0, %v4507
    %4509 = vmatmul.f32.gmra.mxu0 %v4378
    %v4510 = vpop.f32.mrf.mxu0
    %v4511 = vadd.f32 0.0, %v4510
    %4512 = vmatmul.f32.gmra.mxu0 %v4379
    %v4513 = vpop.f32.mrf.mxu0
    %v4514 = vadd.f32 0.0, %v4513
    %4515 = vmatmul.f32.gmra.mxu0 %v4380
    %v4516 = vpop.f32.mrf.mxu0
    %v4517 = vadd.f32 0.0, %v4516
    %4518 = vmatmul.f32.gmra.mxu0 %v4381
    %v4519 = vpop.f32.mrf.mxu0
    %v4520 = vadd.f32 0.0, %v4519
    %4521 = vmatmul.f32.gmra.mxu0 %v4382
    %v4522 = vpop.f32.mrf.mxu0
    %v4523 = vadd.f32 0.0, %v4522
    %4524 = vmatmul.f32.gmra.mxu0 %v4383
    %v4525 = vpop.f32.mrf.mxu0
    %v4526 = vadd.f32 0.0, %v4525
    %4527 = vmatmul.f32.gmra.mxu0 %v4384
    %v4528 = vpop.f32.mrf.mxu0
    %v4529 = vadd.f32 0.0, %v4528
    %4530 = vdwg.mxu0
    %v4531 = vsub.f32 %v4450, %v4484
    %v4532 = vsub.f32 %v4451, %v4487
    %v4533 = vsub.f32 %v4452, %v4490
    %v4534 = vsub.f32 %v4453, %v4493
    %v4535 = vsub.f32 %v4454, %v4496
    %v4536 = vsub.f32 %v4455, %v4499
    %v4537 = vsub.f32 %v4456, %v4502
    %v4538 = vsub.f32 %v4457, %v4505
    %v4539 = vsub.f32 %v4458, %v4508
    %v4540 = vsub.f32 %v4459, %v4511
    %v4541 = vsub.f32 %v4460, %v4514
    %v4542 = vsub.f32 %v4461, %v4517
    %v4543 = vsub.f32 %v4462, %v4520
    %v4544 = vsub.f32 %v4463, %v4523
    %v4545 = vsub.f32 %v4464, %v4526
    %v4546 = vsub.f32 %v4465, %v4529
    %4547 = vmatpush.msra.mxu0 %v4546
    %4548 = vmatpush.msra.mxu0 %v4545
    %4549 = vmatpush.msra.mxu0 %v4544
    %4550 = vmatpush.msra.mxu0 %v4543
    %4551 = vmatpush.msra.mxu0 %v4542
    %4552 = vmatpush.msra.mxu0 %v4541
    %4553 = vmatpush.msra.mxu0 %v4540
    %4554 = vmatpush.msra.mxu0 %v4539
    %4555 = vmatpush.msra.mxu0 %v4538
    %4556 = vmatpush.msra.mxu0 %v4537
    %4557 = vmatpush.msra.mxu0 %v4536
    %4558 = vmatpush.msra.mxu0 %v4535
    %4559 = vmatpush.msra.mxu0 %v4534
    %4560 = vmatpush.msra.mxu0 %v4533
    %4561 = vmatpush.msra.mxu0 %v4532
    %4562 = vmatpush.msra.mxu0 %v4531
    %4563 = vmatmul.f32.gmra.mxu0 %v3431
    %v4564 = vpop.f32.mrf.mxu0
    %v4565 = vadd.f32 0.0, %v4564
    %4566 = vmatmul.f32.gmra.mxu0 %v3432
    %v4567 = vpop.f32.mrf.mxu0
    %v4568 = vadd.f32 0.0, %v4567
    %4569 = vmatmul.f32.gmra.mxu0 %v3433
    %v4570 = vpop.f32.mrf.mxu0
    %v4571 = vadd.f32 0.0, %v4570
    %4572 = vmatmul.f32.gmra.mxu0 %v3434
    %v4573 = vpop.f32.mrf.mxu0
    %v4574 = vadd.f32 0.0, %v4573
    %4575 = vmatmul.f32.gmra.mxu0 %v3435
    %v4576 = vpop.f32.mrf.mxu0
    %v4577 = vadd.f32 0.0, %v4576
    %4578 = vmatmul.f32.gmra.mxu0 %v3436
    %v4579 = vpop.f32.mrf.mxu0
    %v4580 = vadd.f32 0.0, %v4579
    %4581 = vmatmul.f32.gmra.mxu0 %v3437
    %v4582 = vpop.f32.mrf.mxu0
    %v4583 = vadd.f32 0.0, %v4582
    %4584 = vmatmul.f32.gmra.mxu0 %v3438
    %v4585 = vpop.f32.mrf.mxu0
    %v4586 = vadd.f32 0.0, %v4585
    %4587 = vmatmul.f32.gmra.mxu0 %v3439
    %v4588 = vpop.f32.mrf.mxu0
    %v4589 = vadd.f32 0.0, %v4588
    %4590 = vmatmul.f32.gmra.mxu0 %v3440
    %v4591 = vpop.f32.mrf.mxu0
    %v4592 = vadd.f32 0.0, %v4591
    %4593 = vmatmul.f32.gmra.mxu0 %v3441
    %v4594 = vpop.f32.mrf.mxu0
    %v4595 = vadd.f32 0.0, %v4594
    %4596 = vmatmul.f32.gmra.mxu0 %v3442
    %v4597 = vpop.f32.mrf.mxu0
    %v4598 = vadd.f32 0.0, %v4597
    %4599 = vmatmul.f32.gmra.mxu0 %v3443
    %v4600 = vpop.f32.mrf.mxu0
    %v4601 = vadd.f32 0.0, %v4600
    %4602 = vmatmul.f32.gmra.mxu0 %v3444
    %v4603 = vpop.f32.mrf.mxu0
    %v4604 = vadd.f32 0.0, %v4603
    %4605 = vmatmul.f32.gmra.mxu0 %v3445
    %v4606 = vpop.f32.mrf.mxu0
    %v4607 = vadd.f32 0.0, %v4606
    %4608 = vmatmul.f32.gmra.mxu0 %v3446
    %v4609 = vpop.f32.mrf.mxu0
    %v4610 = vadd.f32 0.0, %v4609
    %4611 = vdwg.mxu0
    %v4612 = vmul.f32 %v4531, 2.0
    %v4613 = vmul.f32 %v4532, 2.0
    %v4614 = vmul.f32 %v4533, 2.0
    %v4615 = vmul.f32 %v4534, 2.0
    %v4616 = vmul.f32 %v4535, 2.0
    %v4617 = vmul.f32 %v4536, 2.0
    %v4618 = vmul.f32 %v4537, 2.0
    %v4619 = vmul.f32 %v4538, 2.0
    %v4620 = vmul.f32 %v4539, 2.0
    %v4621 = vmul.f32 %v4540, 2.0
    %v4622 = vmul.f32 %v4541, 2.0
    %v4623 = vmul.f32 %v4542, 2.0
    %v4624 = vmul.f32 %v4543, 2.0
    %v4625 = vmul.f32 %v4544, 2.0
    %v4626 = vmul.f32 %v4545, 2.0
    %v4627 = vmul.f32 %v4546, 2.0
    %4628 = vmatpush.msra.mxu0 %v4610
    %4629 = vmatpush.msra.mxu0 %v4607
    %4630 = vmatpush.msra.mxu0 %v4604
    %4631 = vmatpush.msra.mxu0 %v4601
    %4632 = vmatpush.msra.mxu0 %v4598
    %4633 = vmatpush.msra.mxu0 %v4595
    %4634 = vmatpush.msra.mxu0 %v4592
    %4635 = vmatpush.msra.mxu0 %v4589
    %4636 = vmatpush.msra.mxu0 %v4586
    %4637 = vmatpush.msra.mxu0 %v4583
    %4638 = vmatpush.msra.mxu0 %v4580
    %4639 = vmatpush.msra.mxu0 %v4577
    %4640 = vmatpush.msra.mxu0 %v4574
    %4641 = vmatpush.msra.mxu0 %v4571
    %4642 = vmatpush.msra.mxu0 %v4568
    %4643 = vmatpush.msra.mxu0 %v4565
    %4644 = vmatmul.f32.gmra.mxu0 %v4531
    %v4645 = vpop.f32.mrf.mxu0
    %v4646 = vadd.f32 0.0, %v4645
    %4647 = vmatmul.f32.gmra.mxu0 %v4532
    %v4648 = vpop.f32.mrf.mxu0
    %v4649 = vadd.f32 0.0, %v4648
    %4650 = vmatmul.f32.gmra.mxu0 %v4533
    %v4651 = vpop.f32.mrf.mxu0
    %v4652 = vadd.f32 0.0, %v4651
    %4653 = vmatmul.f32.gmra.mxu0 %v4534
    %v4654 = vpop.f32.mrf.mxu0
    %v4655 = vadd.f32 0.0, %v4654
    %4656 = vmatmul.f32.gmra.mxu0 %v4535
    %v4657 = vpop.f32.mrf.mxu0
    %v4658 = vadd.f32 0.0, %v4657
    %4659 = vmatmul.f32.gmra.mxu0 %v4536
    %v4660 = vpop.f32.mrf.mxu0
    %v4661 = vadd.f32 0.0, %v4660
    %4662 = vmatmul.f32.gmra.mxu0 %v4537
    %v4663 = vpop.f32.mrf.mxu0
    %v4664 = vadd.f32 0.0, %v4663
    %4665 = vmatmul.f32.gmra.mxu0 %v4538
    %v4666 = vpop.f32.mrf.mxu0
    %v4667 = vadd.f32 0.0, %v4666
    %4668 = vmatmul.f32.gmra.mxu0 %v4539
    %v4669 = vpop.f32.mrf.mxu0
    %v4670 = vadd.f32 0.0, %v4669
    %4671 = vmatmul.f32.gmra.mxu0 %v4540
    %v4672 = vpop.f32.mrf.mxu0
    %v4673 = vadd.f32 0.0, %v4672
    %4674 = vmatmul.f32.gmra.mxu0 %v4541
    %v4675 = vpop.f32.mrf.mxu0
    %v4676 = vadd.f32 0.0, %v4675
    %4677 = vmatmul.f32.gmra.mxu0 %v4542
    %v4678 = vpop.f32.mrf.mxu0
    %v4679 = vadd.f32 0.0, %v4678
    %4680 = vmatmul.f32.gmra.mxu0 %v4543
    %v4681 = vpop.f32.mrf.mxu0
    %v4682 = vadd.f32 0.0, %v4681
    %4683 = vmatmul.f32.gmra.mxu0 %v4544
    %v4684 = vpop.f32.mrf.mxu0
    %v4685 = vadd.f32 0.0, %v4684
    %4686 = vmatmul.f32.gmra.mxu0 %v4545
    %v4687 = vpop.f32.mrf.mxu0
    %v4688 = vadd.f32 0.0, %v4687
    %4689 = vmatmul.f32.gmra.mxu0 %v4546
    %v4690 = vpop.f32.mrf.mxu0
    %v4691 = vadd.f32 0.0, %v4690
    %4692 = vdwg.mxu0
    %v4693 = vsub.f32 %v4612, %v4646
    %v4694 = vsub.f32 %v4613, %v4649
    %v4695 = vsub.f32 %v4614, %v4652
    %v4696 = vsub.f32 %v4615, %v4655
    %v4697 = vsub.f32 %v4616, %v4658
    %v4698 = vsub.f32 %v4617, %v4661
    %v4699 = vsub.f32 %v4618, %v4664
    %v4700 = vsub.f32 %v4619, %v4667
    %v4701 = vsub.f32 %v4620, %v4670
    %v4702 = vsub.f32 %v4621, %v4673
    %v4703 = vsub.f32 %v4622, %v4676
    %v4704 = vsub.f32 %v4623, %v4679
    %v4705 = vsub.f32 %v4624, %v4682
    %v4706 = vsub.f32 %v4625, %v4685
    %v4707 = vsub.f32 %v4626, %v4688
    %v4708 = vsub.f32 %v4627, %v4691
    %4709 = vmatpush.msra.mxu0 %v4708
    %4710 = vmatpush.msra.mxu0 %v4707
    %4711 = vmatpush.msra.mxu0 %v4706
    %4712 = vmatpush.msra.mxu0 %v4705
    %4713 = vmatpush.msra.mxu0 %v4704
    %4714 = vmatpush.msra.mxu0 %v4703
    %4715 = vmatpush.msra.mxu0 %v4702
    %4716 = vmatpush.msra.mxu0 %v4701
    %4717 = vmatpush.msra.mxu0 %v4700
    %4718 = vmatpush.msra.mxu0 %v4699
    %4719 = vmatpush.msra.mxu0 %v4698
    %4720 = vmatpush.msra.mxu0 %v4697
    %4721 = vmatpush.msra.mxu0 %v4696
    %4722 = vmatpush.msra.mxu0 %v4695
    %4723 = vmatpush.msra.mxu0 %v4694
    %4724 = vmatpush.msra.mxu0 %v4693
    %4725 = vmatmul.f32.gmra.mxu0 %v3431
    %v4726 = vpop.f32.mrf.mxu0
    %v4727 = vadd.f32 0.0, %v4726
    %4728 = vmatmul.f32.gmra.mxu0 %v3432
    %v4729 = vpop.f32.mrf.mxu0
    %v4730 = vadd.f32 0.0, %v4729
    %4731 = vmatmul.f32.gmra.mxu0 %v3433
    %v4732 = vpop.f32.mrf.mxu0
    %v4733 = vadd.f32 0.0, %v4732
    %4734 = vmatmul.f32.gmra.mxu0 %v3434
    %v4735 = vpop.f32.mrf.mxu0
    %v4736 = vadd.f32 0.0, %v4735
    %4737 = vmatmul.f32.gmra.mxu0 %v3435
    %v4738 = vpop.f32.mrf.mxu0
    %v4739 = vadd.f32 0.0, %v4738
    %4740 = vmatmul.f32.gmra.mxu0 %v3436
    %v4741 = vpop.f32.mrf.mxu0
    %v4742 = vadd.f32 0.0, %v4741
    %4743 = vmatmul.f32.gmra.mxu0 %v3437
    %v4744 = vpop.f32.mrf.mxu0
    %v4745 = vadd.f32 0.0, %v4744
    %4746 = vmatmul.f32.gmra.mxu0 %v3438
    %v4747 = vpop.f32.mrf.mxu0
    %v4748 = vadd.f32 0.0, %v4747
    %4749 = vmatmul.f32.gmra.mxu0 %v3439
    %v4750 = vpop.f32.mrf.mxu0
    %v4751 = vadd.f32 0.0, %v4750
    %4752 = vmatmul.f32.gmra.mxu0 %v3440
    %v4753 = vpop.f32.mrf.mxu0
    %v4754 = vadd.f32 0.0, %v4753
    %4755 = vmatmul.f32.gmra.mxu0 %v3441
    %v4756 = vpop.f32.mrf.mxu0
    %v4757 = vadd.f32 0.0, %v4756
    %4758 = vmatmul.f32.gmra.mxu0 %v3442
    %v4759 = vpop.f32.mrf.mxu0
    %v4760 = vadd.f32 0.0, %v4759
    %4761 = vmatmul.f32.gmra.mxu0 %v3443
    %v4762 = vpop.f32.mrf.mxu0
    %v4763 = vadd.f32 0.0, %v4762
    %4764 = vmatmul.f32.gmra.mxu0 %v3444
    %v4765 = vpop.f32.mrf.mxu0
    %v4766 = vadd.f32 0.0, %v4765
    %4767 = vmatmul.f32.gmra.mxu0 %v3445
    %v4768 = vpop.f32.mrf.mxu0
    %v4769 = vadd.f32 0.0, %v4768
    %4770 = vmatmul.f32.gmra.mxu0 %v3446
    %v4771 = vpop.f32.mrf.mxu0
    %v4772 = vadd.f32 0.0, %v4771
    %4773 = vdwg.mxu0
    %v4774 = vmul.f32 %v4693, 2.0
    %v4775 = vmul.f32 %v4694, 2.0
    %v4776 = vmul.f32 %v4695, 2.0
    %v4777 = vmul.f32 %v4696, 2.0
    %v4778 = vmul.f32 %v4697, 2.0
    %v4779 = vmul.f32 %v4698, 2.0
    %v4780 = vmul.f32 %v4699, 2.0
    %v4781 = vmul.f32 %v4700, 2.0
    %v4782 = vmul.f32 %v4701, 2.0
    %v4783 = vmul.f32 %v4702, 2.0
    %v4784 = vmul.f32 %v4703, 2.0
    %v4785 = vmul.f32 %v4704, 2.0
    %v4786 = vmul.f32 %v4705, 2.0
    %v4787 = vmul.f32 %v4706, 2.0
    %v4788 = vmul.f32 %v4707, 2.0
    %v4789 = vmul.f32 %v4708, 2.0
    %4790 = vmatpush.msra.mxu0 %v4772
    %4791 = vmatpush.msra.mxu0 %v4769
    %4792 = vmatpush.msra.mxu0 %v4766
    %4793 = vmatpush.msra.mxu0 %v4763
    %4794 = vmatpush.msra.mxu0 %v4760
    %4795 = vmatpush.msra.mxu0 %v4757
    %4796 = vmatpush.msra.mxu0 %v4754
    %4797 = vmatpush.msra.mxu0 %v4751
    %4798 = vmatpush.msra.mxu0 %v4748
    %4799 = vmatpush.msra.mxu0 %v4745
    %4800 = vmatpush.msra.mxu0 %v4742
    %4801 = vmatpush.msra.mxu0 %v4739
    %4802 = vmatpush.msra.mxu0 %v4736
    %4803 = vmatpush.msra.mxu0 %v4733
    %4804 = vmatpush.msra.mxu0 %v4730
    %4805 = vmatpush.msra.mxu0 %v4727
    %4806 = vmatmul.f32.gmra.mxu0 %v4693
    %v4807 = vpop.f32.mrf.mxu0
    %v4808 = vadd.f32 0.0, %v4807
    %4809 = vmatmul.f32.gmra.mxu0 %v4694
    %v4810 = vpop.f32.mrf.mxu0
    %v4811 = vadd.f32 0.0, %v4810
    %4812 = vmatmul.f32.gmra.mxu0 %v4695
    %v4813 = vpop.f32.mrf.mxu0
    %v4814 = vadd.f32 0.0, %v4813
    %4815 = vmatmul.f32.gmra.mxu0 %v4696
    %v4816 = vpop.f32.mrf.mxu0
    %v4817 = vadd.f32 0.0, %v4816
    %4818 = vmatmul.f32.gmra.mxu0 %v4697
    %v4819 = vpop.f32.mrf.mxu0
    %v4820 = vadd.f32 0.0, %v4819
    %4821 = vmatmul.f32.gmra.mxu0 %v4698
    %v4822 = vpop.f32.mrf.mxu0
    %v4823 = vadd.f32 0.0, %v4822
    %4824 = vmatmul.f32.gmra.mxu0 %v4699
    %v4825 = vpop.f32.mrf.mxu0
    %v4826 = vadd.f32 0.0, %v4825
    %4827 = vmatmul.f32.gmra.mxu0 %v4700
    %v4828 = vpop.f32.mrf.mxu0
    %v4829 = vadd.f32 0.0, %v4828
    %4830 = vmatmul.f32.gmra.mxu0 %v4701
    %v4831 = vpop.f32.mrf.mxu0
    %v4832 = vadd.f32 0.0, %v4831
    %4833 = vmatmul.f32.gmra.mxu0 %v4702
    %v4834 = vpop.f32.mrf.mxu0
    %v4835 = vadd.f32 0.0, %v4834
    %4836 = vmatmul.f32.gmra.mxu0 %v4703
    %v4837 = vpop.f32.mrf.mxu0
    %v4838 = vadd.f32 0.0, %v4837
    %4839 = vmatmul.f32.gmra.mxu0 %v4704
    %v4840 = vpop.f32.mrf.mxu0
    %v4841 = vadd.f32 0.0, %v4840
    %4842 = vmatmul.f32.gmra.mxu0 %v4705
    %v4843 = vpop.f32.mrf.mxu0
    %v4844 = vadd.f32 0.0, %v4843
    %4845 = vmatmul.f32.gmra.mxu0 %v4706
    %v4846 = vpop.f32.mrf.mxu0
    %v4847 = vadd.f32 0.0, %v4846
    %4848 = vmatmul.f32.gmra.mxu0 %v4707
    %v4849 = vpop.f32.mrf.mxu0
    %v4850 = vadd.f32 0.0, %v4849
    %4851 = vmatmul.f32.gmra.mxu0 %v4708
    %v4852 = vpop.f32.mrf.mxu0
    %v4853 = vadd.f32 0.0, %v4852
    %4854 = vdwg.mxu0
    %v4855 = vsub.f32 %v4774, %v4808
    %v4856 = vsub.f32 %v4775, %v4811
    %v4857 = vsub.f32 %v4776, %v4814
    %v4858 = vsub.f32 %v4777, %v4817
    %v4859 = vsub.f32 %v4778, %v4820
    %v4860 = vsub.f32 %v4779, %v4823
    %v4861 = vsub.f32 %v4780, %v4826
    %v4862 = vsub.f32 %v4781, %v4829
    %v4863 = vsub.f32 %v4782, %v4832
    %v4864 = vsub.f32 %v4783, %v4835
    %v4865 = vsub.f32 %v4784, %v4838
    %v4866 = vsub.f32 %v4785, %v4841
    %v4867 = vsub.f32 %v4786, %v4844
    %v4868 = vsub.f32 %v4787, %v4847
    %v4869 = vsub.f32 %v4788, %v4850
    %v4870 = vsub.f32 %v4789, %v4853
    %4871 = vmatpush.msra.mxu0 %v4870
    %4872 = vmatpush.msra.mxu0 %v4869
    %4873 = vmatpush.msra.mxu0 %v4868
    %4874 = vmatpush.msra.mxu0 %v4867
    %4875 = vmatpush.msra.mxu0 %v4866
    %4876 = vmatpush.msra.mxu0 %v4865
    %4877 = vmatpush.msra.mxu0 %v4864
    %4878 = vmatpush.msra.mxu0 %v4863
    %4879 = vmatpush.msra.mxu0 %v4862
    %4880 = vmatpush.msra.mxu0 %v4861
    %4881 = vmatpush.msra.mxu0 %v4860
    %4882 = vmatpush.msra.mxu0 %v4859
    %4883 = vmatpush.msra.mxu0 %v4858
    %4884 = vmatpush.msra.mxu0 %v4857
    %4885 = vmatpush.msra.mxu0 %v4856
    %4886 = vmatpush.msra.mxu0 %v4855
    %4887 = vmatmul.f32.gmra.mxu0 %v3431
    %v4888 = vpop.f32.mrf.mxu0
    %v4889 = vadd.f32 0.0, %v4888
    %4890 = vmatmul.f32.gmra.mxu0 %v3432
    %v4891 = vpop.f32.mrf.mxu0
    %v4892 = vadd.f32 0.0, %v4891
    %4893 = vmatmul.f32.gmra.mxu0 %v3433
    %v4894 = vpop.f32.mrf.mxu0
    %v4895 = vadd.f32 0.0, %v4894
    %4896 = vmatmul.f32.gmra.mxu0 %v3434
    %v4897 = vpop.f32.mrf.mxu0
    %v4898 = vadd.f32 0.0, %v4897
    %4899 = vmatmul.f32.gmra.mxu0 %v3435
    %v4900 = vpop.f32.mrf.mxu0
    %v4901 = vadd.f32 0.0, %v4900
    %4902 = vmatmul.f32.gmra.mxu0 %v3436
    %v4903 = vpop.f32.mrf.mxu0
    %v4904 = vadd.f32 0.0, %v4903
    %4905 = vmatmul.f32.gmra.mxu0 %v3437
    %v4906 = vpop.f32.mrf.mxu0
    %v4907 = vadd.f32 0.0, %v4906
    %4908 = vmatmul.f32.gmra.mxu0 %v3438
    %v4909 = vpop.f32.mrf.mxu0
    %v4910 = vadd.f32 0.0, %v4909
    %4911 = vmatmul.f32.gmra.mxu0 %v3439
    %v4912 = vpop.f32.mrf.mxu0
    %v4913 = vadd.f32 0.0, %v4912
    %4914 = vmatmul.f32.gmra.mxu0 %v3440
    %v4915 = vpop.f32.mrf.mxu0
    %v4916 = vadd.f32 0.0, %v4915
    %4917 = vmatmul.f32.gmra.mxu0 %v3441
    %v4918 = vpop.f32.mrf.mxu0
    %v4919 = vadd.f32 0.0, %v4918
    %4920 = vmatmul.f32.gmra.mxu0 %v3442
    %v4921 = vpop.f32.mrf.mxu0
    %v4922 = vadd.f32 0.0, %v4921
    %4923 = vmatmul.f32.gmra.mxu0 %v3443
    %v4924 = vpop.f32.mrf.mxu0
    %v4925 = vadd.f32 0.0, %v4924
    %4926 = vmatmul.f32.gmra.mxu0 %v3444
    %v4927 = vpop.f32.mrf.mxu0
    %v4928 = vadd.f32 0.0, %v4927
    %4929 = vmatmul.f32.gmra.mxu0 %v3445
    %v4930 = vpop.f32.mrf.mxu0
    %v4931 = vadd.f32 0.0, %v4930
    %4932 = vmatmul.f32.gmra.mxu0 %v3446
    %v4933 = vpop.f32.mrf.mxu0
    %v4934 = vadd.f32 0.0, %v4933
    %4935 = vdwg.mxu0
    %v4936 = vmul.f32 %v4855, 2.0
    %v4937 = vmul.f32 %v4856, 2.0
    %v4938 = vmul.f32 %v4857, 2.0
    %v4939 = vmul.f32 %v4858, 2.0
    %v4940 = vmul.f32 %v4859, 2.0
    %v4941 = vmul.f32 %v4860, 2.0
    %v4942 = vmul.f32 %v4861, 2.0
    %v4943 = vmul.f32 %v4862, 2.0
    %v4944 = vmul.f32 %v4863, 2.0
    %v4945 = vmul.f32 %v4864, 2.0
    %v4946 = vmul.f32 %v4865, 2.0
    %v4947 = vmul.f32 %v4866, 2.0
    %v4948 = vmul.f32 %v4867, 2.0
    %v4949 = vmul.f32 %v4868, 2.0
    %v4950 = vmul.f32 %v4869, 2.0
    %v4951 = vmul.f32 %v4870, 2.0
    %4952 = vmatpush.msra.mxu0 %v4934
    %4953 = vmatpush.msra.mxu0 %v4931
    %4954 = vmatpush.msra.mxu0 %v4928
    %4955 = vmatpush.msra.mxu0 %v4925
    %4956 = vmatpush.msra.mxu0 %v4922
    %4957 = vmatpush.msra.mxu0 %v4919
    %4958 = vmatpush.msra.mxu0 %v4916
    %4959 = vmatpush.msra.mxu0 %v4913
    %4960 = vmatpush.msra.mxu0 %v4910
    %4961 = vmatpush.msra.mxu0 %v4907
    %4962 = vmatpush.msra.mxu0 %v4904
    %4963 = vmatpush.msra.mxu0 %v4901
    %4964 = vmatpush.msra.mxu0 %v4898
    %4965 = vmatpush.msra.mxu0 %v4895
    %4966 = vmatpush.msra.mxu0 %v4892
    %4967 = vmatpush.msra.mxu0 %v4889
    %4968 = vmatmul.f32.gmra.mxu0 %v4855
    %v4969 = vpop.f32.mrf.mxu0
    %v4970 = vadd.f32 0.0, %v4969
    %4971 = vmatmul.f32.gmra.mxu0 %v4856
    %v4972 = vpop.f32.mrf.mxu0
    %v4973 = vadd.f32 0.0, %v4972
    %4974 = vmatmul.f32.gmra.mxu0 %v4857
    %v4975 = vpop.f32.mrf.mxu0
    %v4976 = vadd.f32 0.0, %v4975
    %4977 = vmatmul.f32.gmra.mxu0 %v4858
    %v4978 = vpop.f32.mrf.mxu0
    %v4979 = vadd.f32 0.0, %v4978
    %4980 = vmatmul.f32.gmra.mxu0 %v4859
    %v4981 = vpop.f32.mrf.mxu0
    %v4982 = vadd.f32 0.0, %v4981
    %4983 = vmatmul.f32.gmra.mxu0 %v4860
    %v4984 = vpop.f32.mrf.mxu0
    %v4985 = vadd.f32 0.0, %v4984
    %4986 = vmatmul.f32.gmra.mxu0 %v4861
    %v4987 = vpop.f32.mrf.mxu0
    %v4988 = vadd.f32 0.0, %v4987
    %4989 = vmatmul.f32.gmra.mxu0 %v4862
    %v4990 = vpop.f32.mrf.mxu0
    %v4991 = vadd.f32 0.0, %v4990
    %4992 = vmatmul.f32.gmra.mxu0 %v4863
    %v4993 = vpop.f32.mrf.mxu0
    %v4994 = vadd.f32 0.0, %v4993
    %4995 = vmatmul.f32.gmra.mxu0 %v4864
    %v4996 = vpop.f32.mrf.mxu0
    %v4997 = vadd.f32 0.0, %v4996
    %4998 = vmatmul.f32.gmra.mxu0 %v4865
    %v4999 = vpop.f32.mrf.mxu0
    %v5000 = vadd.f32 0.0, %v4999
    %5001 = vmatmul.f32.gmra.mxu0 %v4866
    %v5002 = vpop.f32.mrf.mxu0
    %v5003 = vadd.f32 0.0, %v5002
    %5004 = vmatmul.f32.gmra.mxu0 %v4867
    %v5005 = vpop.f32.mrf.mxu0
    %v5006 = vadd.f32 0.0, %v5005
    %5007 = vmatmul.f32.gmra.mxu0 %v4868
    %v5008 = vpop.f32.mrf.mxu0
    %v5009 = vadd.f32 0.0, %v5008
    %5010 = vmatmul.f32.gmra.mxu0 %v4869
    %v5011 = vpop.f32.mrf.mxu0
    %v5012 = vadd.f32 0.0, %v5011
    %5013 = vmatmul.f32.gmra.mxu0 %v4870
    %v5014 = vpop.f32.mrf.mxu0
    %v5015 = vadd.f32 0.0, %v5014
    %5016 = vdwg.mxu0
    %v5017 = vsub.f32 %v4936, %v4970
    %v5018 = vsub.f32 %v4937, %v4973
    %v5019 = vsub.f32 %v4938, %v4976
    %v5020 = vsub.f32 %v4939, %v4979
    %v5021 = vsub.f32 %v4940, %v4982
    %v5022 = vsub.f32 %v4941, %v4985
    %v5023 = vsub.f32 %v4942, %v4988
    %v5024 = vsub.f32 %v4943, %v4991
    %v5025 = vsub.f32 %v4944, %v4994
    %v5026 = vsub.f32 %v4945, %v4997
    %v5027 = vsub.f32 %v4946, %v5000
    %v5028 = vsub.f32 %v4947, %v5003
    %v5029 = vsub.f32 %v4948, %v5006
    %v5030 = vsub.f32 %v4949, %v5009
    %v5031 = vsub.f32 %v4950, %v5012
    %v5032 = vsub.f32 %v4951, %v5015
    %5033 = vmatpush.msra.mxu0 %v5032
    %5034 = vmatpush.msra.mxu0 %v5031
    %5035 = vmatpush.msra.mxu0 %v5030
    %5036 = vmatpush.msra.mxu0 %v5029
    %5037 = vmatpush.msra.mxu0 %v5028
    %5038 = vmatpush.msra.mxu0 %v5027
    %5039 = vmatpush.msra.mxu0 %v5026
    %5040 = vmatpush.msra.mxu0 %v5025
    %5041 = vmatpush.msra.mxu0 %v5024
    %5042 = vmatpush.msra.mxu0 %v5023
    %5043 = vmatpush.msra.mxu0 %v5022
    %5044 = vmatpush.msra.mxu0 %v5021
    %5045 = vmatpush.msra.mxu0 %v5020
    %5046 = vmatpush.msra.mxu0 %v5019
    %5047 = vmatpush.msra.mxu0 %v5018
    %5048 = vmatpush.msra.mxu0 %v5017
    %5049 = vmatmul.f32.gmra.mxu0 %v3431
    %v5050 = vpop.f32.mrf.mxu0
    %v5051 = vadd.f32 0.0, %v5050
    %5052 = vmatmul.f32.gmra.mxu0 %v3432
    %v5053 = vpop.f32.mrf.mxu0
    %v5054 = vadd.f32 0.0, %v5053
    %5055 = vmatmul.f32.gmra.mxu0 %v3433
    %v5056 = vpop.f32.mrf.mxu0
    %v5057 = vadd.f32 0.0, %v5056
    %5058 = vmatmul.f32.gmra.mxu0 %v3434
    %v5059 = vpop.f32.mrf.mxu0
    %v5060 = vadd.f32 0.0, %v5059
    %5061 = vmatmul.f32.gmra.mxu0 %v3435
    %v5062 = vpop.f32.mrf.mxu0
    %v5063 = vadd.f32 0.0, %v5062
    %5064 = vmatmul.f32.gmra.mxu0 %v3436
    %v5065 = vpop.f32.mrf.mxu0
    %v5066 = vadd.f32 0.0, %v5065
    %5067 = vmatmul.f32.gmra.mxu0 %v3437
    %v5068 = vpop.f32.mrf.mxu0
    %v5069 = vadd.f32 0.0, %v5068
    %5070 = vmatmul.f32.gmra.mxu0 %v3438
    %v5071 = vpop.f32.mrf.mxu0
    %v5072 = vadd.f32 0.0, %v5071
    %5073 = vmatmul.f32.gmra.mxu0 %v3439
    %v5074 = vpop.f32.mrf.mxu0
    %v5075 = vadd.f32 0.0, %v5074
    %5076 = vmatmul.f32.gmra.mxu0 %v3440
    %v5077 = vpop.f32.mrf.mxu0
    %v5078 = vadd.f32 0.0, %v5077
    %5079 = vmatmul.f32.gmra.mxu0 %v3441
    %v5080 = vpop.f32.mrf.mxu0
    %v5081 = vadd.f32 0.0, %v5080
    %5082 = vmatmul.f32.gmra.mxu0 %v3442
    %v5083 = vpop.f32.mrf.mxu0
    %v5084 = vadd.f32 0.0, %v5083
    %5085 = vmatmul.f32.gmra.mxu0 %v3443
    %v5086 = vpop.f32.mrf.mxu0
    %v5087 = vadd.f32 0.0, %v5086
    %5088 = vmatmul.f32.gmra.mxu0 %v3444
    %v5089 = vpop.f32.mrf.mxu0
    %v5090 = vadd.f32 0.0, %v5089
    %5091 = vmatmul.f32.gmra.mxu0 %v3445
    %v5092 = vpop.f32.mrf.mxu0
    %v5093 = vadd.f32 0.0, %v5092
    %5094 = vmatmul.f32.gmra.mxu0 %v3446
    %v5095 = vpop.f32.mrf.mxu0
    %v5096 = vadd.f32 0.0, %v5095
    %5097 = vdwg.mxu0
    %v5098 = vmul.f32 %v5017, 2.0
    %v5099 = vmul.f32 %v5018, 2.0
    %v5100 = vmul.f32 %v5019, 2.0
    %v5101 = vmul.f32 %v5020, 2.0
    %v5102 = vmul.f32 %v5021, 2.0
    %v5103 = vmul.f32 %v5022, 2.0
    %v5104 = vmul.f32 %v5023, 2.0
    %v5105 = vmul.f32 %v5024, 2.0
    %v5106 = vmul.f32 %v5025, 2.0
    %v5107 = vmul.f32 %v5026, 2.0
    %v5108 = vmul.f32 %v5027, 2.0
    %v5109 = vmul.f32 %v5028, 2.0
    %v5110 = vmul.f32 %v5029, 2.0
    %v5111 = vmul.f32 %v5030, 2.0
    %v5112 = vmul.f32 %v5031, 2.0
    %v5113 = vmul.f32 %v5032, 2.0
    %5114 = vmatpush.msra.mxu0 %v5096
    %5115 = vmatpush.msra.mxu0 %v5093
    %5116 = vmatpush.msra.mxu0 %v5090
    %5117 = vmatpush.msra.mxu0 %v5087
    %5118 = vmatpush.msra.mxu0 %v5084
    %5119 = vmatpush.msra.mxu0 %v5081
    %5120 = vmatpush.msra.mxu0 %v5078
    %5121 = vmatpush.msra.mxu0 %v5075
    %5122 = vmatpush.msra.mxu0 %v5072
    %5123 = vmatpush.msra.mxu0 %v5069
    %5124 = vmatpush.msra.mxu0 %v5066
    %5125 = vmatpush.msra.mxu0 %v5063
    %5126 = vmatpush.msra.mxu0 %v5060
    %5127 = vmatpush.msra.mxu0 %v5057
    %5128 = vmatpush.msra.mxu0 %v5054
    %5129 = vmatpush.msra.mxu0 %v5051
    %5130 = vmatmul.f32.gmra.mxu0 %v5017
    %v5131 = vpop.f32.mrf.mxu0
    %v5132 = vadd.f32 0.0, %v5131
    %5133 = vmatmul.f32.gmra.mxu0 %v5018
    %v5134 = vpop.f32.mrf.mxu0
    %v5135 = vadd.f32 0.0, %v5134
    %5136 = vmatmul.f32.gmra.mxu0 %v5019
    %v5137 = vpop.f32.mrf.mxu0
    %v5138 = vadd.f32 0.0, %v5137
    %5139 = vmatmul.f32.gmra.mxu0 %v5020
    %v5140 = vpop.f32.mrf.mxu0
    %v5141 = vadd.f32 0.0, %v5140
    %5142 = vmatmul.f32.gmra.mxu0 %v5021
    %v5143 = vpop.f32.mrf.mxu0
    %v5144 = vadd.f32 0.0, %v5143
    %5145 = vmatmul.f32.gmra.mxu0 %v5022
    %v5146 = vpop.f32.mrf.mxu0
    %v5147 = vadd.f32 0.0, %v5146
    %5148 = vmatmul.f32.gmra.mxu0 %v5023
    %v5149 = vpop.f32.mrf.mxu0
    %v5150 = vadd.f32 0.0, %v5149
    %5151 = vmatmul.f32.gmra.mxu0 %v5024
    %v5152 = vpop.f32.mrf.mxu0
    %v5153 = vadd.f32 0.0, %v5152
    %5154 = vmatmul.f32.gmra.mxu0 %v5025
    %v5155 = vpop.f32.mrf.mxu0
    %v5156 = vadd.f32 0.0, %v5155
    %5157 = vmatmul.f32.gmra.mxu0 %v5026
    %v5158 = vpop.f32.mrf.mxu0
    %v5159 = vadd.f32 0.0, %v5158
    %5160 = vmatmul.f32.gmra.mxu0 %v5027
    %v5161 = vpop.f32.mrf.mxu0
    %v5162 = vadd.f32 0.0, %v5161
    %5163 = vmatmul.f32.gmra.mxu0 %v5028
    %v5164 = vpop.f32.mrf.mxu0
    %v5165 = vadd.f32 0.0, %v5164
    %5166 = vmatmul.f32.gmra.mxu0 %v5029
    %v5167 = vpop.f32.mrf.mxu0
    %v5168 = vadd.f32 0.0, %v5167
    %5169 = vmatmul.f32.gmra.mxu0 %v5030
    %v5170 = vpop.f32.mrf.mxu0
    %v5171 = vadd.f32 0.0, %v5170
    %5172 = vmatmul.f32.gmra.mxu0 %v5031
    %v5173 = vpop.f32.mrf.mxu0
    %v5174 = vadd.f32 0.0, %v5173
    %5175 = vmatmul.f32.gmra.mxu0 %v5032
    %v5176 = vpop.f32.mrf.mxu0
    %v5177 = vadd.f32 0.0, %v5176
    %5178 = vdwg.mxu0
    %v5179 = vsub.f32 %v5098, %v5132
    %v5180 = vsub.f32 %v5099, %v5135
    %v5181 = vsub.f32 %v5100, %v5138
    %v5182 = vsub.f32 %v5101, %v5141
    %v5183 = vsub.f32 %v5102, %v5144
    %v5184 = vsub.f32 %v5103, %v5147
    %v5185 = vsub.f32 %v5104, %v5150
    %v5186 = vsub.f32 %v5105, %v5153
    %v5187 = vsub.f32 %v5106, %v5156
    %v5188 = vsub.f32 %v5107, %v5159
    %v5189 = vsub.f32 %v5108, %v5162
    %v5190 = vsub.f32 %v5109, %v5165
    %v5191 = vsub.f32 %v5110, %v5168
    %v5192 = vsub.f32 %v5111, %v5171
    %v5193 = vsub.f32 %v5112, %v5174
    %v5194 = vsub.f32 %v5113, %v5177
    %5195 = vmatpush.msra.mxu0 %v5194
    %5196 = vmatpush.msra.mxu0 %v5193
    %5197 = vmatpush.msra.mxu0 %v5192
    %5198 = vmatpush.msra.mxu0 %v5191
    %5199 = vmatpush.msra.mxu0 %v5190
    %5200 = vmatpush.msra.mxu0 %v5189
    %5201 = vmatpush.msra.mxu0 %v5188
    %5202 = vmatpush.msra.mxu0 %v5187
    %5203 = vmatpush.msra.mxu0 %v5186
    %5204 = vmatpush.msra.mxu0 %v5185
    %5205 = vmatpush.msra.mxu0 %v5184
    %5206 = vmatpush.msra.mxu0 %v5183
    %5207 = vmatpush.msra.mxu0 %v5182
    %5208 = vmatpush.msra.mxu0 %v5181
    %5209 = vmatpush.msra.mxu0 %v5180
    %5210 = vmatpush.msra.mxu0 %v5179
    %5211 = vmatmul.f32.gmra.mxu0 %v3431
    %v5212 = vpop.f32.mrf.mxu0
    %v5213 = vadd.f32 0.0, %v5212
    %5214 = vmatmul.f32.gmra.mxu0 %v3432
    %v5215 = vpop.f32.mrf.mxu0
    %v5216 = vadd.f32 0.0, %v5215
    %5217 = vmatmul.f32.gmra.mxu0 %v3433
    %v5218 = vpop.f32.mrf.mxu0
    %v5219 = vadd.f32 0.0, %v5218
    %5220 = vmatmul.f32.gmra.mxu0 %v3434
    %v5221 = vpop.f32.mrf.mxu0
    %v5222 = vadd.f32 0.0, %v5221
    %5223 = vmatmul.f32.gmra.mxu0 %v3435
    %v5224 = vpop.f32.mrf.mxu0
    %v5225 = vadd.f32 0.0, %v5224
    %5226 = vmatmul.f32.gmra.mxu0 %v3436
    %v5227 = vpop.f32.mrf.mxu0
    %v5228 = vadd.f32 0.0, %v5227
    %5229 = vmatmul.f32.gmra.mxu0 %v3437
    %v5230 = vpop.f32.mrf.mxu0
    %v5231 = vadd.f32 0.0, %v5230
    %5232 = vmatmul.f32.gmra.mxu0 %v3438
    %v5233 = vpop.f32.mrf.mxu0
    %v5234 = vadd.f32 0.0, %v5233
    %5235 = vmatmul.f32.gmra.mxu0 %v3439
    %v5236 = vpop.f32.mrf.mxu0
    %v5237 = vadd.f32 0.0, %v5236
    %5238 = vmatmul.f32.gmra.mxu0 %v3440
    %v5239 = vpop.f32.mrf.mxu0
    %v5240 = vadd.f32 0.0, %v5239
    %5241 = vmatmul.f32.gmra.mxu0 %v3441
    %v5242 = vpop.f32.mrf.mxu0
    %v5243 = vadd.f32 0.0, %v5242
    %5244 = vmatmul.f32.gmra.mxu0 %v3442
    %v5245 = vpop.f32.mrf.mxu0
    %v5246 = vadd.f32 0.0, %v5245
    %5247 = vmatmul.f32.gmra.mxu0 %v3443
    %v5248 = vpop.f32.mrf.mxu0
    %v5249 = vadd.f32 0.0, %v5248
    %5250 = vmatmul.f32.gmra.mxu0 %v3444
    %v5251 = vpop.f32.mrf.mxu0
    %v5252 = vadd.f32 0.0, %v5251
    %5253 = vmatmul.f32.gmra.mxu0 %v3445
    %v5254 = vpop.f32.mrf.mxu0
    %v5255 = vadd.f32 0.0, %v5254
    %5256 = vmatmul.f32.gmra.mxu0 %v3446
    %v5257 = vpop.f32.mrf.mxu0
    %v5258 = vadd.f32 0.0, %v5257
    %5259 = vdwg.mxu0
    %v5260 = vmul.f32 %v5179, 2.0
    %v5261 = vmul.f32 %v5180, 2.0
    %v5262 = vmul.f32 %v5181, 2.0
    %v5263 = vmul.f32 %v5182, 2.0
    %v5264 = vmul.f32 %v5183, 2.0
    %v5265 = vmul.f32 %v5184, 2.0
    %v5266 = vmul.f32 %v5185, 2.0
    %v5267 = vmul.f32 %v5186, 2.0
    %v5268 = vmul.f32 %v5187, 2.0
    %v5269 = vmul.f32 %v5188, 2.0
    %v5270 = vmul.f32 %v5189, 2.0
    %v5271 = vmul.f32 %v5190, 2.0
    %v5272 = vmul.f32 %v5191, 2.0
    %v5273 = vmul.f32 %v5192, 2.0
    %v5274 = vmul.f32 %v5193, 2.0
    %v5275 = vmul.f32 %v5194, 2.0
    %5276 = vmatpush.msra.mxu0 %v5258
    %5277 = vmatpush.msra.mxu0 %v5255
    %5278 = vmatpush.msra.mxu0 %v5252
    %5279 = vmatpush.msra.mxu0 %v5249
    %5280 = vmatpush.msra.mxu0 %v5246
    %5281 = vmatpush.msra.mxu0 %v5243
    %5282 = vmatpush.msra.mxu0 %v5240
    %5283 = vmatpush.msra.mxu0 %v5237
    %5284 = vmatpush.msra.mxu0 %v5234
    %5285 = vmatpush.msra.mxu0 %v5231
    %5286 = vmatpush.msra.mxu0 %v5228
    %5287 = vmatpush.msra.mxu0 %v5225
    %5288 = vmatpush.msra.mxu0 %v5222
    %5289 = vmatpush.msra.mxu0 %v5219
    %5290 = vmatpush.msra.mxu0 %v5216
    %5291 = vmatpush.msra.mxu0 %v5213
    %5292 = vmatmul.f32.gmra.mxu0 %v5179
    %v5293 = vpop.f32.mrf.mxu0
    %v5294 = vadd.f32 0.0, %v5293
    %5295 = vmatmul.f32.gmra.mxu0 %v5180
    %v5296 = vpop.f32.mrf.mxu0
    %v5297 = vadd.f32 0.0, %v5296
    %5298 = vmatmul.f32.gmra.mxu0 %v5181
    %v5299 = vpop.f32.mrf.mxu0
    %v5300 = vadd.f32 0.0, %v5299
    %5301 = vmatmul.f32.gmra.mxu0 %v5182
    %v5302 = vpop.f32.mrf.mxu0
    %v5303 = vadd.f32 0.0, %v5302
    %5304 = vmatmul.f32.gmra.mxu0 %v5183
    %v5305 = vpop.f32.mrf.mxu0
    %v5306 = vadd.f32 0.0, %v5305
    %5307 = vmatmul.f32.gmra.mxu0 %v5184
    %v5308 = vpop.f32.mrf.mxu0
    %v5309 = vadd.f32 0.0, %v5308
    %5310 = vmatmul.f32.gmra.mxu0 %v5185
    %v5311 = vpop.f32.mrf.mxu0
    %v5312 = vadd.f32 0.0, %v5311
    %5313 = vmatmul.f32.gmra.mxu0 %v5186
    %v5314 = vpop.f32.mrf.mxu0
    %v5315 = vadd.f32 0.0, %v5314
    %5316 = vmatmul.f32.gmra.mxu0 %v5187
    %v5317 = vpop.f32.mrf.mxu0
    %v5318 = vadd.f32 0.0, %v5317
    %5319 = vmatmul.f32.gmra.mxu0 %v5188
    %v5320 = vpop.f32.mrf.mxu0
    %v5321 = vadd.f32 0.0, %v5320
    %5322 = vmatmul.f32.gmra.mxu0 %v5189
    %v5323 = vpop.f32.mrf.mxu0
    %v5324 = vadd.f32 0.0, %v5323
    %5325 = vmatmul.f32.gmra.mxu0 %v5190
    %v5326 = vpop.f32.mrf.mxu0
    %v5327 = vadd.f32 0.0, %v5326
    %5328 = vmatmul.f32.gmra.mxu0 %v5191
    %v5329 = vpop.f32.mrf.mxu0
    %v5330 = vadd.f32 0.0, %v5329
    %5331 = vmatmul.f32.gmra.mxu0 %v5192
    %v5332 = vpop.f32.mrf.mxu0
    %v5333 = vadd.f32 0.0, %v5332
    %5334 = vmatmul.f32.gmra.mxu0 %v5193
    %v5335 = vpop.f32.mrf.mxu0
    %v5336 = vadd.f32 0.0, %v5335
    %5337 = vmatmul.f32.gmra.mxu0 %v5194
    %v5338 = vpop.f32.mrf.mxu0
    %v5339 = vadd.f32 0.0, %v5338
    %5340 = vdwg.mxu0
    %v5341 = vsub.f32 %v5260, %v5294
    %v5342 = vsub.f32 %v5261, %v5297
    %v5343 = vsub.f32 %v5262, %v5300
    %v5344 = vsub.f32 %v5263, %v5303
    %v5345 = vsub.f32 %v5264, %v5306
    %v5346 = vsub.f32 %v5265, %v5309
    %v5347 = vsub.f32 %v5266, %v5312
    %v5348 = vsub.f32 %v5267, %v5315
    %v5349 = vsub.f32 %v5268, %v5318
    %v5350 = vsub.f32 %v5269, %v5321
    %v5351 = vsub.f32 %v5270, %v5324
    %v5352 = vsub.f32 %v5271, %v5327
    %v5353 = vsub.f32 %v5272, %v5330
    %v5354 = vsub.f32 %v5273, %v5333
    %v5355 = vsub.f32 %v5274, %v5336
    %v5356 = vsub.f32 %v5275, %v5339
    %5357 = vmatpush.msra.mxu0 %v5356
    %5358 = vmatpush.msra.mxu0 %v5355
    %5359 = vmatpush.msra.mxu0 %v5354
    %5360 = vmatpush.msra.mxu0 %v5353
    %5361 = vmatpush.msra.mxu0 %v5352
    %5362 = vmatpush.msra.mxu0 %v5351
    %5363 = vmatpush.msra.mxu0 %v5350
    %5364 = vmatpush.msra.mxu0 %v5349
    %5365 = vmatpush.msra.mxu0 %v5348
    %5366 = vmatpush.msra.mxu0 %v5347
    %5367 = vmatpush.msra.mxu0 %v5346
    %5368 = vmatpush.msra.mxu0 %v5345
    %5369 = vmatpush.msra.mxu0 %v5344
    %5370 = vmatpush.msra.mxu0 %v5343
    %5371 = vmatpush.msra.mxu0 %v5342
    %5372 = vmatpush.msra.mxu0 %v5341
    %5373 = vmatmul.f32.gmra.mxu0 %v3431
    %v5374 = vpop.f32.mrf.mxu0
    %v5375 = vadd.f32 0.0, %v5374
    %5376 = vmatmul.f32.gmra.mxu0 %v3432
    %v5377 = vpop.f32.mrf.mxu0
    %v5378 = vadd.f32 0.0, %v5377
    %5379 = vmatmul.f32.gmra.mxu0 %v3433
    %v5380 = vpop.f32.mrf.mxu0
    %v5381 = vadd.f32 0.0, %v5380
    %5382 = vmatmul.f32.gmra.mxu0 %v3434
    %v5383 = vpop.f32.mrf.mxu0
    %v5384 = vadd.f32 0.0, %v5383
    %5385 = vmatmul.f32.gmra.mxu0 %v3435
    %v5386 = vpop.f32.mrf.mxu0
    %v5387 = vadd.f32 0.0, %v5386
    %5388 = vmatmul.f32.gmra.mxu0 %v3436
    %v5389 = vpop.f32.mrf.mxu0
    %v5390 = vadd.f32 0.0, %v5389
    %5391 = vmatmul.f32.gmra.mxu0 %v3437
    %v5392 = vpop.f32.mrf.mxu0
    %v5393 = vadd.f32 0.0, %v5392
    %5394 = vmatmul.f32.gmra.mxu0 %v3438
    %v5395 = vpop.f32.mrf.mxu0
    %v5396 = vadd.f32 0.0, %v5395
    %5397 = vmatmul.f32.gmra.mxu0 %v3439
    %v5398 = vpop.f32.mrf.mxu0
    %v5399 = vadd.f32 0.0, %v5398
    %5400 = vmatmul.f32.gmra.mxu0 %v3440
    %v5401 = vpop.f32.mrf.mxu0
    %v5402 = vadd.f32 0.0, %v5401
    %5403 = vmatmul.f32.gmra.mxu0 %v3441
    %v5404 = vpop.f32.mrf.mxu0
    %v5405 = vadd.f32 0.0, %v5404
    %5406 = vmatmul.f32.gmra.mxu0 %v3442
    %v5407 = vpop.f32.mrf.mxu0
    %v5408 = vadd.f32 0.0, %v5407
    %5409 = vmatmul.f32.gmra.mxu0 %v3443
    %v5410 = vpop.f32.mrf.mxu0
    %v5411 = vadd.f32 0.0, %v5410
    %5412 = vmatmul.f32.gmra.mxu0 %v3444
    %v5413 = vpop.f32.mrf.mxu0
    %v5414 = vadd.f32 0.0, %v5413
    %5415 = vmatmul.f32.gmra.mxu0 %v3445
    %v5416 = vpop.f32.mrf.mxu0
    %v5417 = vadd.f32 0.0, %v5416
    %5418 = vmatmul.f32.gmra.mxu0 %v3446
    %v5419 = vpop.f32.mrf.mxu0
    %v5420 = vadd.f32 0.0, %v5419
    %5421 = vdwg.mxu0
    %v5422 = vmul.f32 %v5341, 2.0
    %v5423 = vmul.f32 %v5342, 2.0
    %v5424 = vmul.f32 %v5343, 2.0
    %v5425 = vmul.f32 %v5344, 2.0
    %v5426 = vmul.f32 %v5345, 2.0
    %v5427 = vmul.f32 %v5346, 2.0
    %v5428 = vmul.f32 %v5347, 2.0
    %v5429 = vmul.f32 %v5348, 2.0
    %v5430 = vmul.f32 %v5349, 2.0
    %v5431 = vmul.f32 %v5350, 2.0
    %v5432 = vmul.f32 %v5351, 2.0
    %v5433 = vmul.f32 %v5352, 2.0
    %v5434 = vmul.f32 %v5353, 2.0
    %v5435 = vmul.f32 %v5354, 2.0
    %v5436 = vmul.f32 %v5355, 2.0
    %v5437 = vmul.f32 %v5356, 2.0
    %5438 = vmatpush.msra.mxu0 %v5420
    %5439 = vmatpush.msra.mxu0 %v5417
    %5440 = vmatpush.msra.mxu0 %v5414
    %5441 = vmatpush.msra.mxu0 %v5411
    %5442 = vmatpush.msra.mxu0 %v5408
    %5443 = vmatpush.msra.mxu0 %v5405
    %5444 = vmatpush.msra.mxu0 %v5402
    %5445 = vmatpush.msra.mxu0 %v5399
    %5446 = vmatpush.msra.mxu0 %v5396
    %5447 = vmatpush.msra.mxu0 %v5393
    %5448 = vmatpush.msra.mxu0 %v5390
    %5449 = vmatpush.msra.mxu0 %v5387
    %5450 = vmatpush.msra.mxu0 %v5384
    %5451 = vmatpush.msra.mxu0 %v5381
    %5452 = vmatpush.msra.mxu0 %v5378
    %5453 = vmatpush.msra.mxu0 %v5375
    %5454 = vmatmul.f32.gmra.mxu0 %v5341
    %v5455 = vpop.f32.mrf.mxu0
    %v5456 = vadd.f32 0.0, %v5455
    %5457 = vmatmul.f32.gmra.mxu0 %v5342
    %v5458 = vpop.f32.mrf.mxu0
    %v5459 = vadd.f32 0.0, %v5458
    %5460 = vmatmul.f32.gmra.mxu0 %v5343
    %v5461 = vpop.f32.mrf.mxu0
    %v5462 = vadd.f32 0.0, %v5461
    %5463 = vmatmul.f32.gmra.mxu0 %v5344
    %v5464 = vpop.f32.mrf.mxu0
    %v5465 = vadd.f32 0.0, %v5464
    %5466 = vmatmul.f32.gmra.mxu0 %v5345
    %v5467 = vpop.f32.mrf.mxu0
    %v5468 = vadd.f32 0.0, %v5467
    %5469 = vmatmul.f32.gmra.mxu0 %v5346
    %v5470 = vpop.f32.mrf.mxu0
    %v5471 = vadd.f32 0.0, %v5470
    %5472 = vmatmul.f32.gmra.mxu0 %v5347
    %v5473 = vpop.f32.mrf.mxu0
    %v5474 = vadd.f32 0.0, %v5473
    %5475 = vmatmul.f32.gmra.mxu0 %v5348
    %v5476 = vpop.f32.mrf.mxu0
    %v5477 = vadd.f32 0.0, %v5476
    %5478 = vmatmul.f32.gmra.mxu0 %v5349
    %v5479 = vpop.f32.mrf.mxu0
    %v5480 = vadd.f32 0.0, %v5479
    %5481 = vmatmul.f32.gmra.mxu0 %v5350
    %v5482 = vpop.f32.mrf.mxu0
    %v5483 = vadd.f32 0.0, %v5482
    %5484 = vmatmul.f32.gmra.mxu0 %v5351
    %v5485 = vpop.f32.mrf.mxu0
    %v5486 = vadd.f32 0.0, %v5485
    %5487 = vmatmul.f32.gmra.mxu0 %v5352
    %v5488 = vpop.f32.mrf.mxu0
    %v5489 = vadd.f32 0.0, %v5488
    %5490 = vmatmul.f32.gmra.mxu0 %v5353
    %v5491 = vpop.f32.mrf.mxu0
    %v5492 = vadd.f32 0.0, %v5491
    %5493 = vmatmul.f32.gmra.mxu0 %v5354
    %v5494 = vpop.f32.mrf.mxu0
    %v5495 = vadd.f32 0.0, %v5494
    %5496 = vmatmul.f32.gmra.mxu0 %v5355
    %v5497 = vpop.f32.mrf.mxu0
    %v5498 = vadd.f32 0.0, %v5497
    %5499 = vmatmul.f32.gmra.mxu0 %v5356
    %v5500 = vpop.f32.mrf.mxu0
    %v5501 = vadd.f32 0.0, %v5500
    %5502 = vdwg.mxu0
    %v5503 = vsub.f32 %v5422, %v5456
    %v5504 = vsub.f32 %v5423, %v5459
    %v5505 = vsub.f32 %v5424, %v5462
    %v5506 = vsub.f32 %v5425, %v5465
    %v5507 = vsub.f32 %v5426, %v5468
    %v5508 = vsub.f32 %v5427, %v5471
    %v5509 = vsub.f32 %v5428, %v5474
    %v5510 = vsub.f32 %v5429, %v5477
    %v5511 = vsub.f32 %v5430, %v5480
    %v5512 = vsub.f32 %v5431, %v5483
    %v5513 = vsub.f32 %v5432, %v5486
    %v5514 = vsub.f32 %v5433, %v5489
    %v5515 = vsub.f32 %v5434, %v5492
    %v5516 = vsub.f32 %v5435, %v5495
    %v5517 = vsub.f32 %v5436, %v5498
    %v5518 = vsub.f32 %v5437, %v5501
    %5519 = vmatpush.msra.mxu0 %v5518
    %5520 = vmatpush.msra.mxu0 %v5517
    %5521 = vmatpush.msra.mxu0 %v5516
    %5522 = vmatpush.msra.mxu0 %v5515
    %5523 = vmatpush.msra.mxu0 %v5514
    %5524 = vmatpush.msra.mxu0 %v5513
    %5525 = vmatpush.msra.mxu0 %v5512
    %5526 = vmatpush.msra.mxu0 %v5511
    %5527 = vmatpush.msra.mxu0 %v5510
    %5528 = vmatpush.msra.mxu0 %v5509
    %5529 = vmatpush.msra.mxu0 %v5508
    %5530 = vmatpush.msra.mxu0 %v5507
    %5531 = vmatpush.msra.mxu0 %v5506
    %5532 = vmatpush.msra.mxu0 %v5505
    %5533 = vmatpush.msra.mxu0 %v5504
    %5534 = vmatpush.msra.mxu0 %v5503
    %5535 = vmatmul.f32.gmra.mxu0 %v3431
    %v5536 = vpop.f32.mrf.mxu0
    %v5537 = vadd.f32 0.0, %v5536
    %5538 = vmatmul.f32.gmra.mxu0 %v3432
    %v5539 = vpop.f32.mrf.mxu0
    %v5540 = vadd.f32 0.0, %v5539
    %5541 = vmatmul.f32.gmra.mxu0 %v3433
    %v5542 = vpop.f32.mrf.mxu0
    %v5543 = vadd.f32 0.0, %v5542
    %5544 = vmatmul.f32.gmra.mxu0 %v3434
    %v5545 = vpop.f32.mrf.mxu0
    %v5546 = vadd.f32 0.0, %v5545
    %5547 = vmatmul.f32.gmra.mxu0 %v3435
    %v5548 = vpop.f32.mrf.mxu0
    %v5549 = vadd.f32 0.0, %v5548
    %5550 = vmatmul.f32.gmra.mxu0 %v3436
    %v5551 = vpop.f32.mrf.mxu0
    %v5552 = vadd.f32 0.0, %v5551
    %5553 = vmatmul.f32.gmra.mxu0 %v3437
    %v5554 = vpop.f32.mrf.mxu0
    %v5555 = vadd.f32 0.0, %v5554
    %5556 = vmatmul.f32.gmra.mxu0 %v3438
    %v5557 = vpop.f32.mrf.mxu0
    %v5558 = vadd.f32 0.0, %v5557
    %5559 = vmatmul.f32.gmra.mxu0 %v3439
    %v5560 = vpop.f32.mrf.mxu0
    %v5561 = vadd.f32 0.0, %v5560
    %5562 = vmatmul.f32.gmra.mxu0 %v3440
    %v5563 = vpop.f32.mrf.mxu0
    %v5564 = vadd.f32 0.0, %v5563
    %5565 = vmatmul.f32.gmra.mxu0 %v3441
    %v5566 = vpop.f32.mrf.mxu0
    %v5567 = vadd.f32 0.0, %v5566
    %5568 = vmatmul.f32.gmra.mxu0 %v3442
    %v5569 = vpop.f32.mrf.mxu0
    %v5570 = vadd.f32 0.0, %v5569
    %5571 = vmatmul.f32.gmra.mxu0 %v3443
    %v5572 = vpop.f32.mrf.mxu0
    %v5573 = vadd.f32 0.0, %v5572
    %5574 = vmatmul.f32.gmra.mxu0 %v3444
    %v5575 = vpop.f32.mrf.mxu0
    %v5576 = vadd.f32 0.0, %v5575
    %5577 = vmatmul.f32.gmra.mxu0 %v3445
    %v5578 = vpop.f32.mrf.mxu0
    %v5579 = vadd.f32 0.0, %v5578
    %5580 = vmatmul.f32.gmra.mxu0 %v3446
    %v5581 = vpop.f32.mrf.mxu0
    %v5582 = vadd.f32 0.0, %v5581
    %5583 = vdwg.mxu0
    %v5584 = vmul.f32 %v5503, 2.0
    %v5585 = vmul.f32 %v5504, 2.0
    %v5586 = vmul.f32 %v5505, 2.0
    %v5587 = vmul.f32 %v5506, 2.0
    %v5588 = vmul.f32 %v5507, 2.0
    %v5589 = vmul.f32 %v5508, 2.0
    %v5590 = vmul.f32 %v5509, 2.0
    %v5591 = vmul.f32 %v5510, 2.0
    %v5592 = vmul.f32 %v5511, 2.0
    %v5593 = vmul.f32 %v5512, 2.0
    %v5594 = vmul.f32 %v5513, 2.0
    %v5595 = vmul.f32 %v5514, 2.0
    %v5596 = vmul.f32 %v5515, 2.0
    %v5597 = vmul.f32 %v5516, 2.0
    %v5598 = vmul.f32 %v5517, 2.0
    %v5599 = vmul.f32 %v5518, 2.0
    %5600 = vmatpush.msra.mxu0 %v5582
    %5601 = vmatpush.msra.mxu0 %v5579
    %5602 = vmatpush.msra.mxu0 %v5576
    %5603 = vmatpush.msra.mxu0 %v5573
    %5604 = vmatpush.msra.mxu0 %v5570
    %5605 = vmatpush.msra.mxu0 %v5567
    %5606 = vmatpush.msra.mxu0 %v5564
    %5607 = vmatpush.msra.mxu0 %v5561
    %5608 = vmatpush.msra.mxu0 %v5558
    %5609 = vmatpush.msra.mxu0 %v5555
    %5610 = vmatpush.msra.mxu0 %v5552
    %5611 = vmatpush.msra.mxu0 %v5549
    %5612 = vmatpush.msra.mxu0 %v5546
    %5613 = vmatpush.msra.mxu0 %v5543
    %5614 = vmatpush.msra.mxu0 %v5540
    %5615 = vmatpush.msra.mxu0 %v5537
    %5616 = vmatmul.f32.gmra.mxu0 %v5503
    %v5617 = vpop.f32.mrf.mxu0
    %v5618 = vadd.f32 0.0, %v5617
    %5619 = vmatmul.f32.gmra.mxu0 %v5504
    %v5620 = vpop.f32.mrf.mxu0
    %v5621 = vadd.f32 0.0, %v5620
    %5622 = vmatmul.f32.gmra.mxu0 %v5505
    %v5623 = vpop.f32.mrf.mxu0
    %v5624 = vadd.f32 0.0, %v5623
    %5625 = vmatmul.f32.gmra.mxu0 %v5506
    %v5626 = vpop.f32.mrf.mxu0
    %v5627 = vadd.f32 0.0, %v5626
    %5628 = vmatmul.f32.gmra.mxu0 %v5507
    %v5629 = vpop.f32.mrf.mxu0
    %v5630 = vadd.f32 0.0, %v5629
    %5631 = vmatmul.f32.gmra.mxu0 %v5508
    %v5632 = vpop.f32.mrf.mxu0
    %v5633 = vadd.f32 0.0, %v5632
    %5634 = vmatmul.f32.gmra.mxu0 %v5509
    %v5635 = vpop.f32.mrf.mxu0
    %v5636 = vadd.f32 0.0, %v5635
    %5637 = vmatmul.f32.gmra.mxu0 %v5510
    %v5638 = vpop.f32.mrf.mxu0
    %v5639 = vadd.f32 0.0, %v5638
    %5640 = vmatmul.f32.gmra.mxu0 %v5511
    %v5641 = vpop.f32.mrf.mxu0
    %v5642 = vadd.f32 0.0, %v5641
    %5643 = vmatmul.f32.gmra.mxu0 %v5512
    %v5644 = vpop.f32.mrf.mxu0
    %v5645 = vadd.f32 0.0, %v5644
    %5646 = vmatmul.f32.gmra.mxu0 %v5513
    %v5647 = vpop.f32.mrf.mxu0
    %v5648 = vadd.f32 0.0, %v5647
    %5649 = vmatmul.f32.gmra.mxu0 %v5514
    %v5650 = vpop.f32.mrf.mxu0
    %v5651 = vadd.f32 0.0, %v5650
    %5652 = vmatmul.f32.gmra.mxu0 %v5515
    %v5653 = vpop.f32.mrf.mxu0
    %v5654 = vadd.f32 0.0, %v5653
    %5655 = vmatmul.f32.gmra.mxu0 %v5516
    %v5656 = vpop.f32.mrf.mxu0
    %v5657 = vadd.f32 0.0, %v5656
    %5658 = vmatmul.f32.gmra.mxu0 %v5517
    %v5659 = vpop.f32.mrf.mxu0
    %v5660 = vadd.f32 0.0, %v5659
    %5661 = vmatmul.f32.gmra.mxu0 %v5518
    %v5662 = vpop.f32.mrf.mxu0
    %v5663 = vadd.f32 0.0, %v5662
    %5664 = vdwg.mxu0
    %v5665 = vsub.f32 %v5584, %v5618
    %v5666 = vsub.f32 %v5585, %v5621
    %v5667 = vsub.f32 %v5586, %v5624
    %v5668 = vsub.f32 %v5587, %v5627
    %v5669 = vsub.f32 %v5588, %v5630
    %v5670 = vsub.f32 %v5589, %v5633
    %v5671 = vsub.f32 %v5590, %v5636
    %v5672 = vsub.f32 %v5591, %v5639
    %v5673 = vsub.f32 %v5592, %v5642
    %v5674 = vsub.f32 %v5593, %v5645
    %v5675 = vsub.f32 %v5594, %v5648
    %v5676 = vsub.f32 %v5595, %v5651
    %v5677 = vsub.f32 %v5596, %v5654
    %v5678 = vsub.f32 %v5597, %v5657
    %v5679 = vsub.f32 %v5598, %v5660
    %v5680 = vsub.f32 %v5599, %v5663
    %5681 = vmatpush.msra.mxu0 %v5680
    %5682 = vmatpush.msra.mxu0 %v5679
    %5683 = vmatpush.msra.mxu0 %v5678
    %5684 = vmatpush.msra.mxu0 %v5677
    %5685 = vmatpush.msra.mxu0 %v5676
    %5686 = vmatpush.msra.mxu0 %v5675
    %5687 = vmatpush.msra.mxu0 %v5674
    %5688 = vmatpush.msra.mxu0 %v5673
    %5689 = vmatpush.msra.mxu0 %v5672
    %5690 = vmatpush.msra.mxu0 %v5671
    %5691 = vmatpush.msra.mxu0 %v5670
    %5692 = vmatpush.msra.mxu0 %v5669
    %5693 = vmatpush.msra.mxu0 %v5668
    %5694 = vmatpush.msra.mxu0 %v5667
    %5695 = vmatpush.msra.mxu0 %v5666
    %5696 = vmatpush.msra.mxu0 %v5665
    %5697 = vmatmul.f32.gmra.mxu0 %v3431
    %v5698 = vpop.f32.mrf.mxu0
    %v5699 = vadd.f32 0.0, %v5698
    %5700 = vmatmul.f32.gmra.mxu0 %v3432
    %v5701 = vpop.f32.mrf.mxu0
    %v5702 = vadd.f32 0.0, %v5701
    %5703 = vmatmul.f32.gmra.mxu0 %v3433
    %v5704 = vpop.f32.mrf.mxu0
    %v5705 = vadd.f32 0.0, %v5704
    %5706 = vmatmul.f32.gmra.mxu0 %v3434
    %v5707 = vpop.f32.mrf.mxu0
    %v5708 = vadd.f32 0.0, %v5707
    %5709 = vmatmul.f32.gmra.mxu0 %v3435
    %v5710 = vpop.f32.mrf.mxu0
    %v5711 = vadd.f32 0.0, %v5710
    %5712 = vmatmul.f32.gmra.mxu0 %v3436
    %v5713 = vpop.f32.mrf.mxu0
    %v5714 = vadd.f32 0.0, %v5713
    %5715 = vmatmul.f32.gmra.mxu0 %v3437
    %v5716 = vpop.f32.mrf.mxu0
    %v5717 = vadd.f32 0.0, %v5716
    %5718 = vmatmul.f32.gmra.mxu0 %v3438
    %v5719 = vpop.f32.mrf.mxu0
    %v5720 = vadd.f32 0.0, %v5719
    %5721 = vmatmul.f32.gmra.mxu0 %v3439
    %v5722 = vpop.f32.mrf.mxu0
    %v5723 = vadd.f32 0.0, %v5722
    %5724 = vmatmul.f32.gmra.mxu0 %v3440
    %v5725 = vpop.f32.mrf.mxu0
    %v5726 = vadd.f32 0.0, %v5725
    %5727 = vmatmul.f32.gmra.mxu0 %v3441
    %v5728 = vpop.f32.mrf.mxu0
    %v5729 = vadd.f32 0.0, %v5728
    %5730 = vmatmul.f32.gmra.mxu0 %v3442
    %v5731 = vpop.f32.mrf.mxu0
    %v5732 = vadd.f32 0.0, %v5731
    %5733 = vmatmul.f32.gmra.mxu0 %v3443
    %v5734 = vpop.f32.mrf.mxu0
    %v5735 = vadd.f32 0.0, %v5734
    %5736 = vmatmul.f32.gmra.mxu0 %v3444
    %v5737 = vpop.f32.mrf.mxu0
    %v5738 = vadd.f32 0.0, %v5737
    %5739 = vmatmul.f32.gmra.mxu0 %v3445
    %v5740 = vpop.f32.mrf.mxu0
    %v5741 = vadd.f32 0.0, %v5740
    %5742 = vmatmul.f32.gmra.mxu0 %v3446
    %v5743 = vpop.f32.mrf.mxu0
    %v5744 = vadd.f32 0.0, %v5743
    %5745 = vdwg.mxu0
    %v5746 = vmul.f32 %v5665, 2.0
    %v5747 = vmul.f32 %v5666, 2.0
    %v5748 = vmul.f32 %v5667, 2.0
    %v5749 = vmul.f32 %v5668, 2.0
    %v5750 = vmul.f32 %v5669, 2.0
    %v5751 = vmul.f32 %v5670, 2.0
    %v5752 = vmul.f32 %v5671, 2.0
    %v5753 = vmul.f32 %v5672, 2.0
    %v5754 = vmul.f32 %v5673, 2.0
    %v5755 = vmul.f32 %v5674, 2.0
    %v5756 = vmul.f32 %v5675, 2.0
    %v5757 = vmul.f32 %v5676, 2.0
    %v5758 = vmul.f32 %v5677, 2.0
    %v5759 = vmul.f32 %v5678, 2.0
    %v5760 = vmul.f32 %v5679, 2.0
    %v5761 = vmul.f32 %v5680, 2.0
    %5762 = vmatpush.msra.mxu0 %v5744
    %5763 = vmatpush.msra.mxu0 %v5741
    %5764 = vmatpush.msra.mxu0 %v5738
    %5765 = vmatpush.msra.mxu0 %v5735
    %5766 = vmatpush.msra.mxu0 %v5732
    %5767 = vmatpush.msra.mxu0 %v5729
    %5768 = vmatpush.msra.mxu0 %v5726
    %5769 = vmatpush.msra.mxu0 %v5723
    %5770 = vmatpush.msra.mxu0 %v5720
    %5771 = vmatpush.msra.mxu0 %v5717
    %5772 = vmatpush.msra.mxu0 %v5714
    %5773 = vmatpush.msra.mxu0 %v5711
    %5774 = vmatpush.msra.mxu0 %v5708
    %5775 = vmatpush.msra.mxu0 %v5705
    %5776 = vmatpush.msra.mxu0 %v5702
    %5777 = vmatpush.msra.mxu0 %v5699
    %5778 = vmatmul.f32.gmra.mxu0 %v5665
    %v5779 = vpop.f32.mrf.mxu0
    %v5780 = vadd.f32 0.0, %v5779
    %5781 = vmatmul.f32.gmra.mxu0 %v5666
    %v5782 = vpop.f32.mrf.mxu0
    %v5783 = vadd.f32 0.0, %v5782
    %5784 = vmatmul.f32.gmra.mxu0 %v5667
    %v5785 = vpop.f32.mrf.mxu0
    %v5786 = vadd.f32 0.0, %v5785
    %5787 = vmatmul.f32.gmra.mxu0 %v5668
    %v5788 = vpop.f32.mrf.mxu0
    %v5789 = vadd.f32 0.0, %v5788
    %5790 = vmatmul.f32.gmra.mxu0 %v5669
    %v5791 = vpop.f32.mrf.mxu0
    %v5792 = vadd.f32 0.0, %v5791
    %5793 = vmatmul.f32.gmra.mxu0 %v5670
    %v5794 = vpop.f32.mrf.mxu0
    %v5795 = vadd.f32 0.0, %v5794
    %5796 = vmatmul.f32.gmra.mxu0 %v5671
    %v5797 = vpop.f32.mrf.mxu0
    %v5798 = vadd.f32 0.0, %v5797
    %5799 = vmatmul.f32.gmra.mxu0 %v5672
    %v5800 = vpop.f32.mrf.mxu0
    %v5801 = vadd.f32 0.0, %v5800
    %5802 = vmatmul.f32.gmra.mxu0 %v5673
    %v5803 = vpop.f32.mrf.mxu0
    %v5804 = vadd.f32 0.0, %v5803
    %5805 = vmatmul.f32.gmra.mxu0 %v5674
    %v5806 = vpop.f32.mrf.mxu0
    %v5807 = vadd.f32 0.0, %v5806
    %5808 = vmatmul.f32.gmra.mxu0 %v5675
    %v5809 = vpop.f32.mrf.mxu0
    %v5810 = vadd.f32 0.0, %v5809
    %5811 = vmatmul.f32.gmra.mxu0 %v5676
    %v5812 = vpop.f32.mrf.mxu0
    %v5813 = vadd.f32 0.0, %v5812
    %5814 = vmatmul.f32.gmra.mxu0 %v5677
    %v5815 = vpop.f32.mrf.mxu0
    %v5816 = vadd.f32 0.0, %v5815
    %5817 = vmatmul.f32.gmra.mxu0 %v5678
    %v5818 = vpop.f32.mrf.mxu0
    %v5819 = vadd.f32 0.0, %v5818
    %5820 = vmatmul.f32.gmra.mxu0 %v5679
    %v5821 = vpop.f32.mrf.mxu0
    %v5822 = vadd.f32 0.0, %v5821
    %5823 = vmatmul.f32.gmra.mxu0 %v5680
    %v5824 = vpop.f32.mrf.mxu0
    %v5825 = vadd.f32 0.0, %v5824
    %5826 = vdwg.mxu0
    %v5827 = vsub.f32 %v5746, %v5780
    %v5828 = vsub.f32 %v5747, %v5783
    %v5829 = vsub.f32 %v5748, %v5786
    %v5830 = vsub.f32 %v5749, %v5789
    %v5831 = vsub.f32 %v5750, %v5792
    %v5832 = vsub.f32 %v5751, %v5795
    %v5833 = vsub.f32 %v5752, %v5798
    %v5834 = vsub.f32 %v5753, %v5801
    %v5835 = vsub.f32 %v5754, %v5804
    %v5836 = vsub.f32 %v5755, %v5807
    %v5837 = vsub.f32 %v5756, %v5810
    %v5838 = vsub.f32 %v5757, %v5813
    %v5839 = vsub.f32 %v5758, %v5816
    %v5840 = vsub.f32 %v5759, %v5819
    %v5841 = vsub.f32 %v5760, %v5822
    %v5842 = vsub.f32 %v5761, %v5825
    %5843 = vmatpush.msra.mxu0 %v5842
    %5844 = vmatpush.msra.mxu0 %v5841
    %5845 = vmatpush.msra.mxu0 %v5840
    %5846 = vmatpush.msra.mxu0 %v5839
    %5847 = vmatpush.msra.mxu0 %v5838
    %5848 = vmatpush.msra.mxu0 %v5837
    %5849 = vmatpush.msra.mxu0 %v5836
    %5850 = vmatpush.msra.mxu0 %v5835
    %5851 = vmatpush.msra.mxu0 %v5834
    %5852 = vmatpush.msra.mxu0 %v5833
    %5853 = vmatpush.msra.mxu0 %v5832
    %5854 = vmatpush.msra.mxu0 %v5831
    %5855 = vmatpush.msra.mxu0 %v5830
    %5856 = vmatpush.msra.mxu0 %v5829
    %5857 = vmatpush.msra.mxu0 %v5828
    %5858 = vmatpush.msra.mxu0 %v5827
    %5859 = vmatmul.f32.gmra.mxu0 %v3431
    %v5860 = vpop.f32.mrf.mxu0
    %v5861 = vadd.f32 0.0, %v5860
    %5862 = vmatmul.f32.gmra.mxu0 %v3432
    %v5863 = vpop.f32.mrf.mxu0
    %v5864 = vadd.f32 0.0, %v5863
    %5865 = vmatmul.f32.gmra.mxu0 %v3433
    %v5866 = vpop.f32.mrf.mxu0
    %v5867 = vadd.f32 0.0, %v5866
    %5868 = vmatmul.f32.gmra.mxu0 %v3434
    %v5869 = vpop.f32.mrf.mxu0
    %v5870 = vadd.f32 0.0, %v5869
    %5871 = vmatmul.f32.gmra.mxu0 %v3435
    %v5872 = vpop.f32.mrf.mxu0
    %v5873 = vadd.f32 0.0, %v5872
    %5874 = vmatmul.f32.gmra.mxu0 %v3436
    %v5875 = vpop.f32.mrf.mxu0
    %v5876 = vadd.f32 0.0, %v5875
    %5877 = vmatmul.f32.gmra.mxu0 %v3437
    %v5878 = vpop.f32.mrf.mxu0
    %v5879 = vadd.f32 0.0, %v5878
    %5880 = vmatmul.f32.gmra.mxu0 %v3438
    %v5881 = vpop.f32.mrf.mxu0
    %v5882 = vadd.f32 0.0, %v5881
    %5883 = vmatmul.f32.gmra.mxu0 %v3439
    %v5884 = vpop.f32.mrf.mxu0
    %v5885 = vadd.f32 0.0, %v5884
    %5886 = vmatmul.f32.gmra.mxu0 %v3440
    %v5887 = vpop.f32.mrf.mxu0
    %v5888 = vadd.f32 0.0, %v5887
    %5889 = vmatmul.f32.gmra.mxu0 %v3441
    %v5890 = vpop.f32.mrf.mxu0
    %v5891 = vadd.f32 0.0, %v5890
    %5892 = vmatmul.f32.gmra.mxu0 %v3442
    %v5893 = vpop.f32.mrf.mxu0
    %v5894 = vadd.f32 0.0, %v5893
    %5895 = vmatmul.f32.gmra.mxu0 %v3443
    %v5896 = vpop.f32.mrf.mxu0
    %v5897 = vadd.f32 0.0, %v5896
    %5898 = vmatmul.f32.gmra.mxu0 %v3444
    %v5899 = vpop.f32.mrf.mxu0
    %v5900 = vadd.f32 0.0, %v5899
    %5901 = vmatmul.f32.gmra.mxu0 %v3445
    %v5902 = vpop.f32.mrf.mxu0
    %v5903 = vadd.f32 0.0, %v5902
    %5904 = vmatmul.f32.gmra.mxu0 %v3446
    %v5905 = vpop.f32.mrf.mxu0
    %v5906 = vadd.f32 0.0, %v5905
    %5907 = vdwg.mxu0
    %v5908 = vmul.f32 %v5827, 2.0
    %v5909 = vmul.f32 %v5828, 2.0
    %v5910 = vmul.f32 %v5829, 2.0
    %v5911 = vmul.f32 %v5830, 2.0
    %v5912 = vmul.f32 %v5831, 2.0
    %v5913 = vmul.f32 %v5832, 2.0
    %v5914 = vmul.f32 %v5833, 2.0
    %v5915 = vmul.f32 %v5834, 2.0
    %v5916 = vmul.f32 %v5835, 2.0
    %v5917 = vmul.f32 %v5836, 2.0
    %v5918 = vmul.f32 %v5837, 2.0
    %v5919 = vmul.f32 %v5838, 2.0
    %v5920 = vmul.f32 %v5839, 2.0
    %v5921 = vmul.f32 %v5840, 2.0
    %v5922 = vmul.f32 %v5841, 2.0
    %v5923 = vmul.f32 %v5842, 2.0
    %5924 = vmatpush.msra.mxu0 %v5906
    %5925 = vmatpush.msra.mxu0 %v5903
    %5926 = vmatpush.msra.mxu0 %v5900
    %5927 = vmatpush.msra.mxu0 %v5897
    %5928 = vmatpush.msra.mxu0 %v5894
    %5929 = vmatpush.msra.mxu0 %v5891
    %5930 = vmatpush.msra.mxu0 %v5888
    %5931 = vmatpush.msra.mxu0 %v5885
    %5932 = vmatpush.msra.mxu0 %v5882
    %5933 = vmatpush.msra.mxu0 %v5879
    %5934 = vmatpush.msra.mxu0 %v5876
    %5935 = vmatpush.msra.mxu0 %v5873
    %5936 = vmatpush.msra.mxu0 %v5870
    %5937 = vmatpush.msra.mxu0 %v5867
    %5938 = vmatpush.msra.mxu0 %v5864
    %5939 = vmatpush.msra.mxu0 %v5861
    %5940 = vmatmul.f32.gmra.mxu0 %v5827
    %v5941 = vpop.f32.mrf.mxu0
    %v5942 = vadd.f32 0.0, %v5941
    %5943 = vmatmul.f32.gmra.mxu0 %v5828
    %v5944 = vpop.f32.mrf.mxu0
    %v5945 = vadd.f32 0.0, %v5944
    %5946 = vmatmul.f32.gmra.mxu0 %v5829
    %v5947 = vpop.f32.mrf.mxu0
    %v5948 = vadd.f32 0.0, %v5947
    %5949 = vmatmul.f32.gmra.mxu0 %v5830
    %v5950 = vpop.f32.mrf.mxu0
    %v5951 = vadd.f32 0.0, %v5950
    %5952 = vmatmul.f32.gmra.mxu0 %v5831
    %v5953 = vpop.f32.mrf.mxu0
    %v5954 = vadd.f32 0.0, %v5953
    %5955 = vmatmul.f32.gmra.mxu0 %v5832
    %v5956 = vpop.f32.mrf.mxu0
    %v5957 = vadd.f32 0.0, %v5956
    %5958 = vmatmul.f32.gmra.mxu0 %v5833
    %v5959 = vpop.f32.mrf.mxu0
    %v5960 = vadd.f32 0.0, %v5959
    %5961 = vmatmul.f32.gmra.mxu0 %v5834
    %v5962 = vpop.f32.mrf.mxu0
    %v5963 = vadd.f32 0.0, %v5962
    %5964 = vmatmul.f32.gmra.mxu0 %v5835
    %v5965 = vpop.f32.mrf.mxu0
    %v5966 = vadd.f32 0.0, %v5965
    %5967 = vmatmul.f32.gmra.mxu0 %v5836
    %v5968 = vpop.f32.mrf.mxu0
    %v5969 = vadd.f32 0.0, %v5968
    %5970 = vmatmul.f32.gmra.mxu0 %v5837
    %v5971 = vpop.f32.mrf.mxu0
    %v5972 = vadd.f32 0.0, %v5971
    %5973 = vmatmul.f32.gmra.mxu0 %v5838
    %v5974 = vpop.f32.mrf.mxu0
    %v5975 = vadd.f32 0.0, %v5974
    %5976 = vmatmul.f32.gmra.mxu0 %v5839
    %v5977 = vpop.f32.mrf.mxu0
    %v5978 = vadd.f32 0.0, %v5977
    %5979 = vmatmul.f32.gmra.mxu0 %v5840
    %v5980 = vpop.f32.mrf.mxu0
    %v5981 = vadd.f32 0.0, %v5980
    %5982 = vmatmul.f32.gmra.mxu0 %v5841
    %v5983 = vpop.f32.mrf.mxu0
    %v5984 = vadd.f32 0.0, %v5983
    %5985 = vmatmul.f32.gmra.mxu0 %v5842
    %v5986 = vpop.f32.mrf.mxu0
    %v5987 = vadd.f32 0.0, %v5986
    %5988 = vdwg.mxu0
    %v5989 = vsub.f32 %v5908, %v5942
    %v5990 = vsub.f32 %v5909, %v5945
    %v5991 = vsub.f32 %v5910, %v5948
    %v5992 = vsub.f32 %v5911, %v5951
    %v5993 = vsub.f32 %v5912, %v5954
    %v5994 = vsub.f32 %v5913, %v5957
    %v5995 = vsub.f32 %v5914, %v5960
    %v5996 = vsub.f32 %v5915, %v5963
    %v5997 = vsub.f32 %v5916, %v5966
    %v5998 = vsub.f32 %v5917, %v5969
    %v5999 = vsub.f32 %v5918, %v5972
    %v6000 = vsub.f32 %v5919, %v5975
    %v6001 = vsub.f32 %v5920, %v5978
    %v6002 = vsub.f32 %v5921, %v5981
    %v6003 = vsub.f32 %v5922, %v5984
    %v6004 = vsub.f32 %v5923, %v5987
    %6005 = vmatpush.msra.mxu0 %v6004
    %6006 = vmatpush.msra.mxu0 %v6003
    %6007 = vmatpush.msra.mxu0 %v6002
    %6008 = vmatpush.msra.mxu0 %v6001
    %6009 = vmatpush.msra.mxu0 %v6000
    %6010 = vmatpush.msra.mxu0 %v5999
    %6011 = vmatpush.msra.mxu0 %v5998
    %6012 = vmatpush.msra.mxu0 %v5997
    %6013 = vmatpush.msra.mxu0 %v5996
    %6014 = vmatpush.msra.mxu0 %v5995
    %6015 = vmatpush.msra.mxu0 %v5994
    %6016 = vmatpush.msra.mxu0 %v5993
    %6017 = vmatpush.msra.mxu0 %v5992
    %6018 = vmatpush.msra.mxu0 %v5991
    %6019 = vmatpush.msra.mxu0 %v5990
    %6020 = vmatpush.msra.mxu0 %v5989
    %6021 = vmatmul.f32.gmra.mxu0 %v3431
    %v6022 = vpop.f32.mrf.mxu0
    %v6023 = vadd.f32 0.0, %v6022
    %6024 = vmatmul.f32.gmra.mxu0 %v3432
    %v6025 = vpop.f32.mrf.mxu0
    %v6026 = vadd.f32 0.0, %v6025
    %6027 = vmatmul.f32.gmra.mxu0 %v3433
    %v6028 = vpop.f32.mrf.mxu0
    %v6029 = vadd.f32 0.0, %v6028
    %6030 = vmatmul.f32.gmra.mxu0 %v3434
    %v6031 = vpop.f32.mrf.mxu0
    %v6032 = vadd.f32 0.0, %v6031
    %6033 = vmatmul.f32.gmra.mxu0 %v3435
    %v6034 = vpop.f32.mrf.mxu0
    %v6035 = vadd.f32 0.0, %v6034
    %6036 = vmatmul.f32.gmra.mxu0 %v3436
    %v6037 = vpop.f32.mrf.mxu0
    %v6038 = vadd.f32 0.0, %v6037
    %6039 = vmatmul.f32.gmra.mxu0 %v3437
    %v6040 = vpop.f32.mrf.mxu0
    %v6041 = vadd.f32 0.0, %v6040
    %6042 = vmatmul.f32.gmra.mxu0 %v3438
    %v6043 = vpop.f32.mrf.mxu0
    %v6044 = vadd.f32 0.0, %v6043
    %6045 = vmatmul.f32.gmra.mxu0 %v3439
    %v6046 = vpop.f32.mrf.mxu0
    %v6047 = vadd.f32 0.0, %v6046
    %6048 = vmatmul.f32.gmra.mxu0 %v3440
    %v6049 = vpop.f32.mrf.mxu0
    %v6050 = vadd.f32 0.0, %v6049
    %6051 = vmatmul.f32.gmra.mxu0 %v3441
    %v6052 = vpop.f32.mrf.mxu0
    %v6053 = vadd.f32 0.0, %v6052
    %6054 = vmatmul.f32.gmra.mxu0 %v3442
    %v6055 = vpop.f32.mrf.mxu0
    %v6056 = vadd.f32 0.0, %v6055
    %6057 = vmatmul.f32.gmra.mxu0 %v3443
    %v6058 = vpop.f32.mrf.mxu0
    %v6059 = vadd.f32 0.0, %v6058
    %6060 = vmatmul.f32.gmra.mxu0 %v3444
    %v6061 = vpop.f32.mrf.mxu0
    %v6062 = vadd.f32 0.0, %v6061
    %6063 = vmatmul.f32.gmra.mxu0 %v3445
    %v6064 = vpop.f32.mrf.mxu0
    %v6065 = vadd.f32 0.0, %v6064
    %6066 = vmatmul.f32.gmra.mxu0 %v3446
    %v6067 = vpop.f32.mrf.mxu0
    %v6068 = vadd.f32 0.0, %v6067
    %6069 = vdwg.mxu0
    %v6070 = vmul.f32 %v5989, 2.0
    %v6071 = vmul.f32 %v5990, 2.0
    %v6072 = vmul.f32 %v5991, 2.0
    %v6073 = vmul.f32 %v5992, 2.0
    %v6074 = vmul.f32 %v5993, 2.0
    %v6075 = vmul.f32 %v5994, 2.0
    %v6076 = vmul.f32 %v5995, 2.0
    %v6077 = vmul.f32 %v5996, 2.0
    %v6078 = vmul.f32 %v5997, 2.0
    %v6079 = vmul.f32 %v5998, 2.0
    %v6080 = vmul.f32 %v5999, 2.0
    %v6081 = vmul.f32 %v6000, 2.0
    %v6082 = vmul.f32 %v6001, 2.0
    %v6083 = vmul.f32 %v6002, 2.0
    %v6084 = vmul.f32 %v6003, 2.0
    %v6085 = vmul.f32 %v6004, 2.0
    %6086 = vmatpush.msra.mxu0 %v6068
    %6087 = vmatpush.msra.mxu0 %v6065
    %6088 = vmatpush.msra.mxu0 %v6062
    %6089 = vmatpush.msra.mxu0 %v6059
    %6090 = vmatpush.msra.mxu0 %v6056
    %6091 = vmatpush.msra.mxu0 %v6053
    %6092 = vmatpush.msra.mxu0 %v6050
    %6093 = vmatpush.msra.mxu0 %v6047
    %6094 = vmatpush.msra.mxu0 %v6044
    %6095 = vmatpush.msra.mxu0 %v6041
    %6096 = vmatpush.msra.mxu0 %v6038
    %6097 = vmatpush.msra.mxu0 %v6035
    %6098 = vmatpush.msra.mxu0 %v6032
    %6099 = vmatpush.msra.mxu0 %v6029
    %6100 = vmatpush.msra.mxu0 %v6026
    %6101 = vmatpush.msra.mxu0 %v6023
    %6102 = vmatmul.f32.gmra.mxu0 %v5989
    %v6103 = vpop.f32.mrf.mxu0
    %v6104 = vadd.f32 0.0, %v6103
    %6105 = vmatmul.f32.gmra.mxu0 %v5990
    %v6106 = vpop.f32.mrf.mxu0
    %v6107 = vadd.f32 0.0, %v6106
    %6108 = vmatmul.f32.gmra.mxu0 %v5991
    %v6109 = vpop.f32.mrf.mxu0
    %v6110 = vadd.f32 0.0, %v6109
    %6111 = vmatmul.f32.gmra.mxu0 %v5992
    %v6112 = vpop.f32.mrf.mxu0
    %v6113 = vadd.f32 0.0, %v6112
    %6114 = vmatmul.f32.gmra.mxu0 %v5993
    %v6115 = vpop.f32.mrf.mxu0
    %v6116 = vadd.f32 0.0, %v6115
    %6117 = vmatmul.f32.gmra.mxu0 %v5994
    %v6118 = vpop.f32.mrf.mxu0
    %v6119 = vadd.f32 0.0, %v6118
    %6120 = vmatmul.f32.gmra.mxu0 %v5995
    %v6121 = vpop.f32.mrf.mxu0
    %v6122 = vadd.f32 0.0, %v6121
    %6123 = vmatmul.f32.gmra.mxu0 %v5996
    %v6124 = vpop.f32.mrf.mxu0
    %v6125 = vadd.f32 0.0, %v6124
    %6126 = vmatmul.f32.gmra.mxu0 %v5997
    %v6127 = vpop.f32.mrf.mxu0
    %v6128 = vadd.f32 0.0, %v6127
    %6129 = vmatmul.f32.gmra.mxu0 %v5998
    %v6130 = vpop.f32.mrf.mxu0
    %v6131 = vadd.f32 0.0, %v6130
    %6132 = vmatmul.f32.gmra.mxu0 %v5999
    %v6133 = vpop.f32.mrf.mxu0
    %v6134 = vadd.f32 0.0, %v6133
    %6135 = vmatmul.f32.gmra.mxu0 %v6000
    %v6136 = vpop.f32.mrf.mxu0
    %v6137 = vadd.f32 0.0, %v6136
    %6138 = vmatmul.f32.gmra.mxu0 %v6001
    %v6139 = vpop.f32.mrf.mxu0
    %v6140 = vadd.f32 0.0, %v6139
    %6141 = vmatmul.f32.gmra.mxu0 %v6002
    %v6142 = vpop.f32.mrf.mxu0
    %v6143 = vadd.f32 0.0, %v6142
    %6144 = vmatmul.f32.gmra.mxu0 %v6003
    %v6145 = vpop.f32.mrf.mxu0
    %v6146 = vadd.f32 0.0, %v6145
    %6147 = vmatmul.f32.gmra.mxu0 %v6004
    %v6148 = vpop.f32.mrf.mxu0
    %v6149 = vadd.f32 0.0, %v6148
    %6150 = vdwg.mxu0
    %v6151 = vsub.f32 %v6070, %v6104
    %v6152 = vsub.f32 %v6071, %v6107
    %v6153 = vsub.f32 %v6072, %v6110
    %v6154 = vsub.f32 %v6073, %v6113
    %v6155 = vsub.f32 %v6074, %v6116
    %v6156 = vsub.f32 %v6075, %v6119
    %v6157 = vsub.f32 %v6076, %v6122
    %v6158 = vsub.f32 %v6077, %v6125
    %v6159 = vsub.f32 %v6078, %v6128
    %v6160 = vsub.f32 %v6079, %v6131
    %v6161 = vsub.f32 %v6080, %v6134
    %v6162 = vsub.f32 %v6081, %v6137
    %v6163 = vsub.f32 %v6082, %v6140
    %v6164 = vsub.f32 %v6083, %v6143
    %v6165 = vsub.f32 %v6084, %v6146
    %v6166 = vsub.f32 %v6085, %v6149
    %6167 = vmatpush.msra.mxu0 %v6166
    %6168 = vmatpush.msra.mxu0 %v6165
    %6169 = vmatpush.msra.mxu0 %v6164
    %6170 = vmatpush.msra.mxu0 %v6163
    %6171 = vmatpush.msra.mxu0 %v6162
    %6172 = vmatpush.msra.mxu0 %v6161
    %6173 = vmatpush.msra.mxu0 %v6160
    %6174 = vmatpush.msra.mxu0 %v6159
    %6175 = vmatpush.msra.mxu0 %v6158
    %6176 = vmatpush.msra.mxu0 %v6157
    %6177 = vmatpush.msra.mxu0 %v6156
    %6178 = vmatpush.msra.mxu0 %v6155
    %6179 = vmatpush.msra.mxu0 %v6154
    %6180 = vmatpush.msra.mxu0 %v6153
    %6181 = vmatpush.msra.mxu0 %v6152
    %6182 = vmatpush.msra.mxu0 %v6151
    %6183 = vmatmul.f32.gmra.mxu0 %v3332
    %v6184 = vpop.f32.mrf.mxu0
    %v6185 = vadd.f32 0.0, %v6184
    %6186 = vdwg.mxu0
    %v6187 = vsub.f32 %v3216, %v6185
    %6188 = vmatpush.msra.mxu0 %v148
    %6189 = vmatpush.msra.mxu0 %v147
    %6190 = vmatpush.msra.mxu0 %v146
    %6191 = vmatpush.msra.mxu0 %v145
    %6192 = vmatpush.msra.mxu0 %v144
    %6193 = vmatpush.msra.mxu0 %v143
    %6194 = vmatpush.msra.mxu0 %v142
    %6195 = vmatpush.msra.mxu0 %v141
    %6196 = vmatpush.msra.mxu0 %v140
    %6197 = vmatpush.msra.mxu0 %v139
    %6198 = vmatpush.msra.mxu0 %v138
    %6199 = vmatpush.msra.mxu0 %v137
    %6200 = vmatpush.msra.mxu0 %v136
    %6201 = vmatpush.msra.mxu0 %v135
    %6202 = vmatpush.msra.mxu0 %v134
    %6203 = vmatpush.msra.mxu0 %v133
    %6204 = vmatmul.f32.gmra.mxu0 %v6187
    %v6205 = vpop.f32.mrf.mxu0
    %v6206 = vadd.f32 0.0, %v6205
    %6207 = vdwg.mxu0
    %v6208 = vmul.f32 %v6206, %v6206
    %v6209 = vadd.f32 %v6208, 1.0
    %v6210 = vrsqrt.pop %v6209
    %v6211 = vmul.f32 %v6210, %v6209
    %v6212 = vmul.f32 %v6211, %v6210
    %v6213 = vmul.f32 0.5, %v6212
    %v6214 = vsub.f32 1.5, %v6213
    %v6215 = vmul.f32 %v6210, %v6214
    %vm6216 = vweird.f32 %v6209
    %vm6217 = vweird.f32 %v6210
    %vm6218 = vmor %vm6216, %vm6217
    %v6219 = vsel %vm6218, %v6210, %v6215
    %v6220 = vadd.f32 %v6208, 4.0
    %v6221 = vrcp.pop %v6220
    %v6222 = vmul.f32 %v6206, %v6219
    %v6223 = vmul.f32 %v6206, %v6221
    %6224 = vmatpush.msra.mxu0 %v200
    %6225 = vmatpush.msra.mxu0 %v199
    %6226 = vmatpush.msra.mxu0 %v198
    %6227 = vmatpush.msra.mxu0 %v197
    %6228 = vmatpush.msra.mxu0 %v196
    %6229 = vmatpush.msra.mxu0 %v195
    %6230 = vmatpush.msra.mxu0 %v194
    %6231 = vmatpush.msra.mxu0 %v193
    %6232 = vmatpush.msra.mxu0 %v192
    %6233 = vmatpush.msra.mxu0 %v191
    %6234 = vmatpush.msra.mxu0 %v190
    %6235 = vmatpush.msra.mxu0 %v189
    %6236 = vmatpush.msra.mxu0 %v188
    %6237 = vmatpush.msra.mxu0 %v187
    %6238 = vmatpush.msra.mxu0 %v186
    %6239 = vmatpush.msra.mxu0 %v185
    %6240 = vmatmul.f32.gmra.mxu0 %v6187
    %v6241 = vpop.f32.mrf.mxu0
    %v6242 = vadd.f32 0.0, %v6241
    %6243 = vdwg.mxu0
    %v6244 = vsub.f32 %v6242, %v221
    %6245 = vmatpush.msra.mxu0 %v238
    %6246 = vmatpush.msra.mxu0 %v237
    %6247 = vmatpush.msra.mxu0 %v236
    %6248 = vmatpush.msra.mxu0 %v235
    %6249 = vmatpush.msra.mxu0 %v234
    %6250 = vmatpush.msra.mxu0 %v233
    %6251 = vmatpush.msra.mxu0 %v232
    %6252 = vmatpush.msra.mxu0 %v231
    %6253 = vmatpush.msra.mxu0 %v230
    %6254 = vmatpush.msra.mxu0 %v229
    %6255 = vmatpush.msra.mxu0 %v228
    %6256 = vmatpush.msra.mxu0 %v227
    %6257 = vmatpush.msra.mxu0 %v226
    %6258 = vmatpush.msra.mxu0 %v225
    %6259 = vmatpush.msra.mxu0 %v224
    %6260 = vmatpush.msra.mxu0 %v223
    %6261 = vmatmul.f32.gmra.mxu0 %v6244
    %v6262 = vpop.f32.mrf.mxu0
    %v6263 = vadd.f32 0.0, %v6262
    %6264 = vdwg.mxu0
    %6265 = vmatpush.msra.mxu0 %v254
    %6266 = vmatpush.msra.mxu0 %v253
    %6267 = vmatpush.msra.mxu0 %v252
    %6268 = vmatpush.msra.mxu0 %v251
    %6269 = vmatpush.msra.mxu0 %v250
    %6270 = vmatpush.msra.mxu0 %v249
    %6271 = vmatpush.msra.mxu0 %v248
    %6272 = vmatpush.msra.mxu0 %v247
    %6273 = vmatpush.msra.mxu0 %v246
    %6274 = vmatpush.msra.mxu0 %v245
    %6275 = vmatpush.msra.mxu0 %v244
    %6276 = vmatpush.msra.mxu0 %v243
    %6277 = vmatpush.msra.mxu0 %v242
    %6278 = vmatpush.msra.mxu0 %v241
    %6279 = vmatpush.msra.mxu0 %v240
    %6280 = vmatpush.msra.mxu0 %v239
    %6281 = vmatmul.f32.gmra.mxu0 %v6222
    %v6282 = vpop.f32.mrf.mxu0
    %v6283 = vadd.f32 %v6263, %v6282
    %6284 = vdwg.mxu0
    %6285 = vmatpush.msra.mxu0 %v270
    %6286 = vmatpush.msra.mxu0 %v269
    %6287 = vmatpush.msra.mxu0 %v268
    %6288 = vmatpush.msra.mxu0 %v267
    %6289 = vmatpush.msra.mxu0 %v266
    %6290 = vmatpush.msra.mxu0 %v265
    %6291 = vmatpush.msra.mxu0 %v264
    %6292 = vmatpush.msra.mxu0 %v263
    %6293 = vmatpush.msra.mxu0 %v262
    %6294 = vmatpush.msra.mxu0 %v261
    %6295 = vmatpush.msra.mxu0 %v260
    %6296 = vmatpush.msra.mxu0 %v259
    %6297 = vmatpush.msra.mxu0 %v258
    %6298 = vmatpush.msra.mxu0 %v257
    %6299 = vmatpush.msra.mxu0 %v256
    %6300 = vmatpush.msra.mxu0 %v255
    %6301 = vmatmul.f32.gmra.mxu0 %v6223
    %v6302 = vpop.f32.mrf.mxu0
    %v6303 = vadd.f32 %v6283, %v6302
    %6304 = vdwg.mxu0
    %v6305 = vrot.slane %v6219, 4
    %v6306 = vadd.f32 %v6219, %v6305
    %v6307 = vrot.slane %v6306, 2
    %v6308 = vadd.f32 %v6306, %v6307
    %v6309 = vrot.slane %v6308, 1
    %v6310 = vadd.f32 %v6308, %v6309
    %v6311 = vmul.f32 %v6310, 0.1
    %v6312 = vrot.slane %v6221, 4
    %v6313 = vadd.f32 %v6221, %v6312
    %v6314 = vrot.slane %v6313, 2
    %v6315 = vadd.f32 %v6313, %v6314
    %v6316 = vrot.slane %v6315, 1
    %v6317 = vadd.f32 %v6315, %v6316
    %v6318 = vmul.f32 %v6317, 0.05
    %v6319 = vadd.f32 %v6311, %v6318
    %v6320 = vmul.f32 %v6319, 0.125
    %v6321 = vmul.f32 %v133, %v6320
    %v6322 = vmul.f32 %v134, %v6320
    %v6323 = vmul.f32 %v135, %v6320
    %v6324 = vmul.f32 %v136, %v6320
    %v6325 = vmul.f32 %v137, %v6320
    %v6326 = vmul.f32 %v138, %v6320
    %v6327 = vmul.f32 %v139, %v6320
    %v6328 = vmul.f32 %v140, %v6320
    %v6329 = vmul.f32 %v141, %v6320
    %v6330 = vmul.f32 %v142, %v6320
    %v6331 = vmul.f32 %v143, %v6320
    %v6332 = vmul.f32 %v144, %v6320
    %v6333 = vmul.f32 %v145, %v6320
    %v6334 = vmul.f32 %v146, %v6320
    %v6335 = vmul.f32 %v147, %v6320
    %v6336 = vmul.f32 %v148, %v6320
    %6337 = vmatpush.msra.mxu0 %v394
    %6338 = vmatpush.msra.mxu0 %v393
    %6339 = vmatpush.msra.mxu0 %v392
    %6340 = vmatpush.msra.mxu0 %v391
    %6341 = vmatpush.msra.mxu0 %v390
    %6342 = vmatpush.msra.mxu0 %v389
    %6343 = vmatpush.msra.mxu0 %v388
    %6344 = vmatpush.msra.mxu0 %v387
    %6345 = vmatpush.msra.mxu0 %v386
    %6346 = vmatpush.msra.mxu0 %v385
    %6347 = vmatpush.msra.mxu0 %v384
    %6348 = vmatpush.msra.mxu0 %v383
    %6349 = vmatpush.msra.mxu0 %v382
    %6350 = vmatpush.msra.mxu0 %v381
    %6351 = vmatpush.msra.mxu0 %v380
    %6352 = vmatpush.msra.mxu0 %v379
    %6353 = vmatmul.f32.gmra.mxu0 %v6321
    %v6354 = vpop.f32.mrf.mxu0
    %v6355 = vadd.f32 0.0, %v6354
    %6356 = vmatmul.f32.gmra.mxu0 %v6322
    %v6357 = vpop.f32.mrf.mxu0
    %v6358 = vadd.f32 0.0, %v6357
    %6359 = vmatmul.f32.gmra.mxu0 %v6323
    %v6360 = vpop.f32.mrf.mxu0
    %v6361 = vadd.f32 0.0, %v6360
    %6362 = vmatmul.f32.gmra.mxu0 %v6324
    %v6363 = vpop.f32.mrf.mxu0
    %v6364 = vadd.f32 0.0, %v6363
    %6365 = vmatmul.f32.gmra.mxu0 %v6325
    %v6366 = vpop.f32.mrf.mxu0
    %v6367 = vadd.f32 0.0, %v6366
    %6368 = vmatmul.f32.gmra.mxu0 %v6326
    %v6369 = vpop.f32.mrf.mxu0
    %v6370 = vadd.f32 0.0, %v6369
    %6371 = vmatmul.f32.gmra.mxu0 %v6327
    %v6372 = vpop.f32.mrf.mxu0
    %v6373 = vadd.f32 0.0, %v6372
    %6374 = vmatmul.f32.gmra.mxu0 %v6328
    %v6375 = vpop.f32.mrf.mxu0
    %v6376 = vadd.f32 0.0, %v6375
    %6377 = vmatmul.f32.gmra.mxu0 %v6329
    %v6378 = vpop.f32.mrf.mxu0
    %v6379 = vadd.f32 0.0, %v6378
    %6380 = vmatmul.f32.gmra.mxu0 %v6330
    %v6381 = vpop.f32.mrf.mxu0
    %v6382 = vadd.f32 0.0, %v6381
    %6383 = vmatmul.f32.gmra.mxu0 %v6331
    %v6384 = vpop.f32.mrf.mxu0
    %v6385 = vadd.f32 0.0, %v6384
    %6386 = vmatmul.f32.gmra.mxu0 %v6332
    %v6387 = vpop.f32.mrf.mxu0
    %v6388 = vadd.f32 0.0, %v6387
    %6389 = vmatmul.f32.gmra.mxu0 %v6333
    %v6390 = vpop.f32.mrf.mxu0
    %v6391 = vadd.f32 0.0, %v6390
    %6392 = vmatmul.f32.gmra.mxu0 %v6334
    %v6393 = vpop.f32.mrf.mxu0
    %v6394 = vadd.f32 0.0, %v6393
    %6395 = vmatmul.f32.gmra.mxu0 %v6335
    %v6396 = vpop.f32.mrf.mxu0
    %v6397 = vadd.f32 0.0, %v6396
    %6398 = vmatmul.f32.gmra.mxu0 %v6336
    %v6399 = vpop.f32.mrf.mxu0
    %v6400 = vadd.f32 0.0, %v6399
    %6401 = vdwg.mxu0
    %v6402 = vadd.f32 %v347, %v6355
    %v6403 = vadd.f32 %v348, %v6358
    %v6404 = vadd.f32 %v349, %v6361
    %v6405 = vadd.f32 %v350, %v6364
    %v6406 = vadd.f32 %v351, %v6367
    %v6407 = vadd.f32 %v352, %v6370
    %v6408 = vadd.f32 %v353, %v6373
    %v6409 = vadd.f32 %v354, %v6376
    %v6410 = vadd.f32 %v355, %v6379
    %v6411 = vadd.f32 %v356, %v6382
    %v6412 = vadd.f32 %v357, %v6385
    %v6413 = vadd.f32 %v358, %v6388
    %v6414 = vadd.f32 %v359, %v6391
    %v6415 = vadd.f32 %v360, %v6394
    %v6416 = vadd.f32 %v361, %v6397
    %v6417 = vadd.f32 %v362, %v6400
    %v6418 = vand.u32 2147483647, %v6402
    %v6419 = vand.u32 2147483647, %v6403
    %v6420 = vand.u32 2147483647, %v6404
    %v6421 = vand.u32 2147483647, %v6405
    %v6422 = vand.u32 2147483647, %v6406
    %v6423 = vand.u32 2147483647, %v6407
    %v6424 = vand.u32 2147483647, %v6408
    %v6425 = vand.u32 2147483647, %v6409
    %v6426 = vand.u32 2147483647, %v6410
    %v6427 = vand.u32 2147483647, %v6411
    %v6428 = vand.u32 2147483647, %v6412
    %v6429 = vand.u32 2147483647, %v6413
    %v6430 = vand.u32 2147483647, %v6414
    %v6431 = vand.u32 2147483647, %v6415
    %v6432 = vand.u32 2147483647, %v6416
    %v6433 = vand.u32 2147483647, %v6417
    %v6434 = vadd.f32 %v6418, %v6419
    %v6435 = vadd.f32 %v6434, %v6420
    %v6436 = vadd.f32 %v6435, %v6421
    %v6437 = vadd.f32 %v6436, %v6422
    %v6438 = vadd.f32 %v6437, %v6423
    %v6439 = vadd.f32 %v6438, %v6424
    %v6440 = vadd.f32 %v6439, %v6425
    %v6441 = vadd.f32 %v6440, %v6426
    %v6442 = vadd.f32 %v6441, %v6427
    %v6443 = vadd.f32 %v6442, %v6428
    %v6444 = vadd.f32 %v6443, %v6429
    %v6445 = vadd.f32 %v6444, %v6430
    %v6446 = vadd.f32 %v6445, %v6431
    %v6447 = vadd.f32 %v6446, %v6432
    %v6448 = vadd.f32 %v6447, %v6433
    %v6449 = vrot.slane %v6448, 4
    %v6450 = vadd.f32 %v6448, %v6449
    %v6451 = vrot.slane %v6450, 2
    %v6452 = vadd.f32 %v6450, %v6451
    %v6453 = vrot.slane %v6452, 1
    %v6454 = vadd.f32 %v6452, %v6453
    %6455 = vmax.xlane.f32.xlu0 %v6454
    %v6456 = vpop.xlane.xlu0 %6455
    %s6457 = vtos %v6456
    %6458 = vadd.xlane.f32.xlu0 %v6418
    %v6459 = vpop.xlane.xlu0 %6458
    %6460 = vadd.xlane.f32.xlu0 %v6419
    %v6461 = vpop.xlane.xlu0 %6460
    %6462 = vadd.xlane.f32.xlu0 %v6420
    %v6463 = vpop.xlane.xlu0 %6462
    %6464 = vadd.xlane.f32.xlu0 %v6421
    %v6465 = vpop.xlane.xlu0 %6464
    %6466 = vadd.xlane.f32.xlu0 %v6422
    %v6467 = vpop.xlane.xlu0 %6466
    %6468 = vadd.xlane.f32.xlu0 %v6423
    %v6469 = vpop.xlane.xlu0 %6468
    %6470 = vadd.xlane.f32.xlu0 %v6424
    %v6471 = vpop.xlane.xlu0 %6470
    %6472 = vadd.xlane.f32.xlu0 %v6425
    %v6473 = vpop.xlane.xlu0 %6472
    %6474 = vadd.xlane.f32.xlu0 %v6426
    %v6475 = vpop.xlane.xlu0 %6474
    %6476 = vadd.xlane.f32.xlu0 %v6427
    %v6477 = vpop.xlane.xlu0 %6476
    %6478 = vadd.xlane.f32.xlu0 %v6428
    %v6479 = vpop.xlane.xlu0 %6478
    %6480 = vadd.xlane.f32.xlu0 %v6429
    %v6481 = vpop.xlane.xlu0 %6480
    %6482 = vadd.xlane.f32.xlu0 %v6430
    %v6483 = vpop.xlane.xlu0 %6482
    %6484 = vadd.xlane.f32.xlu0 %v6431
    %v6485 = vpop.xlane.xlu0 %6484
    %6486 = vadd.xlane.f32.xlu0 %v6432
    %v6487 = vpop.xlane.xlu0 %6486
    %6488 = vadd.xlane.f32.xlu0 %v6433
    %v6489 = vpop.xlane.xlu0 %6488
    %v6490 = vmax.f32 %v6459, %v6467
    %v6491 = vmax.f32 %v6461, %v6469
    %v6492 = vmax.f32 %v6463, %v6471
    %v6493 = vmax.f32 %v6465, %v6473
    %v6494 = vmax.f32 %v6490, %v6475
    %v6495 = vmax.f32 %v6491, %v6477
    %v6496 = vmax.f32 %v6492, %v6479
    %v6497 = vmax.f32 %v6493, %v6481
    %v6498 = vmax.f32 %v6494, %v6483
    %v6499 = vmax.f32 %v6495, %v6485
    %v6500 = vmax.f32 %v6496, %v6487
    %v6501 = vmax.f32 %v6497, %v6489
    %v6502 = vmax.f32 %v6498, %v6499
    %v6503 = vmax.f32 %v6500, %v6501
    %v6504 = vmax.f32 %v6502, %v6503
    %v6505 = vrot.slane %v6504, 4
    %v6506 = vmax.f32 %v6504, %v6505
    %v6507 = vrot.slane %v6506, 2
    %v6508 = vmax.f32 %v6506, %v6507
    %v6509 = vrot.slane %v6508, 1
    %v6510 = vmax.f32 %v6508, %v6509
    %s6511 = vtos %v6510
    %s6512 = smul.f32 %s6457, %s6511
    %v6513 = vstv %s6512
    %v6514 = vrcp.pop %v6513
    %v6515 = vmul.f32 %v6513, %v6514
    %v6516 = vsub.f32 1.0, %v6515
    %v6517 = vmul.f32 %v6514, %v6516
    %v6518 = vadd.f32 %v6514, %v6517
    %vm6519 = vweird.f32 %v6513
    %vm6520 = vweird.f32 %v6514
    %vm6521 = vmor %vm6519, %vm6520
    %v6522 = vsel %vm6521, %v6514, %v6518
    %v6523 = vand.u32 2147483647, %v6513
    %vm6524 = vcmp.eq.f32.partialorder %v6523, 8.507059e+37
    %v6525 = vand.u32 %v6513, 2147483648
    %v6526 = vor.u32 1.1754944e-38, %v6525
    %v6527 = vsel %vm6524, %v6526, %v6522
    %s6528 = vtos %v6527
    %v6529 = vstv %s6528
    %v6530 = vmul.f32 %v6402, %v6529
    %v6531 = vmul.f32 %v6403, %v6529
    %v6532 = vmul.f32 %v6404, %v6529
    %v6533 = vmul.f32 %v6405, %v6529
    %v6534 = vmul.f32 %v6406, %v6529
    %v6535 = vmul.f32 %v6407, %v6529
    %v6536 = vmul.f32 %v6408, %v6529
    %v6537 = vmul.f32 %v6409, %v6529
    %v6538 = vmul.f32 %v6410, %v6529
    %v6539 = vmul.f32 %v6411, %v6529
    %v6540 = vmul.f32 %v6412, %v6529
    %v6541 = vmul.f32 %v6413, %v6529
    %v6542 = vmul.f32 %v6414, %v6529
    %v6543 = vmul.f32 %v6415, %v6529
    %v6544 = vmul.f32 %v6416, %v6529
    %v6545 = vmul.f32 %v6417, %v6529
    %6546 = vmatpush.msra.mxu0 %v6545
    %6547 = vmatpush.msra.mxu0 %v6544
    %6548 = vmatpush.msra.mxu0 %v6543
    %6549 = vmatpush.msra.mxu0 %v6542
    %6550 = vmatpush.msra.mxu0 %v6541
    %6551 = vmatpush.msra.mxu0 %v6540
    %6552 = vmatpush.msra.mxu0 %v6539
    %6553 = vmatpush.msra.mxu0 %v6538
    %6554 = vmatpush.msra.mxu0 %v6537
    %6555 = vmatpush.msra.mxu0 %v6536
    %6556 = vmatpush.msra.mxu0 %v6535
    %6557 = vmatpush.msra.mxu0 %v6534
    %6558 = vmatpush.msra.mxu0 %v6533
    %6559 = vmatpush.msra.mxu0 %v6532
    %6560 = vmatpush.msra.mxu0 %v6531
    %6561 = vmatpush.msra.mxu0 %v6530
    %6562 = vmatmul.f32.gmra.mxu0 %v6402
    %v6563 = vpop.f32.mrf.mxu0
    %v6564 = vadd.f32 0.0, %v6563
    %6565 = vmatmul.f32.gmra.mxu0 %v6403
    %v6566 = vpop.f32.mrf.mxu0
    %v6567 = vadd.f32 0.0, %v6566
    %6568 = vmatmul.f32.gmra.mxu0 %v6404
    %v6569 = vpop.f32.mrf.mxu0
    %v6570 = vadd.f32 0.0, %v6569
    %6571 = vmatmul.f32.gmra.mxu0 %v6405
    %v6572 = vpop.f32.mrf.mxu0
    %v6573 = vadd.f32 0.0, %v6572
    %6574 = vmatmul.f32.gmra.mxu0 %v6406
    %v6575 = vpop.f32.mrf.mxu0
    %v6576 = vadd.f32 0.0, %v6575
    %6577 = vmatmul.f32.gmra.mxu0 %v6407
    %v6578 = vpop.f32.mrf.mxu0
    %v6579 = vadd.f32 0.0, %v6578
    %6580 = vmatmul.f32.gmra.mxu0 %v6408
    %v6581 = vpop.f32.mrf.mxu0
    %v6582 = vadd.f32 0.0, %v6581
    %6583 = vmatmul.f32.gmra.mxu0 %v6409
    %v6584 = vpop.f32.mrf.mxu0
    %v6585 = vadd.f32 0.0, %v6584
    %6586 = vmatmul.f32.gmra.mxu0 %v6410
    %v6587 = vpop.f32.mrf.mxu0
    %v6588 = vadd.f32 0.0, %v6587
    %6589 = vmatmul.f32.gmra.mxu0 %v6411
    %v6590 = vpop.f32.mrf.mxu0
    %v6591 = vadd.f32 0.0, %v6590
    %6592 = vmatmul.f32.gmra.mxu0 %v6412
    %v6593 = vpop.f32.mrf.mxu0
    %v6594 = vadd.f32 0.0, %v6593
    %6595 = vmatmul.f32.gmra.mxu0 %v6413
    %v6596 = vpop.f32.mrf.mxu0
    %v6597 = vadd.f32 0.0, %v6596
    %6598 = vmatmul.f32.gmra.mxu0 %v6414
    %v6599 = vpop.f32.mrf.mxu0
    %v6600 = vadd.f32 0.0, %v6599
    %6601 = vmatmul.f32.gmra.mxu0 %v6415
    %v6602 = vpop.f32.mrf.mxu0
    %v6603 = vadd.f32 0.0, %v6602
    %6604 = vmatmul.f32.gmra.mxu0 %v6416
    %v6605 = vpop.f32.mrf.mxu0
    %v6606 = vadd.f32 0.0, %v6605
    %6607 = vmatmul.f32.gmra.mxu0 %v6417
    %v6608 = vpop.f32.mrf.mxu0
    %v6609 = vadd.f32 0.0, %v6608
    %6610 = vdwg.mxu0
    %v6611 = vmul.f32 %v6530, 2.0
    %v6612 = vmul.f32 %v6531, 2.0
    %v6613 = vmul.f32 %v6532, 2.0
    %v6614 = vmul.f32 %v6533, 2.0
    %v6615 = vmul.f32 %v6534, 2.0
    %v6616 = vmul.f32 %v6535, 2.0
    %v6617 = vmul.f32 %v6536, 2.0
    %v6618 = vmul.f32 %v6537, 2.0
    %v6619 = vmul.f32 %v6538, 2.0
    %v6620 = vmul.f32 %v6539, 2.0
    %v6621 = vmul.f32 %v6540, 2.0
    %v6622 = vmul.f32 %v6541, 2.0
    %v6623 = vmul.f32 %v6542, 2.0
    %v6624 = vmul.f32 %v6543, 2.0
    %v6625 = vmul.f32 %v6544, 2.0
    %v6626 = vmul.f32 %v6545, 2.0
    %6627 = vmatpush.msra.mxu0 %v6609
    %6628 = vmatpush.msra.mxu0 %v6606
    %6629 = vmatpush.msra.mxu0 %v6603
    %6630 = vmatpush.msra.mxu0 %v6600
    %6631 = vmatpush.msra.mxu0 %v6597
    %6632 = vmatpush.msra.mxu0 %v6594
    %6633 = vmatpush.msra.mxu0 %v6591
    %6634 = vmatpush.msra.mxu0 %v6588
    %6635 = vmatpush.msra.mxu0 %v6585
    %6636 = vmatpush.msra.mxu0 %v6582
    %6637 = vmatpush.msra.mxu0 %v6579
    %6638 = vmatpush.msra.mxu0 %v6576
    %6639 = vmatpush.msra.mxu0 %v6573
    %6640 = vmatpush.msra.mxu0 %v6570
    %6641 = vmatpush.msra.mxu0 %v6567
    %6642 = vmatpush.msra.mxu0 %v6564
    %6643 = vmatmul.f32.gmra.mxu0 %v6530
    %v6644 = vpop.f32.mrf.mxu0
    %v6645 = vadd.f32 0.0, %v6644
    %6646 = vmatmul.f32.gmra.mxu0 %v6531
    %v6647 = vpop.f32.mrf.mxu0
    %v6648 = vadd.f32 0.0, %v6647
    %6649 = vmatmul.f32.gmra.mxu0 %v6532
    %v6650 = vpop.f32.mrf.mxu0
    %v6651 = vadd.f32 0.0, %v6650
    %6652 = vmatmul.f32.gmra.mxu0 %v6533
    %v6653 = vpop.f32.mrf.mxu0
    %v6654 = vadd.f32 0.0, %v6653
    %6655 = vmatmul.f32.gmra.mxu0 %v6534
    %v6656 = vpop.f32.mrf.mxu0
    %v6657 = vadd.f32 0.0, %v6656
    %6658 = vmatmul.f32.gmra.mxu0 %v6535
    %v6659 = vpop.f32.mrf.mxu0
    %v6660 = vadd.f32 0.0, %v6659
    %6661 = vmatmul.f32.gmra.mxu0 %v6536
    %v6662 = vpop.f32.mrf.mxu0
    %v6663 = vadd.f32 0.0, %v6662
    %6664 = vmatmul.f32.gmra.mxu0 %v6537
    %v6665 = vpop.f32.mrf.mxu0
    %v6666 = vadd.f32 0.0, %v6665
    %6667 = vmatmul.f32.gmra.mxu0 %v6538
    %v6668 = vpop.f32.mrf.mxu0
    %v6669 = vadd.f32 0.0, %v6668
    %6670 = vmatmul.f32.gmra.mxu0 %v6539
    %v6671 = vpop.f32.mrf.mxu0
    %v6672 = vadd.f32 0.0, %v6671
    %6673 = vmatmul.f32.gmra.mxu0 %v6540
    %v6674 = vpop.f32.mrf.mxu0
    %v6675 = vadd.f32 0.0, %v6674
    %6676 = vmatmul.f32.gmra.mxu0 %v6541
    %v6677 = vpop.f32.mrf.mxu0
    %v6678 = vadd.f32 0.0, %v6677
    %6679 = vmatmul.f32.gmra.mxu0 %v6542
    %v6680 = vpop.f32.mrf.mxu0
    %v6681 = vadd.f32 0.0, %v6680
    %6682 = vmatmul.f32.gmra.mxu0 %v6543
    %v6683 = vpop.f32.mrf.mxu0
    %v6684 = vadd.f32 0.0, %v6683
    %6685 = vmatmul.f32.gmra.mxu0 %v6544
    %v6686 = vpop.f32.mrf.mxu0
    %v6687 = vadd.f32 0.0, %v6686
    %6688 = vmatmul.f32.gmra.mxu0 %v6545
    %v6689 = vpop.f32.mrf.mxu0
    %v6690 = vadd.f32 0.0, %v6689
    %6691 = vdwg.mxu0
    %v6692 = vsub.f32 %v6611, %v6645
    %v6693 = vsub.f32 %v6612, %v6648
    %v6694 = vsub.f32 %v6613, %v6651
    %v6695 = vsub.f32 %v6614, %v6654
    %v6696 = vsub.f32 %v6615, %v6657
    %v6697 = vsub.f32 %v6616, %v6660
    %v6698 = vsub.f32 %v6617, %v6663
    %v6699 = vsub.f32 %v6618, %v6666
    %v6700 = vsub.f32 %v6619, %v6669
    %v6701 = vsub.f32 %v6620, %v6672
    %v6702 = vsub.f32 %v6621, %v6675
    %v6703 = vsub.f32 %v6622, %v6678
    %v6704 = vsub.f32 %v6623, %v6681
    %v6705 = vsub.f32 %v6624, %v6684
    %v6706 = vsub.f32 %v6625, %v6687
    %v6707 = vsub.f32 %v6626, %v6690
    %6708 = vmatpush.msra.mxu0 %v6707
    %6709 = vmatpush.msra.mxu0 %v6706
    %6710 = vmatpush.msra.mxu0 %v6705
    %6711 = vmatpush.msra.mxu0 %v6704
    %6712 = vmatpush.msra.mxu0 %v6703
    %6713 = vmatpush.msra.mxu0 %v6702
    %6714 = vmatpush.msra.mxu0 %v6701
    %6715 = vmatpush.msra.mxu0 %v6700
    %6716 = vmatpush.msra.mxu0 %v6699
    %6717 = vmatpush.msra.mxu0 %v6698
    %6718 = vmatpush.msra.mxu0 %v6697
    %6719 = vmatpush.msra.mxu0 %v6696
    %6720 = vmatpush.msra.mxu0 %v6695
    %6721 = vmatpush.msra.mxu0 %v6694
    %6722 = vmatpush.msra.mxu0 %v6693
    %6723 = vmatpush.msra.mxu0 %v6692
    %6724 = vmatmul.f32.gmra.mxu0 %v6402
    %v6725 = vpop.f32.mrf.mxu0
    %v6726 = vadd.f32 0.0, %v6725
    %6727 = vmatmul.f32.gmra.mxu0 %v6403
    %v6728 = vpop.f32.mrf.mxu0
    %v6729 = vadd.f32 0.0, %v6728
    %6730 = vmatmul.f32.gmra.mxu0 %v6404
    %v6731 = vpop.f32.mrf.mxu0
    %v6732 = vadd.f32 0.0, %v6731
    %6733 = vmatmul.f32.gmra.mxu0 %v6405
    %v6734 = vpop.f32.mrf.mxu0
    %v6735 = vadd.f32 0.0, %v6734
    %6736 = vmatmul.f32.gmra.mxu0 %v6406
    %v6737 = vpop.f32.mrf.mxu0
    %v6738 = vadd.f32 0.0, %v6737
    %6739 = vmatmul.f32.gmra.mxu0 %v6407
    %v6740 = vpop.f32.mrf.mxu0
    %v6741 = vadd.f32 0.0, %v6740
    %6742 = vmatmul.f32.gmra.mxu0 %v6408
    %v6743 = vpop.f32.mrf.mxu0
    %v6744 = vadd.f32 0.0, %v6743
    %6745 = vmatmul.f32.gmra.mxu0 %v6409
    %v6746 = vpop.f32.mrf.mxu0
    %v6747 = vadd.f32 0.0, %v6746
    %6748 = vmatmul.f32.gmra.mxu0 %v6410
    %v6749 = vpop.f32.mrf.mxu0
    %v6750 = vadd.f32 0.0, %v6749
    %6751 = vmatmul.f32.gmra.mxu0 %v6411
    %v6752 = vpop.f32.mrf.mxu0
    %v6753 = vadd.f32 0.0, %v6752
    %6754 = vmatmul.f32.gmra.mxu0 %v6412
    %v6755 = vpop.f32.mrf.mxu0
    %v6756 = vadd.f32 0.0, %v6755
    %6757 = vmatmul.f32.gmra.mxu0 %v6413
    %v6758 = vpop.f32.mrf.mxu0
    %v6759 = vadd.f32 0.0, %v6758
    %6760 = vmatmul.f32.gmra.mxu0 %v6414
    %v6761 = vpop.f32.mrf.mxu0
    %v6762 = vadd.f32 0.0, %v6761
    %6763 = vmatmul.f32.gmra.mxu0 %v6415
    %v6764 = vpop.f32.mrf.mxu0
    %v6765 = vadd.f32 0.0, %v6764
    %6766 = vmatmul.f32.gmra.mxu0 %v6416
    %v6767 = vpop.f32.mrf.mxu0
    %v6768 = vadd.f32 0.0, %v6767
    %6769 = vmatmul.f32.gmra.mxu0 %v6417
    %v6770 = vpop.f32.mrf.mxu0
    %v6771 = vadd.f32 0.0, %v6770
    %6772 = vdwg.mxu0
    %v6773 = vmul.f32 %v6692, 2.0
    %v6774 = vmul.f32 %v6693, 2.0
    %v6775 = vmul.f32 %v6694, 2.0
    %v6776 = vmul.f32 %v6695, 2.0
    %v6777 = vmul.f32 %v6696, 2.0
    %v6778 = vmul.f32 %v6697, 2.0
    %v6779 = vmul.f32 %v6698, 2.0
    %v6780 = vmul.f32 %v6699, 2.0
    %v6781 = vmul.f32 %v6700, 2.0
    %v6782 = vmul.f32 %v6701, 2.0
    %v6783 = vmul.f32 %v6702, 2.0
    %v6784 = vmul.f32 %v6703, 2.0
    %v6785 = vmul.f32 %v6704, 2.0
    %v6786 = vmul.f32 %v6705, 2.0
    %v6787 = vmul.f32 %v6706, 2.0
    %v6788 = vmul.f32 %v6707, 2.0
    %6789 = vmatpush.msra.mxu0 %v6771
    %6790 = vmatpush.msra.mxu0 %v6768
    %6791 = vmatpush.msra.mxu0 %v6765
    %6792 = vmatpush.msra.mxu0 %v6762
    %6793 = vmatpush.msra.mxu0 %v6759
    %6794 = vmatpush.msra.mxu0 %v6756
    %6795 = vmatpush.msra.mxu0 %v6753
    %6796 = vmatpush.msra.mxu0 %v6750
    %6797 = vmatpush.msra.mxu0 %v6747
    %6798 = vmatpush.msra.mxu0 %v6744
    %6799 = vmatpush.msra.mxu0 %v6741
    %6800 = vmatpush.msra.mxu0 %v6738
    %6801 = vmatpush.msra.mxu0 %v6735
    %6802 = vmatpush.msra.mxu0 %v6732
    %6803 = vmatpush.msra.mxu0 %v6729
    %6804 = vmatpush.msra.mxu0 %v6726
    %6805 = vmatmul.f32.gmra.mxu0 %v6692
    %v6806 = vpop.f32.mrf.mxu0
    %v6807 = vadd.f32 0.0, %v6806
    %6808 = vmatmul.f32.gmra.mxu0 %v6693
    %v6809 = vpop.f32.mrf.mxu0
    %v6810 = vadd.f32 0.0, %v6809
    %6811 = vmatmul.f32.gmra.mxu0 %v6694
    %v6812 = vpop.f32.mrf.mxu0
    %v6813 = vadd.f32 0.0, %v6812
    %6814 = vmatmul.f32.gmra.mxu0 %v6695
    %v6815 = vpop.f32.mrf.mxu0
    %v6816 = vadd.f32 0.0, %v6815
    %6817 = vmatmul.f32.gmra.mxu0 %v6696
    %v6818 = vpop.f32.mrf.mxu0
    %v6819 = vadd.f32 0.0, %v6818
    %6820 = vmatmul.f32.gmra.mxu0 %v6697
    %v6821 = vpop.f32.mrf.mxu0
    %v6822 = vadd.f32 0.0, %v6821
    %6823 = vmatmul.f32.gmra.mxu0 %v6698
    %v6824 = vpop.f32.mrf.mxu0
    %v6825 = vadd.f32 0.0, %v6824
    %6826 = vmatmul.f32.gmra.mxu0 %v6699
    %v6827 = vpop.f32.mrf.mxu0
    %v6828 = vadd.f32 0.0, %v6827
    %6829 = vmatmul.f32.gmra.mxu0 %v6700
    %v6830 = vpop.f32.mrf.mxu0
    %v6831 = vadd.f32 0.0, %v6830
    %6832 = vmatmul.f32.gmra.mxu0 %v6701
    %v6833 = vpop.f32.mrf.mxu0
    %v6834 = vadd.f32 0.0, %v6833
    %6835 = vmatmul.f32.gmra.mxu0 %v6702
    %v6836 = vpop.f32.mrf.mxu0
    %v6837 = vadd.f32 0.0, %v6836
    %6838 = vmatmul.f32.gmra.mxu0 %v6703
    %v6839 = vpop.f32.mrf.mxu0
    %v6840 = vadd.f32 0.0, %v6839
    %6841 = vmatmul.f32.gmra.mxu0 %v6704
    %v6842 = vpop.f32.mrf.mxu0
    %v6843 = vadd.f32 0.0, %v6842
    %6844 = vmatmul.f32.gmra.mxu0 %v6705
    %v6845 = vpop.f32.mrf.mxu0
    %v6846 = vadd.f32 0.0, %v6845
    %6847 = vmatmul.f32.gmra.mxu0 %v6706
    %v6848 = vpop.f32.mrf.mxu0
    %v6849 = vadd.f32 0.0, %v6848
    %6850 = vmatmul.f32.gmra.mxu0 %v6707
    %v6851 = vpop.f32.mrf.mxu0
    %v6852 = vadd.f32 0.0, %v6851
    %6853 = vdwg.mxu0
    %v6854 = vsub.f32 %v6773, %v6807
    %v6855 = vsub.f32 %v6774, %v6810
    %v6856 = vsub.f32 %v6775, %v6813
    %v6857 = vsub.f32 %v6776, %v6816
    %v6858 = vsub.f32 %v6777, %v6819
    %v6859 = vsub.f32 %v6778, %v6822
    %v6860 = vsub.f32 %v6779, %v6825
    %v6861 = vsub.f32 %v6780, %v6828
    %v6862 = vsub.f32 %v6781, %v6831
    %v6863 = vsub.f32 %v6782, %v6834
    %v6864 = vsub.f32 %v6783, %v6837
    %v6865 = vsub.f32 %v6784, %v6840
    %v6866 = vsub.f32 %v6785, %v6843
    %v6867 = vsub.f32 %v6786, %v6846
    %v6868 = vsub.f32 %v6787, %v6849
    %v6869 = vsub.f32 %v6788, %v6852
    %6870 = vmatpush.msra.mxu0 %v6869
    %6871 = vmatpush.msra.mxu0 %v6868
    %6872 = vmatpush.msra.mxu0 %v6867
    %6873 = vmatpush.msra.mxu0 %v6866
    %6874 = vmatpush.msra.mxu0 %v6865
    %6875 = vmatpush.msra.mxu0 %v6864
    %6876 = vmatpush.msra.mxu0 %v6863
    %6877 = vmatpush.msra.mxu0 %v6862
    %6878 = vmatpush.msra.mxu0 %v6861
    %6879 = vmatpush.msra.mxu0 %v6860
    %6880 = vmatpush.msra.mxu0 %v6859
    %6881 = vmatpush.msra.mxu0 %v6858
    %6882 = vmatpush.msra.mxu0 %v6857
    %6883 = vmatpush.msra.mxu0 %v6856
    %6884 = vmatpush.msra.mxu0 %v6855
    %6885 = vmatpush.msra.mxu0 %v6854
    %6886 = vmatmul.f32.gmra.mxu0 %v6402
    %v6887 = vpop.f32.mrf.mxu0
    %v6888 = vadd.f32 0.0, %v6887
    %6889 = vmatmul.f32.gmra.mxu0 %v6403
    %v6890 = vpop.f32.mrf.mxu0
    %v6891 = vadd.f32 0.0, %v6890
    %6892 = vmatmul.f32.gmra.mxu0 %v6404
    %v6893 = vpop.f32.mrf.mxu0
    %v6894 = vadd.f32 0.0, %v6893
    %6895 = vmatmul.f32.gmra.mxu0 %v6405
    %v6896 = vpop.f32.mrf.mxu0
    %v6897 = vadd.f32 0.0, %v6896
    %6898 = vmatmul.f32.gmra.mxu0 %v6406
    %v6899 = vpop.f32.mrf.mxu0
    %v6900 = vadd.f32 0.0, %v6899
    %6901 = vmatmul.f32.gmra.mxu0 %v6407
    %v6902 = vpop.f32.mrf.mxu0
    %v6903 = vadd.f32 0.0, %v6902
    %6904 = vmatmul.f32.gmra.mxu0 %v6408
    %v6905 = vpop.f32.mrf.mxu0
    %v6906 = vadd.f32 0.0, %v6905
    %6907 = vmatmul.f32.gmra.mxu0 %v6409
    %v6908 = vpop.f32.mrf.mxu0
    %v6909 = vadd.f32 0.0, %v6908
    %6910 = vmatmul.f32.gmra.mxu0 %v6410
    %v6911 = vpop.f32.mrf.mxu0
    %v6912 = vadd.f32 0.0, %v6911
    %6913 = vmatmul.f32.gmra.mxu0 %v6411
    %v6914 = vpop.f32.mrf.mxu0
    %v6915 = vadd.f32 0.0, %v6914
    %6916 = vmatmul.f32.gmra.mxu0 %v6412
    %v6917 = vpop.f32.mrf.mxu0
    %v6918 = vadd.f32 0.0, %v6917
    %6919 = vmatmul.f32.gmra.mxu0 %v6413
    %v6920 = vpop.f32.mrf.mxu0
    %v6921 = vadd.f32 0.0, %v6920
    %6922 = vmatmul.f32.gmra.mxu0 %v6414
    %v6923 = vpop.f32.mrf.mxu0
    %v6924 = vadd.f32 0.0, %v6923
    %6925 = vmatmul.f32.gmra.mxu0 %v6415
    %v6926 = vpop.f32.mrf.mxu0
    %v6927 = vadd.f32 0.0, %v6926
    %6928 = vmatmul.f32.gmra.mxu0 %v6416
    %v6929 = vpop.f32.mrf.mxu0
    %v6930 = vadd.f32 0.0, %v6929
    %6931 = vmatmul.f32.gmra.mxu0 %v6417
    %v6932 = vpop.f32.mrf.mxu0
    %v6933 = vadd.f32 0.0, %v6932
    %6934 = vdwg.mxu0
    %v6935 = vmul.f32 %v6854, 2.0
    %v6936 = vmul.f32 %v6855, 2.0
    %v6937 = vmul.f32 %v6856, 2.0
    %v6938 = vmul.f32 %v6857, 2.0
    %v6939 = vmul.f32 %v6858, 2.0
    %v6940 = vmul.f32 %v6859, 2.0
    %v6941 = vmul.f32 %v6860, 2.0
    %v6942 = vmul.f32 %v6861, 2.0
    %v6943 = vmul.f32 %v6862, 2.0
    %v6944 = vmul.f32 %v6863, 2.0
    %v6945 = vmul.f32 %v6864, 2.0
    %v6946 = vmul.f32 %v6865, 2.0
    %v6947 = vmul.f32 %v6866, 2.0
    %v6948 = vmul.f32 %v6867, 2.0
    %v6949 = vmul.f32 %v6868, 2.0
    %v6950 = vmul.f32 %v6869, 2.0
    %6951 = vmatpush.msra.mxu0 %v6933
    %6952 = vmatpush.msra.mxu0 %v6930
    %6953 = vmatpush.msra.mxu0 %v6927
    %6954 = vmatpush.msra.mxu0 %v6924
    %6955 = vmatpush.msra.mxu0 %v6921
    %6956 = vmatpush.msra.mxu0 %v6918
    %6957 = vmatpush.msra.mxu0 %v6915
    %6958 = vmatpush.msra.mxu0 %v6912
    %6959 = vmatpush.msra.mxu0 %v6909
    %6960 = vmatpush.msra.mxu0 %v6906
    %6961 = vmatpush.msra.mxu0 %v6903
    %6962 = vmatpush.msra.mxu0 %v6900
    %6963 = vmatpush.msra.mxu0 %v6897
    %6964 = vmatpush.msra.mxu0 %v6894
    %6965 = vmatpush.msra.mxu0 %v6891
    %6966 = vmatpush.msra.mxu0 %v6888
    %6967 = vmatmul.f32.gmra.mxu0 %v6854
    %v6968 = vpop.f32.mrf.mxu0
    %v6969 = vadd.f32 0.0, %v6968
    %6970 = vmatmul.f32.gmra.mxu0 %v6855
    %v6971 = vpop.f32.mrf.mxu0
    %v6972 = vadd.f32 0.0, %v6971
    %6973 = vmatmul.f32.gmra.mxu0 %v6856
    %v6974 = vpop.f32.mrf.mxu0
    %v6975 = vadd.f32 0.0, %v6974
    %6976 = vmatmul.f32.gmra.mxu0 %v6857
    %v6977 = vpop.f32.mrf.mxu0
    %v6978 = vadd.f32 0.0, %v6977
    %6979 = vmatmul.f32.gmra.mxu0 %v6858
    %v6980 = vpop.f32.mrf.mxu0
    %v6981 = vadd.f32 0.0, %v6980
    %6982 = vmatmul.f32.gmra.mxu0 %v6859
    %v6983 = vpop.f32.mrf.mxu0
    %v6984 = vadd.f32 0.0, %v6983
    %6985 = vmatmul.f32.gmra.mxu0 %v6860
    %v6986 = vpop.f32.mrf.mxu0
    %v6987 = vadd.f32 0.0, %v6986
    %6988 = vmatmul.f32.gmra.mxu0 %v6861
    %v6989 = vpop.f32.mrf.mxu0
    %v6990 = vadd.f32 0.0, %v6989
    %6991 = vmatmul.f32.gmra.mxu0 %v6862
    %v6992 = vpop.f32.mrf.mxu0
    %v6993 = vadd.f32 0.0, %v6992
    %6994 = vmatmul.f32.gmra.mxu0 %v6863
    %v6995 = vpop.f32.mrf.mxu0
    %v6996 = vadd.f32 0.0, %v6995
    %6997 = vmatmul.f32.gmra.mxu0 %v6864
    %v6998 = vpop.f32.mrf.mxu0
    %v6999 = vadd.f32 0.0, %v6998
    %7000 = vmatmul.f32.gmra.mxu0 %v6865
    %v7001 = vpop.f32.mrf.mxu0
    %v7002 = vadd.f32 0.0, %v7001
    %7003 = vmatmul.f32.gmra.mxu0 %v6866
    %v7004 = vpop.f32.mrf.mxu0
    %v7005 = vadd.f32 0.0, %v7004
    %7006 = vmatmul.f32.gmra.mxu0 %v6867
    %v7007 = vpop.f32.mrf.mxu0
    %v7008 = vadd.f32 0.0, %v7007
    %7009 = vmatmul.f32.gmra.mxu0 %v6868
    %v7010 = vpop.f32.mrf.mxu0
    %v7011 = vadd.f32 0.0, %v7010
    %7012 = vmatmul.f32.gmra.mxu0 %v6869
    %v7013 = vpop.f32.mrf.mxu0
    %v7014 = vadd.f32 0.0, %v7013
    %7015 = vdwg.mxu0
    %v7016 = vsub.f32 %v6935, %v6969
    %v7017 = vsub.f32 %v6936, %v6972
    %v7018 = vsub.f32 %v6937, %v6975
    %v7019 = vsub.f32 %v6938, %v6978
    %v7020 = vsub.f32 %v6939, %v6981
    %v7021 = vsub.f32 %v6940, %v6984
    %v7022 = vsub.f32 %v6941, %v6987
    %v7023 = vsub.f32 %v6942, %v6990
    %v7024 = vsub.f32 %v6943, %v6993
    %v7025 = vsub.f32 %v6944, %v6996
    %v7026 = vsub.f32 %v6945, %v6999
    %v7027 = vsub.f32 %v6946, %v7002
    %v7028 = vsub.f32 %v6947, %v7005
    %v7029 = vsub.f32 %v6948, %v7008
    %v7030 = vsub.f32 %v6949, %v7011
    %v7031 = vsub.f32 %v6950, %v7014
    %7032 = vmatpush.msra.mxu0 %v7031
    %7033 = vmatpush.msra.mxu0 %v7030
    %7034 = vmatpush.msra.mxu0 %v7029
    %7035 = vmatpush.msra.mxu0 %v7028
    %7036 = vmatpush.msra.mxu0 %v7027
    %7037 = vmatpush.msra.mxu0 %v7026
    %7038 = vmatpush.msra.mxu0 %v7025
    %7039 = vmatpush.msra.mxu0 %v7024
    %7040 = vmatpush.msra.mxu0 %v7023
    %7041 = vmatpush.msra.mxu0 %v7022
    %7042 = vmatpush.msra.mxu0 %v7021
    %7043 = vmatpush.msra.mxu0 %v7020
    %7044 = vmatpush.msra.mxu0 %v7019
    %7045 = vmatpush.msra.mxu0 %v7018
    %7046 = vmatpush.msra.mxu0 %v7017
    %7047 = vmatpush.msra.mxu0 %v7016
    %7048 = vmatmul.f32.gmra.mxu0 %v6402
    %v7049 = vpop.f32.mrf.mxu0
    %v7050 = vadd.f32 0.0, %v7049
    %7051 = vmatmul.f32.gmra.mxu0 %v6403
    %v7052 = vpop.f32.mrf.mxu0
    %v7053 = vadd.f32 0.0, %v7052
    %7054 = vmatmul.f32.gmra.mxu0 %v6404
    %v7055 = vpop.f32.mrf.mxu0
    %v7056 = vadd.f32 0.0, %v7055
    %7057 = vmatmul.f32.gmra.mxu0 %v6405
    %v7058 = vpop.f32.mrf.mxu0
    %v7059 = vadd.f32 0.0, %v7058
    %7060 = vmatmul.f32.gmra.mxu0 %v6406
    %v7061 = vpop.f32.mrf.mxu0
    %v7062 = vadd.f32 0.0, %v7061
    %7063 = vmatmul.f32.gmra.mxu0 %v6407
    %v7064 = vpop.f32.mrf.mxu0
    %v7065 = vadd.f32 0.0, %v7064
    %7066 = vmatmul.f32.gmra.mxu0 %v6408
    %v7067 = vpop.f32.mrf.mxu0
    %v7068 = vadd.f32 0.0, %v7067
    %7069 = vmatmul.f32.gmra.mxu0 %v6409
    %v7070 = vpop.f32.mrf.mxu0
    %v7071 = vadd.f32 0.0, %v7070
    %7072 = vmatmul.f32.gmra.mxu0 %v6410
    %v7073 = vpop.f32.mrf.mxu0
    %v7074 = vadd.f32 0.0, %v7073
    %7075 = vmatmul.f32.gmra.mxu0 %v6411
    %v7076 = vpop.f32.mrf.mxu0
    %v7077 = vadd.f32 0.0, %v7076
    %7078 = vmatmul.f32.gmra.mxu0 %v6412
    %v7079 = vpop.f32.mrf.mxu0
    %v7080 = vadd.f32 0.0, %v7079
    %7081 = vmatmul.f32.gmra.mxu0 %v6413
    %v7082 = vpop.f32.mrf.mxu0
    %v7083 = vadd.f32 0.0, %v7082
    %7084 = vmatmul.f32.gmra.mxu0 %v6414
    %v7085 = vpop.f32.mrf.mxu0
    %v7086 = vadd.f32 0.0, %v7085
    %7087 = vmatmul.f32.gmra.mxu0 %v6415
    %v7088 = vpop.f32.mrf.mxu0
    %v7089 = vadd.f32 0.0, %v7088
    %7090 = vmatmul.f32.gmra.mxu0 %v6416
    %v7091 = vpop.f32.mrf.mxu0
    %v7092 = vadd.f32 0.0, %v7091
    %7093 = vmatmul.f32.gmra.mxu0 %v6417
    %v7094 = vpop.f32.mrf.mxu0
    %v7095 = vadd.f32 0.0, %v7094
    %7096 = vdwg.mxu0
    %v7097 = vmul.f32 %v7016, 2.0
    %v7098 = vmul.f32 %v7017, 2.0
    %v7099 = vmul.f32 %v7018, 2.0
    %v7100 = vmul.f32 %v7019, 2.0
    %v7101 = vmul.f32 %v7020, 2.0
    %v7102 = vmul.f32 %v7021, 2.0
    %v7103 = vmul.f32 %v7022, 2.0
    %v7104 = vmul.f32 %v7023, 2.0
    %v7105 = vmul.f32 %v7024, 2.0
    %v7106 = vmul.f32 %v7025, 2.0
    %v7107 = vmul.f32 %v7026, 2.0
    %v7108 = vmul.f32 %v7027, 2.0
    %v7109 = vmul.f32 %v7028, 2.0
    %v7110 = vmul.f32 %v7029, 2.0
    %v7111 = vmul.f32 %v7030, 2.0
    %v7112 = vmul.f32 %v7031, 2.0
    %7113 = vmatpush.msra.mxu0 %v7095
    %7114 = vmatpush.msra.mxu0 %v7092
    %7115 = vmatpush.msra.mxu0 %v7089
    %7116 = vmatpush.msra.mxu0 %v7086
    %7117 = vmatpush.msra.mxu0 %v7083
    %7118 = vmatpush.msra.mxu0 %v7080
    %7119 = vmatpush.msra.mxu0 %v7077
    %7120 = vmatpush.msra.mxu0 %v7074
    %7121 = vmatpush.msra.mxu0 %v7071
    %7122 = vmatpush.msra.mxu0 %v7068
    %7123 = vmatpush.msra.mxu0 %v7065
    %7124 = vmatpush.msra.mxu0 %v7062
    %7125 = vmatpush.msra.mxu0 %v7059
    %7126 = vmatpush.msra.mxu0 %v7056
    %7127 = vmatpush.msra.mxu0 %v7053
    %7128 = vmatpush.msra.mxu0 %v7050
    %7129 = vmatmul.f32.gmra.mxu0 %v7016
    %v7130 = vpop.f32.mrf.mxu0
    %v7131 = vadd.f32 0.0, %v7130
    %7132 = vmatmul.f32.gmra.mxu0 %v7017
    %v7133 = vpop.f32.mrf.mxu0
    %v7134 = vadd.f32 0.0, %v7133
    %7135 = vmatmul.f32.gmra.mxu0 %v7018
    %v7136 = vpop.f32.mrf.mxu0
    %v7137 = vadd.f32 0.0, %v7136
    %7138 = vmatmul.f32.gmra.mxu0 %v7019
    %v7139 = vpop.f32.mrf.mxu0
    %v7140 = vadd.f32 0.0, %v7139
    %7141 = vmatmul.f32.gmra.mxu0 %v7020
    %v7142 = vpop.f32.mrf.mxu0
    %v7143 = vadd.f32 0.0, %v7142
    %7144 = vmatmul.f32.gmra.mxu0 %v7021
    %v7145 = vpop.f32.mrf.mxu0
    %v7146 = vadd.f32 0.0, %v7145
    %7147 = vmatmul.f32.gmra.mxu0 %v7022
    %v7148 = vpop.f32.mrf.mxu0
    %v7149 = vadd.f32 0.0, %v7148
    %7150 = vmatmul.f32.gmra.mxu0 %v7023
    %v7151 = vpop.f32.mrf.mxu0
    %v7152 = vadd.f32 0.0, %v7151
    %7153 = vmatmul.f32.gmra.mxu0 %v7024
    %v7154 = vpop.f32.mrf.mxu0
    %v7155 = vadd.f32 0.0, %v7154
    %7156 = vmatmul.f32.gmra.mxu0 %v7025
    %v7157 = vpop.f32.mrf.mxu0
    %v7158 = vadd.f32 0.0, %v7157
    %7159 = vmatmul.f32.gmra.mxu0 %v7026
    %v7160 = vpop.f32.mrf.mxu0
    %v7161 = vadd.f32 0.0, %v7160
    %7162 = vmatmul.f32.gmra.mxu0 %v7027
    %v7163 = vpop.f32.mrf.mxu0
    %v7164 = vadd.f32 0.0, %v7163
    %7165 = vmatmul.f32.gmra.mxu0 %v7028
    %v7166 = vpop.f32.mrf.mxu0
    %v7167 = vadd.f32 0.0, %v7166
    %7168 = vmatmul.f32.gmra.mxu0 %v7029
    %v7169 = vpop.f32.mrf.mxu0
    %v7170 = vadd.f32 0.0, %v7169
    %7171 = vmatmul.f32.gmra.mxu0 %v7030
    %v7172 = vpop.f32.mrf.mxu0
    %v7173 = vadd.f32 0.0, %v7172
    %7174 = vmatmul.f32.gmra.mxu0 %v7031
    %v7175 = vpop.f32.mrf.mxu0
    %v7176 = vadd.f32 0.0, %v7175
    %7177 = vdwg.mxu0
    %v7178 = vsub.f32 %v7097, %v7131
    %v7179 = vsub.f32 %v7098, %v7134
    %v7180 = vsub.f32 %v7099, %v7137
    %v7181 = vsub.f32 %v7100, %v7140
    %v7182 = vsub.f32 %v7101, %v7143
    %v7183 = vsub.f32 %v7102, %v7146
    %v7184 = vsub.f32 %v7103, %v7149
    %v7185 = vsub.f32 %v7104, %v7152
    %v7186 = vsub.f32 %v7105, %v7155
    %v7187 = vsub.f32 %v7106, %v7158
    %v7188 = vsub.f32 %v7107, %v7161
    %v7189 = vsub.f32 %v7108, %v7164
    %v7190 = vsub.f32 %v7109, %v7167
    %v7191 = vsub.f32 %v7110, %v7170
    %v7192 = vsub.f32 %v7111, %v7173
    %v7193 = vsub.f32 %v7112, %v7176
    %7194 = vmatpush.msra.mxu0 %v7193
    %7195 = vmatpush.msra.mxu0 %v7192
    %7196 = vmatpush.msra.mxu0 %v7191
    %7197 = vmatpush.msra.mxu0 %v7190
    %7198 = vmatpush.msra.mxu0 %v7189
    %7199 = vmatpush.msra.mxu0 %v7188
    %7200 = vmatpush.msra.mxu0 %v7187
    %7201 = vmatpush.msra.mxu0 %v7186
    %7202 = vmatpush.msra.mxu0 %v7185
    %7203 = vmatpush.msra.mxu0 %v7184
    %7204 = vmatpush.msra.mxu0 %v7183
    %7205 = vmatpush.msra.mxu0 %v7182
    %7206 = vmatpush.msra.mxu0 %v7181
    %7207 = vmatpush.msra.mxu0 %v7180
    %7208 = vmatpush.msra.mxu0 %v7179
    %7209 = vmatpush.msra.mxu0 %v7178
    %7210 = vmatmul.f32.gmra.mxu0 %v6402
    %v7211 = vpop.f32.mrf.mxu0
    %v7212 = vadd.f32 0.0, %v7211
    %7213 = vmatmul.f32.gmra.mxu0 %v6403
    %v7214 = vpop.f32.mrf.mxu0
    %v7215 = vadd.f32 0.0, %v7214
    %7216 = vmatmul.f32.gmra.mxu0 %v6404
    %v7217 = vpop.f32.mrf.mxu0
    %v7218 = vadd.f32 0.0, %v7217
    %7219 = vmatmul.f32.gmra.mxu0 %v6405
    %v7220 = vpop.f32.mrf.mxu0
    %v7221 = vadd.f32 0.0, %v7220
    %7222 = vmatmul.f32.gmra.mxu0 %v6406
    %v7223 = vpop.f32.mrf.mxu0
    %v7224 = vadd.f32 0.0, %v7223
    %7225 = vmatmul.f32.gmra.mxu0 %v6407
    %v7226 = vpop.f32.mrf.mxu0
    %v7227 = vadd.f32 0.0, %v7226
    %7228 = vmatmul.f32.gmra.mxu0 %v6408
    %v7229 = vpop.f32.mrf.mxu0
    %v7230 = vadd.f32 0.0, %v7229
    %7231 = vmatmul.f32.gmra.mxu0 %v6409
    %v7232 = vpop.f32.mrf.mxu0
    %v7233 = vadd.f32 0.0, %v7232
    %7234 = vmatmul.f32.gmra.mxu0 %v6410
    %v7235 = vpop.f32.mrf.mxu0
    %v7236 = vadd.f32 0.0, %v7235
    %7237 = vmatmul.f32.gmra.mxu0 %v6411
    %v7238 = vpop.f32.mrf.mxu0
    %v7239 = vadd.f32 0.0, %v7238
    %7240 = vmatmul.f32.gmra.mxu0 %v6412
    %v7241 = vpop.f32.mrf.mxu0
    %v7242 = vadd.f32 0.0, %v7241
    %7243 = vmatmul.f32.gmra.mxu0 %v6413
    %v7244 = vpop.f32.mrf.mxu0
    %v7245 = vadd.f32 0.0, %v7244
    %7246 = vmatmul.f32.gmra.mxu0 %v6414
    %v7247 = vpop.f32.mrf.mxu0
    %v7248 = vadd.f32 0.0, %v7247
    %7249 = vmatmul.f32.gmra.mxu0 %v6415
    %v7250 = vpop.f32.mrf.mxu0
    %v7251 = vadd.f32 0.0, %v7250
    %7252 = vmatmul.f32.gmra.mxu0 %v6416
    %v7253 = vpop.f32.mrf.mxu0
    %v7254 = vadd.f32 0.0, %v7253
    %7255 = vmatmul.f32.gmra.mxu0 %v6417
    %v7256 = vpop.f32.mrf.mxu0
    %v7257 = vadd.f32 0.0, %v7256
    %7258 = vdwg.mxu0
    %v7259 = vmul.f32 %v7178, 2.0
    %v7260 = vmul.f32 %v7179, 2.0
    %v7261 = vmul.f32 %v7180, 2.0
    %v7262 = vmul.f32 %v7181, 2.0
    %v7263 = vmul.f32 %v7182, 2.0
    %v7264 = vmul.f32 %v7183, 2.0
    %v7265 = vmul.f32 %v7184, 2.0
    %v7266 = vmul.f32 %v7185, 2.0
    %v7267 = vmul.f32 %v7186, 2.0
    %v7268 = vmul.f32 %v7187, 2.0
    %v7269 = vmul.f32 %v7188, 2.0
    %v7270 = vmul.f32 %v7189, 2.0
    %v7271 = vmul.f32 %v7190, 2.0
    %v7272 = vmul.f32 %v7191, 2.0
    %v7273 = vmul.f32 %v7192, 2.0
    %v7274 = vmul.f32 %v7193, 2.0
    %7275 = vmatpush.msra.mxu0 %v7257
    %7276 = vmatpush.msra.mxu0 %v7254
    %7277 = vmatpush.msra.mxu0 %v7251
    %7278 = vmatpush.msra.mxu0 %v7248
    %7279 = vmatpush.msra.mxu0 %v7245
    %7280 = vmatpush.msra.mxu0 %v7242
    %7281 = vmatpush.msra.mxu0 %v7239
    %7282 = vmatpush.msra.mxu0 %v7236
    %7283 = vmatpush.msra.mxu0 %v7233
    %7284 = vmatpush.msra.mxu0 %v7230
    %7285 = vmatpush.msra.mxu0 %v7227
    %7286 = vmatpush.msra.mxu0 %v7224
    %7287 = vmatpush.msra.mxu0 %v7221
    %7288 = vmatpush.msra.mxu0 %v7218
    %7289 = vmatpush.msra.mxu0 %v7215
    %7290 = vmatpush.msra.mxu0 %v7212
    %7291 = vmatmul.f32.gmra.mxu0 %v7178
    %v7292 = vpop.f32.mrf.mxu0
    %v7293 = vadd.f32 0.0, %v7292
    %7294 = vmatmul.f32.gmra.mxu0 %v7179
    %v7295 = vpop.f32.mrf.mxu0
    %v7296 = vadd.f32 0.0, %v7295
    %7297 = vmatmul.f32.gmra.mxu0 %v7180
    %v7298 = vpop.f32.mrf.mxu0
    %v7299 = vadd.f32 0.0, %v7298
    %7300 = vmatmul.f32.gmra.mxu0 %v7181
    %v7301 = vpop.f32.mrf.mxu0
    %v7302 = vadd.f32 0.0, %v7301
    %7303 = vmatmul.f32.gmra.mxu0 %v7182
    %v7304 = vpop.f32.mrf.mxu0
    %v7305 = vadd.f32 0.0, %v7304
    %7306 = vmatmul.f32.gmra.mxu0 %v7183
    %v7307 = vpop.f32.mrf.mxu0
    %v7308 = vadd.f32 0.0, %v7307
    %7309 = vmatmul.f32.gmra.mxu0 %v7184
    %v7310 = vpop.f32.mrf.mxu0
    %v7311 = vadd.f32 0.0, %v7310
    %7312 = vmatmul.f32.gmra.mxu0 %v7185
    %v7313 = vpop.f32.mrf.mxu0
    %v7314 = vadd.f32 0.0, %v7313
    %7315 = vmatmul.f32.gmra.mxu0 %v7186
    %v7316 = vpop.f32.mrf.mxu0
    %v7317 = vadd.f32 0.0, %v7316
    %7318 = vmatmul.f32.gmra.mxu0 %v7187
    %v7319 = vpop.f32.mrf.mxu0
    %v7320 = vadd.f32 0.0, %v7319
    %7321 = vmatmul.f32.gmra.mxu0 %v7188
    %v7322 = vpop.f32.mrf.mxu0
    %v7323 = vadd.f32 0.0, %v7322
    %7324 = vmatmul.f32.gmra.mxu0 %v7189
    %v7325 = vpop.f32.mrf.mxu0
    %v7326 = vadd.f32 0.0, %v7325
    %7327 = vmatmul.f32.gmra.mxu0 %v7190
    %v7328 = vpop.f32.mrf.mxu0
    %v7329 = vadd.f32 0.0, %v7328
    %7330 = vmatmul.f32.gmra.mxu0 %v7191
    %v7331 = vpop.f32.mrf.mxu0
    %v7332 = vadd.f32 0.0, %v7331
    %7333 = vmatmul.f32.gmra.mxu0 %v7192
    %v7334 = vpop.f32.mrf.mxu0
    %v7335 = vadd.f32 0.0, %v7334
    %7336 = vmatmul.f32.gmra.mxu0 %v7193
    %v7337 = vpop.f32.mrf.mxu0
    %v7338 = vadd.f32 0.0, %v7337
    %7339 = vdwg.mxu0
    %v7340 = vsub.f32 %v7259, %v7293
    %v7341 = vsub.f32 %v7260, %v7296
    %v7342 = vsub.f32 %v7261, %v7299
    %v7343 = vsub.f32 %v7262, %v7302
    %v7344 = vsub.f32 %v7263, %v7305
    %v7345 = vsub.f32 %v7264, %v7308
    %v7346 = vsub.f32 %v7265, %v7311
    %v7347 = vsub.f32 %v7266, %v7314
    %v7348 = vsub.f32 %v7267, %v7317
    %v7349 = vsub.f32 %v7268, %v7320
    %v7350 = vsub.f32 %v7269, %v7323
    %v7351 = vsub.f32 %v7270, %v7326
    %v7352 = vsub.f32 %v7271, %v7329
    %v7353 = vsub.f32 %v7272, %v7332
    %v7354 = vsub.f32 %v7273, %v7335
    %v7355 = vsub.f32 %v7274, %v7338
    %7356 = vmatpush.msra.mxu0 %v7355
    %7357 = vmatpush.msra.mxu0 %v7354
    %7358 = vmatpush.msra.mxu0 %v7353
    %7359 = vmatpush.msra.mxu0 %v7352
    %7360 = vmatpush.msra.mxu0 %v7351
    %7361 = vmatpush.msra.mxu0 %v7350
    %7362 = vmatpush.msra.mxu0 %v7349
    %7363 = vmatpush.msra.mxu0 %v7348
    %7364 = vmatpush.msra.mxu0 %v7347
    %7365 = vmatpush.msra.mxu0 %v7346
    %7366 = vmatpush.msra.mxu0 %v7345
    %7367 = vmatpush.msra.mxu0 %v7344
    %7368 = vmatpush.msra.mxu0 %v7343
    %7369 = vmatpush.msra.mxu0 %v7342
    %7370 = vmatpush.msra.mxu0 %v7341
    %7371 = vmatpush.msra.mxu0 %v7340
    %7372 = vmatmul.f32.gmra.mxu0 %v6402
    %v7373 = vpop.f32.mrf.mxu0
    %v7374 = vadd.f32 0.0, %v7373
    %7375 = vmatmul.f32.gmra.mxu0 %v6403
    %v7376 = vpop.f32.mrf.mxu0
    %v7377 = vadd.f32 0.0, %v7376
    %7378 = vmatmul.f32.gmra.mxu0 %v6404
    %v7379 = vpop.f32.mrf.mxu0
    %v7380 = vadd.f32 0.0, %v7379
    %7381 = vmatmul.f32.gmra.mxu0 %v6405
    %v7382 = vpop.f32.mrf.mxu0
    %v7383 = vadd.f32 0.0, %v7382
    %7384 = vmatmul.f32.gmra.mxu0 %v6406
    %v7385 = vpop.f32.mrf.mxu0
    %v7386 = vadd.f32 0.0, %v7385
    %7387 = vmatmul.f32.gmra.mxu0 %v6407
    %v7388 = vpop.f32.mrf.mxu0
    %v7389 = vadd.f32 0.0, %v7388
    %7390 = vmatmul.f32.gmra.mxu0 %v6408
    %v7391 = vpop.f32.mrf.mxu0
    %v7392 = vadd.f32 0.0, %v7391
    %7393 = vmatmul.f32.gmra.mxu0 %v6409
    %v7394 = vpop.f32.mrf.mxu0
    %v7395 = vadd.f32 0.0, %v7394
    %7396 = vmatmul.f32.gmra.mxu0 %v6410
    %v7397 = vpop.f32.mrf.mxu0
    %v7398 = vadd.f32 0.0, %v7397
    %7399 = vmatmul.f32.gmra.mxu0 %v6411
    %v7400 = vpop.f32.mrf.mxu0
    %v7401 = vadd.f32 0.0, %v7400
    %7402 = vmatmul.f32.gmra.mxu0 %v6412
    %v7403 = vpop.f32.mrf.mxu0
    %v7404 = vadd.f32 0.0, %v7403
    %7405 = vmatmul.f32.gmra.mxu0 %v6413
    %v7406 = vpop.f32.mrf.mxu0
    %v7407 = vadd.f32 0.0, %v7406
    %7408 = vmatmul.f32.gmra.mxu0 %v6414
    %v7409 = vpop.f32.mrf.mxu0
    %v7410 = vadd.f32 0.0, %v7409
    %7411 = vmatmul.f32.gmra.mxu0 %v6415
    %v7412 = vpop.f32.mrf.mxu0
    %v7413 = vadd.f32 0.0, %v7412
    %7414 = vmatmul.f32.gmra.mxu0 %v6416
    %v7415 = vpop.f32.mrf.mxu0
    %v7416 = vadd.f32 0.0, %v7415
    %7417 = vmatmul.f32.gmra.mxu0 %v6417
    %v7418 = vpop.f32.mrf.mxu0
    %v7419 = vadd.f32 0.0, %v7418
    %7420 = vdwg.mxu0
    %v7421 = vmul.f32 %v7340, 2.0
    %v7422 = vmul.f32 %v7341, 2.0
    %v7423 = vmul.f32 %v7342, 2.0
    %v7424 = vmul.f32 %v7343, 2.0
    %v7425 = vmul.f32 %v7344, 2.0
    %v7426 = vmul.f32 %v7345, 2.0
    %v7427 = vmul.f32 %v7346, 2.0
    %v7428 = vmul.f32 %v7347, 2.0
    %v7429 = vmul.f32 %v7348, 2.0
    %v7430 = vmul.f32 %v7349, 2.0
    %v7431 = vmul.f32 %v7350, 2.0
    %v7432 = vmul.f32 %v7351, 2.0
    %v7433 = vmul.f32 %v7352, 2.0
    %v7434 = vmul.f32 %v7353, 2.0
    %v7435 = vmul.f32 %v7354, 2.0
    %v7436 = vmul.f32 %v7355, 2.0
    %7437 = vmatpush.msra.mxu0 %v7419
    %7438 = vmatpush.msra.mxu0 %v7416
    %7439 = vmatpush.msra.mxu0 %v7413
    %7440 = vmatpush.msra.mxu0 %v7410
    %7441 = vmatpush.msra.mxu0 %v7407
    %7442 = vmatpush.msra.mxu0 %v7404
    %7443 = vmatpush.msra.mxu0 %v7401
    %7444 = vmatpush.msra.mxu0 %v7398
    %7445 = vmatpush.msra.mxu0 %v7395
    %7446 = vmatpush.msra.mxu0 %v7392
    %7447 = vmatpush.msra.mxu0 %v7389
    %7448 = vmatpush.msra.mxu0 %v7386
    %7449 = vmatpush.msra.mxu0 %v7383
    %7450 = vmatpush.msra.mxu0 %v7380
    %7451 = vmatpush.msra.mxu0 %v7377
    %7452 = vmatpush.msra.mxu0 %v7374
    %7453 = vmatmul.f32.gmra.mxu0 %v7340
    %v7454 = vpop.f32.mrf.mxu0
    %v7455 = vadd.f32 0.0, %v7454
    %7456 = vmatmul.f32.gmra.mxu0 %v7341
    %v7457 = vpop.f32.mrf.mxu0
    %v7458 = vadd.f32 0.0, %v7457
    %7459 = vmatmul.f32.gmra.mxu0 %v7342
    %v7460 = vpop.f32.mrf.mxu0
    %v7461 = vadd.f32 0.0, %v7460
    %7462 = vmatmul.f32.gmra.mxu0 %v7343
    %v7463 = vpop.f32.mrf.mxu0
    %v7464 = vadd.f32 0.0, %v7463
    %7465 = vmatmul.f32.gmra.mxu0 %v7344
    %v7466 = vpop.f32.mrf.mxu0
    %v7467 = vadd.f32 0.0, %v7466
    %7468 = vmatmul.f32.gmra.mxu0 %v7345
    %v7469 = vpop.f32.mrf.mxu0
    %v7470 = vadd.f32 0.0, %v7469
    %7471 = vmatmul.f32.gmra.mxu0 %v7346
    %v7472 = vpop.f32.mrf.mxu0
    %v7473 = vadd.f32 0.0, %v7472
    %7474 = vmatmul.f32.gmra.mxu0 %v7347
    %v7475 = vpop.f32.mrf.mxu0
    %v7476 = vadd.f32 0.0, %v7475
    %7477 = vmatmul.f32.gmra.mxu0 %v7348
    %v7478 = vpop.f32.mrf.mxu0
    %v7479 = vadd.f32 0.0, %v7478
    %7480 = vmatmul.f32.gmra.mxu0 %v7349
    %v7481 = vpop.f32.mrf.mxu0
    %v7482 = vadd.f32 0.0, %v7481
    %7483 = vmatmul.f32.gmra.mxu0 %v7350
    %v7484 = vpop.f32.mrf.mxu0
    %v7485 = vadd.f32 0.0, %v7484
    %7486 = vmatmul.f32.gmra.mxu0 %v7351
    %v7487 = vpop.f32.mrf.mxu0
    %v7488 = vadd.f32 0.0, %v7487
    %7489 = vmatmul.f32.gmra.mxu0 %v7352
    %v7490 = vpop.f32.mrf.mxu0
    %v7491 = vadd.f32 0.0, %v7490
    %7492 = vmatmul.f32.gmra.mxu0 %v7353
    %v7493 = vpop.f32.mrf.mxu0
    %v7494 = vadd.f32 0.0, %v7493
    %7495 = vmatmul.f32.gmra.mxu0 %v7354
    %v7496 = vpop.f32.mrf.mxu0
    %v7497 = vadd.f32 0.0, %v7496
    %7498 = vmatmul.f32.gmra.mxu0 %v7355
    %v7499 = vpop.f32.mrf.mxu0
    %v7500 = vadd.f32 0.0, %v7499
    %7501 = vdwg.mxu0
    %v7502 = vsub.f32 %v7421, %v7455
    %v7503 = vsub.f32 %v7422, %v7458
    %v7504 = vsub.f32 %v7423, %v7461
    %v7505 = vsub.f32 %v7424, %v7464
    %v7506 = vsub.f32 %v7425, %v7467
    %v7507 = vsub.f32 %v7426, %v7470
    %v7508 = vsub.f32 %v7427, %v7473
    %v7509 = vsub.f32 %v7428, %v7476
    %v7510 = vsub.f32 %v7429, %v7479
    %v7511 = vsub.f32 %v7430, %v7482
    %v7512 = vsub.f32 %v7431, %v7485
    %v7513 = vsub.f32 %v7432, %v7488
    %v7514 = vsub.f32 %v7433, %v7491
    %v7515 = vsub.f32 %v7434, %v7494
    %v7516 = vsub.f32 %v7435, %v7497
    %v7517 = vsub.f32 %v7436, %v7500
    %7518 = vmatpush.msra.mxu0 %v7517
    %7519 = vmatpush.msra.mxu0 %v7516
    %7520 = vmatpush.msra.mxu0 %v7515
    %7521 = vmatpush.msra.mxu0 %v7514
    %7522 = vmatpush.msra.mxu0 %v7513
    %7523 = vmatpush.msra.mxu0 %v7512
    %7524 = vmatpush.msra.mxu0 %v7511
    %7525 = vmatpush.msra.mxu0 %v7510
    %7526 = vmatpush.msra.mxu0 %v7509
    %7527 = vmatpush.msra.mxu0 %v7508
    %7528 = vmatpush.msra.mxu0 %v7507
    %7529 = vmatpush.msra.mxu0 %v7506
    %7530 = vmatpush.msra.mxu0 %v7505
    %7531 = vmatpush.msra.mxu0 %v7504
    %7532 = vmatpush.msra.mxu0 %v7503
    %7533 = vmatpush.msra.mxu0 %v7502
    %7534 = vmatmul.f32.gmra.mxu0 %v6402
    %v7535 = vpop.f32.mrf.mxu0
    %v7536 = vadd.f32 0.0, %v7535
    %7537 = vmatmul.f32.gmra.mxu0 %v6403
    %v7538 = vpop.f32.mrf.mxu0
    %v7539 = vadd.f32 0.0, %v7538
    %7540 = vmatmul.f32.gmra.mxu0 %v6404
    %v7541 = vpop.f32.mrf.mxu0
    %v7542 = vadd.f32 0.0, %v7541
    %7543 = vmatmul.f32.gmra.mxu0 %v6405
    %v7544 = vpop.f32.mrf.mxu0
    %v7545 = vadd.f32 0.0, %v7544
    %7546 = vmatmul.f32.gmra.mxu0 %v6406
    %v7547 = vpop.f32.mrf.mxu0
    %v7548 = vadd.f32 0.0, %v7547
    %7549 = vmatmul.f32.gmra.mxu0 %v6407
    %v7550 = vpop.f32.mrf.mxu0
    %v7551 = vadd.f32 0.0, %v7550
    %7552 = vmatmul.f32.gmra.mxu0 %v6408
    %v7553 = vpop.f32.mrf.mxu0
    %v7554 = vadd.f32 0.0, %v7553
    %7555 = vmatmul.f32.gmra.mxu0 %v6409
    %v7556 = vpop.f32.mrf.mxu0
    %v7557 = vadd.f32 0.0, %v7556
    %7558 = vmatmul.f32.gmra.mxu0 %v6410
    %v7559 = vpop.f32.mrf.mxu0
    %v7560 = vadd.f32 0.0, %v7559
    %7561 = vmatmul.f32.gmra.mxu0 %v6411
    %v7562 = vpop.f32.mrf.mxu0
    %v7563 = vadd.f32 0.0, %v7562
    %7564 = vmatmul.f32.gmra.mxu0 %v6412
    %v7565 = vpop.f32.mrf.mxu0
    %v7566 = vadd.f32 0.0, %v7565
    %7567 = vmatmul.f32.gmra.mxu0 %v6413
    %v7568 = vpop.f32.mrf.mxu0
    %v7569 = vadd.f32 0.0, %v7568
    %7570 = vmatmul.f32.gmra.mxu0 %v6414
    %v7571 = vpop.f32.mrf.mxu0
    %v7572 = vadd.f32 0.0, %v7571
    %7573 = vmatmul.f32.gmra.mxu0 %v6415
    %v7574 = vpop.f32.mrf.mxu0
    %v7575 = vadd.f32 0.0, %v7574
    %7576 = vmatmul.f32.gmra.mxu0 %v6416
    %v7577 = vpop.f32.mrf.mxu0
    %v7578 = vadd.f32 0.0, %v7577
    %7579 = vmatmul.f32.gmra.mxu0 %v6417
    %v7580 = vpop.f32.mrf.mxu0
    %v7581 = vadd.f32 0.0, %v7580
    %7582 = vdwg.mxu0
    %v7583 = vmul.f32 %v7502, 2.0
    %v7584 = vmul.f32 %v7503, 2.0
    %v7585 = vmul.f32 %v7504, 2.0
    %v7586 = vmul.f32 %v7505, 2.0
    %v7587 = vmul.f32 %v7506, 2.0
    %v7588 = vmul.f32 %v7507, 2.0
    %v7589 = vmul.f32 %v7508, 2.0
    %v7590 = vmul.f32 %v7509, 2.0
    %v7591 = vmul.f32 %v7510, 2.0
    %v7592 = vmul.f32 %v7511, 2.0
    %v7593 = vmul.f32 %v7512, 2.0
    %v7594 = vmul.f32 %v7513, 2.0
    %v7595 = vmul.f32 %v7514, 2.0
    %v7596 = vmul.f32 %v7515, 2.0
    %v7597 = vmul.f32 %v7516, 2.0
    %v7598 = vmul.f32 %v7517, 2.0
    %7599 = vmatpush.msra.mxu0 %v7581
    %7600 = vmatpush.msra.mxu0 %v7578
    %7601 = vmatpush.msra.mxu0 %v7575
    %7602 = vmatpush.msra.mxu0 %v7572
    %7603 = vmatpush.msra.mxu0 %v7569
    %7604 = vmatpush.msra.mxu0 %v7566
    %7605 = vmatpush.msra.mxu0 %v7563
    %7606 = vmatpush.msra.mxu0 %v7560
    %7607 = vmatpush.msra.mxu0 %v7557
    %7608 = vmatpush.msra.mxu0 %v7554
    %7609 = vmatpush.msra.mxu0 %v7551
    %7610 = vmatpush.msra.mxu0 %v7548
    %7611 = vmatpush.msra.mxu0 %v7545
    %7612 = vmatpush.msra.mxu0 %v7542
    %7613 = vmatpush.msra.mxu0 %v7539
    %7614 = vmatpush.msra.mxu0 %v7536
    %7615 = vmatmul.f32.gmra.mxu0 %v7502
    %v7616 = vpop.f32.mrf.mxu0
    %v7617 = vadd.f32 0.0, %v7616
    %7618 = vmatmul.f32.gmra.mxu0 %v7503
    %v7619 = vpop.f32.mrf.mxu0
    %v7620 = vadd.f32 0.0, %v7619
    %7621 = vmatmul.f32.gmra.mxu0 %v7504
    %v7622 = vpop.f32.mrf.mxu0
    %v7623 = vadd.f32 0.0, %v7622
    %7624 = vmatmul.f32.gmra.mxu0 %v7505
    %v7625 = vpop.f32.mrf.mxu0
    %v7626 = vadd.f32 0.0, %v7625
    %7627 = vmatmul.f32.gmra.mxu0 %v7506
    %v7628 = vpop.f32.mrf.mxu0
    %v7629 = vadd.f32 0.0, %v7628
    %7630 = vmatmul.f32.gmra.mxu0 %v7507
    %v7631 = vpop.f32.mrf.mxu0
    %v7632 = vadd.f32 0.0, %v7631
    %7633 = vmatmul.f32.gmra.mxu0 %v7508
    %v7634 = vpop.f32.mrf.mxu0
    %v7635 = vadd.f32 0.0, %v7634
    %7636 = vmatmul.f32.gmra.mxu0 %v7509
    %v7637 = vpop.f32.mrf.mxu0
    %v7638 = vadd.f32 0.0, %v7637
    %7639 = vmatmul.f32.gmra.mxu0 %v7510
    %v7640 = vpop.f32.mrf.mxu0
    %v7641 = vadd.f32 0.0, %v7640
    %7642 = vmatmul.f32.gmra.mxu0 %v7511
    %v7643 = vpop.f32.mrf.mxu0
    %v7644 = vadd.f32 0.0, %v7643
    %7645 = vmatmul.f32.gmra.mxu0 %v7512
    %v7646 = vpop.f32.mrf.mxu0
    %v7647 = vadd.f32 0.0, %v7646
    %7648 = vmatmul.f32.gmra.mxu0 %v7513
    %v7649 = vpop.f32.mrf.mxu0
    %v7650 = vadd.f32 0.0, %v7649
    %7651 = vmatmul.f32.gmra.mxu0 %v7514
    %v7652 = vpop.f32.mrf.mxu0
    %v7653 = vadd.f32 0.0, %v7652
    %7654 = vmatmul.f32.gmra.mxu0 %v7515
    %v7655 = vpop.f32.mrf.mxu0
    %v7656 = vadd.f32 0.0, %v7655
    %7657 = vmatmul.f32.gmra.mxu0 %v7516
    %v7658 = vpop.f32.mrf.mxu0
    %v7659 = vadd.f32 0.0, %v7658
    %7660 = vmatmul.f32.gmra.mxu0 %v7517
    %v7661 = vpop.f32.mrf.mxu0
    %v7662 = vadd.f32 0.0, %v7661
    %7663 = vdwg.mxu0
    %v7664 = vsub.f32 %v7583, %v7617
    %v7665 = vsub.f32 %v7584, %v7620
    %v7666 = vsub.f32 %v7585, %v7623
    %v7667 = vsub.f32 %v7586, %v7626
    %v7668 = vsub.f32 %v7587, %v7629
    %v7669 = vsub.f32 %v7588, %v7632
    %v7670 = vsub.f32 %v7589, %v7635
    %v7671 = vsub.f32 %v7590, %v7638
    %v7672 = vsub.f32 %v7591, %v7641
    %v7673 = vsub.f32 %v7592, %v7644
    %v7674 = vsub.f32 %v7593, %v7647
    %v7675 = vsub.f32 %v7594, %v7650
    %v7676 = vsub.f32 %v7595, %v7653
    %v7677 = vsub.f32 %v7596, %v7656
    %v7678 = vsub.f32 %v7597, %v7659
    %v7679 = vsub.f32 %v7598, %v7662
    %7680 = vmatpush.msra.mxu0 %v7679
    %7681 = vmatpush.msra.mxu0 %v7678
    %7682 = vmatpush.msra.mxu0 %v7677
    %7683 = vmatpush.msra.mxu0 %v7676
    %7684 = vmatpush.msra.mxu0 %v7675
    %7685 = vmatpush.msra.mxu0 %v7674
    %7686 = vmatpush.msra.mxu0 %v7673
    %7687 = vmatpush.msra.mxu0 %v7672
    %7688 = vmatpush.msra.mxu0 %v7671
    %7689 = vmatpush.msra.mxu0 %v7670
    %7690 = vmatpush.msra.mxu0 %v7669
    %7691 = vmatpush.msra.mxu0 %v7668
    %7692 = vmatpush.msra.mxu0 %v7667
    %7693 = vmatpush.msra.mxu0 %v7666
    %7694 = vmatpush.msra.mxu0 %v7665
    %7695 = vmatpush.msra.mxu0 %v7664
    %7696 = vmatmul.f32.gmra.mxu0 %v6402
    %v7697 = vpop.f32.mrf.mxu0
    %v7698 = vadd.f32 0.0, %v7697
    %7699 = vmatmul.f32.gmra.mxu0 %v6403
    %v7700 = vpop.f32.mrf.mxu0
    %v7701 = vadd.f32 0.0, %v7700
    %7702 = vmatmul.f32.gmra.mxu0 %v6404
    %v7703 = vpop.f32.mrf.mxu0
    %v7704 = vadd.f32 0.0, %v7703
    %7705 = vmatmul.f32.gmra.mxu0 %v6405
    %v7706 = vpop.f32.mrf.mxu0
    %v7707 = vadd.f32 0.0, %v7706
    %7708 = vmatmul.f32.gmra.mxu0 %v6406
    %v7709 = vpop.f32.mrf.mxu0
    %v7710 = vadd.f32 0.0, %v7709
    %7711 = vmatmul.f32.gmra.mxu0 %v6407
    %v7712 = vpop.f32.mrf.mxu0
    %v7713 = vadd.f32 0.0, %v7712
    %7714 = vmatmul.f32.gmra.mxu0 %v6408
    %v7715 = vpop.f32.mrf.mxu0
    %v7716 = vadd.f32 0.0, %v7715
    %7717 = vmatmul.f32.gmra.mxu0 %v6409
    %v7718 = vpop.f32.mrf.mxu0
    %v7719 = vadd.f32 0.0, %v7718
    %7720 = vmatmul.f32.gmra.mxu0 %v6410
    %v7721 = vpop.f32.mrf.mxu0
    %v7722 = vadd.f32 0.0, %v7721
    %7723 = vmatmul.f32.gmra.mxu0 %v6411
    %v7724 = vpop.f32.mrf.mxu0
    %v7725 = vadd.f32 0.0, %v7724
    %7726 = vmatmul.f32.gmra.mxu0 %v6412
    %v7727 = vpop.f32.mrf.mxu0
    %v7728 = vadd.f32 0.0, %v7727
    %7729 = vmatmul.f32.gmra.mxu0 %v6413
    %v7730 = vpop.f32.mrf.mxu0
    %v7731 = vadd.f32 0.0, %v7730
    %7732 = vmatmul.f32.gmra.mxu0 %v6414
    %v7733 = vpop.f32.mrf.mxu0
    %v7734 = vadd.f32 0.0, %v7733
    %7735 = vmatmul.f32.gmra.mxu0 %v6415
    %v7736 = vpop.f32.mrf.mxu0
    %v7737 = vadd.f32 0.0, %v7736
    %7738 = vmatmul.f32.gmra.mxu0 %v6416
    %v7739 = vpop.f32.mrf.mxu0
    %v7740 = vadd.f32 0.0, %v7739
    %7741 = vmatmul.f32.gmra.mxu0 %v6417
    %v7742 = vpop.f32.mrf.mxu0
    %v7743 = vadd.f32 0.0, %v7742
    %7744 = vdwg.mxu0
    %v7745 = vmul.f32 %v7664, 2.0
    %v7746 = vmul.f32 %v7665, 2.0
    %v7747 = vmul.f32 %v7666, 2.0
    %v7748 = vmul.f32 %v7667, 2.0
    %v7749 = vmul.f32 %v7668, 2.0
    %v7750 = vmul.f32 %v7669, 2.0
    %v7751 = vmul.f32 %v7670, 2.0
    %v7752 = vmul.f32 %v7671, 2.0
    %v7753 = vmul.f32 %v7672, 2.0
    %v7754 = vmul.f32 %v7673, 2.0
    %v7755 = vmul.f32 %v7674, 2.0
    %v7756 = vmul.f32 %v7675, 2.0
    %v7757 = vmul.f32 %v7676, 2.0
    %v7758 = vmul.f32 %v7677, 2.0
    %v7759 = vmul.f32 %v7678, 2.0
    %v7760 = vmul.f32 %v7679, 2.0
    %7761 = vmatpush.msra.mxu0 %v7743
    %7762 = vmatpush.msra.mxu0 %v7740
    %7763 = vmatpush.msra.mxu0 %v7737
    %7764 = vmatpush.msra.mxu0 %v7734
    %7765 = vmatpush.msra.mxu0 %v7731
    %7766 = vmatpush.msra.mxu0 %v7728
    %7767 = vmatpush.msra.mxu0 %v7725
    %7768 = vmatpush.msra.mxu0 %v7722
    %7769 = vmatpush.msra.mxu0 %v7719
    %7770 = vmatpush.msra.mxu0 %v7716
    %7771 = vmatpush.msra.mxu0 %v7713
    %7772 = vmatpush.msra.mxu0 %v7710
    %7773 = vmatpush.msra.mxu0 %v7707
    %7774 = vmatpush.msra.mxu0 %v7704
    %7775 = vmatpush.msra.mxu0 %v7701
    %7776 = vmatpush.msra.mxu0 %v7698
    %7777 = vmatmul.f32.gmra.mxu0 %v7664
    %v7778 = vpop.f32.mrf.mxu0
    %v7779 = vadd.f32 0.0, %v7778
    %7780 = vmatmul.f32.gmra.mxu0 %v7665
    %v7781 = vpop.f32.mrf.mxu0
    %v7782 = vadd.f32 0.0, %v7781
    %7783 = vmatmul.f32.gmra.mxu0 %v7666
    %v7784 = vpop.f32.mrf.mxu0
    %v7785 = vadd.f32 0.0, %v7784
    %7786 = vmatmul.f32.gmra.mxu0 %v7667
    %v7787 = vpop.f32.mrf.mxu0
    %v7788 = vadd.f32 0.0, %v7787
    %7789 = vmatmul.f32.gmra.mxu0 %v7668
    %v7790 = vpop.f32.mrf.mxu0
    %v7791 = vadd.f32 0.0, %v7790
    %7792 = vmatmul.f32.gmra.mxu0 %v7669
    %v7793 = vpop.f32.mrf.mxu0
    %v7794 = vadd.f32 0.0, %v7793
    %7795 = vmatmul.f32.gmra.mxu0 %v7670
    %v7796 = vpop.f32.mrf.mxu0
    %v7797 = vadd.f32 0.0, %v7796
    %7798 = vmatmul.f32.gmra.mxu0 %v7671
    %v7799 = vpop.f32.mrf.mxu0
    %v7800 = vadd.f32 0.0, %v7799
    %7801 = vmatmul.f32.gmra.mxu0 %v7672
    %v7802 = vpop.f32.mrf.mxu0
    %v7803 = vadd.f32 0.0, %v7802
    %7804 = vmatmul.f32.gmra.mxu0 %v7673
    %v7805 = vpop.f32.mrf.mxu0
    %v7806 = vadd.f32 0.0, %v7805
    %7807 = vmatmul.f32.gmra.mxu0 %v7674
    %v7808 = vpop.f32.mrf.mxu0
    %v7809 = vadd.f32 0.0, %v7808
    %7810 = vmatmul.f32.gmra.mxu0 %v7675
    %v7811 = vpop.f32.mrf.mxu0
    %v7812 = vadd.f32 0.0, %v7811
    %7813 = vmatmul.f32.gmra.mxu0 %v7676
    %v7814 = vpop.f32.mrf.mxu0
    %v7815 = vadd.f32 0.0, %v7814
    %7816 = vmatmul.f32.gmra.mxu0 %v7677
    %v7817 = vpop.f32.mrf.mxu0
    %v7818 = vadd.f32 0.0, %v7817
    %7819 = vmatmul.f32.gmra.mxu0 %v7678
    %v7820 = vpop.f32.mrf.mxu0
    %v7821 = vadd.f32 0.0, %v7820
    %7822 = vmatmul.f32.gmra.mxu0 %v7679
    %v7823 = vpop.f32.mrf.mxu0
    %v7824 = vadd.f32 0.0, %v7823
    %7825 = vdwg.mxu0
    %v7826 = vsub.f32 %v7745, %v7779
    %v7827 = vsub.f32 %v7746, %v7782
    %v7828 = vsub.f32 %v7747, %v7785
    %v7829 = vsub.f32 %v7748, %v7788
    %v7830 = vsub.f32 %v7749, %v7791
    %v7831 = vsub.f32 %v7750, %v7794
    %v7832 = vsub.f32 %v7751, %v7797
    %v7833 = vsub.f32 %v7752, %v7800
    %v7834 = vsub.f32 %v7753, %v7803
    %v7835 = vsub.f32 %v7754, %v7806
    %v7836 = vsub.f32 %v7755, %v7809
    %v7837 = vsub.f32 %v7756, %v7812
    %v7838 = vsub.f32 %v7757, %v7815
    %v7839 = vsub.f32 %v7758, %v7818
    %v7840 = vsub.f32 %v7759, %v7821
    %v7841 = vsub.f32 %v7760, %v7824
    %7842 = vmatpush.msra.mxu0 %v7841
    %7843 = vmatpush.msra.mxu0 %v7840
    %7844 = vmatpush.msra.mxu0 %v7839
    %7845 = vmatpush.msra.mxu0 %v7838
    %7846 = vmatpush.msra.mxu0 %v7837
    %7847 = vmatpush.msra.mxu0 %v7836
    %7848 = vmatpush.msra.mxu0 %v7835
    %7849 = vmatpush.msra.mxu0 %v7834
    %7850 = vmatpush.msra.mxu0 %v7833
    %7851 = vmatpush.msra.mxu0 %v7832
    %7852 = vmatpush.msra.mxu0 %v7831
    %7853 = vmatpush.msra.mxu0 %v7830
    %7854 = vmatpush.msra.mxu0 %v7829
    %7855 = vmatpush.msra.mxu0 %v7828
    %7856 = vmatpush.msra.mxu0 %v7827
    %7857 = vmatpush.msra.mxu0 %v7826
    %7858 = vmatmul.f32.gmra.mxu0 %v6402
    %v7859 = vpop.f32.mrf.mxu0
    %v7860 = vadd.f32 0.0, %v7859
    %7861 = vmatmul.f32.gmra.mxu0 %v6403
    %v7862 = vpop.f32.mrf.mxu0
    %v7863 = vadd.f32 0.0, %v7862
    %7864 = vmatmul.f32.gmra.mxu0 %v6404
    %v7865 = vpop.f32.mrf.mxu0
    %v7866 = vadd.f32 0.0, %v7865
    %7867 = vmatmul.f32.gmra.mxu0 %v6405
    %v7868 = vpop.f32.mrf.mxu0
    %v7869 = vadd.f32 0.0, %v7868
    %7870 = vmatmul.f32.gmra.mxu0 %v6406
    %v7871 = vpop.f32.mrf.mxu0
    %v7872 = vadd.f32 0.0, %v7871
    %7873 = vmatmul.f32.gmra.mxu0 %v6407
    %v7874 = vpop.f32.mrf.mxu0
    %v7875 = vadd.f32 0.0, %v7874
    %7876 = vmatmul.f32.gmra.mxu0 %v6408
    %v7877 = vpop.f32.mrf.mxu0
    %v7878 = vadd.f32 0.0, %v7877
    %7879 = vmatmul.f32.gmra.mxu0 %v6409
    %v7880 = vpop.f32.mrf.mxu0
    %v7881 = vadd.f32 0.0, %v7880
    %7882 = vmatmul.f32.gmra.mxu0 %v6410
    %v7883 = vpop.f32.mrf.mxu0
    %v7884 = vadd.f32 0.0, %v7883
    %7885 = vmatmul.f32.gmra.mxu0 %v6411
    %v7886 = vpop.f32.mrf.mxu0
    %v7887 = vadd.f32 0.0, %v7886
    %7888 = vmatmul.f32.gmra.mxu0 %v6412
    %v7889 = vpop.f32.mrf.mxu0
    %v7890 = vadd.f32 0.0, %v7889
    %7891 = vmatmul.f32.gmra.mxu0 %v6413
    %v7892 = vpop.f32.mrf.mxu0
    %v7893 = vadd.f32 0.0, %v7892
    %7894 = vmatmul.f32.gmra.mxu0 %v6414
    %v7895 = vpop.f32.mrf.mxu0
    %v7896 = vadd.f32 0.0, %v7895
    %7897 = vmatmul.f32.gmra.mxu0 %v6415
    %v7898 = vpop.f32.mrf.mxu0
    %v7899 = vadd.f32 0.0, %v7898
    %7900 = vmatmul.f32.gmra.mxu0 %v6416
    %v7901 = vpop.f32.mrf.mxu0
    %v7902 = vadd.f32 0.0, %v7901
    %7903 = vmatmul.f32.gmra.mxu0 %v6417
    %v7904 = vpop.f32.mrf.mxu0
    %v7905 = vadd.f32 0.0, %v7904
    %7906 = vdwg.mxu0
    %v7907 = vmul.f32 %v7826, 2.0
    %v7908 = vmul.f32 %v7827, 2.0
    %v7909 = vmul.f32 %v7828, 2.0
    %v7910 = vmul.f32 %v7829, 2.0
    %v7911 = vmul.f32 %v7830, 2.0
    %v7912 = vmul.f32 %v7831, 2.0
    %v7913 = vmul.f32 %v7832, 2.0
    %v7914 = vmul.f32 %v7833, 2.0
    %v7915 = vmul.f32 %v7834, 2.0
    %v7916 = vmul.f32 %v7835, 2.0
    %v7917 = vmul.f32 %v7836, 2.0
    %v7918 = vmul.f32 %v7837, 2.0
    %v7919 = vmul.f32 %v7838, 2.0
    %v7920 = vmul.f32 %v7839, 2.0
    %v7921 = vmul.f32 %v7840, 2.0
    %v7922 = vmul.f32 %v7841, 2.0
    %7923 = vmatpush.msra.mxu0 %v7905
    %7924 = vmatpush.msra.mxu0 %v7902
    %7925 = vmatpush.msra.mxu0 %v7899
    %7926 = vmatpush.msra.mxu0 %v7896
    %7927 = vmatpush.msra.mxu0 %v7893
    %7928 = vmatpush.msra.mxu0 %v7890
    %7929 = vmatpush.msra.mxu0 %v7887
    %7930 = vmatpush.msra.mxu0 %v7884
    %7931 = vmatpush.msra.mxu0 %v7881
    %7932 = vmatpush.msra.mxu0 %v7878
    %7933 = vmatpush.msra.mxu0 %v7875
    %7934 = vmatpush.msra.mxu0 %v7872
    %7935 = vmatpush.msra.mxu0 %v7869
    %7936 = vmatpush.msra.mxu0 %v7866
    %7937 = vmatpush.msra.mxu0 %v7863
    %7938 = vmatpush.msra.mxu0 %v7860
    %7939 = vmatmul.f32.gmra.mxu0 %v7826
    %v7940 = vpop.f32.mrf.mxu0
    %v7941 = vadd.f32 0.0, %v7940
    %7942 = vmatmul.f32.gmra.mxu0 %v7827
    %v7943 = vpop.f32.mrf.mxu0
    %v7944 = vadd.f32 0.0, %v7943
    %7945 = vmatmul.f32.gmra.mxu0 %v7828
    %v7946 = vpop.f32.mrf.mxu0
    %v7947 = vadd.f32 0.0, %v7946
    %7948 = vmatmul.f32.gmra.mxu0 %v7829
    %v7949 = vpop.f32.mrf.mxu0
    %v7950 = vadd.f32 0.0, %v7949
    %7951 = vmatmul.f32.gmra.mxu0 %v7830
    %v7952 = vpop.f32.mrf.mxu0
    %v7953 = vadd.f32 0.0, %v7952
    %7954 = vmatmul.f32.gmra.mxu0 %v7831
    %v7955 = vpop.f32.mrf.mxu0
    %v7956 = vadd.f32 0.0, %v7955
    %7957 = vmatmul.f32.gmra.mxu0 %v7832
    %v7958 = vpop.f32.mrf.mxu0
    %v7959 = vadd.f32 0.0, %v7958
    %7960 = vmatmul.f32.gmra.mxu0 %v7833
    %v7961 = vpop.f32.mrf.mxu0
    %v7962 = vadd.f32 0.0, %v7961
    %7963 = vmatmul.f32.gmra.mxu0 %v7834
    %v7964 = vpop.f32.mrf.mxu0
    %v7965 = vadd.f32 0.0, %v7964
    %7966 = vmatmul.f32.gmra.mxu0 %v7835
    %v7967 = vpop.f32.mrf.mxu0
    %v7968 = vadd.f32 0.0, %v7967
    %7969 = vmatmul.f32.gmra.mxu0 %v7836
    %v7970 = vpop.f32.mrf.mxu0
    %v7971 = vadd.f32 0.0, %v7970
    %7972 = vmatmul.f32.gmra.mxu0 %v7837
    %v7973 = vpop.f32.mrf.mxu0
    %v7974 = vadd.f32 0.0, %v7973
    %7975 = vmatmul.f32.gmra.mxu0 %v7838
    %v7976 = vpop.f32.mrf.mxu0
    %v7977 = vadd.f32 0.0, %v7976
    %7978 = vmatmul.f32.gmra.mxu0 %v7839
    %v7979 = vpop.f32.mrf.mxu0
    %v7980 = vadd.f32 0.0, %v7979
    %7981 = vmatmul.f32.gmra.mxu0 %v7840
    %v7982 = vpop.f32.mrf.mxu0
    %v7983 = vadd.f32 0.0, %v7982
    %7984 = vmatmul.f32.gmra.mxu0 %v7841
    %v7985 = vpop.f32.mrf.mxu0
    %v7986 = vadd.f32 0.0, %v7985
    %7987 = vdwg.mxu0
    %v7988 = vsub.f32 %v7907, %v7941
    %v7989 = vsub.f32 %v7908, %v7944
    %v7990 = vsub.f32 %v7909, %v7947
    %v7991 = vsub.f32 %v7910, %v7950
    %v7992 = vsub.f32 %v7911, %v7953
    %v7993 = vsub.f32 %v7912, %v7956
    %v7994 = vsub.f32 %v7913, %v7959
    %v7995 = vsub.f32 %v7914, %v7962
    %v7996 = vsub.f32 %v7915, %v7965
    %v7997 = vsub.f32 %v7916, %v7968
    %v7998 = vsub.f32 %v7917, %v7971
    %v7999 = vsub.f32 %v7918, %v7974
    %v8000 = vsub.f32 %v7919, %v7977
    %v8001 = vsub.f32 %v7920, %v7980
    %v8002 = vsub.f32 %v7921, %v7983
    %v8003 = vsub.f32 %v7922, %v7986
    %8004 = vmatpush.msra.mxu0 %v8003
    %8005 = vmatpush.msra.mxu0 %v8002
    %8006 = vmatpush.msra.mxu0 %v8001
    %8007 = vmatpush.msra.mxu0 %v8000
    %8008 = vmatpush.msra.mxu0 %v7999
    %8009 = vmatpush.msra.mxu0 %v7998
    %8010 = vmatpush.msra.mxu0 %v7997
    %8011 = vmatpush.msra.mxu0 %v7996
    %8012 = vmatpush.msra.mxu0 %v7995
    %8013 = vmatpush.msra.mxu0 %v7994
    %8014 = vmatpush.msra.mxu0 %v7993
    %8015 = vmatpush.msra.mxu0 %v7992
    %8016 = vmatpush.msra.mxu0 %v7991
    %8017 = vmatpush.msra.mxu0 %v7990
    %8018 = vmatpush.msra.mxu0 %v7989
    %8019 = vmatpush.msra.mxu0 %v7988
    %8020 = vmatmul.f32.gmra.mxu0 %v6402
    %v8021 = vpop.f32.mrf.mxu0
    %v8022 = vadd.f32 0.0, %v8021
    %8023 = vmatmul.f32.gmra.mxu0 %v6403
    %v8024 = vpop.f32.mrf.mxu0
    %v8025 = vadd.f32 0.0, %v8024
    %8026 = vmatmul.f32.gmra.mxu0 %v6404
    %v8027 = vpop.f32.mrf.mxu0
    %v8028 = vadd.f32 0.0, %v8027
    %8029 = vmatmul.f32.gmra.mxu0 %v6405
    %v8030 = vpop.f32.mrf.mxu0
    %v8031 = vadd.f32 0.0, %v8030
    %8032 = vmatmul.f32.gmra.mxu0 %v6406
    %v8033 = vpop.f32.mrf.mxu0
    %v8034 = vadd.f32 0.0, %v8033
    %8035 = vmatmul.f32.gmra.mxu0 %v6407
    %v8036 = vpop.f32.mrf.mxu0
    %v8037 = vadd.f32 0.0, %v8036
    %8038 = vmatmul.f32.gmra.mxu0 %v6408
    %v8039 = vpop.f32.mrf.mxu0
    %v8040 = vadd.f32 0.0, %v8039
    %8041 = vmatmul.f32.gmra.mxu0 %v6409
    %v8042 = vpop.f32.mrf.mxu0
    %v8043 = vadd.f32 0.0, %v8042
    %8044 = vmatmul.f32.gmra.mxu0 %v6410
    %v8045 = vpop.f32.mrf.mxu0
    %v8046 = vadd.f32 0.0, %v8045
    %8047 = vmatmul.f32.gmra.mxu0 %v6411
    %v8048 = vpop.f32.mrf.mxu0
    %v8049 = vadd.f32 0.0, %v8048
    %8050 = vmatmul.f32.gmra.mxu0 %v6412
    %v8051 = vpop.f32.mrf.mxu0
    %v8052 = vadd.f32 0.0, %v8051
    %8053 = vmatmul.f32.gmra.mxu0 %v6413
    %v8054 = vpop.f32.mrf.mxu0
    %v8055 = vadd.f32 0.0, %v8054
    %8056 = vmatmul.f32.gmra.mxu0 %v6414
    %v8057 = vpop.f32.mrf.mxu0
    %v8058 = vadd.f32 0.0, %v8057
    %8059 = vmatmul.f32.gmra.mxu0 %v6415
    %v8060 = vpop.f32.mrf.mxu0
    %v8061 = vadd.f32 0.0, %v8060
    %8062 = vmatmul.f32.gmra.mxu0 %v6416
    %v8063 = vpop.f32.mrf.mxu0
    %v8064 = vadd.f32 0.0, %v8063
    %8065 = vmatmul.f32.gmra.mxu0 %v6417
    %v8066 = vpop.f32.mrf.mxu0
    %v8067 = vadd.f32 0.0, %v8066
    %8068 = vdwg.mxu0
    %v8069 = vmul.f32 %v7988, 2.0
    %v8070 = vmul.f32 %v7989, 2.0
    %v8071 = vmul.f32 %v7990, 2.0
    %v8072 = vmul.f32 %v7991, 2.0
    %v8073 = vmul.f32 %v7992, 2.0
    %v8074 = vmul.f32 %v7993, 2.0
    %v8075 = vmul.f32 %v7994, 2.0
    %v8076 = vmul.f32 %v7995, 2.0
    %v8077 = vmul.f32 %v7996, 2.0
    %v8078 = vmul.f32 %v7997, 2.0
    %v8079 = vmul.f32 %v7998, 2.0
    %v8080 = vmul.f32 %v7999, 2.0
    %v8081 = vmul.f32 %v8000, 2.0
    %v8082 = vmul.f32 %v8001, 2.0
    %v8083 = vmul.f32 %v8002, 2.0
    %v8084 = vmul.f32 %v8003, 2.0
    %8085 = vmatpush.msra.mxu0 %v8067
    %8086 = vmatpush.msra.mxu0 %v8064
    %8087 = vmatpush.msra.mxu0 %v8061
    %8088 = vmatpush.msra.mxu0 %v8058
    %8089 = vmatpush.msra.mxu0 %v8055
    %8090 = vmatpush.msra.mxu0 %v8052
    %8091 = vmatpush.msra.mxu0 %v8049
    %8092 = vmatpush.msra.mxu0 %v8046
    %8093 = vmatpush.msra.mxu0 %v8043
    %8094 = vmatpush.msra.mxu0 %v8040
    %8095 = vmatpush.msra.mxu0 %v8037
    %8096 = vmatpush.msra.mxu0 %v8034
    %8097 = vmatpush.msra.mxu0 %v8031
    %8098 = vmatpush.msra.mxu0 %v8028
    %8099 = vmatpush.msra.mxu0 %v8025
    %8100 = vmatpush.msra.mxu0 %v8022
    %8101 = vmatmul.f32.gmra.mxu0 %v7988
    %v8102 = vpop.f32.mrf.mxu0
    %v8103 = vadd.f32 0.0, %v8102
    %8104 = vmatmul.f32.gmra.mxu0 %v7989
    %v8105 = vpop.f32.mrf.mxu0
    %v8106 = vadd.f32 0.0, %v8105
    %8107 = vmatmul.f32.gmra.mxu0 %v7990
    %v8108 = vpop.f32.mrf.mxu0
    %v8109 = vadd.f32 0.0, %v8108
    %8110 = vmatmul.f32.gmra.mxu0 %v7991
    %v8111 = vpop.f32.mrf.mxu0
    %v8112 = vadd.f32 0.0, %v8111
    %8113 = vmatmul.f32.gmra.mxu0 %v7992
    %v8114 = vpop.f32.mrf.mxu0
    %v8115 = vadd.f32 0.0, %v8114
    %8116 = vmatmul.f32.gmra.mxu0 %v7993
    %v8117 = vpop.f32.mrf.mxu0
    %v8118 = vadd.f32 0.0, %v8117
    %8119 = vmatmul.f32.gmra.mxu0 %v7994
    %v8120 = vpop.f32.mrf.mxu0
    %v8121 = vadd.f32 0.0, %v8120
    %8122 = vmatmul.f32.gmra.mxu0 %v7995
    %v8123 = vpop.f32.mrf.mxu0
    %v8124 = vadd.f32 0.0, %v8123
    %8125 = vmatmul.f32.gmra.mxu0 %v7996
    %v8126 = vpop.f32.mrf.mxu0
    %v8127 = vadd.f32 0.0, %v8126
    %8128 = vmatmul.f32.gmra.mxu0 %v7997
    %v8129 = vpop.f32.mrf.mxu0
    %v8130 = vadd.f32 0.0, %v8129
    %8131 = vmatmul.f32.gmra.mxu0 %v7998
    %v8132 = vpop.f32.mrf.mxu0
    %v8133 = vadd.f32 0.0, %v8132
    %8134 = vmatmul.f32.gmra.mxu0 %v7999
    %v8135 = vpop.f32.mrf.mxu0
    %v8136 = vadd.f32 0.0, %v8135
    %8137 = vmatmul.f32.gmra.mxu0 %v8000
    %v8138 = vpop.f32.mrf.mxu0
    %v8139 = vadd.f32 0.0, %v8138
    %8140 = vmatmul.f32.gmra.mxu0 %v8001
    %v8141 = vpop.f32.mrf.mxu0
    %v8142 = vadd.f32 0.0, %v8141
    %8143 = vmatmul.f32.gmra.mxu0 %v8002
    %v8144 = vpop.f32.mrf.mxu0
    %v8145 = vadd.f32 0.0, %v8144
    %8146 = vmatmul.f32.gmra.mxu0 %v8003
    %v8147 = vpop.f32.mrf.mxu0
    %v8148 = vadd.f32 0.0, %v8147
    %8149 = vdwg.mxu0
    %v8150 = vsub.f32 %v8069, %v8103
    %v8151 = vsub.f32 %v8070, %v8106
    %v8152 = vsub.f32 %v8071, %v8109
    %v8153 = vsub.f32 %v8072, %v8112
    %v8154 = vsub.f32 %v8073, %v8115
    %v8155 = vsub.f32 %v8074, %v8118
    %v8156 = vsub.f32 %v8075, %v8121
    %v8157 = vsub.f32 %v8076, %v8124
    %v8158 = vsub.f32 %v8077, %v8127
    %v8159 = vsub.f32 %v8078, %v8130
    %v8160 = vsub.f32 %v8079, %v8133
    %v8161 = vsub.f32 %v8080, %v8136
    %v8162 = vsub.f32 %v8081, %v8139
    %v8163 = vsub.f32 %v8082, %v8142
    %v8164 = vsub.f32 %v8083, %v8145
    %v8165 = vsub.f32 %v8084, %v8148
    %8166 = vmatpush.msra.mxu0 %v8165
    %8167 = vmatpush.msra.mxu0 %v8164
    %8168 = vmatpush.msra.mxu0 %v8163
    %8169 = vmatpush.msra.mxu0 %v8162
    %8170 = vmatpush.msra.mxu0 %v8161
    %8171 = vmatpush.msra.mxu0 %v8160
    %8172 = vmatpush.msra.mxu0 %v8159
    %8173 = vmatpush.msra.mxu0 %v8158
    %8174 = vmatpush.msra.mxu0 %v8157
    %8175 = vmatpush.msra.mxu0 %v8156
    %8176 = vmatpush.msra.mxu0 %v8155
    %8177 = vmatpush.msra.mxu0 %v8154
    %8178 = vmatpush.msra.mxu0 %v8153
    %8179 = vmatpush.msra.mxu0 %v8152
    %8180 = vmatpush.msra.mxu0 %v8151
    %8181 = vmatpush.msra.mxu0 %v8150
    %8182 = vmatmul.f32.gmra.mxu0 %v6402
    %v8183 = vpop.f32.mrf.mxu0
    %v8184 = vadd.f32 0.0, %v8183
    %8185 = vmatmul.f32.gmra.mxu0 %v6403
    %v8186 = vpop.f32.mrf.mxu0
    %v8187 = vadd.f32 0.0, %v8186
    %8188 = vmatmul.f32.gmra.mxu0 %v6404
    %v8189 = vpop.f32.mrf.mxu0
    %v8190 = vadd.f32 0.0, %v8189
    %8191 = vmatmul.f32.gmra.mxu0 %v6405
    %v8192 = vpop.f32.mrf.mxu0
    %v8193 = vadd.f32 0.0, %v8192
    %8194 = vmatmul.f32.gmra.mxu0 %v6406
    %v8195 = vpop.f32.mrf.mxu0
    %v8196 = vadd.f32 0.0, %v8195
    %8197 = vmatmul.f32.gmra.mxu0 %v6407
    %v8198 = vpop.f32.mrf.mxu0
    %v8199 = vadd.f32 0.0, %v8198
    %8200 = vmatmul.f32.gmra.mxu0 %v6408
    %v8201 = vpop.f32.mrf.mxu0
    %v8202 = vadd.f32 0.0, %v8201
    %8203 = vmatmul.f32.gmra.mxu0 %v6409
    %v8204 = vpop.f32.mrf.mxu0
    %v8205 = vadd.f32 0.0, %v8204
    %8206 = vmatmul.f32.gmra.mxu0 %v6410
    %v8207 = vpop.f32.mrf.mxu0
    %v8208 = vadd.f32 0.0, %v8207
    %8209 = vmatmul.f32.gmra.mxu0 %v6411
    %v8210 = vpop.f32.mrf.mxu0
    %v8211 = vadd.f32 0.0, %v8210
    %8212 = vmatmul.f32.gmra.mxu0 %v6412
    %v8213 = vpop.f32.mrf.mxu0
    %v8214 = vadd.f32 0.0, %v8213
    %8215 = vmatmul.f32.gmra.mxu0 %v6413
    %v8216 = vpop.f32.mrf.mxu0
    %v8217 = vadd.f32 0.0, %v8216
    %8218 = vmatmul.f32.gmra.mxu0 %v6414
    %v8219 = vpop.f32.mrf.mxu0
    %v8220 = vadd.f32 0.0, %v8219
    %8221 = vmatmul.f32.gmra.mxu0 %v6415
    %v8222 = vpop.f32.mrf.mxu0
    %v8223 = vadd.f32 0.0, %v8222
    %8224 = vmatmul.f32.gmra.mxu0 %v6416
    %v8225 = vpop.f32.mrf.mxu0
    %v8226 = vadd.f32 0.0, %v8225
    %8227 = vmatmul.f32.gmra.mxu0 %v6417
    %v8228 = vpop.f32.mrf.mxu0
    %v8229 = vadd.f32 0.0, %v8228
    %8230 = vdwg.mxu0
    %v8231 = vmul.f32 %v8150, 2.0
    %v8232 = vmul.f32 %v8151, 2.0
    %v8233 = vmul.f32 %v8152, 2.0
    %v8234 = vmul.f32 %v8153, 2.0
    %v8235 = vmul.f32 %v8154, 2.0
    %v8236 = vmul.f32 %v8155, 2.0
    %v8237 = vmul.f32 %v8156, 2.0
    %v8238 = vmul.f32 %v8157, 2.0
    %v8239 = vmul.f32 %v8158, 2.0
    %v8240 = vmul.f32 %v8159, 2.0
    %v8241 = vmul.f32 %v8160, 2.0
    %v8242 = vmul.f32 %v8161, 2.0
    %v8243 = vmul.f32 %v8162, 2.0
    %v8244 = vmul.f32 %v8163, 2.0
    %v8245 = vmul.f32 %v8164, 2.0
    %v8246 = vmul.f32 %v8165, 2.0
    %8247 = vmatpush.msra.mxu0 %v8229
    %8248 = vmatpush.msra.mxu0 %v8226
    %8249 = vmatpush.msra.mxu0 %v8223
    %8250 = vmatpush.msra.mxu0 %v8220
    %8251 = vmatpush.msra.mxu0 %v8217
    %8252 = vmatpush.msra.mxu0 %v8214
    %8253 = vmatpush.msra.mxu0 %v8211
    %8254 = vmatpush.msra.mxu0 %v8208
    %8255 = vmatpush.msra.mxu0 %v8205
    %8256 = vmatpush.msra.mxu0 %v8202
    %8257 = vmatpush.msra.mxu0 %v8199
    %8258 = vmatpush.msra.mxu0 %v8196
    %8259 = vmatpush.msra.mxu0 %v8193
    %8260 = vmatpush.msra.mxu0 %v8190
    %8261 = vmatpush.msra.mxu0 %v8187
    %8262 = vmatpush.msra.mxu0 %v8184
    %8263 = vmatmul.f32.gmra.mxu0 %v8150
    %v8264 = vpop.f32.mrf.mxu0
    %v8265 = vadd.f32 0.0, %v8264
    %8266 = vmatmul.f32.gmra.mxu0 %v8151
    %v8267 = vpop.f32.mrf.mxu0
    %v8268 = vadd.f32 0.0, %v8267
    %8269 = vmatmul.f32.gmra.mxu0 %v8152
    %v8270 = vpop.f32.mrf.mxu0
    %v8271 = vadd.f32 0.0, %v8270
    %8272 = vmatmul.f32.gmra.mxu0 %v8153
    %v8273 = vpop.f32.mrf.mxu0
    %v8274 = vadd.f32 0.0, %v8273
    %8275 = vmatmul.f32.gmra.mxu0 %v8154
    %v8276 = vpop.f32.mrf.mxu0
    %v8277 = vadd.f32 0.0, %v8276
    %8278 = vmatmul.f32.gmra.mxu0 %v8155
    %v8279 = vpop.f32.mrf.mxu0
    %v8280 = vadd.f32 0.0, %v8279
    %8281 = vmatmul.f32.gmra.mxu0 %v8156
    %v8282 = vpop.f32.mrf.mxu0
    %v8283 = vadd.f32 0.0, %v8282
    %8284 = vmatmul.f32.gmra.mxu0 %v8157
    %v8285 = vpop.f32.mrf.mxu0
    %v8286 = vadd.f32 0.0, %v8285
    %8287 = vmatmul.f32.gmra.mxu0 %v8158
    %v8288 = vpop.f32.mrf.mxu0
    %v8289 = vadd.f32 0.0, %v8288
    %8290 = vmatmul.f32.gmra.mxu0 %v8159
    %v8291 = vpop.f32.mrf.mxu0
    %v8292 = vadd.f32 0.0, %v8291
    %8293 = vmatmul.f32.gmra.mxu0 %v8160
    %v8294 = vpop.f32.mrf.mxu0
    %v8295 = vadd.f32 0.0, %v8294
    %8296 = vmatmul.f32.gmra.mxu0 %v8161
    %v8297 = vpop.f32.mrf.mxu0
    %v8298 = vadd.f32 0.0, %v8297
    %8299 = vmatmul.f32.gmra.mxu0 %v8162
    %v8300 = vpop.f32.mrf.mxu0
    %v8301 = vadd.f32 0.0, %v8300
    %8302 = vmatmul.f32.gmra.mxu0 %v8163
    %v8303 = vpop.f32.mrf.mxu0
    %v8304 = vadd.f32 0.0, %v8303
    %8305 = vmatmul.f32.gmra.mxu0 %v8164
    %v8306 = vpop.f32.mrf.mxu0
    %v8307 = vadd.f32 0.0, %v8306
    %8308 = vmatmul.f32.gmra.mxu0 %v8165
    %v8309 = vpop.f32.mrf.mxu0
    %v8310 = vadd.f32 0.0, %v8309
    %8311 = vdwg.mxu0
    %v8312 = vsub.f32 %v8231, %v8265
    %v8313 = vsub.f32 %v8232, %v8268
    %v8314 = vsub.f32 %v8233, %v8271
    %v8315 = vsub.f32 %v8234, %v8274
    %v8316 = vsub.f32 %v8235, %v8277
    %v8317 = vsub.f32 %v8236, %v8280
    %v8318 = vsub.f32 %v8237, %v8283
    %v8319 = vsub.f32 %v8238, %v8286
    %v8320 = vsub.f32 %v8239, %v8289
    %v8321 = vsub.f32 %v8240, %v8292
    %v8322 = vsub.f32 %v8241, %v8295
    %v8323 = vsub.f32 %v8242, %v8298
    %v8324 = vsub.f32 %v8243, %v8301
    %v8325 = vsub.f32 %v8244, %v8304
    %v8326 = vsub.f32 %v8245, %v8307
    %v8327 = vsub.f32 %v8246, %v8310
    %8328 = vmatpush.msra.mxu0 %v8327
    %8329 = vmatpush.msra.mxu0 %v8326
    %8330 = vmatpush.msra.mxu0 %v8325
    %8331 = vmatpush.msra.mxu0 %v8324
    %8332 = vmatpush.msra.mxu0 %v8323
    %8333 = vmatpush.msra.mxu0 %v8322
    %8334 = vmatpush.msra.mxu0 %v8321
    %8335 = vmatpush.msra.mxu0 %v8320
    %8336 = vmatpush.msra.mxu0 %v8319
    %8337 = vmatpush.msra.mxu0 %v8318
    %8338 = vmatpush.msra.mxu0 %v8317
    %8339 = vmatpush.msra.mxu0 %v8316
    %8340 = vmatpush.msra.mxu0 %v8315
    %8341 = vmatpush.msra.mxu0 %v8314
    %8342 = vmatpush.msra.mxu0 %v8313
    %8343 = vmatpush.msra.mxu0 %v8312
    %8344 = vmatmul.f32.gmra.mxu0 %v6402
    %v8345 = vpop.f32.mrf.mxu0
    %v8346 = vadd.f32 0.0, %v8345
    %8347 = vmatmul.f32.gmra.mxu0 %v6403
    %v8348 = vpop.f32.mrf.mxu0
    %v8349 = vadd.f32 0.0, %v8348
    %8350 = vmatmul.f32.gmra.mxu0 %v6404
    %v8351 = vpop.f32.mrf.mxu0
    %v8352 = vadd.f32 0.0, %v8351
    %8353 = vmatmul.f32.gmra.mxu0 %v6405
    %v8354 = vpop.f32.mrf.mxu0
    %v8355 = vadd.f32 0.0, %v8354
    %8356 = vmatmul.f32.gmra.mxu0 %v6406
    %v8357 = vpop.f32.mrf.mxu0
    %v8358 = vadd.f32 0.0, %v8357
    %8359 = vmatmul.f32.gmra.mxu0 %v6407
    %v8360 = vpop.f32.mrf.mxu0
    %v8361 = vadd.f32 0.0, %v8360
    %8362 = vmatmul.f32.gmra.mxu0 %v6408
    %v8363 = vpop.f32.mrf.mxu0
    %v8364 = vadd.f32 0.0, %v8363
    %8365 = vmatmul.f32.gmra.mxu0 %v6409
    %v8366 = vpop.f32.mrf.mxu0
    %v8367 = vadd.f32 0.0, %v8366
    %8368 = vmatmul.f32.gmra.mxu0 %v6410
    %v8369 = vpop.f32.mrf.mxu0
    %v8370 = vadd.f32 0.0, %v8369
    %8371 = vmatmul.f32.gmra.mxu0 %v6411
    %v8372 = vpop.f32.mrf.mxu0
    %v8373 = vadd.f32 0.0, %v8372
    %8374 = vmatmul.f32.gmra.mxu0 %v6412
    %v8375 = vpop.f32.mrf.mxu0
    %v8376 = vadd.f32 0.0, %v8375
    %8377 = vmatmul.f32.gmra.mxu0 %v6413
    %v8378 = vpop.f32.mrf.mxu0
    %v8379 = vadd.f32 0.0, %v8378
    %8380 = vmatmul.f32.gmra.mxu0 %v6414
    %v8381 = vpop.f32.mrf.mxu0
    %v8382 = vadd.f32 0.0, %v8381
    %8383 = vmatmul.f32.gmra.mxu0 %v6415
    %v8384 = vpop.f32.mrf.mxu0
    %v8385 = vadd.f32 0.0, %v8384
    %8386 = vmatmul.f32.gmra.mxu0 %v6416
    %v8387 = vpop.f32.mrf.mxu0
    %v8388 = vadd.f32 0.0, %v8387
    %8389 = vmatmul.f32.gmra.mxu0 %v6417
    %v8390 = vpop.f32.mrf.mxu0
    %v8391 = vadd.f32 0.0, %v8390
    %8392 = vdwg.mxu0
    %v8393 = vmul.f32 %v8312, 2.0
    %v8394 = vmul.f32 %v8313, 2.0
    %v8395 = vmul.f32 %v8314, 2.0
    %v8396 = vmul.f32 %v8315, 2.0
    %v8397 = vmul.f32 %v8316, 2.0
    %v8398 = vmul.f32 %v8317, 2.0
    %v8399 = vmul.f32 %v8318, 2.0
    %v8400 = vmul.f32 %v8319, 2.0
    %v8401 = vmul.f32 %v8320, 2.0
    %v8402 = vmul.f32 %v8321, 2.0
    %v8403 = vmul.f32 %v8322, 2.0
    %v8404 = vmul.f32 %v8323, 2.0
    %v8405 = vmul.f32 %v8324, 2.0
    %v8406 = vmul.f32 %v8325, 2.0
    %v8407 = vmul.f32 %v8326, 2.0
    %v8408 = vmul.f32 %v8327, 2.0
    %8409 = vmatpush.msra.mxu0 %v8391
    %8410 = vmatpush.msra.mxu0 %v8388
    %8411 = vmatpush.msra.mxu0 %v8385
    %8412 = vmatpush.msra.mxu0 %v8382
    %8413 = vmatpush.msra.mxu0 %v8379
    %8414 = vmatpush.msra.mxu0 %v8376
    %8415 = vmatpush.msra.mxu0 %v8373
    %8416 = vmatpush.msra.mxu0 %v8370
    %8417 = vmatpush.msra.mxu0 %v8367
    %8418 = vmatpush.msra.mxu0 %v8364
    %8419 = vmatpush.msra.mxu0 %v8361
    %8420 = vmatpush.msra.mxu0 %v8358
    %8421 = vmatpush.msra.mxu0 %v8355
    %8422 = vmatpush.msra.mxu0 %v8352
    %8423 = vmatpush.msra.mxu0 %v8349
    %8424 = vmatpush.msra.mxu0 %v8346
    %8425 = vmatmul.f32.gmra.mxu0 %v8312
    %v8426 = vpop.f32.mrf.mxu0
    %v8427 = vadd.f32 0.0, %v8426
    %8428 = vmatmul.f32.gmra.mxu0 %v8313
    %v8429 = vpop.f32.mrf.mxu0
    %v8430 = vadd.f32 0.0, %v8429
    %8431 = vmatmul.f32.gmra.mxu0 %v8314
    %v8432 = vpop.f32.mrf.mxu0
    %v8433 = vadd.f32 0.0, %v8432
    %8434 = vmatmul.f32.gmra.mxu0 %v8315
    %v8435 = vpop.f32.mrf.mxu0
    %v8436 = vadd.f32 0.0, %v8435
    %8437 = vmatmul.f32.gmra.mxu0 %v8316
    %v8438 = vpop.f32.mrf.mxu0
    %v8439 = vadd.f32 0.0, %v8438
    %8440 = vmatmul.f32.gmra.mxu0 %v8317
    %v8441 = vpop.f32.mrf.mxu0
    %v8442 = vadd.f32 0.0, %v8441
    %8443 = vmatmul.f32.gmra.mxu0 %v8318
    %v8444 = vpop.f32.mrf.mxu0
    %v8445 = vadd.f32 0.0, %v8444
    %8446 = vmatmul.f32.gmra.mxu0 %v8319
    %v8447 = vpop.f32.mrf.mxu0
    %v8448 = vadd.f32 0.0, %v8447
    %8449 = vmatmul.f32.gmra.mxu0 %v8320
    %v8450 = vpop.f32.mrf.mxu0
    %v8451 = vadd.f32 0.0, %v8450
    %8452 = vmatmul.f32.gmra.mxu0 %v8321
    %v8453 = vpop.f32.mrf.mxu0
    %v8454 = vadd.f32 0.0, %v8453
    %8455 = vmatmul.f32.gmra.mxu0 %v8322
    %v8456 = vpop.f32.mrf.mxu0
    %v8457 = vadd.f32 0.0, %v8456
    %8458 = vmatmul.f32.gmra.mxu0 %v8323
    %v8459 = vpop.f32.mrf.mxu0
    %v8460 = vadd.f32 0.0, %v8459
    %8461 = vmatmul.f32.gmra.mxu0 %v8324
    %v8462 = vpop.f32.mrf.mxu0
    %v8463 = vadd.f32 0.0, %v8462
    %8464 = vmatmul.f32.gmra.mxu0 %v8325
    %v8465 = vpop.f32.mrf.mxu0
    %v8466 = vadd.f32 0.0, %v8465
    %8467 = vmatmul.f32.gmra.mxu0 %v8326
    %v8468 = vpop.f32.mrf.mxu0
    %v8469 = vadd.f32 0.0, %v8468
    %8470 = vmatmul.f32.gmra.mxu0 %v8327
    %v8471 = vpop.f32.mrf.mxu0
    %v8472 = vadd.f32 0.0, %v8471
    %8473 = vdwg.mxu0
    %v8474 = vsub.f32 %v8393, %v8427
    %v8475 = vsub.f32 %v8394, %v8430
    %v8476 = vsub.f32 %v8395, %v8433
    %v8477 = vsub.f32 %v8396, %v8436
    %v8478 = vsub.f32 %v8397, %v8439
    %v8479 = vsub.f32 %v8398, %v8442
    %v8480 = vsub.f32 %v8399, %v8445
    %v8481 = vsub.f32 %v8400, %v8448
    %v8482 = vsub.f32 %v8401, %v8451
    %v8483 = vsub.f32 %v8402, %v8454
    %v8484 = vsub.f32 %v8403, %v8457
    %v8485 = vsub.f32 %v8404, %v8460
    %v8486 = vsub.f32 %v8405, %v8463
    %v8487 = vsub.f32 %v8406, %v8466
    %v8488 = vsub.f32 %v8407, %v8469
    %v8489 = vsub.f32 %v8408, %v8472
    %8490 = vmatpush.msra.mxu0 %v8489
    %8491 = vmatpush.msra.mxu0 %v8488
    %8492 = vmatpush.msra.mxu0 %v8487
    %8493 = vmatpush.msra.mxu0 %v8486
    %8494 = vmatpush.msra.mxu0 %v8485
    %8495 = vmatpush.msra.mxu0 %v8484
    %8496 = vmatpush.msra.mxu0 %v8483
    %8497 = vmatpush.msra.mxu0 %v8482
    %8498 = vmatpush.msra.mxu0 %v8481
    %8499 = vmatpush.msra.mxu0 %v8480
    %8500 = vmatpush.msra.mxu0 %v8479
    %8501 = vmatpush.msra.mxu0 %v8478
    %8502 = vmatpush.msra.mxu0 %v8477
    %8503 = vmatpush.msra.mxu0 %v8476
    %8504 = vmatpush.msra.mxu0 %v8475
    %8505 = vmatpush.msra.mxu0 %v8474
    %8506 = vmatmul.f32.gmra.mxu0 %v6402
    %v8507 = vpop.f32.mrf.mxu0
    %v8508 = vadd.f32 0.0, %v8507
    %8509 = vmatmul.f32.gmra.mxu0 %v6403
    %v8510 = vpop.f32.mrf.mxu0
    %v8511 = vadd.f32 0.0, %v8510
    %8512 = vmatmul.f32.gmra.mxu0 %v6404
    %v8513 = vpop.f32.mrf.mxu0
    %v8514 = vadd.f32 0.0, %v8513
    %8515 = vmatmul.f32.gmra.mxu0 %v6405
    %v8516 = vpop.f32.mrf.mxu0
    %v8517 = vadd.f32 0.0, %v8516
    %8518 = vmatmul.f32.gmra.mxu0 %v6406
    %v8519 = vpop.f32.mrf.mxu0
    %v8520 = vadd.f32 0.0, %v8519
    %8521 = vmatmul.f32.gmra.mxu0 %v6407
    %v8522 = vpop.f32.mrf.mxu0
    %v8523 = vadd.f32 0.0, %v8522
    %8524 = vmatmul.f32.gmra.mxu0 %v6408
    %v8525 = vpop.f32.mrf.mxu0
    %v8526 = vadd.f32 0.0, %v8525
    %8527 = vmatmul.f32.gmra.mxu0 %v6409
    %v8528 = vpop.f32.mrf.mxu0
    %v8529 = vadd.f32 0.0, %v8528
    %8530 = vmatmul.f32.gmra.mxu0 %v6410
    %v8531 = vpop.f32.mrf.mxu0
    %v8532 = vadd.f32 0.0, %v8531
    %8533 = vmatmul.f32.gmra.mxu0 %v6411
    %v8534 = vpop.f32.mrf.mxu0
    %v8535 = vadd.f32 0.0, %v8534
    %8536 = vmatmul.f32.gmra.mxu0 %v6412
    %v8537 = vpop.f32.mrf.mxu0
    %v8538 = vadd.f32 0.0, %v8537
    %8539 = vmatmul.f32.gmra.mxu0 %v6413
    %v8540 = vpop.f32.mrf.mxu0
    %v8541 = vadd.f32 0.0, %v8540
    %8542 = vmatmul.f32.gmra.mxu0 %v6414
    %v8543 = vpop.f32.mrf.mxu0
    %v8544 = vadd.f32 0.0, %v8543
    %8545 = vmatmul.f32.gmra.mxu0 %v6415
    %v8546 = vpop.f32.mrf.mxu0
    %v8547 = vadd.f32 0.0, %v8546
    %8548 = vmatmul.f32.gmra.mxu0 %v6416
    %v8549 = vpop.f32.mrf.mxu0
    %v8550 = vadd.f32 0.0, %v8549
    %8551 = vmatmul.f32.gmra.mxu0 %v6417
    %v8552 = vpop.f32.mrf.mxu0
    %v8553 = vadd.f32 0.0, %v8552
    %8554 = vdwg.mxu0
    %v8555 = vmul.f32 %v8474, 2.0
    %v8556 = vmul.f32 %v8475, 2.0
    %v8557 = vmul.f32 %v8476, 2.0
    %v8558 = vmul.f32 %v8477, 2.0
    %v8559 = vmul.f32 %v8478, 2.0
    %v8560 = vmul.f32 %v8479, 2.0
    %v8561 = vmul.f32 %v8480, 2.0
    %v8562 = vmul.f32 %v8481, 2.0
    %v8563 = vmul.f32 %v8482, 2.0
    %v8564 = vmul.f32 %v8483, 2.0
    %v8565 = vmul.f32 %v8484, 2.0
    %v8566 = vmul.f32 %v8485, 2.0
    %v8567 = vmul.f32 %v8486, 2.0
    %v8568 = vmul.f32 %v8487, 2.0
    %v8569 = vmul.f32 %v8488, 2.0
    %v8570 = vmul.f32 %v8489, 2.0
    %8571 = vmatpush.msra.mxu0 %v8553
    %8572 = vmatpush.msra.mxu0 %v8550
    %8573 = vmatpush.msra.mxu0 %v8547
    %8574 = vmatpush.msra.mxu0 %v8544
    %8575 = vmatpush.msra.mxu0 %v8541
    %8576 = vmatpush.msra.mxu0 %v8538
    %8577 = vmatpush.msra.mxu0 %v8535
    %8578 = vmatpush.msra.mxu0 %v8532
    %8579 = vmatpush.msra.mxu0 %v8529
    %8580 = vmatpush.msra.mxu0 %v8526
    %8581 = vmatpush.msra.mxu0 %v8523
    %8582 = vmatpush.msra.mxu0 %v8520
    %8583 = vmatpush.msra.mxu0 %v8517
    %8584 = vmatpush.msra.mxu0 %v8514
    %8585 = vmatpush.msra.mxu0 %v8511
    %8586 = vmatpush.msra.mxu0 %v8508
    %8587 = vmatmul.f32.gmra.mxu0 %v8474
    %v8588 = vpop.f32.mrf.mxu0
    %v8589 = vadd.f32 0.0, %v8588
    %8590 = vmatmul.f32.gmra.mxu0 %v8475
    %v8591 = vpop.f32.mrf.mxu0
    %v8592 = vadd.f32 0.0, %v8591
    %8593 = vmatmul.f32.gmra.mxu0 %v8476
    %v8594 = vpop.f32.mrf.mxu0
    %v8595 = vadd.f32 0.0, %v8594
    %8596 = vmatmul.f32.gmra.mxu0 %v8477
    %v8597 = vpop.f32.mrf.mxu0
    %v8598 = vadd.f32 0.0, %v8597
    %8599 = vmatmul.f32.gmra.mxu0 %v8478
    %v8600 = vpop.f32.mrf.mxu0
    %v8601 = vadd.f32 0.0, %v8600
    %8602 = vmatmul.f32.gmra.mxu0 %v8479
    %v8603 = vpop.f32.mrf.mxu0
    %v8604 = vadd.f32 0.0, %v8603
    %8605 = vmatmul.f32.gmra.mxu0 %v8480
    %v8606 = vpop.f32.mrf.mxu0
    %v8607 = vadd.f32 0.0, %v8606
    %8608 = vmatmul.f32.gmra.mxu0 %v8481
    %v8609 = vpop.f32.mrf.mxu0
    %v8610 = vadd.f32 0.0, %v8609
    %8611 = vmatmul.f32.gmra.mxu0 %v8482
    %v8612 = vpop.f32.mrf.mxu0
    %v8613 = vadd.f32 0.0, %v8612
    %8614 = vmatmul.f32.gmra.mxu0 %v8483
    %v8615 = vpop.f32.mrf.mxu0
    %v8616 = vadd.f32 0.0, %v8615
    %8617 = vmatmul.f32.gmra.mxu0 %v8484
    %v8618 = vpop.f32.mrf.mxu0
    %v8619 = vadd.f32 0.0, %v8618
    %8620 = vmatmul.f32.gmra.mxu0 %v8485
    %v8621 = vpop.f32.mrf.mxu0
    %v8622 = vadd.f32 0.0, %v8621
    %8623 = vmatmul.f32.gmra.mxu0 %v8486
    %v8624 = vpop.f32.mrf.mxu0
    %v8625 = vadd.f32 0.0, %v8624
    %8626 = vmatmul.f32.gmra.mxu0 %v8487
    %v8627 = vpop.f32.mrf.mxu0
    %v8628 = vadd.f32 0.0, %v8627
    %8629 = vmatmul.f32.gmra.mxu0 %v8488
    %v8630 = vpop.f32.mrf.mxu0
    %v8631 = vadd.f32 0.0, %v8630
    %8632 = vmatmul.f32.gmra.mxu0 %v8489
    %v8633 = vpop.f32.mrf.mxu0
    %v8634 = vadd.f32 0.0, %v8633
    %8635 = vdwg.mxu0
    %v8636 = vsub.f32 %v8555, %v8589
    %v8637 = vsub.f32 %v8556, %v8592
    %v8638 = vsub.f32 %v8557, %v8595
    %v8639 = vsub.f32 %v8558, %v8598
    %v8640 = vsub.f32 %v8559, %v8601
    %v8641 = vsub.f32 %v8560, %v8604
    %v8642 = vsub.f32 %v8561, %v8607
    %v8643 = vsub.f32 %v8562, %v8610
    %v8644 = vsub.f32 %v8563, %v8613
    %v8645 = vsub.f32 %v8564, %v8616
    %v8646 = vsub.f32 %v8565, %v8619
    %v8647 = vsub.f32 %v8566, %v8622
    %v8648 = vsub.f32 %v8567, %v8625
    %v8649 = vsub.f32 %v8568, %v8628
    %v8650 = vsub.f32 %v8569, %v8631
    %v8651 = vsub.f32 %v8570, %v8634
    %8652 = vmatpush.msra.mxu0 %v8651
    %8653 = vmatpush.msra.mxu0 %v8650
    %8654 = vmatpush.msra.mxu0 %v8649
    %8655 = vmatpush.msra.mxu0 %v8648
    %8656 = vmatpush.msra.mxu0 %v8647
    %8657 = vmatpush.msra.mxu0 %v8646
    %8658 = vmatpush.msra.mxu0 %v8645
    %8659 = vmatpush.msra.mxu0 %v8644
    %8660 = vmatpush.msra.mxu0 %v8643
    %8661 = vmatpush.msra.mxu0 %v8642
    %8662 = vmatpush.msra.mxu0 %v8641
    %8663 = vmatpush.msra.mxu0 %v8640
    %8664 = vmatpush.msra.mxu0 %v8639
    %8665 = vmatpush.msra.mxu0 %v8638
    %8666 = vmatpush.msra.mxu0 %v8637
    %8667 = vmatpush.msra.mxu0 %v8636
    %8668 = vmatmul.f32.gmra.mxu0 %v6402
    %v8669 = vpop.f32.mrf.mxu0
    %v8670 = vadd.f32 0.0, %v8669
    %8671 = vmatmul.f32.gmra.mxu0 %v6403
    %v8672 = vpop.f32.mrf.mxu0
    %v8673 = vadd.f32 0.0, %v8672
    %8674 = vmatmul.f32.gmra.mxu0 %v6404
    %v8675 = vpop.f32.mrf.mxu0
    %v8676 = vadd.f32 0.0, %v8675
    %8677 = vmatmul.f32.gmra.mxu0 %v6405
    %v8678 = vpop.f32.mrf.mxu0
    %v8679 = vadd.f32 0.0, %v8678
    %8680 = vmatmul.f32.gmra.mxu0 %v6406
    %v8681 = vpop.f32.mrf.mxu0
    %v8682 = vadd.f32 0.0, %v8681
    %8683 = vmatmul.f32.gmra.mxu0 %v6407
    %v8684 = vpop.f32.mrf.mxu0
    %v8685 = vadd.f32 0.0, %v8684
    %8686 = vmatmul.f32.gmra.mxu0 %v6408
    %v8687 = vpop.f32.mrf.mxu0
    %v8688 = vadd.f32 0.0, %v8687
    %8689 = vmatmul.f32.gmra.mxu0 %v6409
    %v8690 = vpop.f32.mrf.mxu0
    %v8691 = vadd.f32 0.0, %v8690
    %8692 = vmatmul.f32.gmra.mxu0 %v6410
    %v8693 = vpop.f32.mrf.mxu0
    %v8694 = vadd.f32 0.0, %v8693
    %8695 = vmatmul.f32.gmra.mxu0 %v6411
    %v8696 = vpop.f32.mrf.mxu0
    %v8697 = vadd.f32 0.0, %v8696
    %8698 = vmatmul.f32.gmra.mxu0 %v6412
    %v8699 = vpop.f32.mrf.mxu0
    %v8700 = vadd.f32 0.0, %v8699
    %8701 = vmatmul.f32.gmra.mxu0 %v6413
    %v8702 = vpop.f32.mrf.mxu0
    %v8703 = vadd.f32 0.0, %v8702
    %8704 = vmatmul.f32.gmra.mxu0 %v6414
    %v8705 = vpop.f32.mrf.mxu0
    %v8706 = vadd.f32 0.0, %v8705
    %8707 = vmatmul.f32.gmra.mxu0 %v6415
    %v8708 = vpop.f32.mrf.mxu0
    %v8709 = vadd.f32 0.0, %v8708
    %8710 = vmatmul.f32.gmra.mxu0 %v6416
    %v8711 = vpop.f32.mrf.mxu0
    %v8712 = vadd.f32 0.0, %v8711
    %8713 = vmatmul.f32.gmra.mxu0 %v6417
    %v8714 = vpop.f32.mrf.mxu0
    %v8715 = vadd.f32 0.0, %v8714
    %8716 = vdwg.mxu0
    %v8717 = vmul.f32 %v8636, 2.0
    %v8718 = vmul.f32 %v8637, 2.0
    %v8719 = vmul.f32 %v8638, 2.0
    %v8720 = vmul.f32 %v8639, 2.0
    %v8721 = vmul.f32 %v8640, 2.0
    %v8722 = vmul.f32 %v8641, 2.0
    %v8723 = vmul.f32 %v8642, 2.0
    %v8724 = vmul.f32 %v8643, 2.0
    %v8725 = vmul.f32 %v8644, 2.0
    %v8726 = vmul.f32 %v8645, 2.0
    %v8727 = vmul.f32 %v8646, 2.0
    %v8728 = vmul.f32 %v8647, 2.0
    %v8729 = vmul.f32 %v8648, 2.0
    %v8730 = vmul.f32 %v8649, 2.0
    %v8731 = vmul.f32 %v8650, 2.0
    %v8732 = vmul.f32 %v8651, 2.0
    %8733 = vmatpush.msra.mxu0 %v8715
    %8734 = vmatpush.msra.mxu0 %v8712
    %8735 = vmatpush.msra.mxu0 %v8709
    %8736 = vmatpush.msra.mxu0 %v8706
    %8737 = vmatpush.msra.mxu0 %v8703
    %8738 = vmatpush.msra.mxu0 %v8700
    %8739 = vmatpush.msra.mxu0 %v8697
    %8740 = vmatpush.msra.mxu0 %v8694
    %8741 = vmatpush.msra.mxu0 %v8691
    %8742 = vmatpush.msra.mxu0 %v8688
    %8743 = vmatpush.msra.mxu0 %v8685
    %8744 = vmatpush.msra.mxu0 %v8682
    %8745 = vmatpush.msra.mxu0 %v8679
    %8746 = vmatpush.msra.mxu0 %v8676
    %8747 = vmatpush.msra.mxu0 %v8673
    %8748 = vmatpush.msra.mxu0 %v8670
    %8749 = vmatmul.f32.gmra.mxu0 %v8636
    %v8750 = vpop.f32.mrf.mxu0
    %v8751 = vadd.f32 0.0, %v8750
    %8752 = vmatmul.f32.gmra.mxu0 %v8637
    %v8753 = vpop.f32.mrf.mxu0
    %v8754 = vadd.f32 0.0, %v8753
    %8755 = vmatmul.f32.gmra.mxu0 %v8638
    %v8756 = vpop.f32.mrf.mxu0
    %v8757 = vadd.f32 0.0, %v8756
    %8758 = vmatmul.f32.gmra.mxu0 %v8639
    %v8759 = vpop.f32.mrf.mxu0
    %v8760 = vadd.f32 0.0, %v8759
    %8761 = vmatmul.f32.gmra.mxu0 %v8640
    %v8762 = vpop.f32.mrf.mxu0
    %v8763 = vadd.f32 0.0, %v8762
    %8764 = vmatmul.f32.gmra.mxu0 %v8641
    %v8765 = vpop.f32.mrf.mxu0
    %v8766 = vadd.f32 0.0, %v8765
    %8767 = vmatmul.f32.gmra.mxu0 %v8642
    %v8768 = vpop.f32.mrf.mxu0
    %v8769 = vadd.f32 0.0, %v8768
    %8770 = vmatmul.f32.gmra.mxu0 %v8643
    %v8771 = vpop.f32.mrf.mxu0
    %v8772 = vadd.f32 0.0, %v8771
    %8773 = vmatmul.f32.gmra.mxu0 %v8644
    %v8774 = vpop.f32.mrf.mxu0
    %v8775 = vadd.f32 0.0, %v8774
    %8776 = vmatmul.f32.gmra.mxu0 %v8645
    %v8777 = vpop.f32.mrf.mxu0
    %v8778 = vadd.f32 0.0, %v8777
    %8779 = vmatmul.f32.gmra.mxu0 %v8646
    %v8780 = vpop.f32.mrf.mxu0
    %v8781 = vadd.f32 0.0, %v8780
    %8782 = vmatmul.f32.gmra.mxu0 %v8647
    %v8783 = vpop.f32.mrf.mxu0
    %v8784 = vadd.f32 0.0, %v8783
    %8785 = vmatmul.f32.gmra.mxu0 %v8648
    %v8786 = vpop.f32.mrf.mxu0
    %v8787 = vadd.f32 0.0, %v8786
    %8788 = vmatmul.f32.gmra.mxu0 %v8649
    %v8789 = vpop.f32.mrf.mxu0
    %v8790 = vadd.f32 0.0, %v8789
    %8791 = vmatmul.f32.gmra.mxu0 %v8650
    %v8792 = vpop.f32.mrf.mxu0
    %v8793 = vadd.f32 0.0, %v8792
    %8794 = vmatmul.f32.gmra.mxu0 %v8651
    %v8795 = vpop.f32.mrf.mxu0
    %v8796 = vadd.f32 0.0, %v8795
    %8797 = vdwg.mxu0
    %v8798 = vsub.f32 %v8717, %v8751
    %v8799 = vsub.f32 %v8718, %v8754
    %v8800 = vsub.f32 %v8719, %v8757
    %v8801 = vsub.f32 %v8720, %v8760
    %v8802 = vsub.f32 %v8721, %v8763
    %v8803 = vsub.f32 %v8722, %v8766
    %v8804 = vsub.f32 %v8723, %v8769
    %v8805 = vsub.f32 %v8724, %v8772
    %v8806 = vsub.f32 %v8725, %v8775
    %v8807 = vsub.f32 %v8726, %v8778
    %v8808 = vsub.f32 %v8727, %v8781
    %v8809 = vsub.f32 %v8728, %v8784
    %v8810 = vsub.f32 %v8729, %v8787
    %v8811 = vsub.f32 %v8730, %v8790
    %v8812 = vsub.f32 %v8731, %v8793
    %v8813 = vsub.f32 %v8732, %v8796
    %8814 = vmatpush.msra.mxu0 %v8813
    %8815 = vmatpush.msra.mxu0 %v8812
    %8816 = vmatpush.msra.mxu0 %v8811
    %8817 = vmatpush.msra.mxu0 %v8810
    %8818 = vmatpush.msra.mxu0 %v8809
    %8819 = vmatpush.msra.mxu0 %v8808
    %8820 = vmatpush.msra.mxu0 %v8807
    %8821 = vmatpush.msra.mxu0 %v8806
    %8822 = vmatpush.msra.mxu0 %v8805
    %8823 = vmatpush.msra.mxu0 %v8804
    %8824 = vmatpush.msra.mxu0 %v8803
    %8825 = vmatpush.msra.mxu0 %v8802
    %8826 = vmatpush.msra.mxu0 %v8801
    %8827 = vmatpush.msra.mxu0 %v8800
    %8828 = vmatpush.msra.mxu0 %v8799
    %8829 = vmatpush.msra.mxu0 %v8798
    %8830 = vmatmul.f32.gmra.mxu0 %v6402
    %v8831 = vpop.f32.mrf.mxu0
    %v8832 = vadd.f32 0.0, %v8831
    %8833 = vmatmul.f32.gmra.mxu0 %v6403
    %v8834 = vpop.f32.mrf.mxu0
    %v8835 = vadd.f32 0.0, %v8834
    %8836 = vmatmul.f32.gmra.mxu0 %v6404
    %v8837 = vpop.f32.mrf.mxu0
    %v8838 = vadd.f32 0.0, %v8837
    %8839 = vmatmul.f32.gmra.mxu0 %v6405
    %v8840 = vpop.f32.mrf.mxu0
    %v8841 = vadd.f32 0.0, %v8840
    %8842 = vmatmul.f32.gmra.mxu0 %v6406
    %v8843 = vpop.f32.mrf.mxu0
    %v8844 = vadd.f32 0.0, %v8843
    %8845 = vmatmul.f32.gmra.mxu0 %v6407
    %v8846 = vpop.f32.mrf.mxu0
    %v8847 = vadd.f32 0.0, %v8846
    %8848 = vmatmul.f32.gmra.mxu0 %v6408
    %v8849 = vpop.f32.mrf.mxu0
    %v8850 = vadd.f32 0.0, %v8849
    %8851 = vmatmul.f32.gmra.mxu0 %v6409
    %v8852 = vpop.f32.mrf.mxu0
    %v8853 = vadd.f32 0.0, %v8852
    %8854 = vmatmul.f32.gmra.mxu0 %v6410
    %v8855 = vpop.f32.mrf.mxu0
    %v8856 = vadd.f32 0.0, %v8855
    %8857 = vmatmul.f32.gmra.mxu0 %v6411
    %v8858 = vpop.f32.mrf.mxu0
    %v8859 = vadd.f32 0.0, %v8858
    %8860 = vmatmul.f32.gmra.mxu0 %v6412
    %v8861 = vpop.f32.mrf.mxu0
    %v8862 = vadd.f32 0.0, %v8861
    %8863 = vmatmul.f32.gmra.mxu0 %v6413
    %v8864 = vpop.f32.mrf.mxu0
    %v8865 = vadd.f32 0.0, %v8864
    %8866 = vmatmul.f32.gmra.mxu0 %v6414
    %v8867 = vpop.f32.mrf.mxu0
    %v8868 = vadd.f32 0.0, %v8867
    %8869 = vmatmul.f32.gmra.mxu0 %v6415
    %v8870 = vpop.f32.mrf.mxu0
    %v8871 = vadd.f32 0.0, %v8870
    %8872 = vmatmul.f32.gmra.mxu0 %v6416
    %v8873 = vpop.f32.mrf.mxu0
    %v8874 = vadd.f32 0.0, %v8873
    %8875 = vmatmul.f32.gmra.mxu0 %v6417
    %v8876 = vpop.f32.mrf.mxu0
    %v8877 = vadd.f32 0.0, %v8876
    %8878 = vdwg.mxu0
    %v8879 = vmul.f32 %v8798, 2.0
    %v8880 = vmul.f32 %v8799, 2.0
    %v8881 = vmul.f32 %v8800, 2.0
    %v8882 = vmul.f32 %v8801, 2.0
    %v8883 = vmul.f32 %v8802, 2.0
    %v8884 = vmul.f32 %v8803, 2.0
    %v8885 = vmul.f32 %v8804, 2.0
    %v8886 = vmul.f32 %v8805, 2.0
    %v8887 = vmul.f32 %v8806, 2.0
    %v8888 = vmul.f32 %v8807, 2.0
    %v8889 = vmul.f32 %v8808, 2.0
    %v8890 = vmul.f32 %v8809, 2.0
    %v8891 = vmul.f32 %v8810, 2.0
    %v8892 = vmul.f32 %v8811, 2.0
    %v8893 = vmul.f32 %v8812, 2.0
    %v8894 = vmul.f32 %v8813, 2.0
    %8895 = vmatpush.msra.mxu0 %v8877
    %8896 = vmatpush.msra.mxu0 %v8874
    %8897 = vmatpush.msra.mxu0 %v8871
    %8898 = vmatpush.msra.mxu0 %v8868
    %8899 = vmatpush.msra.mxu0 %v8865
    %8900 = vmatpush.msra.mxu0 %v8862
    %8901 = vmatpush.msra.mxu0 %v8859
    %8902 = vmatpush.msra.mxu0 %v8856
    %8903 = vmatpush.msra.mxu0 %v8853
    %8904 = vmatpush.msra.mxu0 %v8850
    %8905 = vmatpush.msra.mxu0 %v8847
    %8906 = vmatpush.msra.mxu0 %v8844
    %8907 = vmatpush.msra.mxu0 %v8841
    %8908 = vmatpush.msra.mxu0 %v8838
    %8909 = vmatpush.msra.mxu0 %v8835
    %8910 = vmatpush.msra.mxu0 %v8832
    %8911 = vmatmul.f32.gmra.mxu0 %v8798
    %v8912 = vpop.f32.mrf.mxu0
    %v8913 = vadd.f32 0.0, %v8912
    %8914 = vmatmul.f32.gmra.mxu0 %v8799
    %v8915 = vpop.f32.mrf.mxu0
    %v8916 = vadd.f32 0.0, %v8915
    %8917 = vmatmul.f32.gmra.mxu0 %v8800
    %v8918 = vpop.f32.mrf.mxu0
    %v8919 = vadd.f32 0.0, %v8918
    %8920 = vmatmul.f32.gmra.mxu0 %v8801
    %v8921 = vpop.f32.mrf.mxu0
    %v8922 = vadd.f32 0.0, %v8921
    %8923 = vmatmul.f32.gmra.mxu0 %v8802
    %v8924 = vpop.f32.mrf.mxu0
    %v8925 = vadd.f32 0.0, %v8924
    %8926 = vmatmul.f32.gmra.mxu0 %v8803
    %v8927 = vpop.f32.mrf.mxu0
    %v8928 = vadd.f32 0.0, %v8927
    %8929 = vmatmul.f32.gmra.mxu0 %v8804
    %v8930 = vpop.f32.mrf.mxu0
    %v8931 = vadd.f32 0.0, %v8930
    %8932 = vmatmul.f32.gmra.mxu0 %v8805
    %v8933 = vpop.f32.mrf.mxu0
    %v8934 = vadd.f32 0.0, %v8933
    %8935 = vmatmul.f32.gmra.mxu0 %v8806
    %v8936 = vpop.f32.mrf.mxu0
    %v8937 = vadd.f32 0.0, %v8936
    %8938 = vmatmul.f32.gmra.mxu0 %v8807
    %v8939 = vpop.f32.mrf.mxu0
    %v8940 = vadd.f32 0.0, %v8939
    %8941 = vmatmul.f32.gmra.mxu0 %v8808
    %v8942 = vpop.f32.mrf.mxu0
    %v8943 = vadd.f32 0.0, %v8942
    %8944 = vmatmul.f32.gmra.mxu0 %v8809
    %v8945 = vpop.f32.mrf.mxu0
    %v8946 = vadd.f32 0.0, %v8945
    %8947 = vmatmul.f32.gmra.mxu0 %v8810
    %v8948 = vpop.f32.mrf.mxu0
    %v8949 = vadd.f32 0.0, %v8948
    %8950 = vmatmul.f32.gmra.mxu0 %v8811
    %v8951 = vpop.f32.mrf.mxu0
    %v8952 = vadd.f32 0.0, %v8951
    %8953 = vmatmul.f32.gmra.mxu0 %v8812
    %v8954 = vpop.f32.mrf.mxu0
    %v8955 = vadd.f32 0.0, %v8954
    %8956 = vmatmul.f32.gmra.mxu0 %v8813
    %v8957 = vpop.f32.mrf.mxu0
    %v8958 = vadd.f32 0.0, %v8957
    %8959 = vdwg.mxu0
    %v8960 = vsub.f32 %v8879, %v8913
    %v8961 = vsub.f32 %v8880, %v8916
    %v8962 = vsub.f32 %v8881, %v8919
    %v8963 = vsub.f32 %v8882, %v8922
    %v8964 = vsub.f32 %v8883, %v8925
    %v8965 = vsub.f32 %v8884, %v8928
    %v8966 = vsub.f32 %v8885, %v8931
    %v8967 = vsub.f32 %v8886, %v8934
    %v8968 = vsub.f32 %v8887, %v8937
    %v8969 = vsub.f32 %v8888, %v8940
    %v8970 = vsub.f32 %v8889, %v8943
    %v8971 = vsub.f32 %v8890, %v8946
    %v8972 = vsub.f32 %v8891, %v8949
    %v8973 = vsub.f32 %v8892, %v8952
    %v8974 = vsub.f32 %v8893, %v8955
    %v8975 = vsub.f32 %v8894, %v8958
    %8976 = vmatpush.msra.mxu0 %v8975
    %8977 = vmatpush.msra.mxu0 %v8974
    %8978 = vmatpush.msra.mxu0 %v8973
    %8979 = vmatpush.msra.mxu0 %v8972
    %8980 = vmatpush.msra.mxu0 %v8971
    %8981 = vmatpush.msra.mxu0 %v8970
    %8982 = vmatpush.msra.mxu0 %v8969
    %8983 = vmatpush.msra.mxu0 %v8968
    %8984 = vmatpush.msra.mxu0 %v8967
    %8985 = vmatpush.msra.mxu0 %v8966
    %8986 = vmatpush.msra.mxu0 %v8965
    %8987 = vmatpush.msra.mxu0 %v8964
    %8988 = vmatpush.msra.mxu0 %v8963
    %8989 = vmatpush.msra.mxu0 %v8962
    %8990 = vmatpush.msra.mxu0 %v8961
    %8991 = vmatpush.msra.mxu0 %v8960
    %8992 = vmatmul.f32.gmra.mxu0 %v6402
    %v8993 = vpop.f32.mrf.mxu0
    %v8994 = vadd.f32 0.0, %v8993
    %8995 = vmatmul.f32.gmra.mxu0 %v6403
    %v8996 = vpop.f32.mrf.mxu0
    %v8997 = vadd.f32 0.0, %v8996
    %8998 = vmatmul.f32.gmra.mxu0 %v6404
    %v8999 = vpop.f32.mrf.mxu0
    %v9000 = vadd.f32 0.0, %v8999
    %9001 = vmatmul.f32.gmra.mxu0 %v6405
    %v9002 = vpop.f32.mrf.mxu0
    %v9003 = vadd.f32 0.0, %v9002
    %9004 = vmatmul.f32.gmra.mxu0 %v6406
    %v9005 = vpop.f32.mrf.mxu0
    %v9006 = vadd.f32 0.0, %v9005
    %9007 = vmatmul.f32.gmra.mxu0 %v6407
    %v9008 = vpop.f32.mrf.mxu0
    %v9009 = vadd.f32 0.0, %v9008
    %9010 = vmatmul.f32.gmra.mxu0 %v6408
    %v9011 = vpop.f32.mrf.mxu0
    %v9012 = vadd.f32 0.0, %v9011
    %9013 = vmatmul.f32.gmra.mxu0 %v6409
    %v9014 = vpop.f32.mrf.mxu0
    %v9015 = vadd.f32 0.0, %v9014
    %9016 = vmatmul.f32.gmra.mxu0 %v6410
    %v9017 = vpop.f32.mrf.mxu0
    %v9018 = vadd.f32 0.0, %v9017
    %9019 = vmatmul.f32.gmra.mxu0 %v6411
    %v9020 = vpop.f32.mrf.mxu0
    %v9021 = vadd.f32 0.0, %v9020
    %9022 = vmatmul.f32.gmra.mxu0 %v6412
    %v9023 = vpop.f32.mrf.mxu0
    %v9024 = vadd.f32 0.0, %v9023
    %9025 = vmatmul.f32.gmra.mxu0 %v6413
    %v9026 = vpop.f32.mrf.mxu0
    %v9027 = vadd.f32 0.0, %v9026
    %9028 = vmatmul.f32.gmra.mxu0 %v6414
    %v9029 = vpop.f32.mrf.mxu0
    %v9030 = vadd.f32 0.0, %v9029
    %9031 = vmatmul.f32.gmra.mxu0 %v6415
    %v9032 = vpop.f32.mrf.mxu0
    %v9033 = vadd.f32 0.0, %v9032
    %9034 = vmatmul.f32.gmra.mxu0 %v6416
    %v9035 = vpop.f32.mrf.mxu0
    %v9036 = vadd.f32 0.0, %v9035
    %9037 = vmatmul.f32.gmra.mxu0 %v6417
    %v9038 = vpop.f32.mrf.mxu0
    %v9039 = vadd.f32 0.0, %v9038
    %9040 = vdwg.mxu0
    %v9041 = vmul.f32 %v8960, 2.0
    %v9042 = vmul.f32 %v8961, 2.0
    %v9043 = vmul.f32 %v8962, 2.0
    %v9044 = vmul.f32 %v8963, 2.0
    %v9045 = vmul.f32 %v8964, 2.0
    %v9046 = vmul.f32 %v8965, 2.0
    %v9047 = vmul.f32 %v8966, 2.0
    %v9048 = vmul.f32 %v8967, 2.0
    %v9049 = vmul.f32 %v8968, 2.0
    %v9050 = vmul.f32 %v8969, 2.0
    %v9051 = vmul.f32 %v8970, 2.0
    %v9052 = vmul.f32 %v8971, 2.0
    %v9053 = vmul.f32 %v8972, 2.0
    %v9054 = vmul.f32 %v8973, 2.0
    %v9055 = vmul.f32 %v8974, 2.0
    %v9056 = vmul.f32 %v8975, 2.0
    %9057 = vmatpush.msra.mxu0 %v9039
    %9058 = vmatpush.msra.mxu0 %v9036
    %9059 = vmatpush.msra.mxu0 %v9033
    %9060 = vmatpush.msra.mxu0 %v9030
    %9061 = vmatpush.msra.mxu0 %v9027
    %9062 = vmatpush.msra.mxu0 %v9024
    %9063 = vmatpush.msra.mxu0 %v9021
    %9064 = vmatpush.msra.mxu0 %v9018
    %9065 = vmatpush.msra.mxu0 %v9015
    %9066 = vmatpush.msra.mxu0 %v9012
    %9067 = vmatpush.msra.mxu0 %v9009
    %9068 = vmatpush.msra.mxu0 %v9006
    %9069 = vmatpush.msra.mxu0 %v9003
    %9070 = vmatpush.msra.mxu0 %v9000
    %9071 = vmatpush.msra.mxu0 %v8997
    %9072 = vmatpush.msra.mxu0 %v8994
    %9073 = vmatmul.f32.gmra.mxu0 %v8960
    %v9074 = vpop.f32.mrf.mxu0
    %v9075 = vadd.f32 0.0, %v9074
    %9076 = vmatmul.f32.gmra.mxu0 %v8961
    %v9077 = vpop.f32.mrf.mxu0
    %v9078 = vadd.f32 0.0, %v9077
    %9079 = vmatmul.f32.gmra.mxu0 %v8962
    %v9080 = vpop.f32.mrf.mxu0
    %v9081 = vadd.f32 0.0, %v9080
    %9082 = vmatmul.f32.gmra.mxu0 %v8963
    %v9083 = vpop.f32.mrf.mxu0
    %v9084 = vadd.f32 0.0, %v9083
    %9085 = vmatmul.f32.gmra.mxu0 %v8964
    %v9086 = vpop.f32.mrf.mxu0
    %v9087 = vadd.f32 0.0, %v9086
    %9088 = vmatmul.f32.gmra.mxu0 %v8965
    %v9089 = vpop.f32.mrf.mxu0
    %v9090 = vadd.f32 0.0, %v9089
    %9091 = vmatmul.f32.gmra.mxu0 %v8966
    %v9092 = vpop.f32.mrf.mxu0
    %v9093 = vadd.f32 0.0, %v9092
    %9094 = vmatmul.f32.gmra.mxu0 %v8967
    %v9095 = vpop.f32.mrf.mxu0
    %v9096 = vadd.f32 0.0, %v9095
    %9097 = vmatmul.f32.gmra.mxu0 %v8968
    %v9098 = vpop.f32.mrf.mxu0
    %v9099 = vadd.f32 0.0, %v9098
    %9100 = vmatmul.f32.gmra.mxu0 %v8969
    %v9101 = vpop.f32.mrf.mxu0
    %v9102 = vadd.f32 0.0, %v9101
    %9103 = vmatmul.f32.gmra.mxu0 %v8970
    %v9104 = vpop.f32.mrf.mxu0
    %v9105 = vadd.f32 0.0, %v9104
    %9106 = vmatmul.f32.gmra.mxu0 %v8971
    %v9107 = vpop.f32.mrf.mxu0
    %v9108 = vadd.f32 0.0, %v9107
    %9109 = vmatmul.f32.gmra.mxu0 %v8972
    %v9110 = vpop.f32.mrf.mxu0
    %v9111 = vadd.f32 0.0, %v9110
    %9112 = vmatmul.f32.gmra.mxu0 %v8973
    %v9113 = vpop.f32.mrf.mxu0
    %v9114 = vadd.f32 0.0, %v9113
    %9115 = vmatmul.f32.gmra.mxu0 %v8974
    %v9116 = vpop.f32.mrf.mxu0
    %v9117 = vadd.f32 0.0, %v9116
    %9118 = vmatmul.f32.gmra.mxu0 %v8975
    %v9119 = vpop.f32.mrf.mxu0
    %v9120 = vadd.f32 0.0, %v9119
    %9121 = vdwg.mxu0
    %v9122 = vsub.f32 %v9041, %v9075
    %v9123 = vsub.f32 %v9042, %v9078
    %v9124 = vsub.f32 %v9043, %v9081
    %v9125 = vsub.f32 %v9044, %v9084
    %v9126 = vsub.f32 %v9045, %v9087
    %v9127 = vsub.f32 %v9046, %v9090
    %v9128 = vsub.f32 %v9047, %v9093
    %v9129 = vsub.f32 %v9048, %v9096
    %v9130 = vsub.f32 %v9049, %v9099
    %v9131 = vsub.f32 %v9050, %v9102
    %v9132 = vsub.f32 %v9051, %v9105
    %v9133 = vsub.f32 %v9052, %v9108
    %v9134 = vsub.f32 %v9053, %v9111
    %v9135 = vsub.f32 %v9054, %v9114
    %v9136 = vsub.f32 %v9055, %v9117
    %v9137 = vsub.f32 %v9056, %v9120
    %9138 = vmatpush.msra.mxu0 %v9137
    %9139 = vmatpush.msra.mxu0 %v9136
    %9140 = vmatpush.msra.mxu0 %v9135
    %9141 = vmatpush.msra.mxu0 %v9134
    %9142 = vmatpush.msra.mxu0 %v9133
    %9143 = vmatpush.msra.mxu0 %v9132
    %9144 = vmatpush.msra.mxu0 %v9131
    %9145 = vmatpush.msra.mxu0 %v9130
    %9146 = vmatpush.msra.mxu0 %v9129
    %9147 = vmatpush.msra.mxu0 %v9128
    %9148 = vmatpush.msra.mxu0 %v9127
    %9149 = vmatpush.msra.mxu0 %v9126
    %9150 = vmatpush.msra.mxu0 %v9125
    %9151 = vmatpush.msra.mxu0 %v9124
    %9152 = vmatpush.msra.mxu0 %v9123
    %9153 = vmatpush.msra.mxu0 %v9122
    %9154 = vmatmul.f32.gmra.mxu0 %v6303
    %v9155 = vpop.f32.mrf.mxu0
    %v9156 = vadd.f32 0.0, %v9155
    %9157 = vdwg.mxu0
    %v9158 = vsub.f32 %v6187, %v9156
    %9159 = vst [vmem:[#allocation14] sm:$0xff] %v9158
    // Predicated region
    $region58: #{tpu_custom_call.1} parent=1 // pred_check
      _
    $region59: #{tpu_custom_call.1} parent=1 // pred_check_branch
      %9161 = sbr.rel (0) target = $region61
    $region60: #{tpu_custom_call.1} parent=1 // pred_region
      %9163 = vsyncadd [#allocation4], 0
      %s9165 = sshll.u32 [#allocation14], 4
      %s9166 = int_to_ptr.vmem [resolvable:$true] %s9165
      %s9167 = sshll.u32 %s7, 4
      %s9168 = int_to_ptr.hbm [resolvable:$true] %s9167
      %9170 = dma.vmem_to_hbm [thread:$0]  %s9166, 128, %s9168, [#allocation4]
    $region61: #{tpu_custom_call.1} parent=1 // pred_fallthru
      _
    // Predicated region
    $region62: #{tpu_custom_call.1} parent=1 // pred_check
      _
    $region63: #{tpu_custom_call.1} parent=1 // pred_check_branch
      %9172 = sbr.rel (0) target = $region65
    $region64: #{tpu_custom_call.1} parent=1 // pred_region
      %9174 = dma.done [#allocation4], 128
    $region65: #{tpu_custom_call.1} parent=1 // pred_fallthru
      _
    %9175 = vsyncpa [#allocation3], 1
    %9176 = vsyncpa [#allocation6], 1
    %9177 = vsyncpa [#allocation9], 1
    %9178 = vsyncpa [#allocation12], 1
    %9179 = vsyncpa [#allocation4], 1

</llo_original>
